<compile_context>
chip_gen: v6e
topology: v6e:2x2x1
jax: 0.10.0
libtpu: 0.0.40
codegen_flags: <defaults>
</compile_context>

<pallas_src>
import functools

import jax
import jax.numpy as jnp
from jax.experimental import pallas as pl
from jax.experimental.pallas import tpu as pltpu

# ---- scaled-down config (ViT-B/32 structure at toy dims) ---------------------
B = 2                              # batch
IMG = 32                           # image spatial size (square)
PATCH = 8                          # patch size
WIDTH = 64                         # transformer width
HEADS = 2                          # attention heads
DH = WIDTH // HEADS                # head dim
LAYERS = 2                         # transformer resblocks
SEQ = (IMG // PATCH) ** 2 + 1      # tokens incl. CLS
CLIP_DIM = 512                     # encoder output dim (== bottleneck in_features)
OUTPUT_DIM = 16                    # bottleneck output_dim
OUT_PAD = 128                      # lane-dense padded output width

EPS_LN = 1e-5
EPS_BN = 1e-5

_NBLK = 12                         # refs per transformer block in the fused kernel


# ================================ kernel ======================================

def _ln(x, g, b):
    mu = jnp.mean(x, axis=-1, keepdims=True)
    xc = x - mu
    var = jnp.mean(xc * xc, axis=-1, keepdims=True)
    return xc * jax.lax.rsqrt(var + EPS_LN) * g + b


def _forward_kernel(*refs):
    """Frozen ViT visual encoder + bottleneck MLP in a single kernel invocation."""
    patches_ref, convw_ref, clspos_ref, lnpre_g_ref, lnpre_b_ref = refs[:5]
    blocks = [refs[5 + i * _NBLK: 5 + (i + 1) * _NBLK] for i in range(LAYERS)]
    (lnpost_g_ref, lnpost_b_ref, proj_ref,
     w1, s1, t1, w2, s2, t2, w3, s3, t3, w4, b4, o_ref) = refs[5 + LAYERS * _NBLK:]

    bf16 = jnp.bfloat16
    scale = 1.0 / (DH ** 0.5)
    bsz = patches_ref.shape[0]

    cls_rows = []
    for bi in range(bsz):                            # static (trace-time) batch loop
        # patch embedding (conv1 as matmul); row 0 of `patches` is all-zero so the
        # CLS token comes entirely from host-folded (class_emb + pos_emb[0]).
        h = jnp.dot(patches_ref[bi], convw_ref[...],
                    preferred_element_type=jnp.float32) + clspos_ref[...]   # (S, W)
        h = _ln(h, lnpre_g_ref[...], lnpre_b_ref[...])

        for blk in blocks:
            (l1g, l1b, qkvw, qkvb, ow, ob, l2g, l2b, fcw, fcb, pw, pb) = blk

            # ---- multi-head self-attention (pre-LN), fused QKV matmul ----
            y = _ln(h, l1g[...], l1b[...]).astype(bf16)
            qkv = jnp.dot(y, qkvw[...],
                          preferred_element_type=jnp.float32) + qkvb[...]   # (S, 3W)
            qkv = qkv.astype(bf16)
            heads = []
            for hd in range(HEADS):                  # static head loop (lane slices)
                q = qkv[:, hd * DH:(hd + 1) * DH]
                k = qkv[:, WIDTH + hd * DH: WIDTH + (hd + 1) * DH]
                v = qkv[:, 2 * WIDTH + hd * DH: 2 * WIDTH + (hd + 1) * DH]
                s = jax.lax.dot_general(
                    q, k, (((1,), (1,)), ((), ())),  # q @ k^T without explicit .T
                    preferred_element_type=jnp.float32) * scale
                m = jnp.max(s, axis=-1, keepdims=True)
                p = jnp.exp(s - m)
                p = p * pl.reciprocal(jnp.sum(p, axis=-1, keepdims=True),
                                      approx=True)
                heads.append(jnp.dot(p.astype(bf16), v,
                                     preferred_element_type=jnp.float32))   # (S, DH)
            attn = jnp.concatenate(heads, axis=-1).astype(bf16)             # (S, W)
            h = h + jnp.dot(attn, ow[...],
                            preferred_element_type=jnp.float32) + ob[...]

            # ---- MLP (pre-LN, QuickGELU) ----
            y = _ln(h, l2g[...], l2b[...]).astype(bf16)
            g = jnp.dot(y, fcw[...], preferred_element_type=jnp.float32) + fcb[...]
            g = g * (1.0 / (1.0 + jnp.exp(-1.702 * g)))                     # QuickGELU
            h = h + jnp.dot(g.astype(bf16), pw[...],
                            preferred_element_type=jnp.float32) + pb[...]

        cls_rows.append(h[0:1, :])                   # CLS token, (1, W)

    cls_tok = jnp.concatenate(cls_rows, axis=0)                             # (B, W)
    cls_tok = _ln(cls_tok, lnpost_g_ref[...], lnpost_b_ref[...])
    feats = jnp.dot(cls_tok.astype(bf16), proj_ref[...],
                    preferred_element_type=jnp.float32)                     # (B, 512)

    # ---- bottleneck: (Linear(no bias) -> BN(folded) -> ReLU -> Dropout) x3 ----
    def stage(x, w_ref, s_ref, t_ref):
        x = jnp.dot(x.astype(bf16), w_ref[...], preferred_element_type=jnp.float32)
        return jnp.maximum(x * s_ref[...] + t_ref[...], 0.0)   # Dropout = identity

    hb = stage(feats, w1, s1, t1)
    hb = stage(hb, w2, s2, t2)
    hb = stage(hb, w3, s3, t3)
    o_ref[...] = jnp.dot(hb.astype(bf16), w4[...],
                         preferred_element_type=jnp.float32) + b4[...]      # (B, 128)


# ============================== kernel wrapper ================================

def _zero_idx(i, *, rank):
    return (0,) * rank


def _run(kernel, out_shape, *args):
    """Single-invocation pallas_call; every operand is one full-array VMEM block."""
    return pl.pallas_call(
        kernel,
        grid=(1,),
        out_shape=jax.ShapeDtypeStruct(out_shape, jnp.float32),
        in_specs=[pl.BlockSpec(a.shape, functools.partial(_zero_idx, rank=a.ndim))
                  for a in args],
        out_specs=pl.BlockSpec(out_shape,
                               functools.partial(_zero_idx, rank=len(out_shape))),
        compiler_params=pltpu.CompilerParams(dimension_semantics=("arbitrary",)),
    )(*args)


def forward(prep, x_nchw):
    enc, bott = prep["encoder"], prep["bottleneck"]
    bsz, c, hh, ww = x_nchw.shape
    p = PATCH
    gh, gw = hh // p, ww // p
    l = gh * gw
    # patch extraction = conv1 (stride=patch, no bias) input layout; tiny XLA glue
    patches = (x_nchw.reshape(bsz, c, gh, p, gw, p)
               .transpose(0, 2, 4, 1, 3, 5)
               .reshape(bsz, l, c * p * p))
    # prepend an all-zero row so the conv-matmul output row 0 is zero (CLS slot)
    patches = jnp.pad(patches, ((0, 0), (1, 0), (0, 0))).astype(jnp.bfloat16)

    args = [patches, enc["conv_w"], enc["cls_pos"], enc["ln_pre_g"], enc["ln_pre_b"]]
    for blk in enc["blocks"]:
        args += [blk[k] for k in ("ln1_g", "ln1_b", "qkv_w", "qkv_b", "out_w",
                                  "out_b", "ln2_g", "ln2_b", "fc_w", "fc_b",
                                  "pw", "pb")]
    args += [enc["ln_post_g"], enc["ln_post_b"], enc["proj"]]
    args += [bott[k] for k in ("w1", "s1", "t1", "w2", "s2", "t2",
                               "w3", "s3", "t3", "w4", "b4")]
    out = _run(_forward_kernel, (bsz, OUT_PAD), *args)
    return out[:, :OUTPUT_DIM]                 # lane-dense store, slice outside kernel


# ============================== parameter init ================================

def init_params(key):
    keys = iter(jax.random.split(key, 256))

    def nrm(shape, scale=0.02):
        return (scale * jax.random.normal(next(keys), shape)).astype(jnp.float32)

    def uni(shape, lo, hi):
        return jax.random.uniform(next(keys), shape, jnp.float32, lo, hi)

    w, p = WIDTH, PATCH
    l = (IMG // PATCH) ** 2
    params = {
        "conv1_w": nrm((3 * p * p, w)),
        "class_emb": nrm((w,)),
        "pos_emb": nrm((l + 1, w)),
        "ln_pre_g": uni((w,), 0.9, 1.1), "ln_pre_b": nrm((w,)),
        "ln_post_g": uni((w,), 0.9, 1.1), "ln_post_b": nrm((w,)),
        "proj": nrm((w, CLIP_DIM)),
        "blocks": [],
    }
    for _ in range(LAYERS):
        params["blocks"].append({
            "ln1_g": uni((w,), 0.9, 1.1), "ln1_b": nrm((w,)),
            "qkv_w": nrm((w, 3 * w)), "qkv_b": nrm((3 * w,)),
            "out_w": nrm((w, w)), "out_b": nrm((w,)),
            "ln2_g": uni((w,), 0.9, 1.1), "ln2_b": nrm((w,)),
            "fc_w": nrm((w, 4 * w)), "fc_b": nrm((4 * w,)),
            "proj_w": nrm((4 * w, w)), "proj_b": nrm((w,)),
        })

    d1, d2 = CLIP_DIM // 2, 1024
    params["bottleneck"] = {
        "w1": nrm((CLIP_DIM, d1)),
        "bn1_g": uni((d1,), 0.9, 1.1), "bn1_b": nrm((d1,)),
        "bn1_m": nrm((d1,)), "bn1_v": uni((d1,), 0.8, 1.2),
        "w2": nrm((d1, d1)),
        "bn2_g": uni((d1,), 0.9, 1.1), "bn2_b": nrm((d1,)),
        "bn2_m": nrm((d1,)), "bn2_v": uni((d1,), 0.8, 1.2),
        "w3": nrm((d1, d2)),
        "bn3_g": uni((d2,), 0.9, 1.1), "bn3_b": nrm((d2,)),
        "bn3_m": nrm((d2,)), "bn3_v": uni((d2,), 0.8, 1.2),
        "w4": nrm((d2, OUTPUT_DIM)), "b4": nrm((OUTPUT_DIM,)),
    }
    return params


def prepare_params(p):
    """One-time host-side prep: fold class_emb into pos_emb, keep QKV / out-proj
    weights combined (one MXU matmul each), fold BN running stats into
    scale/shift, pad the final output weight to a 128-lane-dense slab, and cast
    all MXU weights to bf16 (LN/BN/bias params stay f32, as (1, N) rows)."""
    f32, bf16 = jnp.float32, jnp.bfloat16
    row = lambda a: a.reshape(1, -1).astype(f32)

    enc = {
        "conv_w": p["conv1_w"].astype(bf16),
        "cls_pos": p["pos_emb"].at[0].add(p["class_emb"]).astype(f32),
        "ln_pre_g": row(p["ln_pre_g"]), "ln_pre_b": row(p["ln_pre_b"]),
        "ln_post_g": row(p["ln_post_g"]), "ln_post_b": row(p["ln_post_b"]),
        "proj": p["proj"].astype(bf16),
        "blocks": [],
    }
    for blk in p["blocks"]:
        enc["blocks"].append({
            "ln1_g": row(blk["ln1_g"]), "ln1_b": row(blk["ln1_b"]),
            "qkv_w": blk["qkv_w"].astype(bf16),       # (W, 3W), heads contiguous
            "qkv_b": row(blk["qkv_b"]),               # (1, 3W)
            "out_w": blk["out_w"].astype(bf16),       # (W, W)
            "out_b": row(blk["out_b"]),
            "ln2_g": row(blk["ln2_g"]), "ln2_b": row(blk["ln2_b"]),
            "fc_w": blk["fc_w"].astype(bf16), "fc_b": row(blk["fc_b"]),
            "pw": blk["proj_w"].astype(bf16), "pb": row(blk["proj_b"]),
        })

    bp = p["bottleneck"]

    def bn_fold(g, beta, m, v):
        sc = g * jax.lax.rsqrt(v + EPS_BN)
        return row(sc), row(beta - m * sc)

    s1, t1 = bn_fold(bp["bn1_g"], bp["bn1_b"], bp["bn1_m"], bp["bn1_v"])
    s2, t2 = bn_fold(bp["bn2_g"], bp["bn2_b"], bp["bn2_m"], bp["bn2_v"])
    s3, t3 = bn_fold(bp["bn3_g"], bp["bn3_b"], bp["bn3_m"], bp["bn3_v"])
    d2 = bp["w3"].shape[1]
    w4p = jnp.zeros((d2, OUT_PAD), f32).at[:, :OUTPUT_DIM].set(bp["w4"]).astype(bf16)
    b4p = jnp.zeros((1, OUT_PAD), f32).at[:, :OUTPUT_DIM].set(bp["b4"][None, :])
    bott = {"w1": bp["w1"].astype(bf16), "s1": s1, "t1": t1,
            "w2": bp["w2"].astype(bf16), "s2": s2, "t2": t2,
            "w3": bp["w3"].astype(bf16), "s3": s3, "t3": t3,
            "w4": w4p, "b4": b4p}
    return {"encoder": enc, "bottleneck": bott}


# =================================== main =====================================

if __name__ == "__main__":
    key = jax.random.PRNGKey(0)
    pkey, xkey = jax.random.split(key)
    params = prepare_params(init_params(pkey))
    x = jax.random.normal(xkey, (B, 3, IMG, IMG), dtype=jnp.float32)   # NCHW input
    y = jax.jit(forward)(params, x)
    jax.block_until_ready(y)
    assert y.shape == (B, OUTPUT_DIM) and y.dtype == jnp.float32
    print("KERNEL_OK")
</pallas_src>

<mosaic_0001>
module attributes {stable_mosaic.version = 11 : i64} {
  func.func @_forward_kernel(%arg0: i32, %arg1: memref<2x17x192xbf16, #tpu.memory_space<vmem>>, %arg2: memref<192x64xbf16, #tpu.memory_space<vmem>>, %arg3: memref<17x64xf32, #tpu.memory_space<vmem>>, %arg4: memref<1x64xf32, #tpu.memory_space<vmem>>, %arg5: memref<1x64xf32, #tpu.memory_space<vmem>>, %arg6: memref<1x64xf32, #tpu.memory_space<vmem>>, %arg7: memref<1x64xf32, #tpu.memory_space<vmem>>, %arg8: memref<64x192xbf16, #tpu.memory_space<vmem>>, %arg9: memref<1x192xf32, #tpu.memory_space<vmem>>, %arg10: memref<64x64xbf16, #tpu.memory_space<vmem>>, %arg11: memref<1x64xf32, #tpu.memory_space<vmem>>, %arg12: memref<1x64xf32, #tpu.memory_space<vmem>>, %arg13: memref<1x64xf32, #tpu.memory_space<vmem>>, %arg14: memref<64x256xbf16, #tpu.memory_space<vmem>>, %arg15: memref<1x256xf32, #tpu.memory_space<vmem>>, %arg16: memref<256x64xbf16, #tpu.memory_space<vmem>>, %arg17: memref<1x64xf32, #tpu.memory_space<vmem>>, %arg18: memref<1x64xf32, #tpu.memory_space<vmem>>, %arg19: memref<1x64xf32, #tpu.memory_space<vmem>>, %arg20: memref<64x192xbf16, #tpu.memory_space<vmem>>, %arg21: memref<1x192xf32, #tpu.memory_space<vmem>>, %arg22: memref<64x64xbf16, #tpu.memory_space<vmem>>, %arg23: memref<1x64xf32, #tpu.memory_space<vmem>>, %arg24: memref<1x64xf32, #tpu.memory_space<vmem>>, %arg25: memref<1x64xf32, #tpu.memory_space<vmem>>, %arg26: memref<64x256xbf16, #tpu.memory_space<vmem>>, %arg27: memref<1x256xf32, #tpu.memory_space<vmem>>, %arg28: memref<256x64xbf16, #tpu.memory_space<vmem>>, %arg29: memref<1x64xf32, #tpu.memory_space<vmem>>, %arg30: memref<1x64xf32, #tpu.memory_space<vmem>>, %arg31: memref<1x64xf32, #tpu.memory_space<vmem>>, %arg32: memref<64x512xbf16, #tpu.memory_space<vmem>>, %arg33: memref<512x256xbf16, #tpu.memory_space<vmem>>, %arg34: memref<1x256xf32, #tpu.memory_space<vmem>>, %arg35: memref<1x256xf32, #tpu.memory_space<vmem>>, %arg36: memref<256x256xbf16, #tpu.memory_space<vmem>>, %arg37: memref<1x256xf32, #tpu.memory_space<vmem>>, %arg38: memref<1x256xf32, #tpu.memory_space<vmem>>, %arg39: memref<256x1024xbf16, #tpu.memory_space<vmem>>, %arg40: memref<1x1024xf32, #tpu.memory_space<vmem>>, %arg41: memref<1x1024xf32, #tpu.memory_space<vmem>>, %arg42: memref<1024x128xbf16, #tpu.memory_space<vmem>>, %arg43: memref<1x128xf32, #tpu.memory_space<vmem>>, %arg44: memref<2x128xf32, #tpu.memory_space<vmem>>) attributes {dimension_semantics = [#tpu.dimension_semantics<arbitrary>], iteration_bounds = array<i64: 1>, scalar_prefetch = 0 : i64, scratch_operands = 0 : i64, tpu.core_type = #tpu.core_type<tc>, window_params = [{pipeline_mode = #tpu.pipeline_mode<synchronous>, transform_indices = @transform_0, window_bounds = array<i64: 2, 17, 192>}, {pipeline_mode = #tpu.pipeline_mode<synchronous>, transform_indices = @transform_1, window_bounds = array<i64: 192, 64>}, {pipeline_mode = #tpu.pipeline_mode<synchronous>, transform_indices = @transform_2, window_bounds = array<i64: 17, 64>}, {pipeline_mode = #tpu.pipeline_mode<synchronous>, transform_indices = @transform_3, window_bounds = array<i64: 1, 64>}, {pipeline_mode = #tpu.pipeline_mode<synchronous>, transform_indices = @transform_4, window_bounds = array<i64: 1, 64>}, {pipeline_mode = #tpu.pipeline_mode<synchronous>, transform_indices = @transform_5, window_bounds = array<i64: 1, 64>}, {pipeline_mode = #tpu.pipeline_mode<synchronous>, transform_indices = @transform_6, window_bounds = array<i64: 1, 64>}, {pipeline_mode = #tpu.pipeline_mode<synchronous>, transform_indices = @transform_7, window_bounds = array<i64: 64, 192>}, {pipeline_mode = #tpu.pipeline_mode<synchronous>, transform_indices = @transform_8, window_bounds = array<i64: 1, 192>}, {pipeline_mode = #tpu.pipeline_mode<synchronous>, transform_indices = @transform_9, window_bounds = array<i64: 64, 64>}, {pipeline_mode = #tpu.pipeline_mode<synchronous>, transform_indices = @transform_10, window_bounds = array<i64: 1, 64>}, {pipeline_mode = #tpu.pipeline_mode<synchronous>, transform_indices = @transform_11, window_bounds = array<i64: 1, 64>}, {pipeline_mode = #tpu.pipeline_mode<synchronous>, transform_indices = @transform_12, window_bounds = array<i64: 1, 64>}, {pipeline_mode = #tpu.pipeline_mode<synchronous>, transform_indices = @transform_13, window_bounds = array<i64: 64, 256>}, {pipeline_mode = #tpu.pipeline_mode<synchronous>, transform_indices = @transform_14, window_bounds = array<i64: 1, 256>}, {pipeline_mode = #tpu.pipeline_mode<synchronous>, transform_indices = @transform_15, window_bounds = array<i64: 256, 64>}, {pipeline_mode = #tpu.pipeline_mode<synchronous>, transform_indices = @transform_16, window_bounds = array<i64: 1, 64>}, {pipeline_mode = #tpu.pipeline_mode<synchronous>, transform_indices = @transform_17, window_bounds = array<i64: 1, 64>}, {pipeline_mode = #tpu.pipeline_mode<synchronous>, transform_indices = @transform_18, window_bounds = array<i64: 1, 64>}, {pipeline_mode = #tpu.pipeline_mode<synchronous>, transform_indices = @transform_19, window_bounds = array<i64: 64, 192>}, {pipeline_mode = #tpu.pipeline_mode<synchronous>, transform_indices = @transform_20, window_bounds = array<i64: 1, 192>}, {pipeline_mode = #tpu.pipeline_mode<synchronous>, transform_indices = @transform_21, window_bounds = array<i64: 64, 64>}, {pipeline_mode = #tpu.pipeline_mode<synchronous>, transform_indices = @transform_22, window_bounds = array<i64: 1, 64>}, {pipeline_mode = #tpu.pipeline_mode<synchronous>, transform_indices = @transform_23, window_bounds = array<i64: 1, 64>}, {pipeline_mode = #tpu.pipeline_mode<synchronous>, transform_indices = @transform_24, window_bounds = array<i64: 1, 64>}, {pipeline_mode = #tpu.pipeline_mode<synchronous>, transform_indices = @transform_25, window_bounds = array<i64: 64, 256>}, {pipeline_mode = #tpu.pipeline_mode<synchronous>, transform_indices = @transform_26, window_bounds = array<i64: 1, 256>}, {pipeline_mode = #tpu.pipeline_mode<synchronous>, transform_indices = @transform_27, window_bounds = array<i64: 256, 64>}, {pipeline_mode = #tpu.pipeline_mode<synchronous>, transform_indices = @transform_28, window_bounds = array<i64: 1, 64>}, {pipeline_mode = #tpu.pipeline_mode<synchronous>, transform_indices = @transform_29, window_bounds = array<i64: 1, 64>}, {pipeline_mode = #tpu.pipeline_mode<synchronous>, transform_indices = @transform_30, window_bounds = array<i64: 1, 64>}, {pipeline_mode = #tpu.pipeline_mode<synchronous>, transform_indices = @transform_31, window_bounds = array<i64: 64, 512>}, {pipeline_mode = #tpu.pipeline_mode<synchronous>, transform_indices = @transform_32, window_bounds = array<i64: 512, 256>}, {pipeline_mode = #tpu.pipeline_mode<synchronous>, transform_indices = @transform_33, window_bounds = array<i64: 1, 256>}, {pipeline_mode = #tpu.pipeline_mode<synchronous>, transform_indices = @transform_34, window_bounds = array<i64: 1, 256>}, {pipeline_mode = #tpu.pipeline_mode<synchronous>, transform_indices = @transform_35, window_bounds = array<i64: 256, 256>}, {pipeline_mode = #tpu.pipeline_mode<synchronous>, transform_indices = @transform_36, window_bounds = array<i64: 1, 256>}, {pipeline_mode = #tpu.pipeline_mode<synchronous>, transform_indices = @transform_37, window_bounds = array<i64: 1, 256>}, {pipeline_mode = #tpu.pipeline_mode<synchronous>, transform_indices = @transform_38, window_bounds = array<i64: 256, 1024>}, {pipeline_mode = #tpu.pipeline_mode<synchronous>, transform_indices = @transform_39, window_bounds = array<i64: 1, 1024>}, {pipeline_mode = #tpu.pipeline_mode<synchronous>, transform_indices = @transform_40, window_bounds = array<i64: 1, 1024>}, {pipeline_mode = #tpu.pipeline_mode<synchronous>, transform_indices = @transform_41, window_bounds = array<i64: 1024, 128>}, {pipeline_mode = #tpu.pipeline_mode<synchronous>, transform_indices = @transform_42, window_bounds = array<i64: 1, 128>}, {pipeline_mode = #tpu.pipeline_mode<synchronous>, transform_indices = @transform_43, window_bounds = array<i64: 2, 128>}]} {
    %c0 = arith.constant 0 : index
    %c0_0 = arith.constant 0 : index
    %c0_1 = arith.constant 0 : index
    %0 = vector.load %arg1[%c0, %c0_0, %c0_1] : memref<2x17x192xbf16, #tpu.memory_space<vmem>>, vector<1x17x192xbf16>
    %1 = vector.shape_cast %0 : vector<1x17x192xbf16> to vector<17x192xbf16>
    %c0_2 = arith.constant 0 : index
    %c0_3 = arith.constant 0 : index
    %2 = vector.load %arg2[%c0_2, %c0_3] : memref<192x64xbf16, #tpu.memory_space<vmem>>, vector<192x64xbf16>
    %cst = arith.constant dense<0.000000e+00> : vector<17x64xf32>
    %3 = tpu.matmul %1, %2, %cst {dimension_numbers = #tpu.dot_dimension_numbers<[1], [0], [0], [1], [0, 0, 1, 1], [], []>} : vector<17x192xbf16>, vector<192x64xbf16>, vector<17x64xf32> -> vector<17x64xf32>
    %c0_4 = arith.constant 0 : index
    %c0_5 = arith.constant 0 : index
    %4 = vector.load %arg3[%c0_4, %c0_5] : memref<17x64xf32, #tpu.memory_space<vmem>>, vector<17x64xf32>
    %5 = arith.addf %3, %4 : vector<17x64xf32>
    %c0_6 = arith.constant 0 : index
    %c0_7 = arith.constant 0 : index
    %6 = vector.load %arg4[%c0_6, %c0_7] : memref<1x64xf32, #tpu.memory_space<vmem>>, vector<1x64xf32>
    %c0_8 = arith.constant 0 : index
    %c0_9 = arith.constant 0 : index
    %7 = vector.load %arg5[%c0_8, %c0_9] : memref<1x64xf32, #tpu.memory_space<vmem>>, vector<1x64xf32>
    %cst_10 = arith.constant dense<0.000000e+00> : vector<17xf32>
    %8 = vector.multi_reduction <add>, %5, %cst_10 [1] : vector<17x64xf32> to vector<17xf32>
    %9 = vector.shape_cast %8 : vector<17xf32> to vector<17x1xf32>
    %cst_11 = arith.constant 6.400000e+01 : f32
    %10 = vector.broadcast %cst_11 : f32 to vector<17x1xf32>
    %11 = arith.divf %9, %10 : vector<17x1xf32>
    %12 = vector.broadcast %11 : vector<17x1xf32> to vector<17x64xf32>
    %13 = arith.subf %5, %12 : vector<17x64xf32>
    %14 = arith.mulf %13, %13 : vector<17x64xf32>
    %cst_12 = arith.constant dense<0.000000e+00> : vector<17xf32>
    %15 = vector.multi_reduction <add>, %14, %cst_12 [1] : vector<17x64xf32> to vector<17xf32>
    %16 = vector.shape_cast %15 : vector<17xf32> to vector<17x1xf32>
    %cst_13 = arith.constant 6.400000e+01 : f32
    %17 = vector.broadcast %cst_13 : f32 to vector<17x1xf32>
    %18 = arith.divf %16, %17 : vector<17x1xf32>
    %cst_14 = arith.constant 9.99999974E-6 : f32
    %19 = vector.broadcast %cst_14 : f32 to vector<17x1xf32>
    %20 = arith.addf %18, %19 : vector<17x1xf32>
    %21 = math.rsqrt %20 : vector<17x1xf32>
    %22 = vector.broadcast %21 : vector<17x1xf32> to vector<17x64xf32>
    %23 = arith.mulf %13, %22 : vector<17x64xf32>
    %24 = vector.broadcast %6 : vector<1x64xf32> to vector<17x64xf32>
    %25 = arith.mulf %23, %24 : vector<17x64xf32>
    %26 = vector.broadcast %7 : vector<1x64xf32> to vector<17x64xf32>
    %27 = arith.addf %25, %26 : vector<17x64xf32>
    %c0_15 = arith.constant 0 : index
    %c0_16 = arith.constant 0 : index
    %28 = vector.load %arg6[%c0_15, %c0_16] : memref<1x64xf32, #tpu.memory_space<vmem>>, vector<1x64xf32>
    %c0_17 = arith.constant 0 : index
    %c0_18 = arith.constant 0 : index
    %29 = vector.load %arg7[%c0_17, %c0_18] : memref<1x64xf32, #tpu.memory_space<vmem>>, vector<1x64xf32>
    %cst_19 = arith.constant dense<0.000000e+00> : vector<17xf32>
    %30 = vector.multi_reduction <add>, %27, %cst_19 [1] : vector<17x64xf32> to vector<17xf32>
    %31 = vector.shape_cast %30 : vector<17xf32> to vector<17x1xf32>
    %cst_20 = arith.constant 6.400000e+01 : f32
    %32 = vector.broadcast %cst_20 : f32 to vector<17x1xf32>
    %33 = arith.divf %31, %32 : vector<17x1xf32>
    %34 = vector.broadcast %33 : vector<17x1xf32> to vector<17x64xf32>
    %35 = arith.subf %27, %34 : vector<17x64xf32>
    %36 = arith.mulf %35, %35 : vector<17x64xf32>
    %cst_21 = arith.constant dense<0.000000e+00> : vector<17xf32>
    %37 = vector.multi_reduction <add>, %36, %cst_21 [1] : vector<17x64xf32> to vector<17xf32>
    %38 = vector.shape_cast %37 : vector<17xf32> to vector<17x1xf32>
    %cst_22 = arith.constant 6.400000e+01 : f32
    %39 = vector.broadcast %cst_22 : f32 to vector<17x1xf32>
    %40 = arith.divf %38, %39 : vector<17x1xf32>
    %cst_23 = arith.constant 9.99999974E-6 : f32
    %41 = vector.broadcast %cst_23 : f32 to vector<17x1xf32>
    %42 = arith.addf %40, %41 : vector<17x1xf32>
    %43 = math.rsqrt %42 : vector<17x1xf32>
    %44 = vector.broadcast %43 : vector<17x1xf32> to vector<17x64xf32>
    %45 = arith.mulf %35, %44 : vector<17x64xf32>
    %46 = vector.broadcast %28 : vector<1x64xf32> to vector<17x64xf32>
    %47 = arith.mulf %45, %46 : vector<17x64xf32>
    %48 = vector.broadcast %29 : vector<1x64xf32> to vector<17x64xf32>
    %49 = arith.addf %47, %48 : vector<17x64xf32>
    %50 = arith.truncf %49 : vector<17x64xf32> to vector<17x64xbf16>
    %c0_24 = arith.constant 0 : index
    %c0_25 = arith.constant 0 : index
    %51 = vector.load %arg8[%c0_24, %c0_25] : memref<64x192xbf16, #tpu.memory_space<vmem>>, vector<64x192xbf16>
    %cst_26 = arith.constant dense<0.000000e+00> : vector<17x192xf32>
    %52 = tpu.matmul %50, %51, %cst_26 {dimension_numbers = #tpu.dot_dimension_numbers<[1], [0], [0], [1], [0, 0, 1, 1], [], []>} : vector<17x64xbf16>, vector<64x192xbf16>, vector<17x192xf32> -> vector<17x192xf32>
    %c0_27 = arith.constant 0 : index
    %c0_28 = arith.constant 0 : index
    %53 = vector.load %arg9[%c0_27, %c0_28] : memref<1x192xf32, #tpu.memory_space<vmem>>, vector<1x192xf32>
    %54 = vector.broadcast %53 : vector<1x192xf32> to vector<17x192xf32>
    %55 = arith.addf %52, %54 : vector<17x192xf32>
    %56 = arith.truncf %55 : vector<17x192xf32> to vector<17x192xbf16>
    %57 = vector.extract_strided_slice %56 {offsets = [0, 0], sizes = [17, 32], strides = [1, 1]} : vector<17x192xbf16> to vector<17x32xbf16>
    %58 = vector.extract_strided_slice %56 {offsets = [0, 64], sizes = [17, 32], strides = [1, 1]} : vector<17x192xbf16> to vector<17x32xbf16>
    %59 = vector.extract_strided_slice %56 {offsets = [0, 128], sizes = [17, 32], strides = [1, 1]} : vector<17x192xbf16> to vector<17x32xbf16>
    %cst_29 = arith.constant dense<0.000000e+00> : vector<17x17xf32>
    %60 = tpu.matmul %57, %58, %cst_29 {dimension_numbers = #tpu.dot_dimension_numbers<[1], [1], [0], [0], [0, 0, 1, 0], [], []>} : vector<17x32xbf16>, vector<17x32xbf16>, vector<17x17xf32> -> vector<17x17xf32>
    %cst_30 = arith.constant 0.176776692 : f32
    %61 = vector.broadcast %cst_30 : f32 to vector<17x17xf32>
    %62 = arith.mulf %60, %61 : vector<17x17xf32>
    %cst_31 = arith.constant dense<0xFF800000> : vector<17xf32>
    %63 = vector.multi_reduction <maximumf>, %62, %cst_31 [1] : vector<17x17xf32> to vector<17xf32>
    %64 = vector.shape_cast %63 : vector<17xf32> to vector<17x1xf32>
    %65 = vector.broadcast %64 : vector<17x1xf32> to vector<17x17xf32>
    %66 = arith.subf %62, %65 : vector<17x17xf32>
    %67 = math.exp %66 : vector<17x17xf32>
    %cst_32 = arith.constant dense<0.000000e+00> : vector<17xf32>
    %68 = vector.multi_reduction <add>, %67, %cst_32 [1] : vector<17x17xf32> to vector<17xf32>
    %69 = vector.shape_cast %68 : vector<17xf32> to vector<17x1xf32>
    %70 = tpu.reciprocal %69 {approx = true} : vector<17x1xf32> -> vector<17x1xf32>
    %71 = vector.broadcast %70 : vector<17x1xf32> to vector<17x17xf32>
    %72 = arith.mulf %67, %71 : vector<17x17xf32>
    %73 = arith.truncf %72 : vector<17x17xf32> to vector<17x17xbf16>
    %cst_33 = arith.constant dense<0.000000e+00> : vector<17x32xf32>
    %74 = tpu.matmul %73, %59, %cst_33 {dimension_numbers = #tpu.dot_dimension_numbers<[1], [0], [0], [1], [0, 0, 1, 1], [], []>} : vector<17x17xbf16>, vector<17x32xbf16>, vector<17x32xf32> -> vector<17x32xf32>
    %75 = vector.extract_strided_slice %56 {offsets = [0, 32], sizes = [17, 32], strides = [1, 1]} : vector<17x192xbf16> to vector<17x32xbf16>
    %76 = vector.extract_strided_slice %56 {offsets = [0, 96], sizes = [17, 32], strides = [1, 1]} : vector<17x192xbf16> to vector<17x32xbf16>
    %77 = vector.extract_strided_slice %56 {offsets = [0, 160], sizes = [17, 32], strides = [1, 1]} : vector<17x192xbf16> to vector<17x32xbf16>
    %cst_34 = arith.constant dense<0.000000e+00> : vector<17x17xf32>
    %78 = tpu.matmul %75, %76, %cst_34 {dimension_numbers = #tpu.dot_dimension_numbers<[1], [1], [0], [0], [0, 0, 1, 0], [], []>} : vector<17x32xbf16>, vector<17x32xbf16>, vector<17x17xf32> -> vector<17x17xf32>
    %cst_35 = arith.constant 0.176776692 : f32
    %79 = vector.broadcast %cst_35 : f32 to vector<17x17xf32>
    %80 = arith.mulf %78, %79 : vector<17x17xf32>
    %cst_36 = arith.constant dense<0xFF800000> : vector<17xf32>
    %81 = vector.multi_reduction <maximumf>, %80, %cst_36 [1] : vector<17x17xf32> to vector<17xf32>
    %82 = vector.shape_cast %81 : vector<17xf32> to vector<17x1xf32>
    %83 = vector.broadcast %82 : vector<17x1xf32> to vector<17x17xf32>
    %84 = arith.subf %80, %83 : vector<17x17xf32>
    %85 = math.exp %84 : vector<17x17xf32>
    %cst_37 = arith.constant dense<0.000000e+00> : vector<17xf32>
    %86 = vector.multi_reduction <add>, %85, %cst_37 [1] : vector<17x17xf32> to vector<17xf32>
    %87 = vector.shape_cast %86 : vector<17xf32> to vector<17x1xf32>
    %88 = tpu.reciprocal %87 {approx = true} : vector<17x1xf32> -> vector<17x1xf32>
    %89 = vector.broadcast %88 : vector<17x1xf32> to vector<17x17xf32>
    %90 = arith.mulf %85, %89 : vector<17x17xf32>
    %91 = arith.truncf %90 : vector<17x17xf32> to vector<17x17xbf16>
    %cst_38 = arith.constant dense<0.000000e+00> : vector<17x32xf32>
    %92 = tpu.matmul %91, %77, %cst_38 {dimension_numbers = #tpu.dot_dimension_numbers<[1], [0], [0], [1], [0, 0, 1, 1], [], []>} : vector<17x17xbf16>, vector<17x32xbf16>, vector<17x32xf32> -> vector<17x32xf32>
    %93 = tpu.concatenate %74, %92 in 1 : vector<17x32xf32>, vector<17x32xf32> -> vector<17x64xf32>
    %94 = arith.truncf %93 : vector<17x64xf32> to vector<17x64xbf16>
    %c0_39 = arith.constant 0 : index
    %c0_40 = arith.constant 0 : index
    %95 = vector.load %arg10[%c0_39, %c0_40] : memref<64x64xbf16, #tpu.memory_space<vmem>>, vector<64x64xbf16>
    %cst_41 = arith.constant dense<0.000000e+00> : vector<17x64xf32>
    %96 = tpu.matmul %94, %95, %cst_41 {dimension_numbers = #tpu.dot_dimension_numbers<[1], [0], [0], [1], [0, 0, 1, 1], [], []>} : vector<17x64xbf16>, vector<64x64xbf16>, vector<17x64xf32> -> vector<17x64xf32>
    %97 = arith.addf %27, %96 : vector<17x64xf32>
    %c0_42 = arith.constant 0 : index
    %c0_43 = arith.constant 0 : index
    %98 = vector.load %arg11[%c0_42, %c0_43] : memref<1x64xf32, #tpu.memory_space<vmem>>, vector<1x64xf32>
    %99 = vector.broadcast %98 : vector<1x64xf32> to vector<17x64xf32>
    %100 = arith.addf %97, %99 : vector<17x64xf32>
    %c0_44 = arith.constant 0 : index
    %c0_45 = arith.constant 0 : index
    %101 = vector.load %arg12[%c0_44, %c0_45] : memref<1x64xf32, #tpu.memory_space<vmem>>, vector<1x64xf32>
    %c0_46 = arith.constant 0 : index
    %c0_47 = arith.constant 0 : index
    %102 = vector.load %arg13[%c0_46, %c0_47] : memref<1x64xf32, #tpu.memory_space<vmem>>, vector<1x64xf32>
    %cst_48 = arith.constant dense<0.000000e+00> : vector<17xf32>
    %103 = vector.multi_reduction <add>, %100, %cst_48 [1] : vector<17x64xf32> to vector<17xf32>
    %104 = vector.shape_cast %103 : vector<17xf32> to vector<17x1xf32>
    %cst_49 = arith.constant 6.400000e+01 : f32
    %105 = vector.broadcast %cst_49 : f32 to vector<17x1xf32>
    %106 = arith.divf %104, %105 : vector<17x1xf32>
    %107 = vector.broadcast %106 : vector<17x1xf32> to vector<17x64xf32>
    %108 = arith.subf %100, %107 : vector<17x64xf32>
    %109 = arith.mulf %108, %108 : vector<17x64xf32>
    %cst_50 = arith.constant dense<0.000000e+00> : vector<17xf32>
    %110 = vector.multi_reduction <add>, %109, %cst_50 [1] : vector<17x64xf32> to vector<17xf32>
    %111 = vector.shape_cast %110 : vector<17xf32> to vector<17x1xf32>
    %cst_51 = arith.constant 6.400000e+01 : f32
    %112 = vector.broadcast %cst_51 : f32 to vector<17x1xf32>
    %113 = arith.divf %111, %112 : vector<17x1xf32>
    %cst_52 = arith.constant 9.99999974E-6 : f32
    %114 = vector.broadcast %cst_52 : f32 to vector<17x1xf32>
    %115 = arith.addf %113, %114 : vector<17x1xf32>
    %116 = math.rsqrt %115 : vector<17x1xf32>
    %117 = vector.broadcast %116 : vector<17x1xf32> to vector<17x64xf32>
    %118 = arith.mulf %108, %117 : vector<17x64xf32>
    %119 = vector.broadcast %101 : vector<1x64xf32> to vector<17x64xf32>
    %120 = arith.mulf %118, %119 : vector<17x64xf32>
    %121 = vector.broadcast %102 : vector<1x64xf32> to vector<17x64xf32>
    %122 = arith.addf %120, %121 : vector<17x64xf32>
    %123 = arith.truncf %122 : vector<17x64xf32> to vector<17x64xbf16>
    %c0_53 = arith.constant 0 : index
    %c0_54 = arith.constant 0 : index
    %124 = vector.load %arg14[%c0_53, %c0_54] : memref<64x256xbf16, #tpu.memory_space<vmem>>, vector<64x256xbf16>
    %cst_55 = arith.constant dense<0.000000e+00> : vector<17x256xf32>
    %125 = tpu.matmul %123, %124, %cst_55 {dimension_numbers = #tpu.dot_dimension_numbers<[1], [0], [0], [1], [0, 0, 1, 1], [], []>} : vector<17x64xbf16>, vector<64x256xbf16>, vector<17x256xf32> -> vector<17x256xf32>
    %c0_56 = arith.constant 0 : index
    %c0_57 = arith.constant 0 : index
    %126 = vector.load %arg15[%c0_56, %c0_57] : memref<1x256xf32, #tpu.memory_space<vmem>>, vector<1x256xf32>
    %127 = vector.broadcast %126 : vector<1x256xf32> to vector<17x256xf32>
    %128 = arith.addf %125, %127 : vector<17x256xf32>
    %cst_58 = arith.constant -1.702000e+00 : f32
    %129 = vector.broadcast %cst_58 : f32 to vector<17x256xf32>
    %130 = arith.mulf %129, %128 : vector<17x256xf32>
    %131 = math.exp %130 : vector<17x256xf32>
    %cst_59 = arith.constant 1.000000e+00 : f32
    %132 = vector.broadcast %cst_59 : f32 to vector<17x256xf32>
    %133 = arith.addf %132, %131 : vector<17x256xf32>
    %cst_60 = arith.constant 1.000000e+00 : f32
    %134 = vector.broadcast %cst_60 : f32 to vector<17x256xf32>
    %135 = arith.divf %134, %133 : vector<17x256xf32>
    %136 = arith.mulf %128, %135 : vector<17x256xf32>
    %137 = arith.truncf %136 : vector<17x256xf32> to vector<17x256xbf16>
    %c0_61 = arith.constant 0 : index
    %c0_62 = arith.constant 0 : index
    %138 = vector.load %arg16[%c0_61, %c0_62] : memref<256x64xbf16, #tpu.memory_space<vmem>>, vector<256x64xbf16>
    %cst_63 = arith.constant dense<0.000000e+00> : vector<17x64xf32>
    %139 = tpu.matmul %137, %138, %cst_63 {dimension_numbers = #tpu.dot_dimension_numbers<[1], [0], [0], [1], [0, 0, 1, 1], [], []>} : vector<17x256xbf16>, vector<256x64xbf16>, vector<17x64xf32> -> vector<17x64xf32>
    %140 = arith.addf %100, %139 : vector<17x64xf32>
    %c0_64 = arith.constant 0 : index
    %c0_65 = arith.constant 0 : index
    %141 = vector.load %arg17[%c0_64, %c0_65] : memref<1x64xf32, #tpu.memory_space<vmem>>, vector<1x64xf32>
    %142 = vector.broadcast %141 : vector<1x64xf32> to vector<17x64xf32>
    %143 = arith.addf %140, %142 : vector<17x64xf32>
    %c0_66 = arith.constant 0 : index
    %c0_67 = arith.constant 0 : index
    %144 = vector.load %arg18[%c0_66, %c0_67] : memref<1x64xf32, #tpu.memory_space<vmem>>, vector<1x64xf32>
    %c0_68 = arith.constant 0 : index
    %c0_69 = arith.constant 0 : index
    %145 = vector.load %arg19[%c0_68, %c0_69] : memref<1x64xf32, #tpu.memory_space<vmem>>, vector<1x64xf32>
    %cst_70 = arith.constant dense<0.000000e+00> : vector<17xf32>
    %146 = vector.multi_reduction <add>, %143, %cst_70 [1] : vector<17x64xf32> to vector<17xf32>
    %147 = vector.shape_cast %146 : vector<17xf32> to vector<17x1xf32>
    %cst_71 = arith.constant 6.400000e+01 : f32
    %148 = vector.broadcast %cst_71 : f32 to vector<17x1xf32>
    %149 = arith.divf %147, %148 : vector<17x1xf32>
    %150 = vector.broadcast %149 : vector<17x1xf32> to vector<17x64xf32>
    %151 = arith.subf %143, %150 : vector<17x64xf32>
    %152 = arith.mulf %151, %151 : vector<17x64xf32>
    %cst_72 = arith.constant dense<0.000000e+00> : vector<17xf32>
    %153 = vector.multi_reduction <add>, %152, %cst_72 [1] : vector<17x64xf32> to vector<17xf32>
    %154 = vector.shape_cast %153 : vector<17xf32> to vector<17x1xf32>
    %cst_73 = arith.constant 6.400000e+01 : f32
    %155 = vector.broadcast %cst_73 : f32 to vector<17x1xf32>
    %156 = arith.divf %154, %155 : vector<17x1xf32>
    %cst_74 = arith.constant 9.99999974E-6 : f32
    %157 = vector.broadcast %cst_74 : f32 to vector<17x1xf32>
    %158 = arith.addf %156, %157 : vector<17x1xf32>
    %159 = math.rsqrt %158 : vector<17x1xf32>
    %160 = vector.broadcast %159 : vector<17x1xf32> to vector<17x64xf32>
    %161 = arith.mulf %151, %160 : vector<17x64xf32>
    %162 = vector.broadcast %144 : vector<1x64xf32> to vector<17x64xf32>
    %163 = arith.mulf %161, %162 : vector<17x64xf32>
    %164 = vector.broadcast %145 : vector<1x64xf32> to vector<17x64xf32>
    %165 = arith.addf %163, %164 : vector<17x64xf32>
    %166 = arith.truncf %165 : vector<17x64xf32> to vector<17x64xbf16>
    %c0_75 = arith.constant 0 : index
    %c0_76 = arith.constant 0 : index
    %167 = vector.load %arg20[%c0_75, %c0_76] : memref<64x192xbf16, #tpu.memory_space<vmem>>, vector<64x192xbf16>
    %cst_77 = arith.constant dense<0.000000e+00> : vector<17x192xf32>
    %168 = tpu.matmul %166, %167, %cst_77 {dimension_numbers = #tpu.dot_dimension_numbers<[1], [0], [0], [1], [0, 0, 1, 1], [], []>} : vector<17x64xbf16>, vector<64x192xbf16>, vector<17x192xf32> -> vector<17x192xf32>
    %c0_78 = arith.constant 0 : index
    %c0_79 = arith.constant 0 : index
    %169 = vector.load %arg21[%c0_78, %c0_79] : memref<1x192xf32, #tpu.memory_space<vmem>>, vector<1x192xf32>
    %170 = vector.broadcast %169 : vector<1x192xf32> to vector<17x192xf32>
    %171 = arith.addf %168, %170 : vector<17x192xf32>
    %172 = arith.truncf %171 : vector<17x192xf32> to vector<17x192xbf16>
    %173 = vector.extract_strided_slice %172 {offsets = [0, 0], sizes = [17, 32], strides = [1, 1]} : vector<17x192xbf16> to vector<17x32xbf16>
    %174 = vector.extract_strided_slice %172 {offsets = [0, 64], sizes = [17, 32], strides = [1, 1]} : vector<17x192xbf16> to vector<17x32xbf16>
    %175 = vector.extract_strided_slice %172 {offsets = [0, 128], sizes = [17, 32], strides = [1, 1]} : vector<17x192xbf16> to vector<17x32xbf16>
    %cst_80 = arith.constant dense<0.000000e+00> : vector<17x17xf32>
    %176 = tpu.matmul %173, %174, %cst_80 {dimension_numbers = #tpu.dot_dimension_numbers<[1], [1], [0], [0], [0, 0, 1, 0], [], []>} : vector<17x32xbf16>, vector<17x32xbf16>, vector<17x17xf32> -> vector<17x17xf32>
    %cst_81 = arith.constant 0.176776692 : f32
    %177 = vector.broadcast %cst_81 : f32 to vector<17x17xf32>
    %178 = arith.mulf %176, %177 : vector<17x17xf32>
    %cst_82 = arith.constant dense<0xFF800000> : vector<17xf32>
    %179 = vector.multi_reduction <maximumf>, %178, %cst_82 [1] : vector<17x17xf32> to vector<17xf32>
    %180 = vector.shape_cast %179 : vector<17xf32> to vector<17x1xf32>
    %181 = vector.broadcast %180 : vector<17x1xf32> to vector<17x17xf32>
    %182 = arith.subf %178, %181 : vector<17x17xf32>
    %183 = math.exp %182 : vector<17x17xf32>
    %cst_83 = arith.constant dense<0.000000e+00> : vector<17xf32>
    %184 = vector.multi_reduction <add>, %183, %cst_83 [1] : vector<17x17xf32> to vector<17xf32>
    %185 = vector.shape_cast %184 : vector<17xf32> to vector<17x1xf32>
    %186 = tpu.reciprocal %185 {approx = true} : vector<17x1xf32> -> vector<17x1xf32>
    %187 = vector.broadcast %186 : vector<17x1xf32> to vector<17x17xf32>
    %188 = arith.mulf %183, %187 : vector<17x17xf32>
    %189 = arith.truncf %188 : vector<17x17xf32> to vector<17x17xbf16>
    %cst_84 = arith.constant dense<0.000000e+00> : vector<17x32xf32>
    %190 = tpu.matmul %189, %175, %cst_84 {dimension_numbers = #tpu.dot_dimension_numbers<[1], [0], [0], [1], [0, 0, 1, 1], [], []>} : vector<17x17xbf16>, vector<17x32xbf16>, vector<17x32xf32> -> vector<17x32xf32>
    %191 = vector.extract_strided_slice %172 {offsets = [0, 32], sizes = [17, 32], strides = [1, 1]} : vector<17x192xbf16> to vector<17x32xbf16>
    %192 = vector.extract_strided_slice %172 {offsets = [0, 96], sizes = [17, 32], strides = [1, 1]} : vector<17x192xbf16> to vector<17x32xbf16>
    %193 = vector.extract_strided_slice %172 {offsets = [0, 160], sizes = [17, 32], strides = [1, 1]} : vector<17x192xbf16> to vector<17x32xbf16>
    %cst_85 = arith.constant dense<0.000000e+00> : vector<17x17xf32>
    %194 = tpu.matmul %191, %192, %cst_85 {dimension_numbers = #tpu.dot_dimension_numbers<[1], [1], [0], [0], [0, 0, 1, 0], [], []>} : vector<17x32xbf16>, vector<17x32xbf16>, vector<17x17xf32> -> vector<17x17xf32>
    %cst_86 = arith.constant 0.176776692 : f32
    %195 = vector.broadcast %cst_86 : f32 to vector<17x17xf32>
    %196 = arith.mulf %194, %195 : vector<17x17xf32>
    %cst_87 = arith.constant dense<0xFF800000> : vector<17xf32>
    %197 = vector.multi_reduction <maximumf>, %196, %cst_87 [1] : vector<17x17xf32> to vector<17xf32>
    %198 = vector.shape_cast %197 : vector<17xf32> to vector<17x1xf32>
    %199 = vector.broadcast %198 : vector<17x1xf32> to vector<17x17xf32>
    %200 = arith.subf %196, %199 : vector<17x17xf32>
    %201 = math.exp %200 : vector<17x17xf32>
    %cst_88 = arith.constant dense<0.000000e+00> : vector<17xf32>
    %202 = vector.multi_reduction <add>, %201, %cst_88 [1] : vector<17x17xf32> to vector<17xf32>
    %203 = vector.shape_cast %202 : vector<17xf32> to vector<17x1xf32>
    %204 = tpu.reciprocal %203 {approx = true} : vector<17x1xf32> -> vector<17x1xf32>
    %205 = vector.broadcast %204 : vector<17x1xf32> to vector<17x17xf32>
    %206 = arith.mulf %201, %205 : vector<17x17xf32>
    %207 = arith.truncf %206 : vector<17x17xf32> to vector<17x17xbf16>
    %cst_89 = arith.constant dense<0.000000e+00> : vector<17x32xf32>
    %208 = tpu.matmul %207, %193, %cst_89 {dimension_numbers = #tpu.dot_dimension_numbers<[1], [0], [0], [1], [0, 0, 1, 1], [], []>} : vector<17x17xbf16>, vector<17x32xbf16>, vector<17x32xf32> -> vector<17x32xf32>
    %209 = tpu.concatenate %190, %208 in 1 : vector<17x32xf32>, vector<17x32xf32> -> vector<17x64xf32>
    %210 = arith.truncf %209 : vector<17x64xf32> to vector<17x64xbf16>
    %c0_90 = arith.constant 0 : index
    %c0_91 = arith.constant 0 : index
    %211 = vector.load %arg22[%c0_90, %c0_91] : memref<64x64xbf16, #tpu.memory_space<vmem>>, vector<64x64xbf16>
    %cst_92 = arith.constant dense<0.000000e+00> : vector<17x64xf32>
    %212 = tpu.matmul %210, %211, %cst_92 {dimension_numbers = #tpu.dot_dimension_numbers<[1], [0], [0], [1], [0, 0, 1, 1], [], []>} : vector<17x64xbf16>, vector<64x64xbf16>, vector<17x64xf32> -> vector<17x64xf32>
    %213 = arith.addf %143, %212 : vector<17x64xf32>
    %c0_93 = arith.constant 0 : index
    %c0_94 = arith.constant 0 : index
    %214 = vector.load %arg23[%c0_93, %c0_94] : memref<1x64xf32, #tpu.memory_space<vmem>>, vector<1x64xf32>
    %215 = vector.broadcast %214 : vector<1x64xf32> to vector<17x64xf32>
    %216 = arith.addf %213, %215 : vector<17x64xf32>
    %c0_95 = arith.constant 0 : index
    %c0_96 = arith.constant 0 : index
    %217 = vector.load %arg24[%c0_95, %c0_96] : memref<1x64xf32, #tpu.memory_space<vmem>>, vector<1x64xf32>
    %c0_97 = arith.constant 0 : index
    %c0_98 = arith.constant 0 : index
    %218 = vector.load %arg25[%c0_97, %c0_98] : memref<1x64xf32, #tpu.memory_space<vmem>>, vector<1x64xf32>
    %cst_99 = arith.constant dense<0.000000e+00> : vector<17xf32>
    %219 = vector.multi_reduction <add>, %216, %cst_99 [1] : vector<17x64xf32> to vector<17xf32>
    %220 = vector.shape_cast %219 : vector<17xf32> to vector<17x1xf32>
    %cst_100 = arith.constant 6.400000e+01 : f32
    %221 = vector.broadcast %cst_100 : f32 to vector<17x1xf32>
    %222 = arith.divf %220, %221 : vector<17x1xf32>
    %223 = vector.broadcast %222 : vector<17x1xf32> to vector<17x64xf32>
    %224 = arith.subf %216, %223 : vector<17x64xf32>
    %225 = arith.mulf %224, %224 : vector<17x64xf32>
    %cst_101 = arith.constant dense<0.000000e+00> : vector<17xf32>
    %226 = vector.multi_reduction <add>, %225, %cst_101 [1] : vector<17x64xf32> to vector<17xf32>
    %227 = vector.shape_cast %226 : vector<17xf32> to vector<17x1xf32>
    %cst_102 = arith.constant 6.400000e+01 : f32
    %228 = vector.broadcast %cst_102 : f32 to vector<17x1xf32>
    %229 = arith.divf %227, %228 : vector<17x1xf32>
    %cst_103 = arith.constant 9.99999974E-6 : f32
    %230 = vector.broadcast %cst_103 : f32 to vector<17x1xf32>
    %231 = arith.addf %229, %230 : vector<17x1xf32>
    %232 = math.rsqrt %231 : vector<17x1xf32>
    %233 = vector.broadcast %232 : vector<17x1xf32> to vector<17x64xf32>
    %234 = arith.mulf %224, %233 : vector<17x64xf32>
    %235 = vector.broadcast %217 : vector<1x64xf32> to vector<17x64xf32>
    %236 = arith.mulf %234, %235 : vector<17x64xf32>
    %237 = vector.broadcast %218 : vector<1x64xf32> to vector<17x64xf32>
    %238 = arith.addf %236, %237 : vector<17x64xf32>
    %239 = arith.truncf %238 : vector<17x64xf32> to vector<17x64xbf16>
    %c0_104 = arith.constant 0 : index
    %c0_105 = arith.constant 0 : index
    %240 = vector.load %arg26[%c0_104, %c0_105] : memref<64x256xbf16, #tpu.memory_space<vmem>>, vector<64x256xbf16>
    %cst_106 = arith.constant dense<0.000000e+00> : vector<17x256xf32>
    %241 = tpu.matmul %239, %240, %cst_106 {dimension_numbers = #tpu.dot_dimension_numbers<[1], [0], [0], [1], [0, 0, 1, 1], [], []>} : vector<17x64xbf16>, vector<64x256xbf16>, vector<17x256xf32> -> vector<17x256xf32>
    %c0_107 = arith.constant 0 : index
    %c0_108 = arith.constant 0 : index
    %242 = vector.load %arg27[%c0_107, %c0_108] : memref<1x256xf32, #tpu.memory_space<vmem>>, vector<1x256xf32>
    %243 = vector.broadcast %242 : vector<1x256xf32> to vector<17x256xf32>
    %244 = arith.addf %241, %243 : vector<17x256xf32>
    %cst_109 = arith.constant -1.702000e+00 : f32
    %245 = vector.broadcast %cst_109 : f32 to vector<17x256xf32>
    %246 = arith.mulf %245, %244 : vector<17x256xf32>
    %247 = math.exp %246 : vector<17x256xf32>
    %cst_110 = arith.constant 1.000000e+00 : f32
    %248 = vector.broadcast %cst_110 : f32 to vector<17x256xf32>
    %249 = arith.addf %248, %247 : vector<17x256xf32>
    %cst_111 = arith.constant 1.000000e+00 : f32
    %250 = vector.broadcast %cst_111 : f32 to vector<17x256xf32>
    %251 = arith.divf %250, %249 : vector<17x256xf32>
    %252 = arith.mulf %244, %251 : vector<17x256xf32>
    %253 = arith.truncf %252 : vector<17x256xf32> to vector<17x256xbf16>
    %c0_112 = arith.constant 0 : index
    %c0_113 = arith.constant 0 : index
    %254 = vector.load %arg28[%c0_112, %c0_113] : memref<256x64xbf16, #tpu.memory_space<vmem>>, vector<256x64xbf16>
    %cst_114 = arith.constant dense<0.000000e+00> : vector<17x64xf32>
    %255 = tpu.matmul %253, %254, %cst_114 {dimension_numbers = #tpu.dot_dimension_numbers<[1], [0], [0], [1], [0, 0, 1, 1], [], []>} : vector<17x256xbf16>, vector<256x64xbf16>, vector<17x64xf32> -> vector<17x64xf32>
    %256 = arith.addf %216, %255 : vector<17x64xf32>
    %c0_115 = arith.constant 0 : index
    %c0_116 = arith.constant 0 : index
    %257 = vector.load %arg29[%c0_115, %c0_116] : memref<1x64xf32, #tpu.memory_space<vmem>>, vector<1x64xf32>
    %258 = vector.broadcast %257 : vector<1x64xf32> to vector<17x64xf32>
    %259 = arith.addf %256, %258 : vector<17x64xf32>
    %260 = vector.extract_strided_slice %259 {offsets = [0, 0], sizes = [1, 64], strides = [1, 1]} : vector<17x64xf32> to vector<1x64xf32>
    %c1 = arith.constant 1 : index
    %c0_117 = arith.constant 0 : index
    %c0_118 = arith.constant 0 : index
    %261 = vector.load %arg1[%c1, %c0_117, %c0_118] : memref<2x17x192xbf16, #tpu.memory_space<vmem>>, vector<1x17x192xbf16>
    %262 = vector.shape_cast %261 : vector<1x17x192xbf16> to vector<17x192xbf16>
    %c0_119 = arith.constant 0 : index
    %c0_120 = arith.constant 0 : index
    %263 = vector.load %arg2[%c0_119, %c0_120] : memref<192x64xbf16, #tpu.memory_space<vmem>>, vector<192x64xbf16>
    %cst_121 = arith.constant dense<0.000000e+00> : vector<17x64xf32>
    %264 = tpu.matmul %262, %263, %cst_121 {dimension_numbers = #tpu.dot_dimension_numbers<[1], [0], [0], [1], [0, 0, 1, 1], [], []>} : vector<17x192xbf16>, vector<192x64xbf16>, vector<17x64xf32> -> vector<17x64xf32>
    %c0_122 = arith.constant 0 : index
    %c0_123 = arith.constant 0 : index
    %265 = vector.load %arg3[%c0_122, %c0_123] : memref<17x64xf32, #tpu.memory_space<vmem>>, vector<17x64xf32>
    %266 = arith.addf %264, %265 : vector<17x64xf32>
    %c0_124 = arith.constant 0 : index
    %c0_125 = arith.constant 0 : index
    %267 = vector.load %arg4[%c0_124, %c0_125] : memref<1x64xf32, #tpu.memory_space<vmem>>, vector<1x64xf32>
    %c0_126 = arith.constant 0 : index
    %c0_127 = arith.constant 0 : index
    %268 = vector.load %arg5[%c0_126, %c0_127] : memref<1x64xf32, #tpu.memory_space<vmem>>, vector<1x64xf32>
    %cst_128 = arith.constant dense<0.000000e+00> : vector<17xf32>
    %269 = vector.multi_reduction <add>, %266, %cst_128 [1] : vector<17x64xf32> to vector<17xf32>
    %270 = vector.shape_cast %269 : vector<17xf32> to vector<17x1xf32>
    %cst_129 = arith.constant 6.400000e+01 : f32
    %271 = vector.broadcast %cst_129 : f32 to vector<17x1xf32>
    %272 = arith.divf %270, %271 : vector<17x1xf32>
    %273 = vector.broadcast %272 : vector<17x1xf32> to vector<17x64xf32>
    %274 = arith.subf %266, %273 : vector<17x64xf32>
    %275 = arith.mulf %274, %274 : vector<17x64xf32>
    %cst_130 = arith.constant dense<0.000000e+00> : vector<17xf32>
    %276 = vector.multi_reduction <add>, %275, %cst_130 [1] : vector<17x64xf32> to vector<17xf32>
    %277 = vector.shape_cast %276 : vector<17xf32> to vector<17x1xf32>
    %cst_131 = arith.constant 6.400000e+01 : f32
    %278 = vector.broadcast %cst_131 : f32 to vector<17x1xf32>
    %279 = arith.divf %277, %278 : vector<17x1xf32>
    %cst_132 = arith.constant 9.99999974E-6 : f32
    %280 = vector.broadcast %cst_132 : f32 to vector<17x1xf32>
    %281 = arith.addf %279, %280 : vector<17x1xf32>
    %282 = math.rsqrt %281 : vector<17x1xf32>
    %283 = vector.broadcast %282 : vector<17x1xf32> to vector<17x64xf32>
    %284 = arith.mulf %274, %283 : vector<17x64xf32>
    %285 = vector.broadcast %267 : vector<1x64xf32> to vector<17x64xf32>
    %286 = arith.mulf %284, %285 : vector<17x64xf32>
    %287 = vector.broadcast %268 : vector<1x64xf32> to vector<17x64xf32>
    %288 = arith.addf %286, %287 : vector<17x64xf32>
    %c0_133 = arith.constant 0 : index
    %c0_134 = arith.constant 0 : index
    %289 = vector.load %arg6[%c0_133, %c0_134] : memref<1x64xf32, #tpu.memory_space<vmem>>, vector<1x64xf32>
    %c0_135 = arith.constant 0 : index
    %c0_136 = arith.constant 0 : index
    %290 = vector.load %arg7[%c0_135, %c0_136] : memref<1x64xf32, #tpu.memory_space<vmem>>, vector<1x64xf32>
    %cst_137 = arith.constant dense<0.000000e+00> : vector<17xf32>
    %291 = vector.multi_reduction <add>, %288, %cst_137 [1] : vector<17x64xf32> to vector<17xf32>
    %292 = vector.shape_cast %291 : vector<17xf32> to vector<17x1xf32>
    %cst_138 = arith.constant 6.400000e+01 : f32
    %293 = vector.broadcast %cst_138 : f32 to vector<17x1xf32>
    %294 = arith.divf %292, %293 : vector<17x1xf32>
    %295 = vector.broadcast %294 : vector<17x1xf32> to vector<17x64xf32>
    %296 = arith.subf %288, %295 : vector<17x64xf32>
    %297 = arith.mulf %296, %296 : vector<17x64xf32>
    %cst_139 = arith.constant dense<0.000000e+00> : vector<17xf32>
    %298 = vector.multi_reduction <add>, %297, %cst_139 [1] : vector<17x64xf32> to vector<17xf32>
    %299 = vector.shape_cast %298 : vector<17xf32> to vector<17x1xf32>
    %cst_140 = arith.constant 6.400000e+01 : f32
    %300 = vector.broadcast %cst_140 : f32 to vector<17x1xf32>
    %301 = arith.divf %299, %300 : vector<17x1xf32>
    %cst_141 = arith.constant 9.99999974E-6 : f32
    %302 = vector.broadcast %cst_141 : f32 to vector<17x1xf32>
    %303 = arith.addf %301, %302 : vector<17x1xf32>
    %304 = math.rsqrt %303 : vector<17x1xf32>
    %305 = vector.broadcast %304 : vector<17x1xf32> to vector<17x64xf32>
    %306 = arith.mulf %296, %305 : vector<17x64xf32>
    %307 = vector.broadcast %289 : vector<1x64xf32> to vector<17x64xf32>
    %308 = arith.mulf %306, %307 : vector<17x64xf32>
    %309 = vector.broadcast %290 : vector<1x64xf32> to vector<17x64xf32>
    %310 = arith.addf %308, %309 : vector<17x64xf32>
    %311 = arith.truncf %310 : vector<17x64xf32> to vector<17x64xbf16>
    %c0_142 = arith.constant 0 : index
    %c0_143 = arith.constant 0 : index
    %312 = vector.load %arg8[%c0_142, %c0_143] : memref<64x192xbf16, #tpu.memory_space<vmem>>, vector<64x192xbf16>
    %cst_144 = arith.constant dense<0.000000e+00> : vector<17x192xf32>
    %313 = tpu.matmul %311, %312, %cst_144 {dimension_numbers = #tpu.dot_dimension_numbers<[1], [0], [0], [1], [0, 0, 1, 1], [], []>} : vector<17x64xbf16>, vector<64x192xbf16>, vector<17x192xf32> -> vector<17x192xf32>
    %c0_145 = arith.constant 0 : index
    %c0_146 = arith.constant 0 : index
    %314 = vector.load %arg9[%c0_145, %c0_146] : memref<1x192xf32, #tpu.memory_space<vmem>>, vector<1x192xf32>
    %315 = vector.broadcast %314 : vector<1x192xf32> to vector<17x192xf32>
    %316 = arith.addf %313, %315 : vector<17x192xf32>
    %317 = arith.truncf %316 : vector<17x192xf32> to vector<17x192xbf16>
    %318 = vector.extract_strided_slice %317 {offsets = [0, 0], sizes = [17, 32], strides = [1, 1]} : vector<17x192xbf16> to vector<17x32xbf16>
    %319 = vector.extract_strided_slice %317 {offsets = [0, 64], sizes = [17, 32], strides = [1, 1]} : vector<17x192xbf16> to vector<17x32xbf16>
    %320 = vector.extract_strided_slice %317 {offsets = [0, 128], sizes = [17, 32], strides = [1, 1]} : vector<17x192xbf16> to vector<17x32xbf16>
    %cst_147 = arith.constant dense<0.000000e+00> : vector<17x17xf32>
    %321 = tpu.matmul %318, %319, %cst_147 {dimension_numbers = #tpu.dot_dimension_numbers<[1], [1], [0], [0], [0, 0, 1, 0], [], []>} : vector<17x32xbf16>, vector<17x32xbf16>, vector<17x17xf32> -> vector<17x17xf32>
    %cst_148 = arith.constant 0.176776692 : f32
    %322 = vector.broadcast %cst_148 : f32 to vector<17x17xf32>
    %323 = arith.mulf %321, %322 : vector<17x17xf32>
    %cst_149 = arith.constant dense<0xFF800000> : vector<17xf32>
    %324 = vector.multi_reduction <maximumf>, %323, %cst_149 [1] : vector<17x17xf32> to vector<17xf32>
    %325 = vector.shape_cast %324 : vector<17xf32> to vector<17x1xf32>
    %326 = vector.broadcast %325 : vector<17x1xf32> to vector<17x17xf32>
    %327 = arith.subf %323, %326 : vector<17x17xf32>
    %328 = math.exp %327 : vector<17x17xf32>
    %cst_150 = arith.constant dense<0.000000e+00> : vector<17xf32>
    %329 = vector.multi_reduction <add>, %328, %cst_150 [1] : vector<17x17xf32> to vector<17xf32>
    %330 = vector.shape_cast %329 : vector<17xf32> to vector<17x1xf32>
    %331 = tpu.reciprocal %330 {approx = true} : vector<17x1xf32> -> vector<17x1xf32>
    %332 = vector.broadcast %331 : vector<17x1xf32> to vector<17x17xf32>
    %333 = arith.mulf %328, %332 : vector<17x17xf32>
    %334 = arith.truncf %333 : vector<17x17xf32> to vector<17x17xbf16>
    %cst_151 = arith.constant dense<0.000000e+00> : vector<17x32xf32>
    %335 = tpu.matmul %334, %320, %cst_151 {dimension_numbers = #tpu.dot_dimension_numbers<[1], [0], [0], [1], [0, 0, 1, 1], [], []>} : vector<17x17xbf16>, vector<17x32xbf16>, vector<17x32xf32> -> vector<17x32xf32>
    %336 = vector.extract_strided_slice %317 {offsets = [0, 32], sizes = [17, 32], strides = [1, 1]} : vector<17x192xbf16> to vector<17x32xbf16>
    %337 = vector.extract_strided_slice %317 {offsets = [0, 96], sizes = [17, 32], strides = [1, 1]} : vector<17x192xbf16> to vector<17x32xbf16>
    %338 = vector.extract_strided_slice %317 {offsets = [0, 160], sizes = [17, 32], strides = [1, 1]} : vector<17x192xbf16> to vector<17x32xbf16>
    %cst_152 = arith.constant dense<0.000000e+00> : vector<17x17xf32>
    %339 = tpu.matmul %336, %337, %cst_152 {dimension_numbers = #tpu.dot_dimension_numbers<[1], [1], [0], [0], [0, 0, 1, 0], [], []>} : vector<17x32xbf16>, vector<17x32xbf16>, vector<17x17xf32> -> vector<17x17xf32>
    %cst_153 = arith.constant 0.176776692 : f32
    %340 = vector.broadcast %cst_153 : f32 to vector<17x17xf32>
    %341 = arith.mulf %339, %340 : vector<17x17xf32>
    %cst_154 = arith.constant dense<0xFF800000> : vector<17xf32>
    %342 = vector.multi_reduction <maximumf>, %341, %cst_154 [1] : vector<17x17xf32> to vector<17xf32>
    %343 = vector.shape_cast %342 : vector<17xf32> to vector<17x1xf32>
    %344 = vector.broadcast %343 : vector<17x1xf32> to vector<17x17xf32>
    %345 = arith.subf %341, %344 : vector<17x17xf32>
    %346 = math.exp %345 : vector<17x17xf32>
    %cst_155 = arith.constant dense<0.000000e+00> : vector<17xf32>
    %347 = vector.multi_reduction <add>, %346, %cst_155 [1] : vector<17x17xf32> to vector<17xf32>
    %348 = vector.shape_cast %347 : vector<17xf32> to vector<17x1xf32>
    %349 = tpu.reciprocal %348 {approx = true} : vector<17x1xf32> -> vector<17x1xf32>
    %350 = vector.broadcast %349 : vector<17x1xf32> to vector<17x17xf32>
    %351 = arith.mulf %346, %350 : vector<17x17xf32>
    %352 = arith.truncf %351 : vector<17x17xf32> to vector<17x17xbf16>
    %cst_156 = arith.constant dense<0.000000e+00> : vector<17x32xf32>
    %353 = tpu.matmul %352, %338, %cst_156 {dimension_numbers = #tpu.dot_dimension_numbers<[1], [0], [0], [1], [0, 0, 1, 1], [], []>} : vector<17x17xbf16>, vector<17x32xbf16>, vector<17x32xf32> -> vector<17x32xf32>
    %354 = tpu.concatenate %335, %353 in 1 : vector<17x32xf32>, vector<17x32xf32> -> vector<17x64xf32>
    %355 = arith.truncf %354 : vector<17x64xf32> to vector<17x64xbf16>
    %c0_157 = arith.constant 0 : index
    %c0_158 = arith.constant 0 : index
    %356 = vector.load %arg10[%c0_157, %c0_158] : memref<64x64xbf16, #tpu.memory_space<vmem>>, vector<64x64xbf16>
    %cst_159 = arith.constant dense<0.000000e+00> : vector<17x64xf32>
    %357 = tpu.matmul %355, %356, %cst_159 {dimension_numbers = #tpu.dot_dimension_numbers<[1], [0], [0], [1], [0, 0, 1, 1], [], []>} : vector<17x64xbf16>, vector<64x64xbf16>, vector<17x64xf32> -> vector<17x64xf32>
    %358 = arith.addf %288, %357 : vector<17x64xf32>
    %c0_160 = arith.constant 0 : index
    %c0_161 = arith.constant 0 : index
    %359 = vector.load %arg11[%c0_160, %c0_161] : memref<1x64xf32, #tpu.memory_space<vmem>>, vector<1x64xf32>
    %360 = vector.broadcast %359 : vector<1x64xf32> to vector<17x64xf32>
    %361 = arith.addf %358, %360 : vector<17x64xf32>
    %c0_162 = arith.constant 0 : index
    %c0_163 = arith.constant 0 : index
    %362 = vector.load %arg12[%c0_162, %c0_163] : memref<1x64xf32, #tpu.memory_space<vmem>>, vector<1x64xf32>
    %c0_164 = arith.constant 0 : index
    %c0_165 = arith.constant 0 : index
    %363 = vector.load %arg13[%c0_164, %c0_165] : memref<1x64xf32, #tpu.memory_space<vmem>>, vector<1x64xf32>
    %cst_166 = arith.constant dense<0.000000e+00> : vector<17xf32>
    %364 = vector.multi_reduction <add>, %361, %cst_166 [1] : vector<17x64xf32> to vector<17xf32>
    %365 = vector.shape_cast %364 : vector<17xf32> to vector<17x1xf32>
    %cst_167 = arith.constant 6.400000e+01 : f32
    %366 = vector.broadcast %cst_167 : f32 to vector<17x1xf32>
    %367 = arith.divf %365, %366 : vector<17x1xf32>
    %368 = vector.broadcast %367 : vector<17x1xf32> to vector<17x64xf32>
    %369 = arith.subf %361, %368 : vector<17x64xf32>
    %370 = arith.mulf %369, %369 : vector<17x64xf32>
    %cst_168 = arith.constant dense<0.000000e+00> : vector<17xf32>
    %371 = vector.multi_reduction <add>, %370, %cst_168 [1] : vector<17x64xf32> to vector<17xf32>
    %372 = vector.shape_cast %371 : vector<17xf32> to vector<17x1xf32>
    %cst_169 = arith.constant 6.400000e+01 : f32
    %373 = vector.broadcast %cst_169 : f32 to vector<17x1xf32>
    %374 = arith.divf %372, %373 : vector<17x1xf32>
    %cst_170 = arith.constant 9.99999974E-6 : f32
    %375 = vector.broadcast %cst_170 : f32 to vector<17x1xf32>
    %376 = arith.addf %374, %375 : vector<17x1xf32>
    %377 = math.rsqrt %376 : vector<17x1xf32>
    %378 = vector.broadcast %377 : vector<17x1xf32> to vector<17x64xf32>
    %379 = arith.mulf %369, %378 : vector<17x64xf32>
    %380 = vector.broadcast %362 : vector<1x64xf32> to vector<17x64xf32>
    %381 = arith.mulf %379, %380 : vector<17x64xf32>
    %382 = vector.broadcast %363 : vector<1x64xf32> to vector<17x64xf32>
    %383 = arith.addf %381, %382 : vector<17x64xf32>
    %384 = arith.truncf %383 : vector<17x64xf32> to vector<17x64xbf16>
    %c0_171 = arith.constant 0 : index
    %c0_172 = arith.constant 0 : index
    %385 = vector.load %arg14[%c0_171, %c0_172] : memref<64x256xbf16, #tpu.memory_space<vmem>>, vector<64x256xbf16>
    %cst_173 = arith.constant dense<0.000000e+00> : vector<17x256xf32>
    %386 = tpu.matmul %384, %385, %cst_173 {dimension_numbers = #tpu.dot_dimension_numbers<[1], [0], [0], [1], [0, 0, 1, 1], [], []>} : vector<17x64xbf16>, vector<64x256xbf16>, vector<17x256xf32> -> vector<17x256xf32>
    %c0_174 = arith.constant 0 : index
    %c0_175 = arith.constant 0 : index
    %387 = vector.load %arg15[%c0_174, %c0_175] : memref<1x256xf32, #tpu.memory_space<vmem>>, vector<1x256xf32>
    %388 = vector.broadcast %387 : vector<1x256xf32> to vector<17x256xf32>
    %389 = arith.addf %386, %388 : vector<17x256xf32>
    %cst_176 = arith.constant -1.702000e+00 : f32
    %390 = vector.broadcast %cst_176 : f32 to vector<17x256xf32>
    %391 = arith.mulf %390, %389 : vector<17x256xf32>
    %392 = math.exp %391 : vector<17x256xf32>
    %cst_177 = arith.constant 1.000000e+00 : f32
    %393 = vector.broadcast %cst_177 : f32 to vector<17x256xf32>
    %394 = arith.addf %393, %392 : vector<17x256xf32>
    %cst_178 = arith.constant 1.000000e+00 : f32
    %395 = vector.broadcast %cst_178 : f32 to vector<17x256xf32>
    %396 = arith.divf %395, %394 : vector<17x256xf32>
    %397 = arith.mulf %389, %396 : vector<17x256xf32>
    %398 = arith.truncf %397 : vector<17x256xf32> to vector<17x256xbf16>
    %c0_179 = arith.constant 0 : index
    %c0_180 = arith.constant 0 : index
    %399 = vector.load %arg16[%c0_179, %c0_180] : memref<256x64xbf16, #tpu.memory_space<vmem>>, vector<256x64xbf16>
    %cst_181 = arith.constant dense<0.000000e+00> : vector<17x64xf32>
    %400 = tpu.matmul %398, %399, %cst_181 {dimension_numbers = #tpu.dot_dimension_numbers<[1], [0], [0], [1], [0, 0, 1, 1], [], []>} : vector<17x256xbf16>, vector<256x64xbf16>, vector<17x64xf32> -> vector<17x64xf32>
    %401 = arith.addf %361, %400 : vector<17x64xf32>
    %c0_182 = arith.constant 0 : index
    %c0_183 = arith.constant 0 : index
    %402 = vector.load %arg17[%c0_182, %c0_183] : memref<1x64xf32, #tpu.memory_space<vmem>>, vector<1x64xf32>
    %403 = vector.broadcast %402 : vector<1x64xf32> to vector<17x64xf32>
    %404 = arith.addf %401, %403 : vector<17x64xf32>
    %c0_184 = arith.constant 0 : index
    %c0_185 = arith.constant 0 : index
    %405 = vector.load %arg18[%c0_184, %c0_185] : memref<1x64xf32, #tpu.memory_space<vmem>>, vector<1x64xf32>
    %c0_186 = arith.constant 0 : index
    %c0_187 = arith.constant 0 : index
    %406 = vector.load %arg19[%c0_186, %c0_187] : memref<1x64xf32, #tpu.memory_space<vmem>>, vector<1x64xf32>
    %cst_188 = arith.constant dense<0.000000e+00> : vector<17xf32>
    %407 = vector.multi_reduction <add>, %404, %cst_188 [1] : vector<17x64xf32> to vector<17xf32>
    %408 = vector.shape_cast %407 : vector<17xf32> to vector<17x1xf32>
    %cst_189 = arith.constant 6.400000e+01 : f32
    %409 = vector.broadcast %cst_189 : f32 to vector<17x1xf32>
    %410 = arith.divf %408, %409 : vector<17x1xf32>
    %411 = vector.broadcast %410 : vector<17x1xf32> to vector<17x64xf32>
    %412 = arith.subf %404, %411 : vector<17x64xf32>
    %413 = arith.mulf %412, %412 : vector<17x64xf32>
    %cst_190 = arith.constant dense<0.000000e+00> : vector<17xf32>
    %414 = vector.multi_reduction <add>, %413, %cst_190 [1] : vector<17x64xf32> to vector<17xf32>
    %415 = vector.shape_cast %414 : vector<17xf32> to vector<17x1xf32>
    %cst_191 = arith.constant 6.400000e+01 : f32
    %416 = vector.broadcast %cst_191 : f32 to vector<17x1xf32>
    %417 = arith.divf %415, %416 : vector<17x1xf32>
    %cst_192 = arith.constant 9.99999974E-6 : f32
    %418 = vector.broadcast %cst_192 : f32 to vector<17x1xf32>
    %419 = arith.addf %417, %418 : vector<17x1xf32>
    %420 = math.rsqrt %419 : vector<17x1xf32>
    %421 = vector.broadcast %420 : vector<17x1xf32> to vector<17x64xf32>
    %422 = arith.mulf %412, %421 : vector<17x64xf32>
    %423 = vector.broadcast %405 : vector<1x64xf32> to vector<17x64xf32>
    %424 = arith.mulf %422, %423 : vector<17x64xf32>
    %425 = vector.broadcast %406 : vector<1x64xf32> to vector<17x64xf32>
    %426 = arith.addf %424, %425 : vector<17x64xf32>
    %427 = arith.truncf %426 : vector<17x64xf32> to vector<17x64xbf16>
    %c0_193 = arith.constant 0 : index
    %c0_194 = arith.constant 0 : index
    %428 = vector.load %arg20[%c0_193, %c0_194] : memref<64x192xbf16, #tpu.memory_space<vmem>>, vector<64x192xbf16>
    %cst_195 = arith.constant dense<0.000000e+00> : vector<17x192xf32>
    %429 = tpu.matmul %427, %428, %cst_195 {dimension_numbers = #tpu.dot_dimension_numbers<[1], [0], [0], [1], [0, 0, 1, 1], [], []>} : vector<17x64xbf16>, vector<64x192xbf16>, vector<17x192xf32> -> vector<17x192xf32>
    %c0_196 = arith.constant 0 : index
    %c0_197 = arith.constant 0 : index
    %430 = vector.load %arg21[%c0_196, %c0_197] : memref<1x192xf32, #tpu.memory_space<vmem>>, vector<1x192xf32>
    %431 = vector.broadcast %430 : vector<1x192xf32> to vector<17x192xf32>
    %432 = arith.addf %429, %431 : vector<17x192xf32>
    %433 = arith.truncf %432 : vector<17x192xf32> to vector<17x192xbf16>
    %434 = vector.extract_strided_slice %433 {offsets = [0, 0], sizes = [17, 32], strides = [1, 1]} : vector<17x192xbf16> to vector<17x32xbf16>
    %435 = vector.extract_strided_slice %433 {offsets = [0, 64], sizes = [17, 32], strides = [1, 1]} : vector<17x192xbf16> to vector<17x32xbf16>
    %436 = vector.extract_strided_slice %433 {offsets = [0, 128], sizes = [17, 32], strides = [1, 1]} : vector<17x192xbf16> to vector<17x32xbf16>
    %cst_198 = arith.constant dense<0.000000e+00> : vector<17x17xf32>
    %437 = tpu.matmul %434, %435, %cst_198 {dimension_numbers = #tpu.dot_dimension_numbers<[1], [1], [0], [0], [0, 0, 1, 0], [], []>} : vector<17x32xbf16>, vector<17x32xbf16>, vector<17x17xf32> -> vector<17x17xf32>
    %cst_199 = arith.constant 0.176776692 : f32
    %438 = vector.broadcast %cst_199 : f32 to vector<17x17xf32>
    %439 = arith.mulf %437, %438 : vector<17x17xf32>
    %cst_200 = arith.constant dense<0xFF800000> : vector<17xf32>
    %440 = vector.multi_reduction <maximumf>, %439, %cst_200 [1] : vector<17x17xf32> to vector<17xf32>
    %441 = vector.shape_cast %440 : vector<17xf32> to vector<17x1xf32>
    %442 = vector.broadcast %441 : vector<17x1xf32> to vector<17x17xf32>
    %443 = arith.subf %439, %442 : vector<17x17xf32>
    %444 = math.exp %443 : vector<17x17xf32>
    %cst_201 = arith.constant dense<0.000000e+00> : vector<17xf32>
    %445 = vector.multi_reduction <add>, %444, %cst_201 [1] : vector<17x17xf32> to vector<17xf32>
    %446 = vector.shape_cast %445 : vector<17xf32> to vector<17x1xf32>
    %447 = tpu.reciprocal %446 {approx = true} : vector<17x1xf32> -> vector<17x1xf32>
    %448 = vector.broadcast %447 : vector<17x1xf32> to vector<17x17xf32>
    %449 = arith.mulf %444, %448 : vector<17x17xf32>
    %450 = arith.truncf %449 : vector<17x17xf32> to vector<17x17xbf16>
    %cst_202 = arith.constant dense<0.000000e+00> : vector<17x32xf32>
    %451 = tpu.matmul %450, %436, %cst_202 {dimension_numbers = #tpu.dot_dimension_numbers<[1], [0], [0], [1], [0, 0, 1, 1], [], []>} : vector<17x17xbf16>, vector<17x32xbf16>, vector<17x32xf32> -> vector<17x32xf32>
    %452 = vector.extract_strided_slice %433 {offsets = [0, 32], sizes = [17, 32], strides = [1, 1]} : vector<17x192xbf16> to vector<17x32xbf16>
    %453 = vector.extract_strided_slice %433 {offsets = [0, 96], sizes = [17, 32], strides = [1, 1]} : vector<17x192xbf16> to vector<17x32xbf16>
    %454 = vector.extract_strided_slice %433 {offsets = [0, 160], sizes = [17, 32], strides = [1, 1]} : vector<17x192xbf16> to vector<17x32xbf16>
    %cst_203 = arith.constant dense<0.000000e+00> : vector<17x17xf32>
    %455 = tpu.matmul %452, %453, %cst_203 {dimension_numbers = #tpu.dot_dimension_numbers<[1], [1], [0], [0], [0, 0, 1, 0], [], []>} : vector<17x32xbf16>, vector<17x32xbf16>, vector<17x17xf32> -> vector<17x17xf32>
    %cst_204 = arith.constant 0.176776692 : f32
    %456 = vector.broadcast %cst_204 : f32 to vector<17x17xf32>
    %457 = arith.mulf %455, %456 : vector<17x17xf32>
    %cst_205 = arith.constant dense<0xFF800000> : vector<17xf32>
    %458 = vector.multi_reduction <maximumf>, %457, %cst_205 [1] : vector<17x17xf32> to vector<17xf32>
    %459 = vector.shape_cast %458 : vector<17xf32> to vector<17x1xf32>
    %460 = vector.broadcast %459 : vector<17x1xf32> to vector<17x17xf32>
    %461 = arith.subf %457, %460 : vector<17x17xf32>
    %462 = math.exp %461 : vector<17x17xf32>
    %cst_206 = arith.constant dense<0.000000e+00> : vector<17xf32>
    %463 = vector.multi_reduction <add>, %462, %cst_206 [1] : vector<17x17xf32> to vector<17xf32>
    %464 = vector.shape_cast %463 : vector<17xf32> to vector<17x1xf32>
    %465 = tpu.reciprocal %464 {approx = true} : vector<17x1xf32> -> vector<17x1xf32>
    %466 = vector.broadcast %465 : vector<17x1xf32> to vector<17x17xf32>
    %467 = arith.mulf %462, %466 : vector<17x17xf32>
    %468 = arith.truncf %467 : vector<17x17xf32> to vector<17x17xbf16>
    %cst_207 = arith.constant dense<0.000000e+00> : vector<17x32xf32>
    %469 = tpu.matmul %468, %454, %cst_207 {dimension_numbers = #tpu.dot_dimension_numbers<[1], [0], [0], [1], [0, 0, 1, 1], [], []>} : vector<17x17xbf16>, vector<17x32xbf16>, vector<17x32xf32> -> vector<17x32xf32>
    %470 = tpu.concatenate %451, %469 in 1 : vector<17x32xf32>, vector<17x32xf32> -> vector<17x64xf32>
    %471 = arith.truncf %470 : vector<17x64xf32> to vector<17x64xbf16>
    %c0_208 = arith.constant 0 : index
    %c0_209 = arith.constant 0 : index
    %472 = vector.load %arg22[%c0_208, %c0_209] : memref<64x64xbf16, #tpu.memory_space<vmem>>, vector<64x64xbf16>
    %cst_210 = arith.constant dense<0.000000e+00> : vector<17x64xf32>
    %473 = tpu.matmul %471, %472, %cst_210 {dimension_numbers = #tpu.dot_dimension_numbers<[1], [0], [0], [1], [0, 0, 1, 1], [], []>} : vector<17x64xbf16>, vector<64x64xbf16>, vector<17x64xf32> -> vector<17x64xf32>
    %474 = arith.addf %404, %473 : vector<17x64xf32>
    %c0_211 = arith.constant 0 : index
    %c0_212 = arith.constant 0 : index
    %475 = vector.load %arg23[%c0_211, %c0_212] : memref<1x64xf32, #tpu.memory_space<vmem>>, vector<1x64xf32>
    %476 = vector.broadcast %475 : vector<1x64xf32> to vector<17x64xf32>
    %477 = arith.addf %474, %476 : vector<17x64xf32>
    %c0_213 = arith.constant 0 : index
    %c0_214 = arith.constant 0 : index
    %478 = vector.load %arg24[%c0_213, %c0_214] : memref<1x64xf32, #tpu.memory_space<vmem>>, vector<1x64xf32>
    %c0_215 = arith.constant 0 : index
    %c0_216 = arith.constant 0 : index
    %479 = vector.load %arg25[%c0_215, %c0_216] : memref<1x64xf32, #tpu.memory_space<vmem>>, vector<1x64xf32>
    %cst_217 = arith.constant dense<0.000000e+00> : vector<17xf32>
    %480 = vector.multi_reduction <add>, %477, %cst_217 [1] : vector<17x64xf32> to vector<17xf32>
    %481 = vector.shape_cast %480 : vector<17xf32> to vector<17x1xf32>
    %cst_218 = arith.constant 6.400000e+01 : f32
    %482 = vector.broadcast %cst_218 : f32 to vector<17x1xf32>
    %483 = arith.divf %481, %482 : vector<17x1xf32>
    %484 = vector.broadcast %483 : vector<17x1xf32> to vector<17x64xf32>
    %485 = arith.subf %477, %484 : vector<17x64xf32>
    %486 = arith.mulf %485, %485 : vector<17x64xf32>
    %cst_219 = arith.constant dense<0.000000e+00> : vector<17xf32>
    %487 = vector.multi_reduction <add>, %486, %cst_219 [1] : vector<17x64xf32> to vector<17xf32>
    %488 = vector.shape_cast %487 : vector<17xf32> to vector<17x1xf32>
    %cst_220 = arith.constant 6.400000e+01 : f32
    %489 = vector.broadcast %cst_220 : f32 to vector<17x1xf32>
    %490 = arith.divf %488, %489 : vector<17x1xf32>
    %cst_221 = arith.constant 9.99999974E-6 : f32
    %491 = vector.broadcast %cst_221 : f32 to vector<17x1xf32>
    %492 = arith.addf %490, %491 : vector<17x1xf32>
    %493 = math.rsqrt %492 : vector<17x1xf32>
    %494 = vector.broadcast %493 : vector<17x1xf32> to vector<17x64xf32>
    %495 = arith.mulf %485, %494 : vector<17x64xf32>
    %496 = vector.broadcast %478 : vector<1x64xf32> to vector<17x64xf32>
    %497 = arith.mulf %495, %496 : vector<17x64xf32>
    %498 = vector.broadcast %479 : vector<1x64xf32> to vector<17x64xf32>
    %499 = arith.addf %497, %498 : vector<17x64xf32>
    %500 = arith.truncf %499 : vector<17x64xf32> to vector<17x64xbf16>
    %c0_222 = arith.constant 0 : index
    %c0_223 = arith.constant 0 : index
    %501 = vector.load %arg26[%c0_222, %c0_223] : memref<64x256xbf16, #tpu.memory_space<vmem>>, vector<64x256xbf16>
    %cst_224 = arith.constant dense<0.000000e+00> : vector<17x256xf32>
    %502 = tpu.matmul %500, %501, %cst_224 {dimension_numbers = #tpu.dot_dimension_numbers<[1], [0], [0], [1], [0, 0, 1, 1], [], []>} : vector<17x64xbf16>, vector<64x256xbf16>, vector<17x256xf32> -> vector<17x256xf32>
    %c0_225 = arith.constant 0 : index
    %c0_226 = arith.constant 0 : index
    %503 = vector.load %arg27[%c0_225, %c0_226] : memref<1x256xf32, #tpu.memory_space<vmem>>, vector<1x256xf32>
    %504 = vector.broadcast %503 : vector<1x256xf32> to vector<17x256xf32>
    %505 = arith.addf %502, %504 : vector<17x256xf32>
    %cst_227 = arith.constant -1.702000e+00 : f32
    %506 = vector.broadcast %cst_227 : f32 to vector<17x256xf32>
    %507 = arith.mulf %506, %505 : vector<17x256xf32>
    %508 = math.exp %507 : vector<17x256xf32>
    %cst_228 = arith.constant 1.000000e+00 : f32
    %509 = vector.broadcast %cst_228 : f32 to vector<17x256xf32>
    %510 = arith.addf %509, %508 : vector<17x256xf32>
    %cst_229 = arith.constant 1.000000e+00 : f32
    %511 = vector.broadcast %cst_229 : f32 to vector<17x256xf32>
    %512 = arith.divf %511, %510 : vector<17x256xf32>
    %513 = arith.mulf %505, %512 : vector<17x256xf32>
    %514 = arith.truncf %513 : vector<17x256xf32> to vector<17x256xbf16>
    %c0_230 = arith.constant 0 : index
    %c0_231 = arith.constant 0 : index
    %515 = vector.load %arg28[%c0_230, %c0_231] : memref<256x64xbf16, #tpu.memory_space<vmem>>, vector<256x64xbf16>
    %cst_232 = arith.constant dense<0.000000e+00> : vector<17x64xf32>
    %516 = tpu.matmul %514, %515, %cst_232 {dimension_numbers = #tpu.dot_dimension_numbers<[1], [0], [0], [1], [0, 0, 1, 1], [], []>} : vector<17x256xbf16>, vector<256x64xbf16>, vector<17x64xf32> -> vector<17x64xf32>
    %517 = arith.addf %477, %516 : vector<17x64xf32>
    %c0_233 = arith.constant 0 : index
    %c0_234 = arith.constant 0 : index
    %518 = vector.load %arg29[%c0_233, %c0_234] : memref<1x64xf32, #tpu.memory_space<vmem>>, vector<1x64xf32>
    %519 = vector.broadcast %518 : vector<1x64xf32> to vector<17x64xf32>
    %520 = arith.addf %517, %519 : vector<17x64xf32>
    %521 = vector.extract_strided_slice %520 {offsets = [0, 0], sizes = [1, 64], strides = [1, 1]} : vector<17x64xf32> to vector<1x64xf32>
    %522 = tpu.concatenate %260, %521 in 0 : vector<1x64xf32>, vector<1x64xf32> -> vector<2x64xf32>
    %c0_235 = arith.constant 0 : index
    %c0_236 = arith.constant 0 : index
    %523 = vector.load %arg30[%c0_235, %c0_236] : memref<1x64xf32, #tpu.memory_space<vmem>>, vector<1x64xf32>
    %c0_237 = arith.constant 0 : index
    %c0_238 = arith.constant 0 : index
    %524 = vector.load %arg31[%c0_237, %c0_238] : memref<1x64xf32, #tpu.memory_space<vmem>>, vector<1x64xf32>
    %cst_239 = arith.constant dense<0.000000e+00> : vector<2xf32>
    %525 = vector.multi_reduction <add>, %522, %cst_239 [1] : vector<2x64xf32> to vector<2xf32>
    %526 = vector.shape_cast %525 : vector<2xf32> to vector<2x1xf32>
    %cst_240 = arith.constant 6.400000e+01 : f32
    %527 = vector.broadcast %cst_240 : f32 to vector<2x1xf32>
    %528 = arith.divf %526, %527 : vector<2x1xf32>
    %529 = vector.broadcast %528 : vector<2x1xf32> to vector<2x64xf32>
    %530 = arith.subf %522, %529 : vector<2x64xf32>
    %531 = arith.mulf %530, %530 : vector<2x64xf32>
    %cst_241 = arith.constant dense<0.000000e+00> : vector<2xf32>
    %532 = vector.multi_reduction <add>, %531, %cst_241 [1] : vector<2x64xf32> to vector<2xf32>
    %533 = vector.shape_cast %532 : vector<2xf32> to vector<2x1xf32>
    %cst_242 = arith.constant 6.400000e+01 : f32
    %534 = vector.broadcast %cst_242 : f32 to vector<2x1xf32>
    %535 = arith.divf %533, %534 : vector<2x1xf32>
    %cst_243 = arith.constant 9.99999974E-6 : f32
    %536 = vector.broadcast %cst_243 : f32 to vector<2x1xf32>
    %537 = arith.addf %535, %536 : vector<2x1xf32>
    %538 = math.rsqrt %537 : vector<2x1xf32>
    %539 = vector.broadcast %538 : vector<2x1xf32> to vector<2x64xf32>
    %540 = arith.mulf %530, %539 : vector<2x64xf32>
    %541 = vector.broadcast %523 : vector<1x64xf32> to vector<2x64xf32>
    %542 = arith.mulf %540, %541 : vector<2x64xf32>
    %543 = vector.broadcast %524 : vector<1x64xf32> to vector<2x64xf32>
    %544 = arith.addf %542, %543 : vector<2x64xf32>
    %545 = arith.truncf %544 : vector<2x64xf32> to vector<2x64xbf16>
    %c0_244 = arith.constant 0 : index
    %c0_245 = arith.constant 0 : index
    %546 = vector.load %arg32[%c0_244, %c0_245] : memref<64x512xbf16, #tpu.memory_space<vmem>>, vector<64x512xbf16>
    %cst_246 = arith.constant dense<0.000000e+00> : vector<2x512xf32>
    %547 = tpu.matmul %545, %546, %cst_246 {dimension_numbers = #tpu.dot_dimension_numbers<[1], [0], [0], [1], [0, 0, 1, 1], [], []>} : vector<2x64xbf16>, vector<64x512xbf16>, vector<2x512xf32> -> vector<2x512xf32>
    %548 = arith.truncf %547 : vector<2x512xf32> to vector<2x512xbf16>
    %c0_247 = arith.constant 0 : index
    %c0_248 = arith.constant 0 : index
    %549 = vector.load %arg33[%c0_247, %c0_248] : memref<512x256xbf16, #tpu.memory_space<vmem>>, vector<512x256xbf16>
    %cst_249 = arith.constant dense<0.000000e+00> : vector<2x256xf32>
    %550 = tpu.matmul %548, %549, %cst_249 {dimension_numbers = #tpu.dot_dimension_numbers<[1], [0], [0], [1], [0, 0, 1, 1], [], []>} : vector<2x512xbf16>, vector<512x256xbf16>, vector<2x256xf32> -> vector<2x256xf32>
    %c0_250 = arith.constant 0 : index
    %c0_251 = arith.constant 0 : index
    %551 = vector.load %arg34[%c0_250, %c0_251] : memref<1x256xf32, #tpu.memory_space<vmem>>, vector<1x256xf32>
    %552 = vector.broadcast %551 : vector<1x256xf32> to vector<2x256xf32>
    %553 = arith.mulf %550, %552 : vector<2x256xf32>
    %c0_252 = arith.constant 0 : index
    %c0_253 = arith.constant 0 : index
    %554 = vector.load %arg35[%c0_252, %c0_253] : memref<1x256xf32, #tpu.memory_space<vmem>>, vector<1x256xf32>
    %555 = vector.broadcast %554 : vector<1x256xf32> to vector<2x256xf32>
    %556 = arith.addf %553, %555 : vector<2x256xf32>
    %cst_254 = arith.constant 0.000000e+00 : f32
    %557 = vector.broadcast %cst_254 : f32 to vector<2x256xf32>
    %558 = arith.maximumf %556, %557 : vector<2x256xf32>
    %559 = arith.truncf %558 : vector<2x256xf32> to vector<2x256xbf16>
    %c0_255 = arith.constant 0 : index
    %c0_256 = arith.constant 0 : index
    %560 = vector.load %arg36[%c0_255, %c0_256] : memref<256x256xbf16, #tpu.memory_space<vmem>>, vector<256x256xbf16>
    %cst_257 = arith.constant dense<0.000000e+00> : vector<2x256xf32>
    %561 = tpu.matmul %559, %560, %cst_257 {dimension_numbers = #tpu.dot_dimension_numbers<[1], [0], [0], [1], [0, 0, 1, 1], [], []>} : vector<2x256xbf16>, vector<256x256xbf16>, vector<2x256xf32> -> vector<2x256xf32>
    %c0_258 = arith.constant 0 : index
    %c0_259 = arith.constant 0 : index
    %562 = vector.load %arg37[%c0_258, %c0_259] : memref<1x256xf32, #tpu.memory_space<vmem>>, vector<1x256xf32>
    %563 = vector.broadcast %562 : vector<1x256xf32> to vector<2x256xf32>
    %564 = arith.mulf %561, %563 : vector<2x256xf32>
    %c0_260 = arith.constant 0 : index
    %c0_261 = arith.constant 0 : index
    %565 = vector.load %arg38[%c0_260, %c0_261] : memref<1x256xf32, #tpu.memory_space<vmem>>, vector<1x256xf32>
    %566 = vector.broadcast %565 : vector<1x256xf32> to vector<2x256xf32>
    %567 = arith.addf %564, %566 : vector<2x256xf32>
    %cst_262 = arith.constant 0.000000e+00 : f32
    %568 = vector.broadcast %cst_262 : f32 to vector<2x256xf32>
    %569 = arith.maximumf %567, %568 : vector<2x256xf32>
    %570 = arith.truncf %569 : vector<2x256xf32> to vector<2x256xbf16>
    %c0_263 = arith.constant 0 : index
    %c0_264 = arith.constant 0 : index
    %571 = vector.load %arg39[%c0_263, %c0_264] : memref<256x1024xbf16, #tpu.memory_space<vmem>>, vector<256x1024xbf16>
    %cst_265 = arith.constant dense<0.000000e+00> : vector<2x1024xf32>
    %572 = tpu.matmul %570, %571, %cst_265 {dimension_numbers = #tpu.dot_dimension_numbers<[1], [0], [0], [1], [0, 0, 1, 1], [], []>} : vector<2x256xbf16>, vector<256x1024xbf16>, vector<2x1024xf32> -> vector<2x1024xf32>
    %c0_266 = arith.constant 0 : index
    %c0_267 = arith.constant 0 : index
    %573 = vector.load %arg40[%c0_266, %c0_267] : memref<1x1024xf32, #tpu.memory_space<vmem>>, vector<1x1024xf32>
    %574 = vector.broadcast %573 : vector<1x1024xf32> to vector<2x1024xf32>
    %575 = arith.mulf %572, %574 : vector<2x1024xf32>
    %c0_268 = arith.constant 0 : index
    %c0_269 = arith.constant 0 : index
    %576 = vector.load %arg41[%c0_268, %c0_269] : memref<1x1024xf32, #tpu.memory_space<vmem>>, vector<1x1024xf32>
    %577 = vector.broadcast %576 : vector<1x1024xf32> to vector<2x1024xf32>
    %578 = arith.addf %575, %577 : vector<2x1024xf32>
    %cst_270 = arith.constant 0.000000e+00 : f32
    %579 = vector.broadcast %cst_270 : f32 to vector<2x1024xf32>
    %580 = arith.maximumf %578, %579 : vector<2x1024xf32>
    %581 = arith.truncf %580 : vector<2x1024xf32> to vector<2x1024xbf16>
    %c0_271 = arith.constant 0 : index
    %c0_272 = arith.constant 0 : index
    %582 = vector.load %arg42[%c0_271, %c0_272] : memref<1024x128xbf16, #tpu.memory_space<vmem>>, vector<1024x128xbf16>
    %cst_273 = arith.constant dense<0.000000e+00> : vector<2x128xf32>
    %583 = tpu.matmul %581, %582, %cst_273 {dimension_numbers = #tpu.dot_dimension_numbers<[1], [0], [0], [1], [0, 0, 1, 1], [], []>} : vector<2x1024xbf16>, vector<1024x128xbf16>, vector<2x128xf32> -> vector<2x128xf32>
    %c0_274 = arith.constant 0 : index
    %c0_275 = arith.constant 0 : index
    %584 = vector.load %arg43[%c0_274, %c0_275] : memref<1x128xf32, #tpu.memory_space<vmem>>, vector<1x128xf32>
    %585 = vector.broadcast %584 : vector<1x128xf32> to vector<2x128xf32>
    %586 = arith.addf %583, %585 : vector<2x128xf32>
    %c0_276 = arith.constant 0 : index
    %c0_277 = arith.constant 0 : index
    %587 = vector.load %arg44[%c0_276, %c0_277] : memref<2x128xf32, #tpu.memory_space<vmem>>, vector<2x128xf32>
    tpu.vector_store %arg44[%c0_276, %c0_277], %586 {strides = array<i32>} : memref<2x128xf32, #tpu.memory_space<vmem>>, vector<2x128xf32>,
    return
  }
  func.func @transform_0(%arg0: i32) -> (i32, i32, i32) {
    %c0_i32 = arith.constant 0 : i32
    %c0_i32_0 = arith.constant 0 : i32
    %c0_i32_1 = arith.constant 0 : i32
    %c0_i32_2 = arith.constant 0 : i32
    return %c0_i32, %c0_i32_0, %c0_i32_1 : i32, i32, i32
  }
  func.func @transform_1(%arg0: i32) -> (i32, i32) {
    %c0_i32 = arith.constant 0 : i32
    %c0_i32_0 = arith.constant 0 : i32
    %c0_i32_1 = arith.constant 0 : i32
    return %c0_i32, %c0_i32_0 : i32, i32
  }
  func.func @transform_2(%arg0: i32) -> (i32, i32) {
    %c0_i32 = arith.constant 0 : i32
    %c0_i32_0 = arith.constant 0 : i32
    %c0_i32_1 = arith.constant 0 : i32
    return %c0_i32, %c0_i32_0 : i32, i32
  }
  func.func @transform_3(%arg0: i32) -> (i32, i32) {
    %c0_i32 = arith.constant 0 : i32
    %c0_i32_0 = arith.constant 0 : i32
    %c0_i32_1 = arith.constant 0 : i32
    return %c0_i32, %c0_i32_0 : i32, i32
  }
  func.func @transform_4(%arg0: i32) -> (i32, i32) {
    %c0_i32 = arith.constant 0 : i32
    %c0_i32_0 = arith.constant 0 : i32
    %c0_i32_1 = arith.constant 0 : i32
    return %c0_i32, %c0_i32_0 : i32, i32
  }
  func.func @transform_5(%arg0: i32) -> (i32, i32) {
    %c0_i32 = arith.constant 0 : i32
    %c0_i32_0 = arith.constant 0 : i32
    %c0_i32_1 = arith.constant 0 : i32
    return %c0_i32, %c0_i32_0 : i32, i32
  }
  func.func @transform_6(%arg0: i32) -> (i32, i32) {
    %c0_i32 = arith.constant 0 : i32
    %c0_i32_0 = arith.constant 0 : i32
    %c0_i32_1 = arith.constant 0 : i32
    return %c0_i32, %c0_i32_0 : i32, i32
  }
  func.func @transform_7(%arg0: i32) -> (i32, i32) {
    %c0_i32 = arith.constant 0 : i32
    %c0_i32_0 = arith.constant 0 : i32
    %c0_i32_1 = arith.constant 0 : i32
    return %c0_i32, %c0_i32_0 : i32, i32
  }
  func.func @transform_8(%arg0: i32) -> (i32, i32) {
    %c0_i32 = arith.constant 0 : i32
    %c0_i32_0 = arith.constant 0 : i32
    %c0_i32_1 = arith.constant 0 : i32
    return %c0_i32, %c0_i32_0 : i32, i32
  }
  func.func @transform_9(%arg0: i32) -> (i32, i32) {
    %c0_i32 = arith.constant 0 : i32
    %c0_i32_0 = arith.constant 0 : i32
    %c0_i32_1 = arith.constant 0 : i32
    return %c0_i32, %c0_i32_0 : i32, i32
  }
  func.func @transform_10(%arg0: i32) -> (i32, i32) {
    %c0_i32 = arith.constant 0 : i32
    %c0_i32_0 = arith.constant 0 : i32
    %c0_i32_1 = arith.constant 0 : i32
    return %c0_i32, %c0_i32_0 : i32, i32
  }
  func.func @transform_11(%arg0: i32) -> (i32, i32) {
    %c0_i32 = arith.constant 0 : i32
    %c0_i32_0 = arith.constant 0 : i32
    %c0_i32_1 = arith.constant 0 : i32
    return %c0_i32, %c0_i32_0 : i32, i32
  }
  func.func @transform_12(%arg0: i32) -> (i32, i32) {
    %c0_i32 = arith.constant 0 : i32
    %c0_i32_0 = arith.constant 0 : i32
    %c0_i32_1 = arith.constant 0 : i32
    return %c0_i32, %c0_i32_0 : i32, i32
  }
  func.func @transform_13(%arg0: i32) -> (i32, i32) {
    %c0_i32 = arith.constant 0 : i32
    %c0_i32_0 = arith.constant 0 : i32
    %c0_i32_1 = arith.constant 0 : i32
    return %c0_i32, %c0_i32_0 : i32, i32
  }
  func.func @transform_14(%arg0: i32) -> (i32, i32) {
    %c0_i32 = arith.constant 0 : i32
    %c0_i32_0 = arith.constant 0 : i32
    %c0_i32_1 = arith.constant 0 : i32
    return %c0_i32, %c0_i32_0 : i32, i32
  }
  func.func @transform_15(%arg0: i32) -> (i32, i32) {
    %c0_i32 = arith.constant 0 : i32
    %c0_i32_0 = arith.constant 0 : i32
    %c0_i32_1 = arith.constant 0 : i32
    return %c0_i32, %c0_i32_0 : i32, i32
  }
  func.func @transform_16(%arg0: i32) -> (i32, i32) {
    %c0_i32 = arith.constant 0 : i32
    %c0_i32_0 = arith.constant 0 : i32
    %c0_i32_1 = arith.constant 0 : i32
    return %c0_i32, %c0_i32_0 : i32, i32
  }
  func.func @transform_17(%arg0: i32) -> (i32, i32) {
    %c0_i32 = arith.constant 0 : i32
    %c0_i32_0 = arith.constant 0 : i32
    %c0_i32_1 = arith.constant 0 : i32
    return %c0_i32, %c0_i32_0 : i32, i32
  }
  func.func @transform_18(%arg0: i32) -> (i32, i32) {
    %c0_i32 = arith.constant 0 : i32
    %c0_i32_0 = arith.constant 0 : i32
    %c0_i32_1 = arith.constant 0 : i32
    return %c0_i32, %c0_i32_0 : i32, i32
  }
  func.func @transform_19(%arg0: i32) -> (i32, i32) {
    %c0_i32 = arith.constant 0 : i32
    %c0_i32_0 = arith.constant 0 : i32
    %c0_i32_1 = arith.constant 0 : i32
    return %c0_i32, %c0_i32_0 : i32, i32
  }
  func.func @transform_20(%arg0: i32) -> (i32, i32) {
    %c0_i32 = arith.constant 0 : i32
    %c0_i32_0 = arith.constant 0 : i32
    %c0_i32_1 = arith.constant 0 : i32
    return %c0_i32, %c0_i32_0 : i32, i32
  }
  func.func @transform_21(%arg0: i32) -> (i32, i32) {
    %c0_i32 = arith.constant 0 : i32
    %c0_i32_0 = arith.constant 0 : i32
    %c0_i32_1 = arith.constant 0 : i32
    return %c0_i32, %c0_i32_0 : i32, i32
  }
  func.func @transform_22(%arg0: i32) -> (i32, i32) {
    %c0_i32 = arith.constant 0 : i32
    %c0_i32_0 = arith.constant 0 : i32
    %c0_i32_1 = arith.constant 0 : i32
    return %c0_i32, %c0_i32_0 : i32, i32
  }
  func.func @transform_23(%arg0: i32) -> (i32, i32) {
    %c0_i32 = arith.constant 0 : i32
    %c0_i32_0 = arith.constant 0 : i32
    %c0_i32_1 = arith.constant 0 : i32
    return %c0_i32, %c0_i32_0 : i32, i32
  }
  func.func @transform_24(%arg0: i32) -> (i32, i32) {
    %c0_i32 = arith.constant 0 : i32
    %c0_i32_0 = arith.constant 0 : i32
    %c0_i32_1 = arith.constant 0 : i32
    return %c0_i32, %c0_i32_0 : i32, i32
  }
  func.func @transform_25(%arg0: i32) -> (i32, i32) {
    %c0_i32 = arith.constant 0 : i32
    %c0_i32_0 = arith.constant 0 : i32
    %c0_i32_1 = arith.constant 0 : i32
    return %c0_i32, %c0_i32_0 : i32, i32
  }
  func.func @transform_26(%arg0: i32) -> (i32, i32) {
    %c0_i32 = arith.constant 0 : i32
    %c0_i32_0 = arith.constant 0 : i32
    %c0_i32_1 = arith.constant 0 : i32
    return %c0_i32, %c0_i32_0 : i32, i32
  }
  func.func @transform_27(%arg0: i32) -> (i32, i32) {
    %c0_i32 = arith.constant 0 : i32
    %c0_i32_0 = arith.constant 0 : i32
    %c0_i32_1 = arith.constant 0 : i32
    return %c0_i32, %c0_i32_0 : i32, i32
  }
  func.func @transform_28(%arg0: i32) -> (i32, i32) {
    %c0_i32 = arith.constant 0 : i32
    %c0_i32_0 = arith.constant 0 : i32
    %c0_i32_1 = arith.constant 0 : i32
    return %c0_i32, %c0_i32_0 : i32, i32
  }
  func.func @transform_29(%arg0: i32) -> (i32, i32) {
    %c0_i32 = arith.constant 0 : i32
    %c0_i32_0 = arith.constant 0 : i32
    %c0_i32_1 = arith.constant 0 : i32
    return %c0_i32, %c0_i32_0 : i32, i32
  }
  func.func @transform_30(%arg0: i32) -> (i32, i32) {
    %c0_i32 = arith.constant 0 : i32
    %c0_i32_0 = arith.constant 0 : i32
    %c0_i32_1 = arith.constant 0 : i32
    return %c0_i32, %c0_i32_0 : i32, i32
  }
  func.func @transform_31(%arg0: i32) -> (i32, i32) {
    %c0_i32 = arith.constant 0 : i32
    %c0_i32_0 = arith.constant 0 : i32
    %c0_i32_1 = arith.constant 0 : i32
    return %c0_i32, %c0_i32_0 : i32, i32
  }
  func.func @transform_32(%arg0: i32) -> (i32, i32) {
    %c0_i32 = arith.constant 0 : i32
    %c0_i32_0 = arith.constant 0 : i32
    %c0_i32_1 = arith.constant 0 : i32
    return %c0_i32, %c0_i32_0 : i32, i32
  }
  func.func @transform_33(%arg0: i32) -> (i32, i32) {
    %c0_i32 = arith.constant 0 : i32
    %c0_i32_0 = arith.constant 0 : i32
    %c0_i32_1 = arith.constant 0 : i32
    return %c0_i32, %c0_i32_0 : i32, i32
  }
  func.func @transform_34(%arg0: i32) -> (i32, i32) {
    %c0_i32 = arith.constant 0 : i32
    %c0_i32_0 = arith.constant 0 : i32
    %c0_i32_1 = arith.constant 0 : i32
    return %c0_i32, %c0_i32_0 : i32, i32
  }
  func.func @transform_35(%arg0: i32) -> (i32, i32) {
    %c0_i32 = arith.constant 0 : i32
    %c0_i32_0 = arith.constant 0 : i32
    %c0_i32_1 = arith.constant 0 : i32
    return %c0_i32, %c0_i32_0 : i32, i32
  }
  func.func @transform_36(%arg0: i32) -> (i32, i32) {
    %c0_i32 = arith.constant 0 : i32
    %c0_i32_0 = arith.constant 0 : i32
    %c0_i32_1 = arith.constant 0 : i32
    return %c0_i32, %c0_i32_0 : i32, i32
  }
  func.func @transform_37(%arg0: i32) -> (i32, i32) {
    %c0_i32 = arith.constant 0 : i32
    %c0_i32_0 = arith.constant 0 : i32
    %c0_i32_1 = arith.constant 0 : i32
    return %c0_i32, %c0_i32_0 : i32, i32
  }
  func.func @transform_38(%arg0: i32) -> (i32, i32) {
    %c0_i32 = arith.constant 0 : i32
    %c0_i32_0 = arith.constant 0 : i32
    %c0_i32_1 = arith.constant 0 : i32
    return %c0_i32, %c0_i32_0 : i32, i32
  }
  func.func @transform_39(%arg0: i32) -> (i32, i32) {
    %c0_i32 = arith.constant 0 : i32
    %c0_i32_0 = arith.constant 0 : i32
    %c0_i32_1 = arith.constant 0 : i32
    return %c0_i32, %c0_i32_0 : i32, i32
  }
  func.func @transform_40(%arg0: i32) -> (i32, i32) {
    %c0_i32 = arith.constant 0 : i32
    %c0_i32_0 = arith.constant 0 : i32
    %c0_i32_1 = arith.constant 0 : i32
    return %c0_i32, %c0_i32_0 : i32, i32
  }
  func.func @transform_41(%arg0: i32) -> (i32, i32) {
    %c0_i32 = arith.constant 0 : i32
    %c0_i32_0 = arith.constant 0 : i32
    %c0_i32_1 = arith.constant 0 : i32
    return %c0_i32, %c0_i32_0 : i32, i32
  }
  func.func @transform_42(%arg0: i32) -> (i32, i32) {
    %c0_i32 = arith.constant 0 : i32
    %c0_i32_0 = arith.constant 0 : i32
    %c0_i32_1 = arith.constant 0 : i32
    return %c0_i32, %c0_i32_0 : i32, i32
  }
  func.func @transform_43(%arg0: i32) -> (i32, i32) {
    %c0_i32 = arith.constant 0 : i32
    %c0_i32_0 = arith.constant 0 : i32
    %c0_i32_1 = arith.constant 0 : i32
    return %c0_i32, %c0_i32_0 : i32, i32
  }
}

</mosaic_0001>

<llo_original>
// kernel: forward.1
$region0: #{forward.1}
  #allocation0 [shape = 'u32[]', space=smem, size = 0x4, offset = 0x4, fixed_abs, tag = 'smem constant byte address 0x4 - core index']
  #allocation1 [shape = 'u32[144,128]{1,0:T(1,128)}', space=vmem, size = 0x12000, scoped, tag = 'internal scratch']
  %s0 = inlined_call_operand.smem [shape: u32[44], index: -1, kind: input, shape index: {}]
  %s1 = sld [smem:[%s0]]
  %s2 = scalar_lea.smem %s0, 1
  %s3 = sld [smem:[%s2]]
  %s4 = scalar_lea.smem %s0, 2
  %s5 = sld [smem:[%s4]]
  %s6 = scalar_lea.smem %s0, 3
  %s7 = sld [smem:[%s6]]
  %s8 = scalar_lea.smem %s0, 4
  %s9 = sld [smem:[%s8]]
  %s10 = scalar_lea.smem %s0, 5
  %s11 = sld [smem:[%s10]]
  %s12 = scalar_lea.smem %s0, 6
  %s13 = sld [smem:[%s12]]
  %s14 = scalar_lea.smem %s0, 7
  %s15 = sld [smem:[%s14]]
  %s16 = scalar_lea.smem %s0, 8
  %s17 = sld [smem:[%s16]]
  %s18 = scalar_lea.smem %s0, 9
  %s19 = sld [smem:[%s18]]
  %s20 = scalar_lea.smem %s0, 10
  %s21 = sld [smem:[%s20]]
  %s22 = scalar_lea.smem %s0, 11
  %s23 = sld [smem:[%s22]]
  %s24 = scalar_lea.smem %s0, 12
  %s25 = sld [smem:[%s24]]
  %s26 = scalar_lea.smem %s0, 13
  %s27 = sld [smem:[%s26]]
  %s28 = scalar_lea.smem %s0, 14
  %s29 = sld [smem:[%s28]]
  %s30 = scalar_lea.smem %s0, 15
  %s31 = sld [smem:[%s30]]
  %s32 = scalar_lea.smem %s0, 16
  %s33 = sld [smem:[%s32]]
  %s34 = scalar_lea.smem %s0, 17
  %s35 = sld [smem:[%s34]]
  %s36 = scalar_lea.smem %s0, 18
  %s37 = sld [smem:[%s36]]
  %s38 = scalar_lea.smem %s0, 19
  %s39 = sld [smem:[%s38]]
  %s40 = scalar_lea.smem %s0, 20
  %s41 = sld [smem:[%s40]]
  %s42 = scalar_lea.smem %s0, 21
  %s43 = sld [smem:[%s42]]
  %s44 = scalar_lea.smem %s0, 22
  %s45 = sld [smem:[%s44]]
  %s46 = scalar_lea.smem %s0, 23
  %s47 = sld [smem:[%s46]]
  %s48 = scalar_lea.smem %s0, 24
  %s49 = sld [smem:[%s48]]
  %s50 = scalar_lea.smem %s0, 25
  %s51 = sld [smem:[%s50]]
  %s52 = scalar_lea.smem %s0, 26
  %s53 = sld [smem:[%s52]]
  %s54 = scalar_lea.smem %s0, 27
  %s55 = sld [smem:[%s54]]
  %s56 = scalar_lea.smem %s0, 28
  %s57 = sld [smem:[%s56]]
  %s58 = scalar_lea.smem %s0, 29
  %s59 = sld [smem:[%s58]]
  %s60 = scalar_lea.smem %s0, 30
  %s61 = sld [smem:[%s60]]
  %s62 = scalar_lea.smem %s0, 31
  %s63 = sld [smem:[%s62]]
  %s64 = scalar_lea.smem %s0, 32
  %s65 = sld [smem:[%s64]]
  %s66 = scalar_lea.smem %s0, 33
  %s67 = sld [smem:[%s66]]
  %s68 = scalar_lea.smem %s0, 34
  %s69 = sld [smem:[%s68]]
  %s70 = scalar_lea.smem %s0, 35
  %s71 = sld [smem:[%s70]]
  %s72 = scalar_lea.smem %s0, 36
  %s73 = sld [smem:[%s72]]
  %s74 = scalar_lea.smem %s0, 37
  %s75 = sld [smem:[%s74]]
  %s76 = scalar_lea.smem %s0, 38
  %s77 = sld [smem:[%s76]]
  %s78 = scalar_lea.smem %s0, 39
  %s79 = sld [smem:[%s78]]
  %s80 = scalar_lea.smem %s0, 40
  %s81 = sld [smem:[%s80]]
  %s82 = scalar_lea.smem %s0, 41
  %s83 = sld [smem:[%s82]]
  %s84 = scalar_lea.smem %s0, 42
  %s85 = sld [smem:[%s84]]
  %s86 = scalar_lea.smem %s0, 43
  %s87 = sld [smem:[%s86]]
  %s88 = sld [smem:[#allocation0]]
  $region278: #{forward.1} parent=0
    _
  %s90 = ssub.s32 1, %s88
  %s91 = scalar_select 0, %s90, %s88
  $region1: #{forward.1} parent=0
    #allocation2 [shape = 'u8[12288]{0}', space=vmem, size = 0x3000, scoped, tag = 'input window, operand 2, single buffered']
    #allocation3 [shape = 's32[1]{0}', space=sflag, size = 0x4, scoped, tag = 'scoped memory for forward.1']
    #allocation4 [shape = 's32[1]{0}', space=sflag, size = 0x4, scoped, tag = 'scoped memory for forward.1']
    #allocation5 [shape = 'u8[512]{0}', space=vmem, size = 0x400, scoped, tag = 'input window, operand 3, single buffered']
    #allocation6 [shape = 's32[1]{0}', space=sflag, size = 0x4, scoped, tag = 'scoped memory for forward.1']
    #allocation7 [shape = 'u8[512]{0}', space=vmem, size = 0x400, scoped, tag = 'input window, operand 4, single buffered']
    #allocation8 [shape = 'u8[512]{0}', space=vmem, size = 0x400, scoped, tag = 'input window, operand 5, single buffered']
    #allocation9 [shape = 's32[1]{0}', space=sflag, size = 0x4, scoped, tag = 'scoped memory for forward.1']
    #allocation10 [shape = 'u8[512]{0}', space=vmem, size = 0x400, scoped, tag = 'input window, operand 6, single buffered']
    #allocation11 [shape = 'u8[32768]{0}', space=vmem, size = 0x8000, scoped, tag = 'input window, operand 7, single buffered']
    #allocation12 [shape = 's32[1]{0}', space=sflag, size = 0x4, scoped, tag = 'scoped memory for forward.1']
    #allocation13 [shape = 'u8[512]{0}', space=vmem, size = 0x400, scoped, tag = 'input window, operand 10, single buffered']
    #allocation14 [shape = 'u8[512]{0}', space=vmem, size = 0x400, scoped, tag = 'input window, operand 11, single buffered']
    #allocation15 [shape = 's32[1]{0}', space=sflag, size = 0x4, scoped, tag = 'scoped memory for forward.1']
    #allocation16 [shape = 'u8[512]{0}', space=vmem, size = 0x400, scoped, tag = 'input window, operand 12, single buffered']
    #allocation17 [shape = 'u8[32768]{0}', space=vmem, size = 0x8000, scoped, tag = 'input window, operand 13, single buffered']
    #allocation18 [shape = 's32[1]{0}', space=sflag, size = 0x4, scoped, tag = 'scoped memory for forward.1']
    #allocation19 [shape = 'u8[512]{0}', space=vmem, size = 0x400, scoped, tag = 'input window, operand 16, single buffered']
    #allocation20 [shape = 'u8[512]{0}', space=vmem, size = 0x400, scoped, tag = 'input window, operand 17, single buffered']
    #allocation21 [shape = 's32[1]{0}', space=sflag, size = 0x4, scoped, tag = 'scoped memory for forward.1']
    #allocation22 [shape = 'u8[512]{0}', space=vmem, size = 0x400, scoped, tag = 'input window, operand 18, single buffered']
    #allocation23 [shape = 'u8[32768]{0}', space=vmem, size = 0x8000, scoped, tag = 'input window, operand 19, single buffered']
    #allocation24 [shape = 's32[1]{0}', space=sflag, size = 0x4, scoped, tag = 'scoped memory for forward.1']
    #allocation25 [shape = 'u8[1024]{0}', space=vmem, size = 0x400, scoped, tag = 'input window, operand 20, single buffered']
    #allocation26 [shape = 'u8[16384]{0}', space=vmem, size = 0x4000, scoped, tag = 'input window, operand 21, single buffered']
    #allocation27 [shape = 's32[1]{0}', space=sflag, size = 0x4, scoped, tag = 'scoped memory for forward.1']
    #allocation28 [shape = 'u8[512]{0}', space=vmem, size = 0x400, scoped, tag = 'input window, operand 22, single buffered']
    #allocation29 [shape = 'u8[512]{0}', space=vmem, size = 0x400, scoped, tag = 'input window, operand 23, single buffered']
    #allocation30 [shape = 's32[1]{0}', space=sflag, size = 0x4, scoped, tag = 'scoped memory for forward.1']
    #allocation31 [shape = 'u8[512]{0}', space=vmem, size = 0x400, scoped, tag = 'input window, operand 24, single buffered']
    #allocation32 [shape = 'u8[32768]{0}', space=vmem, size = 0x8000, scoped, tag = 'input window, operand 25, single buffered']
    #allocation33 [shape = 's32[1]{0}', space=sflag, size = 0x4, scoped, tag = 'scoped memory for forward.1']
    #allocation34 [shape = 'u8[1024]{0}', space=vmem, size = 0x400, scoped, tag = 'input window, operand 26, single buffered']
    #allocation35 [shape = 'u8[512]{0}', space=vmem, size = 0x400, scoped, tag = 'input window, operand 28, single buffered']
    #allocation36 [shape = 's32[1]{0}', space=sflag, size = 0x4, scoped, tag = 'scoped memory for forward.1']
    #allocation37 [shape = 'u8[512]{0}', space=vmem, size = 0x400, scoped, tag = 'input window, operand 29, single buffered']
    #allocation38 [shape = 'u8[512]{0}', space=vmem, size = 0x400, scoped, tag = 'input window, operand 30, single buffered']
    #allocation39 [shape = 's32[1]{0}', space=sflag, size = 0x4, scoped, tag = 'scoped memory for forward.1']
    #allocation40 [shape = 'u8[1024]{0}', space=vmem, size = 0x400, scoped, tag = 'output window, operand 0, single buffered']
    %92 = vsyncpa [#allocation3], 0
    %93 = vsyncpa [#allocation6], 0
    %94 = vsyncpa [#allocation9], 0
    %95 = vsyncpa [#allocation12], 0
    %96 = vsyncpa [#allocation15], 0
    %97 = vsyncpa [#allocation18], 0
    %98 = vsyncpa [#allocation21], 0
    %99 = vsyncpa [#allocation24], 0
    %100 = vsyncpa [#allocation27], 0
    %101 = vsyncpa [#allocation30], 0
    %102 = vsyncpa [#allocation33], 0
    %103 = vsyncpa [#allocation36], 0
    %104 = vsyncpa [#allocation39], 0
    %105 = vsyncpa [#allocation4], 0
    // Predicated region
    $region2: #{forward.1} parent=1 // pred_check
      _
    $region3: #{forward.1} parent=1 // pred_check_branch
      %107 = sbr.rel (0) target = $region5
    $region4: #{forward.1} parent=1 // pred_region
      _
    $region5: #{forward.1} parent=1 // pred_fallthru
      _
    // Predicated region
    $region6: #{forward.1} parent=1 // pred_check
      _
    $region7: #{forward.1} parent=1 // pred_check_branch
      %109 = sbr.rel (0) target = $region9
    $region8: #{forward.1} parent=1 // pred_region
      _
    $region9: #{forward.1} parent=1 // pred_fallthru
      _
    // Predicated region
    $region10: #{forward.1} parent=1 // pred_check
      _
    $region11: #{forward.1} parent=1 // pred_check_branch
      %111 = sbr.rel (0) target = $region13
    $region12: #{forward.1} parent=1 // pred_region
      %s113 = ssub.s32 384, 384
      %114 = vsyncadd [#allocation3], %s113
      %s115 = sshll.u32 [#allocation2], 4
      %s116 = int_to_ptr.vmem [resolvable:$true] %s115
      %121 = dma.hbm_to_vmem [thread:$0]  %s5, 384, %s116, [#allocation3], 128, 128, 8
    $region13: #{forward.1} parent=1 // pred_fallthru
      _
    // Predicated region
    $region14: #{forward.1} parent=1 // pred_check
      _
    $region15: #{forward.1} parent=1 // pred_check_branch
      %123 = sbr.rel (0) target = $region17
    $region16: #{forward.1} parent=1 // pred_region
      %s125 = ssub.s32 16, 16
      %126 = vsyncadd [#allocation6], %s125
      %s128 = sshll.u32 [#allocation5], 4
      %s129 = int_to_ptr.vmem [resolvable:$true] %s128
      %131 = dma.hbm_to_vmem [thread:$0]  %s7, 16, %s129, [#allocation6]
    $region17: #{forward.1} parent=1 // pred_fallthru
      _
    // Predicated region
    $region18: #{forward.1} parent=1 // pred_check
      _
    $region19: #{forward.1} parent=1 // pred_check_branch
      %133 = sbr.rel (0) target = $region21
    $region20: #{forward.1} parent=1 // pred_region
      %s135 = ssub.s32 16, 16
      %136 = vsyncadd [#allocation6], %s135
      %s138 = sshll.u32 [#allocation7], 4
      %s139 = int_to_ptr.vmem [resolvable:$true] %s138
      %141 = dma.hbm_to_vmem [thread:$0]  %s9, 16, %s139, [#allocation6]
    $region21: #{forward.1} parent=1 // pred_fallthru
      _
    // Predicated region
    $region22: #{forward.1} parent=1 // pred_check
      _
    $region23: #{forward.1} parent=1 // pred_check_branch
      %143 = sbr.rel (0) target = $region25
    $region24: #{forward.1} parent=1 // pred_region
      %s145 = ssub.s32 16, 16
      %146 = vsyncadd [#allocation9], %s145
      %s148 = sshll.u32 [#allocation8], 4
      %s149 = int_to_ptr.vmem [resolvable:$true] %s148
      %151 = dma.hbm_to_vmem [thread:$0]  %s11, 16, %s149, [#allocation9]
    $region25: #{forward.1} parent=1 // pred_fallthru
      _
    // Predicated region
    $region26: #{forward.1} parent=1 // pred_check
      _
    $region27: #{forward.1} parent=1 // pred_check_branch
      %153 = sbr.rel (0) target = $region29
    $region28: #{forward.1} parent=1 // pred_region
      %s155 = ssub.s32 16, 16
      %156 = vsyncadd [#allocation9], %s155
      %s158 = sshll.u32 [#allocation10], 4
      %s159 = int_to_ptr.vmem [resolvable:$true] %s158
      %161 = dma.hbm_to_vmem [thread:$0]  %s13, 16, %s159, [#allocation9]
    $region29: #{forward.1} parent=1 // pred_fallthru
      _
    // Predicated region
    $region30: #{forward.1} parent=1 // pred_check
      _
    $region31: #{forward.1} parent=1 // pred_check_branch
      %163 = sbr.rel (0) target = $region33
    $region32: #{forward.1} parent=1 // pred_region
      %s165 = ssub.s32 1024, 1024
      %166 = vsyncadd [#allocation12], %s165
      %s167 = sshll.u32 [#allocation11], 4
      %s168 = int_to_ptr.vmem [resolvable:$true] %s167
      %173 = dma.hbm_to_vmem [thread:$0]  %s15, 1024, %s168, [#allocation12], 128, 128, 8
    $region33: #{forward.1} parent=1 // pred_fallthru
      _
    // Predicated region
    $region34: #{forward.1} parent=1 // pred_check
      _
    $region35: #{forward.1} parent=1 // pred_check_branch
      %175 = sbr.rel (0) target = $region37
    $region36: #{forward.1} parent=1 // pred_region
      _
    $region37: #{forward.1} parent=1 // pred_fallthru
      _
    // Predicated region
    $region38: #{forward.1} parent=1 // pred_check
      _
    $region39: #{forward.1} parent=1 // pred_check_branch
      %177 = sbr.rel (0) target = $region41
    $region40: #{forward.1} parent=1 // pred_region
      _
    $region41: #{forward.1} parent=1 // pred_fallthru
      _
    // Predicated region
    $region42: #{forward.1} parent=1 // pred_check
      _
    $region43: #{forward.1} parent=1 // pred_check_branch
      %179 = sbr.rel (0) target = $region45
    $region44: #{forward.1} parent=1 // pred_region
      %s181 = ssub.s32 16, 16
      %182 = vsyncadd [#allocation12], %s181
      %s184 = sshll.u32 [#allocation13], 4
      %s185 = int_to_ptr.vmem [resolvable:$true] %s184
      %187 = dma.hbm_to_vmem [thread:$0]  %s21, 16, %s185, [#allocation12]
    $region45: #{forward.1} parent=1 // pred_fallthru
      _
    // Predicated region
    $region46: #{forward.1} parent=1 // pred_check
      _
    $region47: #{forward.1} parent=1 // pred_check_branch
      %189 = sbr.rel (0) target = $region49
    $region48: #{forward.1} parent=1 // pred_region
      %s191 = ssub.s32 16, 16
      %192 = vsyncadd [#allocation15], %s191
      %s194 = sshll.u32 [#allocation14], 4
      %s195 = int_to_ptr.vmem [resolvable:$true] %s194
      %197 = dma.hbm_to_vmem [thread:$0]  %s23, 16, %s195, [#allocation15]
    $region49: #{forward.1} parent=1 // pred_fallthru
      _
    // Predicated region
    $region50: #{forward.1} parent=1 // pred_check
      _
    $region51: #{forward.1} parent=1 // pred_check_branch
      %199 = sbr.rel (0) target = $region53
    $region52: #{forward.1} parent=1 // pred_region
      %s201 = ssub.s32 16, 16
      %202 = vsyncadd [#allocation15], %s201
      %s204 = sshll.u32 [#allocation16], 4
      %s205 = int_to_ptr.vmem [resolvable:$true] %s204
      %207 = dma.hbm_to_vmem [thread:$0]  %s25, 16, %s205, [#allocation15]
    $region53: #{forward.1} parent=1 // pred_fallthru
      _
    // Predicated region
    $region54: #{forward.1} parent=1 // pred_check
      _
    $region55: #{forward.1} parent=1 // pred_check_branch
      %209 = sbr.rel (0) target = $region57
    $region56: #{forward.1} parent=1 // pred_region
      %s211 = ssub.s32 1024, 1024
      %212 = vsyncadd [#allocation18], %s211
      %s213 = sshll.u32 [#allocation17], 4
      %s214 = int_to_ptr.vmem [resolvable:$true] %s213
      %219 = dma.hbm_to_vmem [thread:$0]  %s27, 1024, %s214, [#allocation18], 128, 128, 8
    $region57: #{forward.1} parent=1 // pred_fallthru
      _
    // Predicated region
    $region58: #{forward.1} parent=1 // pred_check
      _
    $region59: #{forward.1} parent=1 // pred_check_branch
      %221 = sbr.rel (0) target = $region61
    $region60: #{forward.1} parent=1 // pred_region
      _
    $region61: #{forward.1} parent=1 // pred_fallthru
      _
    // Predicated region
    $region62: #{forward.1} parent=1 // pred_check
      _
    $region63: #{forward.1} parent=1 // pred_check_branch
      %223 = sbr.rel (0) target = $region65
    $region64: #{forward.1} parent=1 // pred_region
      _
    $region65: #{forward.1} parent=1 // pred_fallthru
      _
    // Predicated region
    $region66: #{forward.1} parent=1 // pred_check
      _
    $region67: #{forward.1} parent=1 // pred_check_branch
      %225 = sbr.rel (0) target = $region69
    $region68: #{forward.1} parent=1 // pred_region
      %s227 = ssub.s32 16, 16
      %228 = vsyncadd [#allocation18], %s227
      %s230 = sshll.u32 [#allocation19], 4
      %s231 = int_to_ptr.vmem [resolvable:$true] %s230
      %233 = dma.hbm_to_vmem [thread:$0]  %s33, 16, %s231, [#allocation18]
    $region69: #{forward.1} parent=1 // pred_fallthru
      _
    // Predicated region
    $region70: #{forward.1} parent=1 // pred_check
      _
    $region71: #{forward.1} parent=1 // pred_check_branch
      %235 = sbr.rel (0) target = $region73
    $region72: #{forward.1} parent=1 // pred_region
      %s237 = ssub.s32 16, 16
      %238 = vsyncadd [#allocation21], %s237
      %s240 = sshll.u32 [#allocation20], 4
      %s241 = int_to_ptr.vmem [resolvable:$true] %s240
      %243 = dma.hbm_to_vmem [thread:$0]  %s35, 16, %s241, [#allocation21]
    $region73: #{forward.1} parent=1 // pred_fallthru
      _
    // Predicated region
    $region74: #{forward.1} parent=1 // pred_check
      _
    $region75: #{forward.1} parent=1 // pred_check_branch
      %245 = sbr.rel (0) target = $region77
    $region76: #{forward.1} parent=1 // pred_region
      %s247 = ssub.s32 16, 16
      %248 = vsyncadd [#allocation21], %s247
      %s250 = sshll.u32 [#allocation22], 4
      %s251 = int_to_ptr.vmem [resolvable:$true] %s250
      %253 = dma.hbm_to_vmem [thread:$0]  %s37, 16, %s251, [#allocation21]
    $region77: #{forward.1} parent=1 // pred_fallthru
      _
    // Predicated region
    $region78: #{forward.1} parent=1 // pred_check
      _
    $region79: #{forward.1} parent=1 // pred_check_branch
      %255 = sbr.rel (0) target = $region81
    $region80: #{forward.1} parent=1 // pred_region
      %s257 = ssub.s32 1024, 1024
      %258 = vsyncadd [#allocation24], %s257
      %s259 = sshll.u32 [#allocation23], 4
      %s260 = int_to_ptr.vmem [resolvable:$true] %s259
      %265 = dma.hbm_to_vmem [thread:$0]  %s39, 1024, %s260, [#allocation24], 128, 128, 8
    $region81: #{forward.1} parent=1 // pred_fallthru
      _
    // Predicated region
    $region82: #{forward.1} parent=1 // pred_check
      _
    $region83: #{forward.1} parent=1 // pred_check_branch
      %267 = sbr.rel (0) target = $region85
    $region84: #{forward.1} parent=1 // pred_region
      %s269 = ssub.s32 32, 32
      %270 = vsyncadd [#allocation24], %s269
      %s272 = sshll.u32 [#allocation25], 4
      %s273 = int_to_ptr.vmem [resolvable:$true] %s272
      %275 = dma.hbm_to_vmem [thread:$0]  %s41, 32, %s273, [#allocation24]
    $region85: #{forward.1} parent=1 // pred_fallthru
      _
    // Predicated region
    $region86: #{forward.1} parent=1 // pred_check
      _
    $region87: #{forward.1} parent=1 // pred_check_branch
      %277 = sbr.rel (0) target = $region89
    $region88: #{forward.1} parent=1 // pred_region
      %s279 = ssub.s32 512, 512
      %280 = vsyncadd [#allocation27], %s279
      %s281 = sshll.u32 [#allocation26], 4
      %s282 = int_to_ptr.vmem [resolvable:$true] %s281
      %287 = dma.hbm_to_vmem [thread:$0]  %s43, 512, %s282, [#allocation27], 64, 64, 4
    $region89: #{forward.1} parent=1 // pred_fallthru
      _
    // Predicated region
    $region90: #{forward.1} parent=1 // pred_check
      _
    $region91: #{forward.1} parent=1 // pred_check_branch
      %289 = sbr.rel (0) target = $region93
    $region92: #{forward.1} parent=1 // pred_region
      %s291 = ssub.s32 16, 16
      %292 = vsyncadd [#allocation27], %s291
      %s294 = sshll.u32 [#allocation28], 4
      %s295 = int_to_ptr.vmem [resolvable:$true] %s294
      %297 = dma.hbm_to_vmem [thread:$0]  %s45, 16, %s295, [#allocation27]
    $region93: #{forward.1} parent=1 // pred_fallthru
      _
    // Predicated region
    $region94: #{forward.1} parent=1 // pred_check
      _
    $region95: #{forward.1} parent=1 // pred_check_branch
      %299 = sbr.rel (0) target = $region97
    $region96: #{forward.1} parent=1 // pred_region
      %s301 = ssub.s32 16, 16
      %302 = vsyncadd [#allocation30], %s301
      %s304 = sshll.u32 [#allocation29], 4
      %s305 = int_to_ptr.vmem [resolvable:$true] %s304
      %307 = dma.hbm_to_vmem [thread:$0]  %s47, 16, %s305, [#allocation30]
    $region97: #{forward.1} parent=1 // pred_fallthru
      _
    // Predicated region
    $region98: #{forward.1} parent=1 // pred_check
      _
    $region99: #{forward.1} parent=1 // pred_check_branch
      %309 = sbr.rel (0) target = $region101
    $region100: #{forward.1} parent=1 // pred_region
      %s311 = ssub.s32 16, 16
      %312 = vsyncadd [#allocation30], %s311
      %s314 = sshll.u32 [#allocation31], 4
      %s315 = int_to_ptr.vmem [resolvable:$true] %s314
      %317 = dma.hbm_to_vmem [thread:$0]  %s49, 16, %s315, [#allocation30]
    $region101: #{forward.1} parent=1 // pred_fallthru
      _
    // Predicated region
    $region102: #{forward.1} parent=1 // pred_check
      _
    $region103: #{forward.1} parent=1 // pred_check_branch
      %319 = sbr.rel (0) target = $region105
    $region104: #{forward.1} parent=1 // pred_region
      %s321 = ssub.s32 1024, 1024
      %322 = vsyncadd [#allocation33], %s321
      %s323 = sshll.u32 [#allocation32], 4
      %s324 = int_to_ptr.vmem [resolvable:$true] %s323
      %329 = dma.hbm_to_vmem [thread:$0]  %s51, 1024, %s324, [#allocation33], 128, 128, 8
    $region105: #{forward.1} parent=1 // pred_fallthru
      _
    // Predicated region
    $region106: #{forward.1} parent=1 // pred_check
      _
    $region107: #{forward.1} parent=1 // pred_check_branch
      %331 = sbr.rel (0) target = $region109
    $region108: #{forward.1} parent=1 // pred_region
      %s333 = ssub.s32 32, 32
      %334 = vsyncadd [#allocation33], %s333
      %s336 = sshll.u32 [#allocation34], 4
      %s337 = int_to_ptr.vmem [resolvable:$true] %s336
      %339 = dma.hbm_to_vmem [thread:$0]  %s53, 32, %s337, [#allocation33]
    $region109: #{forward.1} parent=1 // pred_fallthru
      _
    // Predicated region
    $region110: #{forward.1} parent=1 // pred_check
      _
    $region111: #{forward.1} parent=1 // pred_check_branch
      %341 = sbr.rel (0) target = $region113
    $region112: #{forward.1} parent=1 // pred_region
      _
    $region113: #{forward.1} parent=1 // pred_fallthru
      _
    // Predicated region
    $region114: #{forward.1} parent=1 // pred_check
      _
    $region115: #{forward.1} parent=1 // pred_check_branch
      %343 = sbr.rel (0) target = $region117
    $region116: #{forward.1} parent=1 // pred_region
      %s345 = ssub.s32 16, 16
      %346 = vsyncadd [#allocation36], %s345
      %s348 = sshll.u32 [#allocation35], 4
      %s349 = int_to_ptr.vmem [resolvable:$true] %s348
      %351 = dma.hbm_to_vmem [thread:$0]  %s57, 16, %s349, [#allocation36]
    $region117: #{forward.1} parent=1 // pred_fallthru
      _
    // Predicated region
    $region118: #{forward.1} parent=1 // pred_check
      _
    $region119: #{forward.1} parent=1 // pred_check_branch
      %353 = sbr.rel (0) target = $region121
    $region120: #{forward.1} parent=1 // pred_region
      %s355 = ssub.s32 16, 16
      %356 = vsyncadd [#allocation36], %s355
      %s358 = sshll.u32 [#allocation37], 4
      %s359 = int_to_ptr.vmem [resolvable:$true] %s358
      %361 = dma.hbm_to_vmem [thread:$0]  %s59, 16, %s359, [#allocation36]
    $region121: #{forward.1} parent=1 // pred_fallthru
      _
    // Predicated region
    $region122: #{forward.1} parent=1 // pred_check
      _
    $region123: #{forward.1} parent=1 // pred_check_branch
      %363 = sbr.rel (0) target = $region125
    $region124: #{forward.1} parent=1 // pred_region
      %s365 = ssub.s32 16, 16
      %366 = vsyncadd [#allocation39], %s365
      %s368 = sshll.u32 [#allocation38], 4
      %s369 = int_to_ptr.vmem [resolvable:$true] %s368
      %371 = dma.hbm_to_vmem [thread:$0]  %s61, 16, %s369, [#allocation39]
    $region125: #{forward.1} parent=1 // pred_fallthru
      _
    // Predicated region
    $region126: #{forward.1} parent=1 // pred_check
      _
    $region127: #{forward.1} parent=1 // pred_check_branch
      %373 = sbr.rel (0) target = $region129
    $region128: #{forward.1} parent=1 // pred_region
      _
    $region129: #{forward.1} parent=1 // pred_fallthru
      _
    // Predicated region
    $region130: #{forward.1} parent=1 // pred_check
      _
    $region131: #{forward.1} parent=1 // pred_check_branch
      %375 = sbr.rel (0) target = $region133
    $region132: #{forward.1} parent=1 // pred_region
      _
    $region133: #{forward.1} parent=1 // pred_fallthru
      _
    // Predicated region
    $region134: #{forward.1} parent=1 // pred_check
      _
    $region135: #{forward.1} parent=1 // pred_check_branch
      %377 = sbr.rel (0) target = $region137
    $region136: #{forward.1} parent=1 // pred_region
      _
    $region137: #{forward.1} parent=1 // pred_fallthru
      _
    // Predicated region
    $region138: #{forward.1} parent=1 // pred_check
      _
    $region139: #{forward.1} parent=1 // pred_check_branch
      %379 = sbr.rel (0) target = $region141
    $region140: #{forward.1} parent=1 // pred_region
      _
    $region141: #{forward.1} parent=1 // pred_fallthru
      _
    // Predicated region
    $region142: #{forward.1} parent=1 // pred_check
      _
    $region143: #{forward.1} parent=1 // pred_check_branch
      %381 = sbr.rel (0) target = $region145
    $region144: #{forward.1} parent=1 // pred_region
      _
    $region145: #{forward.1} parent=1 // pred_fallthru
      _
    // Predicated region
    $region146: #{forward.1} parent=1 // pred_check
      _
    $region147: #{forward.1} parent=1 // pred_check_branch
      %383 = sbr.rel (0) target = $region149
    $region148: #{forward.1} parent=1 // pred_region
      _
    $region149: #{forward.1} parent=1 // pred_fallthru
      _
    // Predicated region
    $region150: #{forward.1} parent=1 // pred_check
      _
    $region151: #{forward.1} parent=1 // pred_check_branch
      %385 = sbr.rel (0) target = $region153
    $region152: #{forward.1} parent=1 // pred_region
      _
    $region153: #{forward.1} parent=1 // pred_fallthru
      _
    // Predicated region
    $region154: #{forward.1} parent=1 // pred_check
      _
    $region155: #{forward.1} parent=1 // pred_check_branch
      %387 = sbr.rel (0) target = $region157
    $region156: #{forward.1} parent=1 // pred_region
      _
    $region157: #{forward.1} parent=1 // pred_fallthru
      _
    // Predicated region
    $region158: #{forward.1} parent=1 // pred_check
      _
    $region159: #{forward.1} parent=1 // pred_check_branch
      %389 = sbr.rel (0) target = $region161
    $region160: #{forward.1} parent=1 // pred_region
      _
    $region161: #{forward.1} parent=1 // pred_fallthru
      _
    // Predicated region
    $region162: #{forward.1} parent=1 // pred_check
      _
    $region163: #{forward.1} parent=1 // pred_check_branch
      %391 = sbr.rel (0) target = $region165
    $region164: #{forward.1} parent=1 // pred_region
      _
    $region165: #{forward.1} parent=1 // pred_fallthru
      _
    // Predicated region
    $region166: #{forward.1} parent=1 // pred_check
      _
    $region167: #{forward.1} parent=1 // pred_check_branch
      %393 = sbr.rel (0) target = $region169
    $region168: #{forward.1} parent=1 // pred_region
      _
    $region169: #{forward.1} parent=1 // pred_fallthru
      _
    // Predicated region
    $region170: #{forward.1} parent=1 // pred_check
      _
    $region171: #{forward.1} parent=1 // pred_check_branch
      %395 = sbr.rel (0) target = $region173
    $region172: #{forward.1} parent=1 // pred_region
      _
    $region173: #{forward.1} parent=1 // pred_fallthru
      _
    // Predicated region
    $region174: #{forward.1} parent=1 // pred_check
      _
    $region175: #{forward.1} parent=1 // pred_check_branch
      %397 = sbr.rel (0) target = $region177
    $region176: #{forward.1} parent=1 // pred_region
      %398 = dma.done [#allocation3], 384
    $region177: #{forward.1} parent=1 // pred_fallthru
      _
    // Predicated region
    $region178: #{forward.1} parent=1 // pred_check
      _
    $region179: #{forward.1} parent=1 // pred_check_branch
      %400 = sbr.rel (0) target = $region181
    $region180: #{forward.1} parent=1 // pred_region
      %401 = dma.done [#allocation6], 16
    $region181: #{forward.1} parent=1 // pred_fallthru
      _
    // Predicated region
    $region182: #{forward.1} parent=1 // pred_check
      _
    $region183: #{forward.1} parent=1 // pred_check_branch
      %403 = sbr.rel (0) target = $region185
    $region184: #{forward.1} parent=1 // pred_region
      %404 = dma.done [#allocation6], 16
    $region185: #{forward.1} parent=1 // pred_fallthru
      _
    // Predicated region
    $region186: #{forward.1} parent=1 // pred_check
      _
    $region187: #{forward.1} parent=1 // pred_check_branch
      %406 = sbr.rel (0) target = $region189
    $region188: #{forward.1} parent=1 // pred_region
      %407 = dma.done [#allocation9], 16
    $region189: #{forward.1} parent=1 // pred_fallthru
      _
    // Predicated region
    $region190: #{forward.1} parent=1 // pred_check
      _
    $region191: #{forward.1} parent=1 // pred_check_branch
      %409 = sbr.rel (0) target = $region193
    $region192: #{forward.1} parent=1 // pred_region
      %410 = dma.done [#allocation9], 16
    $region193: #{forward.1} parent=1 // pred_fallthru
      _
    // Predicated region
    $region194: #{forward.1} parent=1 // pred_check
      _
    $region195: #{forward.1} parent=1 // pred_check_branch
      %412 = sbr.rel (0) target = $region197
    $region196: #{forward.1} parent=1 // pred_region
      %413 = dma.done [#allocation12], 1024
    $region197: #{forward.1} parent=1 // pred_fallthru
      _
    // Predicated region
    $region198: #{forward.1} parent=1 // pred_check
      _
    $region199: #{forward.1} parent=1 // pred_check_branch
      %415 = sbr.rel (0) target = $region201
    $region200: #{forward.1} parent=1 // pred_region
      %416 = dma.done [#allocation12], 16
    $region201: #{forward.1} parent=1 // pred_fallthru
      _
    // Predicated region
    $region202: #{forward.1} parent=1 // pred_check
      _
    $region203: #{forward.1} parent=1 // pred_check_branch
      %418 = sbr.rel (0) target = $region205
    $region204: #{forward.1} parent=1 // pred_region
      %419 = dma.done [#allocation15], 16
    $region205: #{forward.1} parent=1 // pred_fallthru
      _
    // Predicated region
    $region206: #{forward.1} parent=1 // pred_check
      _
    $region207: #{forward.1} parent=1 // pred_check_branch
      %421 = sbr.rel (0) target = $region209
    $region208: #{forward.1} parent=1 // pred_region
      %422 = dma.done [#allocation15], 16
    $region209: #{forward.1} parent=1 // pred_fallthru
      _
    // Predicated region
    $region210: #{forward.1} parent=1 // pred_check
      _
    $region211: #{forward.1} parent=1 // pred_check_branch
      %424 = sbr.rel (0) target = $region213
    $region212: #{forward.1} parent=1 // pred_region
      %425 = dma.done [#allocation18], 1024
    $region213: #{forward.1} parent=1 // pred_fallthru
      _
    // Predicated region
    $region214: #{forward.1} parent=1 // pred_check
      _
    $region215: #{forward.1} parent=1 // pred_check_branch
      %427 = sbr.rel (0) target = $region217
    $region216: #{forward.1} parent=1 // pred_region
      %428 = dma.done [#allocation18], 16
    $region217: #{forward.1} parent=1 // pred_fallthru
      _
    // Predicated region
    $region218: #{forward.1} parent=1 // pred_check
      _
    $region219: #{forward.1} parent=1 // pred_check_branch
      %430 = sbr.rel (0) target = $region221
    $region220: #{forward.1} parent=1 // pred_region
      %431 = dma.done [#allocation21], 16
    $region221: #{forward.1} parent=1 // pred_fallthru
      _
    // Predicated region
    $region222: #{forward.1} parent=1 // pred_check
      _
    $region223: #{forward.1} parent=1 // pred_check_branch
      %433 = sbr.rel (0) target = $region225
    $region224: #{forward.1} parent=1 // pred_region
      %434 = dma.done [#allocation21], 16
    $region225: #{forward.1} parent=1 // pred_fallthru
      _
    // Predicated region
    $region226: #{forward.1} parent=1 // pred_check
      _
    $region227: #{forward.1} parent=1 // pred_check_branch
      %436 = sbr.rel (0) target = $region229
    $region228: #{forward.1} parent=1 // pred_region
      %437 = dma.done [#allocation24], 1024
    $region229: #{forward.1} parent=1 // pred_fallthru
      _
    // Predicated region
    $region230: #{forward.1} parent=1 // pred_check
      _
    $region231: #{forward.1} parent=1 // pred_check_branch
      %439 = sbr.rel (0) target = $region233
    $region232: #{forward.1} parent=1 // pred_region
      %440 = dma.done [#allocation24], 32
    $region233: #{forward.1} parent=1 // pred_fallthru
      _
    // Predicated region
    $region234: #{forward.1} parent=1 // pred_check
      _
    $region235: #{forward.1} parent=1 // pred_check_branch
      %442 = sbr.rel (0) target = $region237
    $region236: #{forward.1} parent=1 // pred_region
      %443 = dma.done [#allocation27], 512
    $region237: #{forward.1} parent=1 // pred_fallthru
      _
    // Predicated region
    $region238: #{forward.1} parent=1 // pred_check
      _
    $region239: #{forward.1} parent=1 // pred_check_branch
      %445 = sbr.rel (0) target = $region241
    $region240: #{forward.1} parent=1 // pred_region
      %446 = dma.done [#allocation27], 16
    $region241: #{forward.1} parent=1 // pred_fallthru
      _
    // Predicated region
    $region242: #{forward.1} parent=1 // pred_check
      _
    $region243: #{forward.1} parent=1 // pred_check_branch
      %448 = sbr.rel (0) target = $region245
    $region244: #{forward.1} parent=1 // pred_region
      %449 = dma.done [#allocation30], 16
    $region245: #{forward.1} parent=1 // pred_fallthru
      _
    // Predicated region
    $region246: #{forward.1} parent=1 // pred_check
      _
    $region247: #{forward.1} parent=1 // pred_check_branch
      %451 = sbr.rel (0) target = $region249
    $region248: #{forward.1} parent=1 // pred_region
      %452 = dma.done [#allocation30], 16
    $region249: #{forward.1} parent=1 // pred_fallthru
      _
    // Predicated region
    $region250: #{forward.1} parent=1 // pred_check
      _
    $region251: #{forward.1} parent=1 // pred_check_branch
      %454 = sbr.rel (0) target = $region253
    $region252: #{forward.1} parent=1 // pred_region
      %455 = dma.done [#allocation33], 1024
    $region253: #{forward.1} parent=1 // pred_fallthru
      _
    // Predicated region
    $region254: #{forward.1} parent=1 // pred_check
      _
    $region255: #{forward.1} parent=1 // pred_check_branch
      %457 = sbr.rel (0) target = $region257
    $region256: #{forward.1} parent=1 // pred_region
      %458 = dma.done [#allocation33], 32
    $region257: #{forward.1} parent=1 // pred_fallthru
      _
    // Predicated region
    $region258: #{forward.1} parent=1 // pred_check
      _
    $region259: #{forward.1} parent=1 // pred_check_branch
      %460 = sbr.rel (0) target = $region261
    $region260: #{forward.1} parent=1 // pred_region
      %461 = dma.done [#allocation36], 16
    $region261: #{forward.1} parent=1 // pred_fallthru
      _
    // Predicated region
    $region262: #{forward.1} parent=1 // pred_check
      _
    $region263: #{forward.1} parent=1 // pred_check_branch
      %463 = sbr.rel (0) target = $region265
    $region264: #{forward.1} parent=1 // pred_region
      %464 = dma.done [#allocation36], 16
    $region265: #{forward.1} parent=1 // pred_fallthru
      _
    // Predicated region
    $region266: #{forward.1} parent=1 // pred_check
      _
    $region267: #{forward.1} parent=1 // pred_check_branch
      %466 = sbr.rel (0) target = $region269
    $region268: #{forward.1} parent=1 // pred_region
      %467 = dma.done [#allocation39], 16
    $region269: #{forward.1} parent=1 // pred_fallthru
      _
    %v469 = vld [vmem:[%s1] sm:$0xff]
    %v470 = vld [vmem:[%s1 + $0x8] sm:$0xff]
    %v471 = vld [vmem:[%s1 + $0x10] sm:$0x11]
    %v472 = vld [vmem:[%s3] sm:$0xf]
    %v473 = vld [vmem:[%s3 + $0x4] sm:$0xf]
    %v474 = vld [vmem:[%s3 + $0x8] sm:$0xf]
    %v475 = vld [vmem:[%s3 + $0xc] sm:$0xf]
    %v476 = vld [vmem:[%s3 + $0x10] sm:$0xf]
    %v477 = vld [vmem:[%s3 + $0x14] sm:$0xf]
    %v478 = vld [vmem:[%s3 + $0x18] sm:$0xf]
    %v479 = vld [vmem:[%s3 + $0x1c] sm:$0xf]
    %v480 = vld [vmem:[%s3 + $0x20] sm:$0xf]
    %v481 = vld [vmem:[%s3 + $0x24] sm:$0xf]
    %v482 = vld [vmem:[%s3 + $0x28] sm:$0xf]
    %v483 = vld [vmem:[%s3 + $0x2c] sm:$0xf]
    %v484 = vld [vmem:[%s3 + $0x30] sm:$0xf]
    %v485 = vld [vmem:[%s3 + $0x34] sm:$0xf]
    %v486 = vld [vmem:[%s3 + $0x38] sm:$0xf]
    %v487 = vld [vmem:[%s3 + $0x3c] sm:$0xf]
    %v488 = vld [vmem:[%s3 + $0x40] sm:$0xf]
    %v489 = vld [vmem:[%s3 + $0x44] sm:$0xf]
    %v490 = vld [vmem:[%s3 + $0x48] sm:$0xf]
    %v491 = vld [vmem:[%s3 + $0x4c] sm:$0xf]
    %v492 = vld [vmem:[%s3 + $0x50] sm:$0xf]
    %v493 = vld [vmem:[%s3 + $0x54] sm:$0xf]
    %v494 = vld [vmem:[%s3 + $0x58] sm:$0xf]
    %v495 = vld [vmem:[%s3 + $0x5c] sm:$0xf]
    %v496 = vld [vmem:[#allocation2] sm:$0xff]
    %v497 = vld [vmem:[#allocation2 + $0x8] sm:$0xff]
    %v498 = vld [vmem:[#allocation2 + $0x10] sm:$0x1]
    %v502 = vunpack.c.l.b16 %v469
    %v503 = vunpack.c.h.b16 %v469
    %v504 = vunpack.c.l.b16 %v470
    %v505 = vunpack.c.h.b16 %v470
    %v506 = vunpack.c.l.b16 %v471
    %v507 = vunpack.c.h.b16 %v471
    %v508 = vpack.c.b16 %v504, %v502
    %v509 = vpack.c.b16 %v505, %v503
    %v510 = vpack.c.b16 %v506, %v506
    %v511 = vpack.c.b16 %v507, %v507
    %v538 = vunpack.c.l.b16 %v472
    %v539 = vunpack.c.l.b16 %v473
    %v540 = vunpack.c.l.b16 %v474
    %v541 = vunpack.c.l.b16 %v475
    %v542 = vunpack.c.l.b16 %v476
    %v543 = vunpack.c.l.b16 %v477
    %v544 = vunpack.c.l.b16 %v478
    %v545 = vunpack.c.l.b16 %v479
    %v546 = vunpack.c.l.b16 %v480
    %v547 = vunpack.c.l.b16 %v481
    %v548 = vunpack.c.l.b16 %v482
    %v549 = vunpack.c.l.b16 %v483
    %v550 = vunpack.c.l.b16 %v484
    %v551 = vunpack.c.l.b16 %v485
    %v552 = vunpack.c.l.b16 %v486
    %v553 = vunpack.c.l.b16 %v487
    %v554 = vunpack.c.l.b16 %v488
    %v555 = vunpack.c.l.b16 %v489
    %v556 = vunpack.c.l.b16 %v490
    %v557 = vunpack.c.l.b16 %v491
    %v558 = vunpack.c.l.b16 %v492
    %v559 = vunpack.c.l.b16 %v493
    %v560 = vunpack.c.l.b16 %v494
    %v561 = vunpack.c.l.b16 %v495
    %v562 = vpack.c.b16 %v539, %v538
    %v563 = vpack.c.b16 %v541, %v540
    %v564 = vpack.c.b16 %v543, %v542
    %v565 = vpack.c.b16 %v545, %v544
    %v566 = vpack.c.b16 %v547, %v546
    %v567 = vpack.c.b16 %v549, %v548
    %v568 = vpack.c.b16 %v551, %v550
    %v569 = vpack.c.b16 %v553, %v552
    %v570 = vpack.c.b16 %v555, %v554
    %v571 = vpack.c.b16 %v557, %v556
    %v572 = vpack.c.b16 %v559, %v558
    %v573 = vpack.c.b16 %v561, %v560
    %vm586 = vcmask 523264
    %v588 = vsel %vm586, %v509, 0
    %v591 = vsel %vm586, %v511, 0
    %593 = vmatprep.subr.bf16.mxu0 0
    %594 = vmatpush1.bf16.msra.mxu0 %v569
    %595 = vmatprep.subr.bf16.mxu0 0
    %596 = vmatpush1.bf16.msra.mxu0 %v568
    %597 = vmatprep.subr.bf16.mxu0 0
    %598 = vmatpush1.bf16.msra.mxu0 %v567
    %599 = vmatprep.subr.bf16.mxu0 0
    %600 = vmatpush1.bf16.msra.mxu0 %v566
    %601 = vmatprep.subr.bf16.mxu0 0
    %602 = vmatpush1.bf16.msra.mxu0 %v565
    %603 = vmatprep.subr.bf16.mxu0 0
    %604 = vmatpush1.bf16.msra.mxu0 %v564
    %605 = vmatprep.subr.bf16.mxu0 0
    %606 = vmatpush1.bf16.msra.mxu0 %v563
    %607 = vmatprep.subr.bf16.mxu0 0
    %608 = vmatpush1.bf16.msra.mxu0 %v562
    %609 = vmatprep.subr.bf16.mxu0 0
    %610 = vmatpush2.bf16.msra.mxu0 0
    %611 = vmatprep.subr.bf16.mxu0 0
    %612 = vmatpush2.bf16.msra.mxu0 0
    %613 = vmatprep.subr.bf16.mxu0 0
    %614 = vmatpush2.bf16.msra.mxu0 0
    %615 = vmatprep.subr.bf16.mxu0 0
    %616 = vmatpush2.bf16.msra.mxu0 0
    %617 = vmatprep.subr.bf16.mxu0 0
    %618 = vmatpush2.bf16.msra.mxu0 %v573
    %619 = vmatprep.subr.bf16.mxu0 0
    %620 = vmatpush2.bf16.msra.mxu0 %v572
    %621 = vmatprep.subr.bf16.mxu0 0
    %622 = vmatpush2.bf16.msra.mxu0 %v571
    %623 = vmatprep.subr.bf16.mxu0 0
    %624 = vmatpush2.bf16.msra.mxu0 %v570
    %625 = vmatprep.mubr.bf16.mxu0 %v588
    %626 = vmatmul.mubr.bf16.gmra.mxu0 %v508
    %v627 = vpop.f32.mrf.mxu0
    %v628 = vadd.f32 %v496, %v627
    %v629 = vpop.f32.mrf.mxu0
    %v630 = vpop.f32.mrf.mxu0
    %v631 = vadd.f32 %v497, %v630
    %v632 = vpop.f32.mrf.mxu0
    %633 = vmatprep.mubr.bf16.mxu0 %v591
    %634 = vmatmul.mubr.bf16.gmra.mxu0 %v510
    %v635 = vpop.f32.mrf.mxu0
    %v636 = vadd.f32 %v498, %v635
    %v637 = vpop.f32.mrf.mxu0
    %v638 = vpop.f32.mrf.mxu0
    %v639 = vpop.f32.mrf.mxu0
    %640 = vdwg.mxu0
    %v641 = vld [vmem:[#allocation5] sm:$0x1]
    %v642 = vld [vmem:[#allocation7] sm:$0x1]
    %v643 = vsel %vm586, %v628, 0.0
    %644 = vadd.xlane.f32.xlu0 %v643
    %v645 = vpop.xlane.xlu0 %644
    %v646 = vsel %vm586, %v631, 0.0
    %647 = vadd.xlane.f32.xlu0 %v646
    %v648 = vpop.xlane.xlu0 %647
    %vm649 = vcmask 516096
    %v650 = vsel %vm649, %v636, 0.0
    %651 = vadd.xlane.f32.xlu0 %v650
    %v652 = vpop.xlane.xlu0 %651
    %v653 = vrcp.pop 64.0
    %v654 = vmul.f32 %v645, %v653
    %v655 = vmul.f32 %v648, %v653
    %v656 = vmul.f32 %v652, %v653
    %v657 = vsub.f32 %v628, %v654
    %v658 = vsub.f32 %v631, %v655
    %v659 = vsub.f32 %v636, %v656
    %v660 = vmul.f32 %v657, %v657
    %v661 = vmul.f32 %v658, %v658
    %v662 = vmul.f32 %v659, %v659
    %v663 = vsel %vm586, %v660, 0.0
    %664 = vadd.xlane.f32.xlu0 %v663
    %v665 = vpop.xlane.xlu0 %664
    %v666 = vsel %vm586, %v661, 0.0
    %667 = vadd.xlane.f32.xlu0 %v666
    %v668 = vpop.xlane.xlu0 %667
    %v669 = vsel %vm649, %v662, 0.0
    %670 = vadd.xlane.f32.xlu0 %v669
    %v671 = vpop.xlane.xlu0 %670
    %v672 = vmul.f32 %v665, %v653
    %v673 = vmul.f32 %v668, %v653
    %v674 = vmul.f32 %v671, %v653
    %v675 = vadd.f32 %v672, 1e-05
    %v676 = vadd.f32 %v673, 1e-05
    %v677 = vadd.f32 %v674, 1e-05
    %v678 = vrsqrt.pop %v675
    %v679 = vrsqrt.pop %v676
    %v680 = vrsqrt.pop %v677
    %v681 = vmul.f32 %v657, %v678
    %v682 = vmul.f32 %v658, %v679
    %v683 = vmul.f32 %v659, %v680
    %v685 = vlaneseq
    %v686 = vshrl.u32 %v685, 7
    %v687 = vsub.s32 0, %v686
    %v688 = vrot.slane %v641, %v687
    %v690 = vmul.f32 %v681, %v688
    %v691 = vmul.f32 %v682, %v688
    %v692 = vmul.f32 %v683, %v688
    %v694 = vlaneseq
    %v695 = vshrl.u32 %v694, 7
    %v696 = vsub.s32 0, %v695
    %v697 = vrot.slane %v642, %v696
    %v699 = vadd.f32 %v690, %v697
    %v700 = vadd.f32 %v691, %v697
    %v701 = vadd.f32 %v692, %v697
    %v702 = vld [vmem:[#allocation8] sm:$0x1]
    %v703 = vld [vmem:[#allocation10] sm:$0x1]
    %v704 = vsel %vm586, %v699, 0.0
    %705 = vadd.xlane.f32.xlu0 %v704
    %v706 = vpop.xlane.xlu0 %705
    %v707 = vsel %vm586, %v700, 0.0
    %708 = vadd.xlane.f32.xlu0 %v707
    %v709 = vpop.xlane.xlu0 %708
    %v710 = vsel %vm649, %v701, 0.0
    %711 = vadd.xlane.f32.xlu0 %v710
    %v712 = vpop.xlane.xlu0 %711
    %v713 = vmul.f32 %v706, %v653
    %v714 = vmul.f32 %v709, %v653
    %v715 = vmul.f32 %v712, %v653
    %v716 = vsub.f32 %v699, %v713
    %v717 = vsub.f32 %v700, %v714
    %v718 = vsub.f32 %v701, %v715
    %v719 = vmul.f32 %v716, %v716
    %v720 = vmul.f32 %v717, %v717
    %v721 = vmul.f32 %v718, %v718
    %v722 = vsel %vm586, %v719, 0.0
    %723 = vadd.xlane.f32.xlu0 %v722
    %v724 = vpop.xlane.xlu0 %723
    %v725 = vsel %vm586, %v720, 0.0
    %726 = vadd.xlane.f32.xlu0 %v725
    %v727 = vpop.xlane.xlu0 %726
    %v728 = vsel %vm649, %v721, 0.0
    %729 = vadd.xlane.f32.xlu0 %v728
    %v730 = vpop.xlane.xlu0 %729
    %v731 = vmul.f32 %v724, %v653
    %v732 = vmul.f32 %v727, %v653
    %v733 = vmul.f32 %v730, %v653
    %v734 = vadd.f32 %v731, 1e-05
    %v735 = vadd.f32 %v732, 1e-05
    %v736 = vadd.f32 %v733, 1e-05
    %v737 = vrsqrt.pop %v734
    %v738 = vrsqrt.pop %v735
    %v739 = vrsqrt.pop %v736
    %v740 = vmul.f32 %v716, %v737
    %v741 = vmul.f32 %v717, %v738
    %v742 = vmul.f32 %v718, %v739
    %v744 = vlaneseq
    %v745 = vshrl.u32 %v744, 7
    %v746 = vsub.s32 0, %v745
    %v747 = vrot.slane %v702, %v746
    %v749 = vmul.f32 %v740, %v747
    %v750 = vmul.f32 %v741, %v747
    %v751 = vmul.f32 %v742, %v747
    %v753 = vlaneseq
    %v754 = vshrl.u32 %v753, 7
    %v755 = vsub.s32 0, %v754
    %v756 = vrot.slane %v703, %v755
    %v758 = vadd.f32 %v749, %v756
    %v759 = vadd.f32 %v750, %v756
    %v760 = vadd.f32 %v751, %v756
    %v761 = vpack.c.bf16 %v759, %v758
    %v762 = vpack.c.bf16 %v760, %v760
    %v763 = vld [vmem:[#allocation11] sm:$0xff]
    %v764 = vld [vmem:[#allocation11 + $0x8] sm:$0xff]
    %v765 = vld [vmem:[#allocation11 + $0x10] sm:$0xff]
    %v766 = vld [vmem:[#allocation11 + $0x18] sm:$0xff]
    %v767 = vld [vmem:[#allocation11 + $0x20] sm:$0xff]
    %v768 = vld [vmem:[#allocation11 + $0x28] sm:$0xff]
    %v769 = vld [vmem:[#allocation11 + $0x30] sm:$0xff]
    %v770 = vld [vmem:[#allocation11 + $0x38] sm:$0xff]
    %v771 = vld [vmem:[%s17] sm:$0x3]
    %v773 = vlaneseq
    %v774 = vshrl.u32 %v773, 7
    %v775 = vsub.s32 0, %v774
    %v776 = vrot.slane %v771, %v775
    %v777 = vlaneseq
    %v778 = vshrl.u32 %v777, 7
    %v779 = vsub.s32 1, %v778
    %v780 = vrot.slane %v771, %v779
    %v791 = vunpack.c.l.b16 %v763
    %v792 = vunpack.c.h.b16 %v763
    %v793 = vunpack.c.l.b16 %v764
    %v794 = vunpack.c.h.b16 %v764
    %v795 = vunpack.c.l.b16 %v765
    %v796 = vunpack.c.h.b16 %v765
    %v797 = vunpack.c.l.b16 %v766
    %v798 = vunpack.c.h.b16 %v766
    %v799 = vunpack.c.l.b16 %v767
    %v800 = vunpack.c.h.b16 %v767
    %v801 = vunpack.c.l.b16 %v768
    %v802 = vunpack.c.h.b16 %v768
    %v803 = vunpack.c.l.b16 %v769
    %v804 = vunpack.c.h.b16 %v769
    %v805 = vunpack.c.l.b16 %v770
    %v806 = vunpack.c.h.b16 %v770
    %v807 = vpack.c.b16 %v793, %v791
    %v808 = vpack.c.b16 %v794, %v792
    %v809 = vpack.c.b16 %v797, %v795
    %v810 = vpack.c.b16 %v798, %v796
    %v811 = vpack.c.b16 %v801, %v799
    %v812 = vpack.c.b16 %v802, %v800
    %v813 = vpack.c.b16 %v805, %v803
    %v814 = vpack.c.b16 %v806, %v804
    %v824 = vsel %vm586, %v761, 0
    %v827 = vsel %vm586, %v762, 0
    %829 = vmatprep.subr.bf16.mxu0 0
    %830 = vmatpush1.bf16.msra.mxu0 0
    %831 = vmatprep.subr.bf16.mxu0 0
    %832 = vmatpush1.bf16.msra.mxu0 0
    %833 = vmatprep.subr.bf16.mxu0 0
    %834 = vmatpush1.bf16.msra.mxu0 0
    %835 = vmatprep.subr.bf16.mxu0 0
    %836 = vmatpush1.bf16.msra.mxu0 0
    %837 = vmatprep.subr.bf16.mxu0 %v814
    %838 = vmatpush1.bf16.msra.mxu0 %v813
    %839 = vmatprep.subr.bf16.mxu0 %v812
    %840 = vmatpush1.bf16.msra.mxu0 %v811
    %841 = vmatprep.subr.bf16.mxu0 %v810
    %842 = vmatpush1.bf16.msra.mxu0 %v809
    %843 = vmatprep.subr.bf16.mxu0 %v808
    %844 = vmatpush1.bf16.msra.mxu0 %v807
    %845 = vmatprep.subr.bf16.mxu0 0
    %846 = vmatpush2.bf16.msra.mxu0 0
    %847 = vmatprep.subr.bf16.mxu0 0
    %848 = vmatpush2.bf16.msra.mxu0 0
    %849 = vmatprep.subr.bf16.mxu0 0
    %850 = vmatpush2.bf16.msra.mxu0 0
    %851 = vmatprep.subr.bf16.mxu0 0
    %852 = vmatpush2.bf16.msra.mxu0 0
    %853 = vmatprep.subr.bf16.mxu0 0
    %854 = vmatpush2.bf16.msra.mxu0 0
    %855 = vmatprep.subr.bf16.mxu0 0
    %856 = vmatpush2.bf16.msra.mxu0 0
    %857 = vmatprep.subr.bf16.mxu0 0
    %858 = vmatpush2.bf16.msra.mxu0 0
    %859 = vmatprep.subr.bf16.mxu0 0
    %860 = vmatpush2.bf16.msra.mxu0 0
    %861 = vmatprep.mubr.bf16.mxu0 0
    %862 = vmatmul.mubr.bf16.gmra.mxu0 %v824
    %v863 = vpop.f32.mrf.mxu0
    %v864 = vadd.f32 %v776, %v863
    %v865 = vpop.f32.mrf.mxu0
    %v866 = vadd.f32 %v780, %v865
    %v867 = vpop.f32.mrf.mxu0
    %v868 = vadd.f32 %v776, %v867
    %v869 = vpop.f32.mrf.mxu0
    %v870 = vadd.f32 %v780, %v869
    %871 = vmatprep.mubr.bf16.mxu0 0
    %872 = vmatmul.mubr.bf16.gmra.mxu0 %v827
    %v873 = vpop.f32.mrf.mxu0
    %v874 = vadd.f32 %v776, %v873
    %v875 = vpop.f32.mrf.mxu0
    %v876 = vadd.f32 %v780, %v875
    %v877 = vpop.f32.mrf.mxu0
    %v878 = vpop.f32.mrf.mxu0
    %879 = vdwg.mxu0
    %v880 = vpack.c.bf16 %v868, %v864
    %v881 = vpack.c.bf16 %v870, %v866
    %v882 = vpack.c.bf16 %v874, %v874
    %v883 = vpack.c.bf16 %v876, %v876
    %886 = vrot.lane.b32.xlu0 %v880, 64
    %v887 = vpop.permute.xlu0 %886
    %888 = vrot.lane.b32.xlu0 %v882, 64
    %v889 = vpop.permute.xlu0 %888
    %vm890 = vcmask 261120
    %v892 = vsel %vm890, %v880, 0
    %v895 = vsel %vm890, %v882, 0
    %v898 = vsel %vm890, %v887, 0
    %v901 = vsel %vm890, %v889, 0
    %903 = vmatprep.subr.bf16.mxu0 0
    %904 = vmatpush1.bf16.xpose.msra.mxu0 0
    %905 = vmatprep.subr.bf16.mxu0 0
    %906 = vmatpush1.bf16.xpose.msra.mxu0 0
    %907 = vmatprep.subr.bf16.mxu0 0
    %908 = vmatpush1.bf16.xpose.msra.mxu0 0
    %909 = vmatprep.subr.bf16.mxu0 0
    %910 = vmatpush1.bf16.xpose.msra.mxu0 0
    %911 = vmatprep.subr.bf16.mxu0 0
    %912 = vmatpush1.bf16.xpose.msra.mxu0 0
    %913 = vmatprep.subr.bf16.mxu0 0
    %914 = vmatpush1.bf16.xpose.msra.mxu0 0
    %915 = vmatprep.subr.bf16.mxu0 0
    %916 = vmatpush1.bf16.xpose.msra.mxu0 %v901
    %917 = vmatprep.subr.bf16.mxu0 0
    %918 = vmatpush1.bf16.xpose.msra.mxu0 %v898
    %919 = vmatprep.subr.bf16.mxu0 0
    %920 = vmatpush2.bf16.xpose.msra.mxu0 0
    %921 = vmatprep.subr.bf16.mxu0 0
    %922 = vmatpush2.bf16.xpose.msra.mxu0 0
    %923 = vmatprep.subr.bf16.mxu0 0
    %924 = vmatpush2.bf16.xpose.msra.mxu0 0
    %925 = vmatprep.subr.bf16.mxu0 0
    %926 = vmatpush2.bf16.xpose.msra.mxu0 0
    %927 = vmatprep.subr.bf16.mxu0 0
    %928 = vmatpush2.bf16.xpose.msra.mxu0 0
    %929 = vmatprep.subr.bf16.mxu0 0
    %930 = vmatpush2.bf16.xpose.msra.mxu0 0
    %931 = vmatprep.subr.bf16.mxu0 0
    %932 = vmatpush2.bf16.xpose.msra.mxu0 0
    %933 = vmatprep.subr.bf16.mxu0 0
    %934 = vmatpush2.bf16.xpose.msra.mxu0 0
    %935 = vmatprep.mubr.bf16.mxu0 0
    %936 = vmatmul.mubr.bf16.gmra.mxu0 %v892
    %v937 = vpop.f32.mrf.mxu0
    %v938 = vadd.f32 0.0, %v937
    %v939 = vpop.f32.mrf.mxu0
    %v940 = vpop.f32.mrf.mxu0
    %v941 = vadd.f32 0.0, %v940
    %v942 = vpop.f32.mrf.mxu0
    %943 = vmatprep.mubr.bf16.mxu0 0
    %944 = vmatmul.mubr.bf16.gmra.mxu0 %v895
    %v945 = vpop.f32.mrf.mxu0
    %v946 = vadd.f32 0.0, %v945
    %v947 = vpop.f32.mrf.mxu0
    %v948 = vpop.f32.mrf.mxu0
    %v949 = vpop.f32.mrf.mxu0
    %950 = vdwg.mxu0
    %v951 = vmul.f32 %v938, 0.17677669
    %v952 = vmul.f32 %v941, 0.17677669
    %v953 = vmul.f32 %v946, 0.17677669
    %vm954 = vcmask 138240
    %v955 = vsel %vm954, %v951, -inf
    %956 = vmax.xlane.f32.xlu0 %v955
    %v957 = vpop.xlane.xlu0 %956
    %v958 = vsel %vm954, %v952, -inf
    %959 = vmax.xlane.f32.xlu0 %v958
    %v960 = vpop.xlane.xlu0 %959
    %vm961 = vcmask 131072
    %v962 = vsel %vm961, %v953, -inf
    %963 = vmax.xlane.f32.xlu0 %v962
    %v964 = vpop.xlane.xlu0 %963
    %v965 = vsub.f32 %v951, %v957
    %v966 = vsub.f32 %v952, %v960
    %v967 = vsub.f32 %v953, %v964
    %v968 = vmul.f32 %v965, 1.442695
    %v969 = vpow.pop %v968
    %v970 = vmul.f32 %v966, 1.442695
    %v971 = vpow.pop %v970
    %v972 = vmul.f32 %v967, 1.442695
    %v973 = vpow.pop %v972
    %v974 = vsel %vm954, %v969, 0.0
    %975 = vadd.xlane.f32.xlu0 %v974
    %v976 = vpop.xlane.xlu0 %975
    %v977 = vsel %vm954, %v971, 0.0
    %978 = vadd.xlane.f32.xlu0 %v977
    %v979 = vpop.xlane.xlu0 %978
    %v980 = vsel %vm961, %v973, 0.0
    %981 = vadd.xlane.f32.xlu0 %v980
    %v982 = vpop.xlane.xlu0 %981
    %v983 = vrcp.pop %v976
    %v984 = vrcp.pop %v979
    %v985 = vrcp.pop %v982
    %v986 = vmul.f32 %v969, %v983
    %v987 = vmul.f32 %v971, %v984
    %v988 = vmul.f32 %v973, %v985
    %v989 = vpack.c.bf16 %v987, %v986
    %v990 = vpack.c.bf16 %v988, %v988
    %v992 = vsel %vm954, %v989, 0
    %v995 = vsel %vm954, %v990, 0
    %vm997 = vcmask 1040384
    %v998 = vsel 0, 4294967295, 65535
    %v999 = vsel %vm997, %v998, 0
    %v1001 = vand.u32 %v883, %v999
    %1003 = vmatprep.subr.bf16.mxu0 0
    %1004 = vmatpush1.bf16.msra.mxu0 0
    %1005 = vmatprep.subr.bf16.mxu0 0
    %1006 = vmatpush1.bf16.msra.mxu0 0
    %1007 = vmatprep.subr.bf16.mxu0 0
    %1008 = vmatpush1.bf16.msra.mxu0 0
    %1009 = vmatprep.subr.bf16.mxu0 0
    %1010 = vmatpush1.bf16.msra.mxu0 0
    %1011 = vmatprep.subr.bf16.mxu0 0
    %1012 = vmatpush1.bf16.msra.mxu0 0
    %1013 = vmatprep.subr.bf16.mxu0 0
    %1014 = vmatpush1.bf16.msra.mxu0 0
    %1015 = vmatprep.subr.bf16.mxu0 0
    %1016 = vmatpush1.bf16.msra.mxu0 %v1001
    %1017 = vmatprep.subr.bf16.mxu0 0
    %1018 = vmatpush1.bf16.msra.mxu0 %v881
    %1019 = vmatprep.subr.bf16.mxu0 0
    %1020 = vmatpush2.bf16.msra.mxu0 0
    %1021 = vmatprep.subr.bf16.mxu0 0
    %1022 = vmatpush2.bf16.msra.mxu0 0
    %1023 = vmatprep.subr.bf16.mxu0 0
    %1024 = vmatpush2.bf16.msra.mxu0 0
    %1025 = vmatprep.subr.bf16.mxu0 0
    %1026 = vmatpush2.bf16.msra.mxu0 0
    %1027 = vmatprep.subr.bf16.mxu0 0
    %1028 = vmatpush2.bf16.msra.mxu0 0
    %1029 = vmatprep.subr.bf16.mxu0 0
    %1030 = vmatpush2.bf16.msra.mxu0 0
    %1031 = vmatprep.subr.bf16.mxu0 0
    %1032 = vmatpush2.bf16.msra.mxu0 0
    %1033 = vmatprep.subr.bf16.mxu0 0
    %1034 = vmatpush2.bf16.msra.mxu0 0
    %1035 = vmatprep.mubr.bf16.mxu0 0
    %1036 = vmatmul.mubr.bf16.gmra.mxu0 %v992
    %v1037 = vpop.f32.mrf.mxu0
    %v1038 = vadd.f32 0.0, %v1037
    %v1039 = vpop.f32.mrf.mxu0
    %v1040 = vpop.f32.mrf.mxu0
    %v1041 = vadd.f32 0.0, %v1040
    %v1042 = vpop.f32.mrf.mxu0
    %1043 = vmatprep.mubr.bf16.mxu0 0
    %1044 = vmatmul.mubr.bf16.gmra.mxu0 %v995
    %v1045 = vpop.f32.mrf.mxu0
    %v1046 = vadd.f32 0.0, %v1045
    %v1047 = vpop.f32.mrf.mxu0
    %v1048 = vpop.f32.mrf.mxu0
    %v1049 = vpop.f32.mrf.mxu0
    %1050 = vdwg.mxu0
    %1051 = vrot.lane.b32.xlu0 %v880, 96
    %v1052 = vpop.permute.xlu0 %1051
    %1053 = vrot.lane.b32.xlu0 %v882, 96
    %v1054 = vpop.permute.xlu0 %1053
    %1055 = vrot.lane.b32.xlu0 %v880, 32
    %v1056 = vpop.permute.xlu0 %1055
    %1057 = vrot.lane.b32.xlu0 %v882, 32
    %v1058 = vpop.permute.xlu0 %1057
    %v1060 = vsel %vm890, %v1052, 0
    %v1063 = vsel %vm890, %v1054, 0
    %v1066 = vsel %vm890, %v1056, 0
    %v1069 = vsel %vm890, %v1058, 0
    %1071 = vmatprep.subr.bf16.mxu0 0
    %1072 = vmatpush1.bf16.xpose.msra.mxu0 0
    %1073 = vmatprep.subr.bf16.mxu0 0
    %1074 = vmatpush1.bf16.xpose.msra.mxu0 0
    %1075 = vmatprep.subr.bf16.mxu0 0
    %1076 = vmatpush1.bf16.xpose.msra.mxu0 0
    %1077 = vmatprep.subr.bf16.mxu0 0
    %1078 = vmatpush1.bf16.xpose.msra.mxu0 0
    %1079 = vmatprep.subr.bf16.mxu0 0
    %1080 = vmatpush1.bf16.xpose.msra.mxu0 0
    %1081 = vmatprep.subr.bf16.mxu0 0
    %1082 = vmatpush1.bf16.xpose.msra.mxu0 0
    %1083 = vmatprep.subr.bf16.mxu0 0
    %1084 = vmatpush1.bf16.xpose.msra.mxu0 %v1069
    %1085 = vmatprep.subr.bf16.mxu0 0
    %1086 = vmatpush1.bf16.xpose.msra.mxu0 %v1066
    %1087 = vmatprep.subr.bf16.mxu0 0
    %1088 = vmatpush2.bf16.xpose.msra.mxu0 0
    %1089 = vmatprep.subr.bf16.mxu0 0
    %1090 = vmatpush2.bf16.xpose.msra.mxu0 0
    %1091 = vmatprep.subr.bf16.mxu0 0
    %1092 = vmatpush2.bf16.xpose.msra.mxu0 0
    %1093 = vmatprep.subr.bf16.mxu0 0
    %1094 = vmatpush2.bf16.xpose.msra.mxu0 0
    %1095 = vmatprep.subr.bf16.mxu0 0
    %1096 = vmatpush2.bf16.xpose.msra.mxu0 0
    %1097 = vmatprep.subr.bf16.mxu0 0
    %1098 = vmatpush2.bf16.xpose.msra.mxu0 0
    %1099 = vmatprep.subr.bf16.mxu0 0
    %1100 = vmatpush2.bf16.xpose.msra.mxu0 0
    %1101 = vmatprep.subr.bf16.mxu0 0
    %1102 = vmatpush2.bf16.xpose.msra.mxu0 0
    %1103 = vmatprep.mubr.bf16.mxu0 0
    %1104 = vmatmul.mubr.bf16.gmra.mxu0 %v1060
    %v1105 = vpop.f32.mrf.mxu0
    %v1106 = vadd.f32 0.0, %v1105
    %v1107 = vpop.f32.mrf.mxu0
    %v1108 = vpop.f32.mrf.mxu0
    %v1109 = vadd.f32 0.0, %v1108
    %v1110 = vpop.f32.mrf.mxu0
    %1111 = vmatprep.mubr.bf16.mxu0 0
    %1112 = vmatmul.mubr.bf16.gmra.mxu0 %v1063
    %v1113 = vpop.f32.mrf.mxu0
    %v1114 = vadd.f32 0.0, %v1113
    %v1115 = vpop.f32.mrf.mxu0
    %v1116 = vpop.f32.mrf.mxu0
    %v1117 = vpop.f32.mrf.mxu0
    %1118 = vdwg.mxu0
    %v1119 = vmul.f32 %v1106, 0.17677669
    %v1120 = vmul.f32 %v1109, 0.17677669
    %v1121 = vmul.f32 %v1114, 0.17677669
    %v1122 = vsel %vm954, %v1119, -inf
    %1123 = vmax.xlane.f32.xlu0 %v1122
    %v1124 = vpop.xlane.xlu0 %1123
    %v1125 = vsel %vm954, %v1120, -inf
    %1126 = vmax.xlane.f32.xlu0 %v1125
    %v1127 = vpop.xlane.xlu0 %1126
    %v1128 = vsel %vm961, %v1121, -inf
    %1129 = vmax.xlane.f32.xlu0 %v1128
    %v1130 = vpop.xlane.xlu0 %1129
    %v1131 = vsub.f32 %v1119, %v1124
    %v1132 = vsub.f32 %v1120, %v1127
    %v1133 = vsub.f32 %v1121, %v1130
    %v1134 = vmul.f32 %v1131, 1.442695
    %v1135 = vpow.pop %v1134
    %v1136 = vmul.f32 %v1132, 1.442695
    %v1137 = vpow.pop %v1136
    %v1138 = vmul.f32 %v1133, 1.442695
    %v1139 = vpow.pop %v1138
    %v1140 = vsel %vm954, %v1135, 0.0
    %1141 = vadd.xlane.f32.xlu0 %v1140
    %v1142 = vpop.xlane.xlu0 %1141
    %v1143 = vsel %vm954, %v1137, 0.0
    %1144 = vadd.xlane.f32.xlu0 %v1143
    %v1145 = vpop.xlane.xlu0 %1144
    %v1146 = vsel %vm961, %v1139, 0.0
    %1147 = vadd.xlane.f32.xlu0 %v1146
    %v1148 = vpop.xlane.xlu0 %1147
    %v1149 = vrcp.pop %v1142
    %v1150 = vrcp.pop %v1145
    %v1151 = vrcp.pop %v1148
    %v1152 = vmul.f32 %v1135, %v1149
    %v1153 = vmul.f32 %v1137, %v1150
    %v1154 = vmul.f32 %v1139, %v1151
    %v1155 = vpack.c.bf16 %v1153, %v1152
    %v1156 = vpack.c.bf16 %v1154, %v1154
    %1159 = vrot.lane.b32.xlu0 %v881, 96
    %v1160 = vpop.permute.xlu0 %1159
    %1161 = vrot.lane.b32.xlu0 %v883, 96
    %v1162 = vpop.permute.xlu0 %1161
    %v1165 = vsel %vm954, %v1155, 0
    %v1168 = vsel %vm954, %v1156, 0
    %v1171 = vand.u32 %v1162, %v999
    %1173 = vmatprep.subr.bf16.mxu0 0
    %1174 = vmatpush1.bf16.msra.mxu0 0
    %1175 = vmatprep.subr.bf16.mxu0 0
    %1176 = vmatpush1.bf16.msra.mxu0 0
    %1177 = vmatprep.subr.bf16.mxu0 0
    %1178 = vmatpush1.bf16.msra.mxu0 0
    %1179 = vmatprep.subr.bf16.mxu0 0
    %1180 = vmatpush1.bf16.msra.mxu0 0
    %1181 = vmatprep.subr.bf16.mxu0 0
    %1182 = vmatpush1.bf16.msra.mxu0 0
    %1183 = vmatprep.subr.bf16.mxu0 0
    %1184 = vmatpush1.bf16.msra.mxu0 0
    %1185 = vmatprep.subr.bf16.mxu0 0
    %1186 = vmatpush1.bf16.msra.mxu0 %v1171
    %1187 = vmatprep.subr.bf16.mxu0 0
    %1188 = vmatpush1.bf16.msra.mxu0 %v1160
    %1189 = vmatprep.subr.bf16.mxu0 0
    %1190 = vmatpush2.bf16.msra.mxu0 0
    %1191 = vmatprep.subr.bf16.mxu0 0
    %1192 = vmatpush2.bf16.msra.mxu0 0
    %1193 = vmatprep.subr.bf16.mxu0 0
    %1194 = vmatpush2.bf16.msra.mxu0 0
    %1195 = vmatprep.subr.bf16.mxu0 0
    %1196 = vmatpush2.bf16.msra.mxu0 0
    %1197 = vmatprep.subr.bf16.mxu0 0
    %1198 = vmatpush2.bf16.msra.mxu0 0
    %1199 = vmatprep.subr.bf16.mxu0 0
    %1200 = vmatpush2.bf16.msra.mxu0 0
    %1201 = vmatprep.subr.bf16.mxu0 0
    %1202 = vmatpush2.bf16.msra.mxu0 0
    %1203 = vmatprep.subr.bf16.mxu0 0
    %1204 = vmatpush2.bf16.msra.mxu0 0
    %1205 = vmatprep.mubr.bf16.mxu0 0
    %1206 = vmatmul.mubr.bf16.gmra.mxu0 %v1165
    %v1207 = vpop.f32.mrf.mxu0
    %v1208 = vadd.f32 0.0, %v1207
    %v1209 = vpop.f32.mrf.mxu0
    %v1210 = vpop.f32.mrf.mxu0
    %v1211 = vadd.f32 0.0, %v1210
    %v1212 = vpop.f32.mrf.mxu0
    %1213 = vmatprep.mubr.bf16.mxu0 0
    %1214 = vmatmul.mubr.bf16.gmra.mxu0 %v1168
    %v1215 = vpop.f32.mrf.mxu0
    %v1216 = vadd.f32 0.0, %v1215
    %v1217 = vpop.f32.mrf.mxu0
    %v1218 = vpop.f32.mrf.mxu0
    %v1219 = vpop.f32.mrf.mxu0
    %1220 = vdwg.mxu0
    %1224 = vrot.lane.b32.xlu0 %v1208, 32
    %v1225 = vpop.permute.xlu0 %1224
    %1226 = vrot.lane.b32.xlu0 %v1211, 32
    %v1227 = vpop.permute.xlu0 %1226
    %1228 = vrot.lane.b32.xlu0 %v1216, 32
    %v1229 = vpop.permute.xlu0 %1228
    %v1233 = vsel %vm890, %v1038, %v1225
    %v1234 = vsel %vm890, %v1041, %v1227
    %v1235 = vsel %vm890, %v1046, %v1229
    %v1236 = vpack.c.bf16 %v1234, %v1233
    %v1237 = vpack.c.bf16 %v1235, %v1235
    %v1238 = vld [vmem:[%s19] sm:$0xf]
    %v1239 = vld [vmem:[%s19 + $0x4] sm:$0xf]
    %v1240 = vld [vmem:[%s19 + $0x8] sm:$0xf]
    %v1241 = vld [vmem:[%s19 + $0xc] sm:$0xf]
    %v1242 = vld [vmem:[%s19 + $0x10] sm:$0xf]
    %v1243 = vld [vmem:[%s19 + $0x14] sm:$0xf]
    %v1244 = vld [vmem:[%s19 + $0x18] sm:$0xf]
    %v1245 = vld [vmem:[%s19 + $0x1c] sm:$0xf]
    %v1254 = vunpack.c.l.b16 %v1238
    %v1255 = vunpack.c.l.b16 %v1239
    %v1256 = vunpack.c.l.b16 %v1240
    %v1257 = vunpack.c.l.b16 %v1241
    %v1258 = vunpack.c.l.b16 %v1242
    %v1259 = vunpack.c.l.b16 %v1243
    %v1260 = vunpack.c.l.b16 %v1244
    %v1261 = vunpack.c.l.b16 %v1245
    %v1262 = vpack.c.b16 %v1255, %v1254
    %v1263 = vpack.c.b16 %v1257, %v1256
    %v1264 = vpack.c.b16 %v1259, %v1258
    %v1265 = vpack.c.b16 %v1261, %v1260
    %v1271 = vsel %vm586, %v1236, 0
    %v1274 = vsel %vm586, %v1237, 0
    %1276 = vmatprep.subr.bf16.mxu0 0
    %1277 = vmatpush1.bf16.msra.mxu0 0
    %1278 = vmatprep.subr.bf16.mxu0 0
    %1279 = vmatpush1.bf16.msra.mxu0 0
    %1280 = vmatprep.subr.bf16.mxu0 0
    %1281 = vmatpush1.bf16.msra.mxu0 0
    %1282 = vmatprep.subr.bf16.mxu0 0
    %1283 = vmatpush1.bf16.msra.mxu0 0
    %1284 = vmatprep.subr.bf16.mxu0 0
    %1285 = vmatpush1.bf16.msra.mxu0 %v1265
    %1286 = vmatprep.subr.bf16.mxu0 0
    %1287 = vmatpush1.bf16.msra.mxu0 %v1264
    %1288 = vmatprep.subr.bf16.mxu0 0
    %1289 = vmatpush1.bf16.msra.mxu0 %v1263
    %1290 = vmatprep.subr.bf16.mxu0 0
    %1291 = vmatpush1.bf16.msra.mxu0 %v1262
    %1292 = vmatprep.subr.bf16.mxu0 0
    %1293 = vmatpush2.bf16.msra.mxu0 0
    %1294 = vmatprep.subr.bf16.mxu0 0
    %1295 = vmatpush2.bf16.msra.mxu0 0
    %1296 = vmatprep.subr.bf16.mxu0 0
    %1297 = vmatpush2.bf16.msra.mxu0 0
    %1298 = vmatprep.subr.bf16.mxu0 0
    %1299 = vmatpush2.bf16.msra.mxu0 0
    %1300 = vmatprep.subr.bf16.mxu0 0
    %1301 = vmatpush2.bf16.msra.mxu0 0
    %1302 = vmatprep.subr.bf16.mxu0 0
    %1303 = vmatpush2.bf16.msra.mxu0 0
    %1304 = vmatprep.subr.bf16.mxu0 0
    %1305 = vmatpush2.bf16.msra.mxu0 0
    %1306 = vmatprep.subr.bf16.mxu0 0
    %1307 = vmatpush2.bf16.msra.mxu0 0
    %1308 = vmatprep.mubr.bf16.mxu0 0
    %1309 = vmatmul.mubr.bf16.gmra.mxu0 %v1271
    %v1310 = vpop.f32.mrf.mxu0
    %v1311 = vadd.f32 0.0, %v1310
    %v1312 = vpop.f32.mrf.mxu0
    %v1313 = vpop.f32.mrf.mxu0
    %v1314 = vadd.f32 0.0, %v1313
    %v1315 = vpop.f32.mrf.mxu0
    %1316 = vmatprep.mubr.bf16.mxu0 0
    %1317 = vmatmul.mubr.bf16.gmra.mxu0 %v1274
    %v1318 = vpop.f32.mrf.mxu0
    %v1319 = vadd.f32 0.0, %v1318
    %v1320 = vpop.f32.mrf.mxu0
    %v1321 = vpop.f32.mrf.mxu0
    %v1322 = vpop.f32.mrf.mxu0
    %1323 = vdwg.mxu0
    %v1324 = vadd.f32 %v699, %v1311
    %v1325 = vadd.f32 %v700, %v1314
    %v1326 = vadd.f32 %v701, %v1319
    %v1327 = vld [vmem:[#allocation13] sm:$0x1]
    %v1329 = vlaneseq
    %v1330 = vshrl.u32 %v1329, 7
    %v1331 = vsub.s32 0, %v1330
    %v1332 = vrot.slane %v1327, %v1331
    %v1334 = vadd.f32 %v1324, %v1332
    %v1335 = vadd.f32 %v1325, %v1332
    %v1336 = vadd.f32 %v1326, %v1332
    %v1337 = vld [vmem:[#allocation14] sm:$0x1]
    %v1338 = vld [vmem:[#allocation16] sm:$0x1]
    %v1339 = vsel %vm586, %v1334, 0.0
    %1340 = vadd.xlane.f32.xlu0 %v1339
    %v1341 = vpop.xlane.xlu0 %1340
    %v1342 = vsel %vm586, %v1335, 0.0
    %1343 = vadd.xlane.f32.xlu0 %v1342
    %v1344 = vpop.xlane.xlu0 %1343
    %v1345 = vsel %vm649, %v1336, 0.0
    %1346 = vadd.xlane.f32.xlu0 %v1345
    %v1347 = vpop.xlane.xlu0 %1346
    %v1348 = vmul.f32 %v1341, %v653
    %v1349 = vmul.f32 %v1344, %v653
    %v1350 = vmul.f32 %v1347, %v653
    %v1351 = vsub.f32 %v1334, %v1348
    %v1352 = vsub.f32 %v1335, %v1349
    %v1353 = vsub.f32 %v1336, %v1350
    %v1354 = vmul.f32 %v1351, %v1351
    %v1355 = vmul.f32 %v1352, %v1352
    %v1356 = vmul.f32 %v1353, %v1353
    %v1357 = vsel %vm586, %v1354, 0.0
    %1358 = vadd.xlane.f32.xlu0 %v1357
    %v1359 = vpop.xlane.xlu0 %1358
    %v1360 = vsel %vm586, %v1355, 0.0
    %1361 = vadd.xlane.f32.xlu0 %v1360
    %v1362 = vpop.xlane.xlu0 %1361
    %v1363 = vsel %vm649, %v1356, 0.0
    %1364 = vadd.xlane.f32.xlu0 %v1363
    %v1365 = vpop.xlane.xlu0 %1364
    %v1366 = vmul.f32 %v1359, %v653
    %v1367 = vmul.f32 %v1362, %v653
    %v1368 = vmul.f32 %v1365, %v653
    %v1369 = vadd.f32 %v1366, 1e-05
    %v1370 = vadd.f32 %v1367, 1e-05
    %v1371 = vadd.f32 %v1368, 1e-05
    %v1372 = vrsqrt.pop %v1369
    %v1373 = vrsqrt.pop %v1370
    %v1374 = vrsqrt.pop %v1371
    %v1375 = vmul.f32 %v1351, %v1372
    %v1376 = vmul.f32 %v1352, %v1373
    %v1377 = vmul.f32 %v1353, %v1374
    %v1379 = vlaneseq
    %v1380 = vshrl.u32 %v1379, 7
    %v1381 = vsub.s32 0, %v1380
    %v1382 = vrot.slane %v1337, %v1381
    %v1384 = vmul.f32 %v1375, %v1382
    %v1385 = vmul.f32 %v1376, %v1382
    %v1386 = vmul.f32 %v1377, %v1382
    %v1388 = vlaneseq
    %v1389 = vshrl.u32 %v1388, 7
    %v1390 = vsub.s32 0, %v1389
    %v1391 = vrot.slane %v1338, %v1390
    %v1393 = vadd.f32 %v1384, %v1391
    %v1394 = vadd.f32 %v1385, %v1391
    %v1395 = vadd.f32 %v1386, %v1391
    %v1396 = vpack.c.bf16 %v1394, %v1393
    %v1397 = vpack.c.bf16 %v1395, %v1395
    %v1398 = vld [vmem:[#allocation17] sm:$0xff]
    %v1399 = vld [vmem:[#allocation17 + $0x8] sm:$0xff]
    %v1400 = vld [vmem:[#allocation17 + $0x10] sm:$0xff]
    %v1401 = vld [vmem:[#allocation17 + $0x18] sm:$0xff]
    %v1402 = vld [vmem:[#allocation17 + $0x20] sm:$0xff]
    %v1403 = vld [vmem:[#allocation17 + $0x28] sm:$0xff]
    %v1404 = vld [vmem:[#allocation17 + $0x30] sm:$0xff]
    %v1405 = vld [vmem:[#allocation17 + $0x38] sm:$0xff]
    %v1406 = vld [vmem:[%s29] sm:$0x3]
    %v1408 = vlaneseq
    %v1409 = vshrl.u32 %v1408, 7
    %v1410 = vsub.s32 0, %v1409
    %v1411 = vrot.slane %v1406, %v1410
    %v1412 = vlaneseq
    %v1413 = vshrl.u32 %v1412, 7
    %v1414 = vsub.s32 1, %v1413
    %v1415 = vrot.slane %v1406, %v1414
    %v1426 = vunpack.c.l.b16 %v1398
    %v1427 = vunpack.c.h.b16 %v1398
    %v1428 = vunpack.c.l.b16 %v1399
    %v1429 = vunpack.c.h.b16 %v1399
    %v1430 = vunpack.c.l.b16 %v1400
    %v1431 = vunpack.c.h.b16 %v1400
    %v1432 = vunpack.c.l.b16 %v1401
    %v1433 = vunpack.c.h.b16 %v1401
    %v1434 = vunpack.c.l.b16 %v1402
    %v1435 = vunpack.c.h.b16 %v1402
    %v1436 = vunpack.c.l.b16 %v1403
    %v1437 = vunpack.c.h.b16 %v1403
    %v1438 = vunpack.c.l.b16 %v1404
    %v1439 = vunpack.c.h.b16 %v1404
    %v1440 = vunpack.c.l.b16 %v1405
    %v1441 = vunpack.c.h.b16 %v1405
    %v1442 = vpack.c.b16 %v1428, %v1426
    %v1443 = vpack.c.b16 %v1429, %v1427
    %v1444 = vpack.c.b16 %v1432, %v1430
    %v1445 = vpack.c.b16 %v1433, %v1431
    %v1446 = vpack.c.b16 %v1436, %v1434
    %v1447 = vpack.c.b16 %v1437, %v1435
    %v1448 = vpack.c.b16 %v1440, %v1438
    %v1449 = vpack.c.b16 %v1441, %v1439
    %v1459 = vsel %vm586, %v1396, 0
    %v1462 = vsel %vm586, %v1397, 0
    %1464 = vmatprep.subr.bf16.mxu0 0
    %1465 = vmatpush1.bf16.msra.mxu0 0
    %1466 = vmatprep.subr.bf16.mxu0 0
    %1467 = vmatpush1.bf16.msra.mxu0 0
    %1468 = vmatprep.subr.bf16.mxu0 0
    %1469 = vmatpush1.bf16.msra.mxu0 0
    %1470 = vmatprep.subr.bf16.mxu0 0
    %1471 = vmatpush1.bf16.msra.mxu0 0
    %1472 = vmatprep.subr.bf16.mxu0 %v1449
    %1473 = vmatpush1.bf16.msra.mxu0 %v1448
    %1474 = vmatprep.subr.bf16.mxu0 %v1447
    %1475 = vmatpush1.bf16.msra.mxu0 %v1446
    %1476 = vmatprep.subr.bf16.mxu0 %v1445
    %1477 = vmatpush1.bf16.msra.mxu0 %v1444
    %1478 = vmatprep.subr.bf16.mxu0 %v1443
    %1479 = vmatpush1.bf16.msra.mxu0 %v1442
    %1480 = vmatprep.subr.bf16.mxu0 0
    %1481 = vmatpush2.bf16.msra.mxu0 0
    %1482 = vmatprep.subr.bf16.mxu0 0
    %1483 = vmatpush2.bf16.msra.mxu0 0
    %1484 = vmatprep.subr.bf16.mxu0 0
    %1485 = vmatpush2.bf16.msra.mxu0 0
    %1486 = vmatprep.subr.bf16.mxu0 0
    %1487 = vmatpush2.bf16.msra.mxu0 0
    %1488 = vmatprep.subr.bf16.mxu0 0
    %1489 = vmatpush2.bf16.msra.mxu0 0
    %1490 = vmatprep.subr.bf16.mxu0 0
    %1491 = vmatpush2.bf16.msra.mxu0 0
    %1492 = vmatprep.subr.bf16.mxu0 0
    %1493 = vmatpush2.bf16.msra.mxu0 0
    %1494 = vmatprep.subr.bf16.mxu0 0
    %1495 = vmatpush2.bf16.msra.mxu0 0
    %1496 = vmatprep.mubr.bf16.mxu0 0
    %1497 = vmatmul.mubr.bf16.gmra.mxu0 %v1459
    %v1498 = vpop.f32.mrf.mxu0
    %v1499 = vadd.f32 %v1411, %v1498
    %v1500 = vpop.f32.mrf.mxu0
    %v1501 = vadd.f32 %v1415, %v1500
    %v1502 = vpop.f32.mrf.mxu0
    %v1503 = vadd.f32 %v1411, %v1502
    %v1504 = vpop.f32.mrf.mxu0
    %v1505 = vadd.f32 %v1415, %v1504
    %1506 = vmatprep.mubr.bf16.mxu0 0
    %1507 = vmatmul.mubr.bf16.gmra.mxu0 %v1462
    %v1508 = vpop.f32.mrf.mxu0
    %v1509 = vadd.f32 %v1411, %v1508
    %v1510 = vpop.f32.mrf.mxu0
    %v1511 = vadd.f32 %v1415, %v1510
    %v1512 = vpop.f32.mrf.mxu0
    %v1513 = vpop.f32.mrf.mxu0
    %1514 = vdwg.mxu0
    %v1515 = vmul.f32 %v1499, -1.702
    %v1516 = vmul.f32 %v1501, -1.702
    %v1517 = vmul.f32 %v1503, -1.702
    %v1518 = vmul.f32 %v1505, -1.702
    %v1519 = vmul.f32 %v1509, -1.702
    %v1520 = vmul.f32 %v1511, -1.702
    %v1521 = vmul.f32 %v1515, 1.442695
    %v1522 = vpow.pop %v1521
    %v1523 = vmul.f32 %v1516, 1.442695
    %v1524 = vpow.pop %v1523
    %v1525 = vmul.f32 %v1517, 1.442695
    %v1526 = vpow.pop %v1525
    %v1527 = vmul.f32 %v1518, 1.442695
    %v1528 = vpow.pop %v1527
    %v1529 = vmul.f32 %v1519, 1.442695
    %v1530 = vpow.pop %v1529
    %v1531 = vmul.f32 %v1520, 1.442695
    %v1532 = vpow.pop %v1531
    %v1533 = vadd.f32 %v1522, 1.0
    %v1534 = vadd.f32 %v1524, 1.0
    %v1535 = vadd.f32 %v1526, 1.0
    %v1536 = vadd.f32 %v1528, 1.0
    %v1537 = vadd.f32 %v1530, 1.0
    %v1538 = vadd.f32 %v1532, 1.0
    %v1539 = vrcp.pop %v1533
    %v1540 = vmul.f32 1.0, %v1539
    %v1541 = vrcp.pop %v1534
    %v1542 = vmul.f32 1.0, %v1541
    %v1543 = vrcp.pop %v1535
    %v1544 = vmul.f32 1.0, %v1543
    %v1545 = vrcp.pop %v1536
    %v1546 = vmul.f32 1.0, %v1545
    %v1547 = vrcp.pop %v1537
    %v1548 = vmul.f32 1.0, %v1547
    %v1549 = vrcp.pop %v1538
    %v1550 = vmul.f32 1.0, %v1549
    %v1551 = vmul.f32 %v1499, %v1540
    %v1552 = vmul.f32 %v1501, %v1542
    %v1553 = vmul.f32 %v1503, %v1544
    %v1554 = vmul.f32 %v1505, %v1546
    %v1555 = vmul.f32 %v1509, %v1548
    %v1556 = vmul.f32 %v1511, %v1550
    %v1557 = vpack.c.bf16 %v1553, %v1551
    %v1558 = vpack.c.bf16 %v1554, %v1552
    %v1559 = vpack.c.bf16 %v1555, %v1555
    %v1560 = vpack.c.bf16 %v1556, %v1556
    %v1561 = vld [vmem:[%s31] sm:$0xf]
    %v1562 = vld [vmem:[%s31 + $0x4] sm:$0xf]
    %v1563 = vld [vmem:[%s31 + $0x8] sm:$0xf]
    %v1564 = vld [vmem:[%s31 + $0xc] sm:$0xf]
    %v1565 = vld [vmem:[%s31 + $0x10] sm:$0xf]
    %v1566 = vld [vmem:[%s31 + $0x14] sm:$0xf]
    %v1567 = vld [vmem:[%s31 + $0x18] sm:$0xf]
    %v1568 = vld [vmem:[%s31 + $0x1c] sm:$0xf]
    %v1569 = vld [vmem:[%s31 + $0x20] sm:$0xf]
    %v1570 = vld [vmem:[%s31 + $0x24] sm:$0xf]
    %v1571 = vld [vmem:[%s31 + $0x28] sm:$0xf]
    %v1572 = vld [vmem:[%s31 + $0x2c] sm:$0xf]
    %v1573 = vld [vmem:[%s31 + $0x30] sm:$0xf]
    %v1574 = vld [vmem:[%s31 + $0x34] sm:$0xf]
    %v1575 = vld [vmem:[%s31 + $0x38] sm:$0xf]
    %v1576 = vld [vmem:[%s31 + $0x3c] sm:$0xf]
    %v1577 = vld [vmem:[%s31 + $0x40] sm:$0xf]
    %v1578 = vld [vmem:[%s31 + $0x44] sm:$0xf]
    %v1579 = vld [vmem:[%s31 + $0x48] sm:$0xf]
    %v1580 = vld [vmem:[%s31 + $0x4c] sm:$0xf]
    %v1581 = vld [vmem:[%s31 + $0x50] sm:$0xf]
    %v1582 = vld [vmem:[%s31 + $0x54] sm:$0xf]
    %v1583 = vld [vmem:[%s31 + $0x58] sm:$0xf]
    %v1584 = vld [vmem:[%s31 + $0x5c] sm:$0xf]
    %v1585 = vld [vmem:[%s31 + $0x60] sm:$0xf]
    %v1586 = vld [vmem:[%s31 + $0x64] sm:$0xf]
    %v1587 = vld [vmem:[%s31 + $0x68] sm:$0xf]
    %v1588 = vld [vmem:[%s31 + $0x6c] sm:$0xf]
    %v1589 = vld [vmem:[%s31 + $0x70] sm:$0xf]
    %v1590 = vld [vmem:[%s31 + $0x74] sm:$0xf]
    %v1591 = vld [vmem:[%s31 + $0x78] sm:$0xf]
    %v1592 = vld [vmem:[%s31 + $0x7c] sm:$0xf]
    %v1625 = vunpack.c.l.b16 %v1561
    %v1626 = vunpack.c.l.b16 %v1562
    %v1627 = vunpack.c.l.b16 %v1563
    %v1628 = vunpack.c.l.b16 %v1564
    %v1629 = vunpack.c.l.b16 %v1565
    %v1630 = vunpack.c.l.b16 %v1566
    %v1631 = vunpack.c.l.b16 %v1567
    %v1632 = vunpack.c.l.b16 %v1568
    %v1633 = vunpack.c.l.b16 %v1569
    %v1634 = vunpack.c.l.b16 %v1570
    %v1635 = vunpack.c.l.b16 %v1571
    %v1636 = vunpack.c.l.b16 %v1572
    %v1637 = vunpack.c.l.b16 %v1573
    %v1638 = vunpack.c.l.b16 %v1574
    %v1639 = vunpack.c.l.b16 %v1575
    %v1640 = vunpack.c.l.b16 %v1576
    %v1641 = vunpack.c.l.b16 %v1577
    %v1642 = vunpack.c.l.b16 %v1578
    %v1643 = vunpack.c.l.b16 %v1579
    %v1644 = vunpack.c.l.b16 %v1580
    %v1645 = vunpack.c.l.b16 %v1581
    %v1646 = vunpack.c.l.b16 %v1582
    %v1647 = vunpack.c.l.b16 %v1583
    %v1648 = vunpack.c.l.b16 %v1584
    %v1649 = vunpack.c.l.b16 %v1585
    %v1650 = vunpack.c.l.b16 %v1586
    %v1651 = vunpack.c.l.b16 %v1587
    %v1652 = vunpack.c.l.b16 %v1588
    %v1653 = vunpack.c.l.b16 %v1589
    %v1654 = vunpack.c.l.b16 %v1590
    %v1655 = vunpack.c.l.b16 %v1591
    %v1656 = vunpack.c.l.b16 %v1592
    %v1657 = vpack.c.b16 %v1626, %v1625
    %v1658 = vpack.c.b16 %v1628, %v1627
    %v1659 = vpack.c.b16 %v1630, %v1629
    %v1660 = vpack.c.b16 %v1632, %v1631
    %v1661 = vpack.c.b16 %v1634, %v1633
    %v1662 = vpack.c.b16 %v1636, %v1635
    %v1663 = vpack.c.b16 %v1638, %v1637
    %v1664 = vpack.c.b16 %v1640, %v1639
    %v1665 = vpack.c.b16 %v1642, %v1641
    %v1666 = vpack.c.b16 %v1644, %v1643
    %v1667 = vpack.c.b16 %v1646, %v1645
    %v1668 = vpack.c.b16 %v1648, %v1647
    %v1669 = vpack.c.b16 %v1650, %v1649
    %v1670 = vpack.c.b16 %v1652, %v1651
    %v1671 = vpack.c.b16 %v1654, %v1653
    %v1672 = vpack.c.b16 %v1656, %v1655
    %1689 = vmatprep.subr.bf16.mxu0 0
    %1690 = vmatpush1.bf16.msra.mxu0 %v1664
    %1691 = vmatprep.subr.bf16.mxu0 0
    %1692 = vmatpush1.bf16.msra.mxu0 %v1663
    %1693 = vmatprep.subr.bf16.mxu0 0
    %1694 = vmatpush1.bf16.msra.mxu0 %v1662
    %1695 = vmatprep.subr.bf16.mxu0 0
    %1696 = vmatpush1.bf16.msra.mxu0 %v1661
    %1697 = vmatprep.subr.bf16.mxu0 0
    %1698 = vmatpush1.bf16.msra.mxu0 %v1660
    %1699 = vmatprep.subr.bf16.mxu0 0
    %1700 = vmatpush1.bf16.msra.mxu0 %v1659
    %1701 = vmatprep.subr.bf16.mxu0 0
    %1702 = vmatpush1.bf16.msra.mxu0 %v1658
    %1703 = vmatprep.subr.bf16.mxu0 0
    %1704 = vmatpush1.bf16.msra.mxu0 %v1657
    %1705 = vmatprep.subr.bf16.mxu0 0
    %1706 = vmatpush2.bf16.msra.mxu0 %v1672
    %1707 = vmatprep.subr.bf16.mxu0 0
    %1708 = vmatpush2.bf16.msra.mxu0 %v1671
    %1709 = vmatprep.subr.bf16.mxu0 0
    %1710 = vmatpush2.bf16.msra.mxu0 %v1670
    %1711 = vmatprep.subr.bf16.mxu0 0
    %1712 = vmatpush2.bf16.msra.mxu0 %v1669
    %1713 = vmatprep.subr.bf16.mxu0 0
    %1714 = vmatpush2.bf16.msra.mxu0 %v1668
    %1715 = vmatprep.subr.bf16.mxu0 0
    %1716 = vmatpush2.bf16.msra.mxu0 %v1667
    %1717 = vmatprep.subr.bf16.mxu0 0
    %1718 = vmatpush2.bf16.msra.mxu0 %v1666
    %1719 = vmatprep.subr.bf16.mxu0 0
    %1720 = vmatpush2.bf16.msra.mxu0 %v1665
    %1721 = vmatprep.mubr.bf16.mxu0 %v1558
    %1722 = vmatmul.mubr.bf16.gmra.mxu0 %v1557
    %v1723 = vpop.f32.mrf.mxu0
    %v1724 = vadd.f32 0.0, %v1723
    %v1725 = vpop.f32.mrf.mxu0
    %v1726 = vpop.f32.mrf.mxu0
    %v1727 = vadd.f32 0.0, %v1726
    %v1728 = vpop.f32.mrf.mxu0
    %1729 = vmatprep.mubr.bf16.mxu0 %v1560
    %1730 = vmatmul.mubr.bf16.gmra.mxu0 %v1559
    %v1731 = vpop.f32.mrf.mxu0
    %v1732 = vadd.f32 0.0, %v1731
    %v1733 = vpop.f32.mrf.mxu0
    %v1734 = vpop.f32.mrf.mxu0
    %v1735 = vpop.f32.mrf.mxu0
    %1736 = vdwg.mxu0
    %v1737 = vadd.f32 %v1334, %v1724
    %v1738 = vadd.f32 %v1335, %v1727
    %v1739 = vadd.f32 %v1336, %v1732
    %v1740 = vld [vmem:[#allocation19] sm:$0x1]
    %v1742 = vlaneseq
    %v1743 = vshrl.u32 %v1742, 7
    %v1744 = vsub.s32 0, %v1743
    %v1745 = vrot.slane %v1740, %v1744
    %v1747 = vadd.f32 %v1737, %v1745
    %v1748 = vadd.f32 %v1738, %v1745
    %v1749 = vadd.f32 %v1739, %v1745
    %v1750 = vld [vmem:[#allocation20] sm:$0x1]
    %v1751 = vld [vmem:[#allocation22] sm:$0x1]
    %v1752 = vsel %vm586, %v1747, 0.0
    %1753 = vadd.xlane.f32.xlu0 %v1752
    %v1754 = vpop.xlane.xlu0 %1753
    %v1755 = vsel %vm586, %v1748, 0.0
    %1756 = vadd.xlane.f32.xlu0 %v1755
    %v1757 = vpop.xlane.xlu0 %1756
    %v1758 = vsel %vm649, %v1749, 0.0
    %1759 = vadd.xlane.f32.xlu0 %v1758
    %v1760 = vpop.xlane.xlu0 %1759
    %v1761 = vmul.f32 %v1754, %v653
    %v1762 = vmul.f32 %v1757, %v653
    %v1763 = vmul.f32 %v1760, %v653
    %v1764 = vsub.f32 %v1747, %v1761
    %v1765 = vsub.f32 %v1748, %v1762
    %v1766 = vsub.f32 %v1749, %v1763
    %v1767 = vmul.f32 %v1764, %v1764
    %v1768 = vmul.f32 %v1765, %v1765
    %v1769 = vmul.f32 %v1766, %v1766
    %v1770 = vsel %vm586, %v1767, 0.0
    %1771 = vadd.xlane.f32.xlu0 %v1770
    %v1772 = vpop.xlane.xlu0 %1771
    %v1773 = vsel %vm586, %v1768, 0.0
    %1774 = vadd.xlane.f32.xlu0 %v1773
    %v1775 = vpop.xlane.xlu0 %1774
    %v1776 = vsel %vm649, %v1769, 0.0
    %1777 = vadd.xlane.f32.xlu0 %v1776
    %v1778 = vpop.xlane.xlu0 %1777
    %v1779 = vmul.f32 %v1772, %v653
    %v1780 = vmul.f32 %v1775, %v653
    %v1781 = vmul.f32 %v1778, %v653
    %v1782 = vadd.f32 %v1779, 1e-05
    %v1783 = vadd.f32 %v1780, 1e-05
    %v1784 = vadd.f32 %v1781, 1e-05
    %v1785 = vrsqrt.pop %v1782
    %v1786 = vrsqrt.pop %v1783
    %v1787 = vrsqrt.pop %v1784
    %v1788 = vmul.f32 %v1764, %v1785
    %v1789 = vmul.f32 %v1765, %v1786
    %v1790 = vmul.f32 %v1766, %v1787
    %v1792 = vlaneseq
    %v1793 = vshrl.u32 %v1792, 7
    %v1794 = vsub.s32 0, %v1793
    %v1795 = vrot.slane %v1750, %v1794
    %v1797 = vmul.f32 %v1788, %v1795
    %v1798 = vmul.f32 %v1789, %v1795
    %v1799 = vmul.f32 %v1790, %v1795
    %v1801 = vlaneseq
    %v1802 = vshrl.u32 %v1801, 7
    %v1803 = vsub.s32 0, %v1802
    %v1804 = vrot.slane %v1751, %v1803
    %v1806 = vadd.f32 %v1797, %v1804
    %v1807 = vadd.f32 %v1798, %v1804
    %v1808 = vadd.f32 %v1799, %v1804
    %v1809 = vpack.c.bf16 %v1807, %v1806
    %v1810 = vpack.c.bf16 %v1808, %v1808
    %v1811 = vld [vmem:[#allocation23] sm:$0xff]
    %v1812 = vld [vmem:[#allocation23 + $0x8] sm:$0xff]
    %v1813 = vld [vmem:[#allocation23 + $0x10] sm:$0xff]
    %v1814 = vld [vmem:[#allocation23 + $0x18] sm:$0xff]
    %v1815 = vld [vmem:[#allocation23 + $0x20] sm:$0xff]
    %v1816 = vld [vmem:[#allocation23 + $0x28] sm:$0xff]
    %v1817 = vld [vmem:[#allocation23 + $0x30] sm:$0xff]
    %v1818 = vld [vmem:[#allocation23 + $0x38] sm:$0xff]
    %v1819 = vld [vmem:[#allocation25] sm:$0x3]
    %v1821 = vlaneseq
    %v1822 = vshrl.u32 %v1821, 7
    %v1823 = vsub.s32 0, %v1822
    %v1824 = vrot.slane %v1819, %v1823
    %v1825 = vlaneseq
    %v1826 = vshrl.u32 %v1825, 7
    %v1827 = vsub.s32 1, %v1826
    %v1828 = vrot.slane %v1819, %v1827
    %v1839 = vunpack.c.l.b16 %v1811
    %v1840 = vunpack.c.h.b16 %v1811
    %v1841 = vunpack.c.l.b16 %v1812
    %v1842 = vunpack.c.h.b16 %v1812
    %v1843 = vunpack.c.l.b16 %v1813
    %v1844 = vunpack.c.h.b16 %v1813
    %v1845 = vunpack.c.l.b16 %v1814
    %v1846 = vunpack.c.h.b16 %v1814
    %v1847 = vunpack.c.l.b16 %v1815
    %v1848 = vunpack.c.h.b16 %v1815
    %v1849 = vunpack.c.l.b16 %v1816
    %v1850 = vunpack.c.h.b16 %v1816
    %v1851 = vunpack.c.l.b16 %v1817
    %v1852 = vunpack.c.h.b16 %v1817
    %v1853 = vunpack.c.l.b16 %v1818
    %v1854 = vunpack.c.h.b16 %v1818
    %v1855 = vpack.c.b16 %v1841, %v1839
    %v1856 = vpack.c.b16 %v1842, %v1840
    %v1857 = vpack.c.b16 %v1845, %v1843
    %v1858 = vpack.c.b16 %v1846, %v1844
    %v1859 = vpack.c.b16 %v1849, %v1847
    %v1860 = vpack.c.b16 %v1850, %v1848
    %v1861 = vpack.c.b16 %v1853, %v1851
    %v1862 = vpack.c.b16 %v1854, %v1852
    %v1872 = vsel %vm586, %v1809, 0
    %v1875 = vsel %vm586, %v1810, 0
    %1877 = vmatprep.subr.bf16.mxu0 0
    %1878 = vmatpush1.bf16.msra.mxu0 0
    %1879 = vmatprep.subr.bf16.mxu0 0
    %1880 = vmatpush1.bf16.msra.mxu0 0
    %1881 = vmatprep.subr.bf16.mxu0 0
    %1882 = vmatpush1.bf16.msra.mxu0 0
    %1883 = vmatprep.subr.bf16.mxu0 0
    %1884 = vmatpush1.bf16.msra.mxu0 0
    %1885 = vmatprep.subr.bf16.mxu0 %v1862
    %1886 = vmatpush1.bf16.msra.mxu0 %v1861
    %1887 = vmatprep.subr.bf16.mxu0 %v1860
    %1888 = vmatpush1.bf16.msra.mxu0 %v1859
    %1889 = vmatprep.subr.bf16.mxu0 %v1858
    %1890 = vmatpush1.bf16.msra.mxu0 %v1857
    %1891 = vmatprep.subr.bf16.mxu0 %v1856
    %1892 = vmatpush1.bf16.msra.mxu0 %v1855
    %1893 = vmatprep.subr.bf16.mxu0 0
    %1894 = vmatpush2.bf16.msra.mxu0 0
    %1895 = vmatprep.subr.bf16.mxu0 0
    %1896 = vmatpush2.bf16.msra.mxu0 0
    %1897 = vmatprep.subr.bf16.mxu0 0
    %1898 = vmatpush2.bf16.msra.mxu0 0
    %1899 = vmatprep.subr.bf16.mxu0 0
    %1900 = vmatpush2.bf16.msra.mxu0 0
    %1901 = vmatprep.subr.bf16.mxu0 0
    %1902 = vmatpush2.bf16.msra.mxu0 0
    %1903 = vmatprep.subr.bf16.mxu0 0
    %1904 = vmatpush2.bf16.msra.mxu0 0
    %1905 = vmatprep.subr.bf16.mxu0 0
    %1906 = vmatpush2.bf16.msra.mxu0 0
    %1907 = vmatprep.subr.bf16.mxu0 0
    %1908 = vmatpush2.bf16.msra.mxu0 0
    %1909 = vmatprep.mubr.bf16.mxu0 0
    %1910 = vmatmul.mubr.bf16.gmra.mxu0 %v1872
    %v1911 = vpop.f32.mrf.mxu0
    %v1912 = vadd.f32 %v1824, %v1911
    %v1913 = vpop.f32.mrf.mxu0
    %v1914 = vadd.f32 %v1828, %v1913
    %v1915 = vpop.f32.mrf.mxu0
    %v1916 = vadd.f32 %v1824, %v1915
    %v1917 = vpop.f32.mrf.mxu0
    %v1918 = vadd.f32 %v1828, %v1917
    %1919 = vmatprep.mubr.bf16.mxu0 0
    %1920 = vmatmul.mubr.bf16.gmra.mxu0 %v1875
    %v1921 = vpop.f32.mrf.mxu0
    %v1922 = vadd.f32 %v1824, %v1921
    %v1923 = vpop.f32.mrf.mxu0
    %v1924 = vadd.f32 %v1828, %v1923
    %v1925 = vpop.f32.mrf.mxu0
    %v1926 = vpop.f32.mrf.mxu0
    %1927 = vdwg.mxu0
    %v1928 = vpack.c.bf16 %v1916, %v1912
    %v1929 = vpack.c.bf16 %v1918, %v1914
    %v1930 = vpack.c.bf16 %v1922, %v1922
    %v1931 = vpack.c.bf16 %v1924, %v1924
    %1934 = vrot.lane.b32.xlu0 %v1928, 64
    %v1935 = vpop.permute.xlu0 %1934
    %1936 = vrot.lane.b32.xlu0 %v1930, 64
    %v1937 = vpop.permute.xlu0 %1936
    %v1939 = vsel %vm890, %v1928, 0
    %v1942 = vsel %vm890, %v1930, 0
    %v1945 = vsel %vm890, %v1935, 0
    %v1948 = vsel %vm890, %v1937, 0
    %1950 = vmatprep.subr.bf16.mxu0 0
    %1951 = vmatpush1.bf16.xpose.msra.mxu0 0
    %1952 = vmatprep.subr.bf16.mxu0 0
    %1953 = vmatpush1.bf16.xpose.msra.mxu0 0
    %1954 = vmatprep.subr.bf16.mxu0 0
    %1955 = vmatpush1.bf16.xpose.msra.mxu0 0
    %1956 = vmatprep.subr.bf16.mxu0 0
    %1957 = vmatpush1.bf16.xpose.msra.mxu0 0
    %1958 = vmatprep.subr.bf16.mxu0 0
    %1959 = vmatpush1.bf16.xpose.msra.mxu0 0
    %1960 = vmatprep.subr.bf16.mxu0 0
    %1961 = vmatpush1.bf16.xpose.msra.mxu0 0
    %1962 = vmatprep.subr.bf16.mxu0 0
    %1963 = vmatpush1.bf16.xpose.msra.mxu0 %v1948
    %1964 = vmatprep.subr.bf16.mxu0 0
    %1965 = vmatpush1.bf16.xpose.msra.mxu0 %v1945
    %1966 = vmatprep.subr.bf16.mxu0 0
    %1967 = vmatpush2.bf16.xpose.msra.mxu0 0
    %1968 = vmatprep.subr.bf16.mxu0 0
    %1969 = vmatpush2.bf16.xpose.msra.mxu0 0
    %1970 = vmatprep.subr.bf16.mxu0 0
    %1971 = vmatpush2.bf16.xpose.msra.mxu0 0
    %1972 = vmatprep.subr.bf16.mxu0 0
    %1973 = vmatpush2.bf16.xpose.msra.mxu0 0
    %1974 = vmatprep.subr.bf16.mxu0 0
    %1975 = vmatpush2.bf16.xpose.msra.mxu0 0
    %1976 = vmatprep.subr.bf16.mxu0 0
    %1977 = vmatpush2.bf16.xpose.msra.mxu0 0
    %1978 = vmatprep.subr.bf16.mxu0 0
    %1979 = vmatpush2.bf16.xpose.msra.mxu0 0
    %1980 = vmatprep.subr.bf16.mxu0 0
    %1981 = vmatpush2.bf16.xpose.msra.mxu0 0
    %1982 = vmatprep.mubr.bf16.mxu0 0
    %1983 = vmatmul.mubr.bf16.gmra.mxu0 %v1939
    %v1984 = vpop.f32.mrf.mxu0
    %v1985 = vadd.f32 0.0, %v1984
    %v1986 = vpop.f32.mrf.mxu0
    %v1987 = vpop.f32.mrf.mxu0
    %v1988 = vadd.f32 0.0, %v1987
    %v1989 = vpop.f32.mrf.mxu0
    %1990 = vmatprep.mubr.bf16.mxu0 0
    %1991 = vmatmul.mubr.bf16.gmra.mxu0 %v1942
    %v1992 = vpop.f32.mrf.mxu0
    %v1993 = vadd.f32 0.0, %v1992
    %v1994 = vpop.f32.mrf.mxu0
    %v1995 = vpop.f32.mrf.mxu0
    %v1996 = vpop.f32.mrf.mxu0
    %1997 = vdwg.mxu0
    %v1998 = vmul.f32 %v1985, 0.17677669
    %v1999 = vmul.f32 %v1988, 0.17677669
    %v2000 = vmul.f32 %v1993, 0.17677669
    %v2001 = vsel %vm954, %v1998, -inf
    %2002 = vmax.xlane.f32.xlu0 %v2001
    %v2003 = vpop.xlane.xlu0 %2002
    %v2004 = vsel %vm954, %v1999, -inf
    %2005 = vmax.xlane.f32.xlu0 %v2004
    %v2006 = vpop.xlane.xlu0 %2005
    %v2007 = vsel %vm961, %v2000, -inf
    %2008 = vmax.xlane.f32.xlu0 %v2007
    %v2009 = vpop.xlane.xlu0 %2008
    %v2010 = vsub.f32 %v1998, %v2003
    %v2011 = vsub.f32 %v1999, %v2006
    %v2012 = vsub.f32 %v2000, %v2009
    %v2013 = vmul.f32 %v2010, 1.442695
    %v2014 = vpow.pop %v2013
    %v2015 = vmul.f32 %v2011, 1.442695
    %v2016 = vpow.pop %v2015
    %v2017 = vmul.f32 %v2012, 1.442695
    %v2018 = vpow.pop %v2017
    %v2019 = vsel %vm954, %v2014, 0.0
    %2020 = vadd.xlane.f32.xlu0 %v2019
    %v2021 = vpop.xlane.xlu0 %2020
    %v2022 = vsel %vm954, %v2016, 0.0
    %2023 = vadd.xlane.f32.xlu0 %v2022
    %v2024 = vpop.xlane.xlu0 %2023
    %v2025 = vsel %vm961, %v2018, 0.0
    %2026 = vadd.xlane.f32.xlu0 %v2025
    %v2027 = vpop.xlane.xlu0 %2026
    %v2028 = vrcp.pop %v2021
    %v2029 = vrcp.pop %v2024
    %v2030 = vrcp.pop %v2027
    %v2031 = vmul.f32 %v2014, %v2028
    %v2032 = vmul.f32 %v2016, %v2029
    %v2033 = vmul.f32 %v2018, %v2030
    %v2034 = vpack.c.bf16 %v2032, %v2031
    %v2035 = vpack.c.bf16 %v2033, %v2033
    %v2037 = vsel %vm954, %v2034, 0
    %v2040 = vsel %vm954, %v2035, 0
    %v2043 = vand.u32 %v1931, %v999
    %2045 = vmatprep.subr.bf16.mxu0 0
    %2046 = vmatpush1.bf16.msra.mxu0 0
    %2047 = vmatprep.subr.bf16.mxu0 0
    %2048 = vmatpush1.bf16.msra.mxu0 0
    %2049 = vmatprep.subr.bf16.mxu0 0
    %2050 = vmatpush1.bf16.msra.mxu0 0
    %2051 = vmatprep.subr.bf16.mxu0 0
    %2052 = vmatpush1.bf16.msra.mxu0 0
    %2053 = vmatprep.subr.bf16.mxu0 0
    %2054 = vmatpush1.bf16.msra.mxu0 0
    %2055 = vmatprep.subr.bf16.mxu0 0
    %2056 = vmatpush1.bf16.msra.mxu0 0
    %2057 = vmatprep.subr.bf16.mxu0 0
    %2058 = vmatpush1.bf16.msra.mxu0 %v2043
    %2059 = vmatprep.subr.bf16.mxu0 0
    %2060 = vmatpush1.bf16.msra.mxu0 %v1929
    %2061 = vmatprep.subr.bf16.mxu0 0
    %2062 = vmatpush2.bf16.msra.mxu0 0
    %2063 = vmatprep.subr.bf16.mxu0 0
    %2064 = vmatpush2.bf16.msra.mxu0 0
    %2065 = vmatprep.subr.bf16.mxu0 0
    %2066 = vmatpush2.bf16.msra.mxu0 0
    %2067 = vmatprep.subr.bf16.mxu0 0
    %2068 = vmatpush2.bf16.msra.mxu0 0
    %2069 = vmatprep.subr.bf16.mxu0 0
    %2070 = vmatpush2.bf16.msra.mxu0 0
    %2071 = vmatprep.subr.bf16.mxu0 0
    %2072 = vmatpush2.bf16.msra.mxu0 0
    %2073 = vmatprep.subr.bf16.mxu0 0
    %2074 = vmatpush2.bf16.msra.mxu0 0
    %2075 = vmatprep.subr.bf16.mxu0 0
    %2076 = vmatpush2.bf16.msra.mxu0 0
    %2077 = vmatprep.mubr.bf16.mxu0 0
    %2078 = vmatmul.mubr.bf16.gmra.mxu0 %v2037
    %v2079 = vpop.f32.mrf.mxu0
    %v2080 = vadd.f32 0.0, %v2079
    %v2081 = vpop.f32.mrf.mxu0
    %v2082 = vpop.f32.mrf.mxu0
    %v2083 = vadd.f32 0.0, %v2082
    %v2084 = vpop.f32.mrf.mxu0
    %2085 = vmatprep.mubr.bf16.mxu0 0
    %2086 = vmatmul.mubr.bf16.gmra.mxu0 %v2040
    %v2087 = vpop.f32.mrf.mxu0
    %v2088 = vadd.f32 0.0, %v2087
    %v2089 = vpop.f32.mrf.mxu0
    %v2090 = vpop.f32.mrf.mxu0
    %v2091 = vpop.f32.mrf.mxu0
    %2092 = vdwg.mxu0
    %2093 = vrot.lane.b32.xlu0 %v1928, 96
    %v2094 = vpop.permute.xlu0 %2093
    %2095 = vrot.lane.b32.xlu0 %v1930, 96
    %v2096 = vpop.permute.xlu0 %2095
    %2097 = vrot.lane.b32.xlu0 %v1928, 32
    %v2098 = vpop.permute.xlu0 %2097
    %2099 = vrot.lane.b32.xlu0 %v1930, 32
    %v2100 = vpop.permute.xlu0 %2099
    %v2102 = vsel %vm890, %v2094, 0
    %v2105 = vsel %vm890, %v2096, 0
    %v2108 = vsel %vm890, %v2098, 0
    %v2111 = vsel %vm890, %v2100, 0
    %2113 = vmatprep.subr.bf16.mxu0 0
    %2114 = vmatpush1.bf16.xpose.msra.mxu0 0
    %2115 = vmatprep.subr.bf16.mxu0 0
    %2116 = vmatpush1.bf16.xpose.msra.mxu0 0
    %2117 = vmatprep.subr.bf16.mxu0 0
    %2118 = vmatpush1.bf16.xpose.msra.mxu0 0
    %2119 = vmatprep.subr.bf16.mxu0 0
    %2120 = vmatpush1.bf16.xpose.msra.mxu0 0
    %2121 = vmatprep.subr.bf16.mxu0 0
    %2122 = vmatpush1.bf16.xpose.msra.mxu0 0
    %2123 = vmatprep.subr.bf16.mxu0 0
    %2124 = vmatpush1.bf16.xpose.msra.mxu0 0
    %2125 = vmatprep.subr.bf16.mxu0 0
    %2126 = vmatpush1.bf16.xpose.msra.mxu0 %v2111
    %2127 = vmatprep.subr.bf16.mxu0 0
    %2128 = vmatpush1.bf16.xpose.msra.mxu0 %v2108
    %2129 = vmatprep.subr.bf16.mxu0 0
    %2130 = vmatpush2.bf16.xpose.msra.mxu0 0
    %2131 = vmatprep.subr.bf16.mxu0 0
    %2132 = vmatpush2.bf16.xpose.msra.mxu0 0
    %2133 = vmatprep.subr.bf16.mxu0 0
    %2134 = vmatpush2.bf16.xpose.msra.mxu0 0
    %2135 = vmatprep.subr.bf16.mxu0 0
    %2136 = vmatpush2.bf16.xpose.msra.mxu0 0
    %2137 = vmatprep.subr.bf16.mxu0 0
    %2138 = vmatpush2.bf16.xpose.msra.mxu0 0
    %2139 = vmatprep.subr.bf16.mxu0 0
    %2140 = vmatpush2.bf16.xpose.msra.mxu0 0
    %2141 = vmatprep.subr.bf16.mxu0 0
    %2142 = vmatpush2.bf16.xpose.msra.mxu0 0
    %2143 = vmatprep.subr.bf16.mxu0 0
    %2144 = vmatpush2.bf16.xpose.msra.mxu0 0
    %2145 = vmatprep.mubr.bf16.mxu0 0
    %2146 = vmatmul.mubr.bf16.gmra.mxu0 %v2102
    %v2147 = vpop.f32.mrf.mxu0
    %v2148 = vadd.f32 0.0, %v2147
    %v2149 = vpop.f32.mrf.mxu0
    %v2150 = vpop.f32.mrf.mxu0
    %v2151 = vadd.f32 0.0, %v2150
    %v2152 = vpop.f32.mrf.mxu0
    %2153 = vmatprep.mubr.bf16.mxu0 0
    %2154 = vmatmul.mubr.bf16.gmra.mxu0 %v2105
    %v2155 = vpop.f32.mrf.mxu0
    %v2156 = vadd.f32 0.0, %v2155
    %v2157 = vpop.f32.mrf.mxu0
    %v2158 = vpop.f32.mrf.mxu0
    %v2159 = vpop.f32.mrf.mxu0
    %2160 = vdwg.mxu0
    %v2161 = vmul.f32 %v2148, 0.17677669
    %v2162 = vmul.f32 %v2151, 0.17677669
    %v2163 = vmul.f32 %v2156, 0.17677669
    %v2164 = vsel %vm954, %v2161, -inf
    %2165 = vmax.xlane.f32.xlu0 %v2164
    %v2166 = vpop.xlane.xlu0 %2165
    %v2167 = vsel %vm954, %v2162, -inf
    %2168 = vmax.xlane.f32.xlu0 %v2167
    %v2169 = vpop.xlane.xlu0 %2168
    %v2170 = vsel %vm961, %v2163, -inf
    %2171 = vmax.xlane.f32.xlu0 %v2170
    %v2172 = vpop.xlane.xlu0 %2171
    %v2173 = vsub.f32 %v2161, %v2166
    %v2174 = vsub.f32 %v2162, %v2169
    %v2175 = vsub.f32 %v2163, %v2172
    %v2176 = vmul.f32 %v2173, 1.442695
    %v2177 = vpow.pop %v2176
    %v2178 = vmul.f32 %v2174, 1.442695
    %v2179 = vpow.pop %v2178
    %v2180 = vmul.f32 %v2175, 1.442695
    %v2181 = vpow.pop %v2180
    %v2182 = vsel %vm954, %v2177, 0.0
    %2183 = vadd.xlane.f32.xlu0 %v2182
    %v2184 = vpop.xlane.xlu0 %2183
    %v2185 = vsel %vm954, %v2179, 0.0
    %2186 = vadd.xlane.f32.xlu0 %v2185
    %v2187 = vpop.xlane.xlu0 %2186
    %v2188 = vsel %vm961, %v2181, 0.0
    %2189 = vadd.xlane.f32.xlu0 %v2188
    %v2190 = vpop.xlane.xlu0 %2189
    %v2191 = vrcp.pop %v2184
    %v2192 = vrcp.pop %v2187
    %v2193 = vrcp.pop %v2190
    %v2194 = vmul.f32 %v2177, %v2191
    %v2195 = vmul.f32 %v2179, %v2192
    %v2196 = vmul.f32 %v2181, %v2193
    %v2197 = vpack.c.bf16 %v2195, %v2194
    %v2198 = vpack.c.bf16 %v2196, %v2196
    %2201 = vrot.lane.b32.xlu0 %v1929, 96
    %v2202 = vpop.permute.xlu0 %2201
    %2203 = vrot.lane.b32.xlu0 %v1931, 96
    %v2204 = vpop.permute.xlu0 %2203
    %v2207 = vsel %vm954, %v2197, 0
    %v2210 = vsel %vm954, %v2198, 0
    %v2213 = vand.u32 %v2204, %v999
    %2215 = vmatprep.subr.bf16.mxu0 0
    %2216 = vmatpush1.bf16.msra.mxu0 0
    %2217 = vmatprep.subr.bf16.mxu0 0
    %2218 = vmatpush1.bf16.msra.mxu0 0
    %2219 = vmatprep.subr.bf16.mxu0 0
    %2220 = vmatpush1.bf16.msra.mxu0 0
    %2221 = vmatprep.subr.bf16.mxu0 0
    %2222 = vmatpush1.bf16.msra.mxu0 0
    %2223 = vmatprep.subr.bf16.mxu0 0
    %2224 = vmatpush1.bf16.msra.mxu0 0
    %2225 = vmatprep.subr.bf16.mxu0 0
    %2226 = vmatpush1.bf16.msra.mxu0 0
    %2227 = vmatprep.subr.bf16.mxu0 0
    %2228 = vmatpush1.bf16.msra.mxu0 %v2213
    %2229 = vmatprep.subr.bf16.mxu0 0
    %2230 = vmatpush1.bf16.msra.mxu0 %v2202
    %2231 = vmatprep.subr.bf16.mxu0 0
    %2232 = vmatpush2.bf16.msra.mxu0 0
    %2233 = vmatprep.subr.bf16.mxu0 0
    %2234 = vmatpush2.bf16.msra.mxu0 0
    %2235 = vmatprep.subr.bf16.mxu0 0
    %2236 = vmatpush2.bf16.msra.mxu0 0
    %2237 = vmatprep.subr.bf16.mxu0 0
    %2238 = vmatpush2.bf16.msra.mxu0 0
    %2239 = vmatprep.subr.bf16.mxu0 0
    %2240 = vmatpush2.bf16.msra.mxu0 0
    %2241 = vmatprep.subr.bf16.mxu0 0
    %2242 = vmatpush2.bf16.msra.mxu0 0
    %2243 = vmatprep.subr.bf16.mxu0 0
    %2244 = vmatpush2.bf16.msra.mxu0 0
    %2245 = vmatprep.subr.bf16.mxu0 0
    %2246 = vmatpush2.bf16.msra.mxu0 0
    %2247 = vmatprep.mubr.bf16.mxu0 0
    %2248 = vmatmul.mubr.bf16.gmra.mxu0 %v2207
    %v2249 = vpop.f32.mrf.mxu0
    %v2250 = vadd.f32 0.0, %v2249
    %v2251 = vpop.f32.mrf.mxu0
    %v2252 = vpop.f32.mrf.mxu0
    %v2253 = vadd.f32 0.0, %v2252
    %v2254 = vpop.f32.mrf.mxu0
    %2255 = vmatprep.mubr.bf16.mxu0 0
    %2256 = vmatmul.mubr.bf16.gmra.mxu0 %v2210
    %v2257 = vpop.f32.mrf.mxu0
    %v2258 = vadd.f32 0.0, %v2257
    %v2259 = vpop.f32.mrf.mxu0
    %v2260 = vpop.f32.mrf.mxu0
    %v2261 = vpop.f32.mrf.mxu0
    %2262 = vdwg.mxu0
    %2266 = vrot.lane.b32.xlu0 %v2250, 32
    %v2267 = vpop.permute.xlu0 %2266
    %2268 = vrot.lane.b32.xlu0 %v2253, 32
    %v2269 = vpop.permute.xlu0 %2268
    %2270 = vrot.lane.b32.xlu0 %v2258, 32
    %v2271 = vpop.permute.xlu0 %2270
    %v2275 = vsel %vm890, %v2080, %v2267
    %v2276 = vsel %vm890, %v2083, %v2269
    %v2277 = vsel %vm890, %v2088, %v2271
    %v2278 = vpack.c.bf16 %v2276, %v2275
    %v2279 = vpack.c.bf16 %v2277, %v2277
    %v2280 = vld [vmem:[#allocation26] sm:$0xf]
    %v2281 = vld [vmem:[#allocation26 + $0x4] sm:$0xf]
    %v2282 = vld [vmem:[#allocation26 + $0x8] sm:$0xf]
    %v2283 = vld [vmem:[#allocation26 + $0xc] sm:$0xf]
    %v2284 = vld [vmem:[#allocation26 + $0x10] sm:$0xf]
    %v2285 = vld [vmem:[#allocation26 + $0x14] sm:$0xf]
    %v2286 = vld [vmem:[#allocation26 + $0x18] sm:$0xf]
    %v2287 = vld [vmem:[#allocation26 + $0x1c] sm:$0xf]
    %v2296 = vunpack.c.l.b16 %v2280
    %v2297 = vunpack.c.l.b16 %v2281
    %v2298 = vunpack.c.l.b16 %v2282
    %v2299 = vunpack.c.l.b16 %v2283
    %v2300 = vunpack.c.l.b16 %v2284
    %v2301 = vunpack.c.l.b16 %v2285
    %v2302 = vunpack.c.l.b16 %v2286
    %v2303 = vunpack.c.l.b16 %v2287
    %v2304 = vpack.c.b16 %v2297, %v2296
    %v2305 = vpack.c.b16 %v2299, %v2298
    %v2306 = vpack.c.b16 %v2301, %v2300
    %v2307 = vpack.c.b16 %v2303, %v2302
    %v2313 = vsel %vm586, %v2278, 0
    %v2316 = vsel %vm586, %v2279, 0
    %2318 = vmatprep.subr.bf16.mxu0 0
    %2319 = vmatpush1.bf16.msra.mxu0 0
    %2320 = vmatprep.subr.bf16.mxu0 0
    %2321 = vmatpush1.bf16.msra.mxu0 0
    %2322 = vmatprep.subr.bf16.mxu0 0
    %2323 = vmatpush1.bf16.msra.mxu0 0
    %2324 = vmatprep.subr.bf16.mxu0 0
    %2325 = vmatpush1.bf16.msra.mxu0 0
    %2326 = vmatprep.subr.bf16.mxu0 0
    %2327 = vmatpush1.bf16.msra.mxu0 %v2307
    %2328 = vmatprep.subr.bf16.mxu0 0
    %2329 = vmatpush1.bf16.msra.mxu0 %v2306
    %2330 = vmatprep.subr.bf16.mxu0 0
    %2331 = vmatpush1.bf16.msra.mxu0 %v2305
    %2332 = vmatprep.subr.bf16.mxu0 0
    %2333 = vmatpush1.bf16.msra.mxu0 %v2304
    %2334 = vmatprep.subr.bf16.mxu0 0
    %2335 = vmatpush2.bf16.msra.mxu0 0
    %2336 = vmatprep.subr.bf16.mxu0 0
    %2337 = vmatpush2.bf16.msra.mxu0 0
    %2338 = vmatprep.subr.bf16.mxu0 0
    %2339 = vmatpush2.bf16.msra.mxu0 0
    %2340 = vmatprep.subr.bf16.mxu0 0
    %2341 = vmatpush2.bf16.msra.mxu0 0
    %2342 = vmatprep.subr.bf16.mxu0 0
    %2343 = vmatpush2.bf16.msra.mxu0 0
    %2344 = vmatprep.subr.bf16.mxu0 0
    %2345 = vmatpush2.bf16.msra.mxu0 0
    %2346 = vmatprep.subr.bf16.mxu0 0
    %2347 = vmatpush2.bf16.msra.mxu0 0
    %2348 = vmatprep.subr.bf16.mxu0 0
    %2349 = vmatpush2.bf16.msra.mxu0 0
    %2350 = vmatprep.mubr.bf16.mxu0 0
    %2351 = vmatmul.mubr.bf16.gmra.mxu0 %v2313
    %v2352 = vpop.f32.mrf.mxu0
    %v2353 = vadd.f32 0.0, %v2352
    %v2354 = vpop.f32.mrf.mxu0
    %v2355 = vpop.f32.mrf.mxu0
    %v2356 = vadd.f32 0.0, %v2355
    %v2357 = vpop.f32.mrf.mxu0
    %2358 = vmatprep.mubr.bf16.mxu0 0
    %2359 = vmatmul.mubr.bf16.gmra.mxu0 %v2316
    %v2360 = vpop.f32.mrf.mxu0
    %v2361 = vadd.f32 0.0, %v2360
    %v2362 = vpop.f32.mrf.mxu0
    %v2363 = vpop.f32.mrf.mxu0
    %v2364 = vpop.f32.mrf.mxu0
    %2365 = vdwg.mxu0
    %v2366 = vadd.f32 %v1747, %v2353
    %v2367 = vadd.f32 %v1748, %v2356
    %v2368 = vadd.f32 %v1749, %v2361
    %v2369 = vld [vmem:[#allocation28] sm:$0x1]
    %v2371 = vlaneseq
    %v2372 = vshrl.u32 %v2371, 7
    %v2373 = vsub.s32 0, %v2372
    %v2374 = vrot.slane %v2369, %v2373
    %v2376 = vadd.f32 %v2366, %v2374
    %v2377 = vadd.f32 %v2367, %v2374
    %v2378 = vadd.f32 %v2368, %v2374
    %v2379 = vld [vmem:[#allocation29] sm:$0x1]
    %v2380 = vld [vmem:[#allocation31] sm:$0x1]
    %v2381 = vsel %vm586, %v2376, 0.0
    %2382 = vadd.xlane.f32.xlu0 %v2381
    %v2383 = vpop.xlane.xlu0 %2382
    %v2384 = vsel %vm586, %v2377, 0.0
    %2385 = vadd.xlane.f32.xlu0 %v2384
    %v2386 = vpop.xlane.xlu0 %2385
    %v2387 = vsel %vm649, %v2378, 0.0
    %2388 = vadd.xlane.f32.xlu0 %v2387
    %v2389 = vpop.xlane.xlu0 %2388
    %v2390 = vmul.f32 %v2383, %v653
    %v2391 = vmul.f32 %v2386, %v653
    %v2392 = vmul.f32 %v2389, %v653
    %v2393 = vsub.f32 %v2376, %v2390
    %v2394 = vsub.f32 %v2377, %v2391
    %v2395 = vsub.f32 %v2378, %v2392
    %v2396 = vmul.f32 %v2393, %v2393
    %v2397 = vmul.f32 %v2394, %v2394
    %v2398 = vmul.f32 %v2395, %v2395
    %v2399 = vsel %vm586, %v2396, 0.0
    %2400 = vadd.xlane.f32.xlu0 %v2399
    %v2401 = vpop.xlane.xlu0 %2400
    %v2402 = vsel %vm586, %v2397, 0.0
    %2403 = vadd.xlane.f32.xlu0 %v2402
    %v2404 = vpop.xlane.xlu0 %2403
    %v2405 = vsel %vm649, %v2398, 0.0
    %2406 = vadd.xlane.f32.xlu0 %v2405
    %v2407 = vpop.xlane.xlu0 %2406
    %v2408 = vmul.f32 %v2401, %v653
    %v2409 = vmul.f32 %v2404, %v653
    %v2410 = vmul.f32 %v2407, %v653
    %v2411 = vadd.f32 %v2408, 1e-05
    %v2412 = vadd.f32 %v2409, 1e-05
    %v2413 = vadd.f32 %v2410, 1e-05
    %v2414 = vrsqrt.pop %v2411
    %v2415 = vrsqrt.pop %v2412
    %v2416 = vrsqrt.pop %v2413
    %v2417 = vmul.f32 %v2393, %v2414
    %v2418 = vmul.f32 %v2394, %v2415
    %v2419 = vmul.f32 %v2395, %v2416
    %v2421 = vlaneseq
    %v2422 = vshrl.u32 %v2421, 7
    %v2423 = vsub.s32 0, %v2422
    %v2424 = vrot.slane %v2379, %v2423
    %v2426 = vmul.f32 %v2417, %v2424
    %v2427 = vmul.f32 %v2418, %v2424
    %v2428 = vmul.f32 %v2419, %v2424
    %v2430 = vlaneseq
    %v2431 = vshrl.u32 %v2430, 7
    %v2432 = vsub.s32 0, %v2431
    %v2433 = vrot.slane %v2380, %v2432
    %v2435 = vadd.f32 %v2426, %v2433
    %v2436 = vadd.f32 %v2427, %v2433
    %v2437 = vadd.f32 %v2428, %v2433
    %v2438 = vpack.c.bf16 %v2436, %v2435
    %v2439 = vpack.c.bf16 %v2437, %v2437
    %v2440 = vld [vmem:[#allocation32] sm:$0xff]
    %v2441 = vld [vmem:[#allocation32 + $0x8] sm:$0xff]
    %v2442 = vld [vmem:[#allocation32 + $0x10] sm:$0xff]
    %v2443 = vld [vmem:[#allocation32 + $0x18] sm:$0xff]
    %v2444 = vld [vmem:[#allocation32 + $0x20] sm:$0xff]
    %v2445 = vld [vmem:[#allocation32 + $0x28] sm:$0xff]
    %v2446 = vld [vmem:[#allocation32 + $0x30] sm:$0xff]
    %v2447 = vld [vmem:[#allocation32 + $0x38] sm:$0xff]
    %v2448 = vld [vmem:[#allocation34] sm:$0x3]
    %v2450 = vlaneseq
    %v2451 = vshrl.u32 %v2450, 7
    %v2452 = vsub.s32 0, %v2451
    %v2453 = vrot.slane %v2448, %v2452
    %v2454 = vlaneseq
    %v2455 = vshrl.u32 %v2454, 7
    %v2456 = vsub.s32 1, %v2455
    %v2457 = vrot.slane %v2448, %v2456
    %v2468 = vunpack.c.l.b16 %v2440
    %v2469 = vunpack.c.h.b16 %v2440
    %v2470 = vunpack.c.l.b16 %v2441
    %v2471 = vunpack.c.h.b16 %v2441
    %v2472 = vunpack.c.l.b16 %v2442
    %v2473 = vunpack.c.h.b16 %v2442
    %v2474 = vunpack.c.l.b16 %v2443
    %v2475 = vunpack.c.h.b16 %v2443
    %v2476 = vunpack.c.l.b16 %v2444
    %v2477 = vunpack.c.h.b16 %v2444
    %v2478 = vunpack.c.l.b16 %v2445
    %v2479 = vunpack.c.h.b16 %v2445
    %v2480 = vunpack.c.l.b16 %v2446
    %v2481 = vunpack.c.h.b16 %v2446
    %v2482 = vunpack.c.l.b16 %v2447
    %v2483 = vunpack.c.h.b16 %v2447
    %v2484 = vpack.c.b16 %v2470, %v2468
    %v2485 = vpack.c.b16 %v2471, %v2469
    %v2486 = vpack.c.b16 %v2474, %v2472
    %v2487 = vpack.c.b16 %v2475, %v2473
    %v2488 = vpack.c.b16 %v2478, %v2476
    %v2489 = vpack.c.b16 %v2479, %v2477
    %v2490 = vpack.c.b16 %v2482, %v2480
    %v2491 = vpack.c.b16 %v2483, %v2481
    %v2501 = vsel %vm586, %v2438, 0
    %v2504 = vsel %vm586, %v2439, 0
    %2506 = vmatprep.subr.bf16.mxu0 0
    %2507 = vmatpush1.bf16.msra.mxu0 0
    %2508 = vmatprep.subr.bf16.mxu0 0
    %2509 = vmatpush1.bf16.msra.mxu0 0
    %2510 = vmatprep.subr.bf16.mxu0 0
    %2511 = vmatpush1.bf16.msra.mxu0 0
    %2512 = vmatprep.subr.bf16.mxu0 0
    %2513 = vmatpush1.bf16.msra.mxu0 0
    %2514 = vmatprep.subr.bf16.mxu0 %v2491
    %2515 = vmatpush1.bf16.msra.mxu0 %v2490
    %2516 = vmatprep.subr.bf16.mxu0 %v2489
    %2517 = vmatpush1.bf16.msra.mxu0 %v2488
    %2518 = vmatprep.subr.bf16.mxu0 %v2487
    %2519 = vmatpush1.bf16.msra.mxu0 %v2486
    %2520 = vmatprep.subr.bf16.mxu0 %v2485
    %2521 = vmatpush1.bf16.msra.mxu0 %v2484
    %2522 = vmatprep.subr.bf16.mxu0 0
    %2523 = vmatpush2.bf16.msra.mxu0 0
    %2524 = vmatprep.subr.bf16.mxu0 0
    %2525 = vmatpush2.bf16.msra.mxu0 0
    %2526 = vmatprep.subr.bf16.mxu0 0
    %2527 = vmatpush2.bf16.msra.mxu0 0
    %2528 = vmatprep.subr.bf16.mxu0 0
    %2529 = vmatpush2.bf16.msra.mxu0 0
    %2530 = vmatprep.subr.bf16.mxu0 0
    %2531 = vmatpush2.bf16.msra.mxu0 0
    %2532 = vmatprep.subr.bf16.mxu0 0
    %2533 = vmatpush2.bf16.msra.mxu0 0
    %2534 = vmatprep.subr.bf16.mxu0 0
    %2535 = vmatpush2.bf16.msra.mxu0 0
    %2536 = vmatprep.subr.bf16.mxu0 0
    %2537 = vmatpush2.bf16.msra.mxu0 0
    %2538 = vmatprep.mubr.bf16.mxu0 0
    %2539 = vmatmul.mubr.bf16.gmra.mxu0 %v2501
    %v2540 = vpop.f32.mrf.mxu0
    %v2541 = vadd.f32 %v2453, %v2540
    %v2542 = vpop.f32.mrf.mxu0
    %v2543 = vadd.f32 %v2457, %v2542
    %v2544 = vpop.f32.mrf.mxu0
    %v2545 = vadd.f32 %v2453, %v2544
    %v2546 = vpop.f32.mrf.mxu0
    %v2547 = vadd.f32 %v2457, %v2546
    %2548 = vmatprep.mubr.bf16.mxu0 0
    %2549 = vmatmul.mubr.bf16.gmra.mxu0 %v2504
    %v2550 = vpop.f32.mrf.mxu0
    %v2551 = vadd.f32 %v2453, %v2550
    %v2552 = vpop.f32.mrf.mxu0
    %v2553 = vadd.f32 %v2457, %v2552
    %v2554 = vpop.f32.mrf.mxu0
    %v2555 = vpop.f32.mrf.mxu0
    %2556 = vdwg.mxu0
    %v2557 = vmul.f32 %v2541, -1.702
    %v2558 = vmul.f32 %v2543, -1.702
    %v2559 = vmul.f32 %v2545, -1.702
    %v2560 = vmul.f32 %v2547, -1.702
    %v2561 = vmul.f32 %v2551, -1.702
    %v2562 = vmul.f32 %v2553, -1.702
    %v2563 = vmul.f32 %v2557, 1.442695
    %v2564 = vpow.pop %v2563
    %v2565 = vmul.f32 %v2558, 1.442695
    %v2566 = vpow.pop %v2565
    %v2567 = vmul.f32 %v2559, 1.442695
    %v2568 = vpow.pop %v2567
    %v2569 = vmul.f32 %v2560, 1.442695
    %v2570 = vpow.pop %v2569
    %v2571 = vmul.f32 %v2561, 1.442695
    %v2572 = vpow.pop %v2571
    %v2573 = vmul.f32 %v2562, 1.442695
    %v2574 = vpow.pop %v2573
    %v2575 = vadd.f32 %v2564, 1.0
    %v2576 = vadd.f32 %v2566, 1.0
    %v2577 = vadd.f32 %v2568, 1.0
    %v2578 = vadd.f32 %v2570, 1.0
    %v2579 = vadd.f32 %v2572, 1.0
    %v2580 = vadd.f32 %v2574, 1.0
    %v2581 = vrcp.pop %v2575
    %v2582 = vmul.f32 1.0, %v2581
    %v2583 = vrcp.pop %v2576
    %v2584 = vmul.f32 1.0, %v2583
    %v2585 = vrcp.pop %v2577
    %v2586 = vmul.f32 1.0, %v2585
    %v2587 = vrcp.pop %v2578
    %v2588 = vmul.f32 1.0, %v2587
    %v2589 = vrcp.pop %v2579
    %v2590 = vmul.f32 1.0, %v2589
    %v2591 = vrcp.pop %v2580
    %v2592 = vmul.f32 1.0, %v2591
    %v2593 = vmul.f32 %v2541, %v2582
    %v2594 = vmul.f32 %v2543, %v2584
    %v2595 = vmul.f32 %v2545, %v2586
    %v2596 = vmul.f32 %v2547, %v2588
    %v2597 = vmul.f32 %v2551, %v2590
    %v2598 = vmul.f32 %v2553, %v2592
    %v2599 = vpack.c.bf16 %v2595, %v2593
    %v2600 = vpack.c.bf16 %v2596, %v2594
    %v2601 = vpack.c.bf16 %v2597, %v2597
    %v2602 = vpack.c.bf16 %v2598, %v2598
    %v2603 = vld [vmem:[%s55] sm:$0xf]
    %v2604 = vld [vmem:[%s55 + $0x4] sm:$0xf]
    %v2605 = vld [vmem:[%s55 + $0x8] sm:$0xf]
    %v2606 = vld [vmem:[%s55 + $0xc] sm:$0xf]
    %v2607 = vld [vmem:[%s55 + $0x10] sm:$0xf]
    %v2608 = vld [vmem:[%s55 + $0x14] sm:$0xf]
    %v2609 = vld [vmem:[%s55 + $0x18] sm:$0xf]
    %v2610 = vld [vmem:[%s55 + $0x1c] sm:$0xf]
    %v2611 = vld [vmem:[%s55 + $0x20] sm:$0xf]
    %v2612 = vld [vmem:[%s55 + $0x24] sm:$0xf]
    %v2613 = vld [vmem:[%s55 + $0x28] sm:$0xf]
    %v2614 = vld [vmem:[%s55 + $0x2c] sm:$0xf]
    %v2615 = vld [vmem:[%s55 + $0x30] sm:$0xf]
    %v2616 = vld [vmem:[%s55 + $0x34] sm:$0xf]
    %v2617 = vld [vmem:[%s55 + $0x38] sm:$0xf]
    %v2618 = vld [vmem:[%s55 + $0x3c] sm:$0xf]
    %v2619 = vld [vmem:[%s55 + $0x40] sm:$0xf]
    %v2620 = vld [vmem:[%s55 + $0x44] sm:$0xf]
    %v2621 = vld [vmem:[%s55 + $0x48] sm:$0xf]
    %v2622 = vld [vmem:[%s55 + $0x4c] sm:$0xf]
    %v2623 = vld [vmem:[%s55 + $0x50] sm:$0xf]
    %v2624 = vld [vmem:[%s55 + $0x54] sm:$0xf]
    %v2625 = vld [vmem:[%s55 + $0x58] sm:$0xf]
    %v2626 = vld [vmem:[%s55 + $0x5c] sm:$0xf]
    %v2627 = vld [vmem:[%s55 + $0x60] sm:$0xf]
    %v2628 = vld [vmem:[%s55 + $0x64] sm:$0xf]
    %v2629 = vld [vmem:[%s55 + $0x68] sm:$0xf]
    %v2630 = vld [vmem:[%s55 + $0x6c] sm:$0xf]
    %v2631 = vld [vmem:[%s55 + $0x70] sm:$0xf]
    %v2632 = vld [vmem:[%s55 + $0x74] sm:$0xf]
    %v2633 = vld [vmem:[%s55 + $0x78] sm:$0xf]
    %v2634 = vld [vmem:[%s55 + $0x7c] sm:$0xf]
    %v2667 = vunpack.c.l.b16 %v2603
    %v2668 = vunpack.c.l.b16 %v2604
    %v2669 = vunpack.c.l.b16 %v2605
    %v2670 = vunpack.c.l.b16 %v2606
    %v2671 = vunpack.c.l.b16 %v2607
    %v2672 = vunpack.c.l.b16 %v2608
    %v2673 = vunpack.c.l.b16 %v2609
    %v2674 = vunpack.c.l.b16 %v2610
    %v2675 = vunpack.c.l.b16 %v2611
    %v2676 = vunpack.c.l.b16 %v2612
    %v2677 = vunpack.c.l.b16 %v2613
    %v2678 = vunpack.c.l.b16 %v2614
    %v2679 = vunpack.c.l.b16 %v2615
    %v2680 = vunpack.c.l.b16 %v2616
    %v2681 = vunpack.c.l.b16 %v2617
    %v2682 = vunpack.c.l.b16 %v2618
    %v2683 = vunpack.c.l.b16 %v2619
    %v2684 = vunpack.c.l.b16 %v2620
    %v2685 = vunpack.c.l.b16 %v2621
    %v2686 = vunpack.c.l.b16 %v2622
    %v2687 = vunpack.c.l.b16 %v2623
    %v2688 = vunpack.c.l.b16 %v2624
    %v2689 = vunpack.c.l.b16 %v2625
    %v2690 = vunpack.c.l.b16 %v2626
    %v2691 = vunpack.c.l.b16 %v2627
    %v2692 = vunpack.c.l.b16 %v2628
    %v2693 = vunpack.c.l.b16 %v2629
    %v2694 = vunpack.c.l.b16 %v2630
    %v2695 = vunpack.c.l.b16 %v2631
    %v2696 = vunpack.c.l.b16 %v2632
    %v2697 = vunpack.c.l.b16 %v2633
    %v2698 = vunpack.c.l.b16 %v2634
    %v2699 = vpack.c.b16 %v2668, %v2667
    %v2700 = vpack.c.b16 %v2670, %v2669
    %v2701 = vpack.c.b16 %v2672, %v2671
    %v2702 = vpack.c.b16 %v2674, %v2673
    %v2703 = vpack.c.b16 %v2676, %v2675
    %v2704 = vpack.c.b16 %v2678, %v2677
    %v2705 = vpack.c.b16 %v2680, %v2679
    %v2706 = vpack.c.b16 %v2682, %v2681
    %v2707 = vpack.c.b16 %v2684, %v2683
    %v2708 = vpack.c.b16 %v2686, %v2685
    %v2709 = vpack.c.b16 %v2688, %v2687
    %v2710 = vpack.c.b16 %v2690, %v2689
    %v2711 = vpack.c.b16 %v2692, %v2691
    %v2712 = vpack.c.b16 %v2694, %v2693
    %v2713 = vpack.c.b16 %v2696, %v2695
    %v2714 = vpack.c.b16 %v2698, %v2697
    %2731 = vmatprep.subr.bf16.mxu0 0
    %2732 = vmatpush1.bf16.msra.mxu0 %v2706
    %2733 = vmatprep.subr.bf16.mxu0 0
    %2734 = vmatpush1.bf16.msra.mxu0 %v2705
    %2735 = vmatprep.subr.bf16.mxu0 0
    %2736 = vmatpush1.bf16.msra.mxu0 %v2704
    %2737 = vmatprep.subr.bf16.mxu0 0
    %2738 = vmatpush1.bf16.msra.mxu0 %v2703
    %2739 = vmatprep.subr.bf16.mxu0 0
    %2740 = vmatpush1.bf16.msra.mxu0 %v2702
    %2741 = vmatprep.subr.bf16.mxu0 0
    %2742 = vmatpush1.bf16.msra.mxu0 %v2701
    %2743 = vmatprep.subr.bf16.mxu0 0
    %2744 = vmatpush1.bf16.msra.mxu0 %v2700
    %2745 = vmatprep.subr.bf16.mxu0 0
    %2746 = vmatpush1.bf16.msra.mxu0 %v2699
    %2747 = vmatprep.subr.bf16.mxu0 0
    %2748 = vmatpush2.bf16.msra.mxu0 %v2714
    %2749 = vmatprep.subr.bf16.mxu0 0
    %2750 = vmatpush2.bf16.msra.mxu0 %v2713
    %2751 = vmatprep.subr.bf16.mxu0 0
    %2752 = vmatpush2.bf16.msra.mxu0 %v2712
    %2753 = vmatprep.subr.bf16.mxu0 0
    %2754 = vmatpush2.bf16.msra.mxu0 %v2711
    %2755 = vmatprep.subr.bf16.mxu0 0
    %2756 = vmatpush2.bf16.msra.mxu0 %v2710
    %2757 = vmatprep.subr.bf16.mxu0 0
    %2758 = vmatpush2.bf16.msra.mxu0 %v2709
    %2759 = vmatprep.subr.bf16.mxu0 0
    %2760 = vmatpush2.bf16.msra.mxu0 %v2708
    %2761 = vmatprep.subr.bf16.mxu0 0
    %2762 = vmatpush2.bf16.msra.mxu0 %v2707
    %2763 = vmatprep.mubr.bf16.mxu0 %v2600
    %2764 = vmatmul.mubr.bf16.gmra.mxu0 %v2599
    %v2765 = vpop.f32.mrf.mxu0
    %v2766 = vadd.f32 0.0, %v2765
    %v2767 = vpop.f32.mrf.mxu0
    %v2768 = vpop.f32.mrf.mxu0
    %v2769 = vpop.f32.mrf.mxu0
    %2770 = vmatprep.mubr.bf16.mxu0 %v2602
    %2771 = vmatmul.mubr.bf16.gmra.mxu0 %v2601
    %v2772 = vpop.f32.mrf.mxu0
    %v2773 = vpop.f32.mrf.mxu0
    %v2774 = vpop.f32.mrf.mxu0
    %v2775 = vpop.f32.mrf.mxu0
    %2776 = vdwg.mxu0
    %v2777 = vadd.f32 %v2376, %v2766
    %v2778 = vld [vmem:[#allocation35] sm:$0x1]
    %v2780 = vlaneseq
    %v2781 = vshrl.u32 %v2780, 7
    %v2782 = vsub.s32 0, %v2781
    %v2783 = vrot.slane %v2778, %v2782
    %v2785 = vadd.f32 %v2777, %v2783
    %s2786 = scalar_lea.vmem %s1, 24
    %v2787 = vld [vmem:[%s2786] sm:$0xff]
    %v2788 = vld [vmem:[%s2786 + $0x8] sm:$0xff]
    %v2789 = vld [vmem:[%s2786 + $0x10] sm:$0x11]
    %v2793 = vunpack.c.l.b16 %v2787
    %v2794 = vunpack.c.h.b16 %v2787
    %v2795 = vunpack.c.l.b16 %v2788
    %v2796 = vunpack.c.h.b16 %v2788
    %v2797 = vunpack.c.l.b16 %v2789
    %v2798 = vunpack.c.h.b16 %v2789
    %v2799 = vpack.c.b16 %v2795, %v2793
    %v2800 = vpack.c.b16 %v2796, %v2794
    %v2801 = vpack.c.b16 %v2797, %v2797
    %v2802 = vpack.c.b16 %v2798, %v2798
    %v2806 = vsel %vm586, %v2800, 0
    %v2809 = vsel %vm586, %v2802, 0
    %2811 = vmatprep.subr.bf16.mxu0 0
    %2812 = vmatpush1.bf16.msra.mxu0 %v569
    %2813 = vmatprep.subr.bf16.mxu0 0
    %2814 = vmatpush1.bf16.msra.mxu0 %v568
    %2815 = vmatprep.subr.bf16.mxu0 0
    %2816 = vmatpush1.bf16.msra.mxu0 %v567
    %2817 = vmatprep.subr.bf16.mxu0 0
    %2818 = vmatpush1.bf16.msra.mxu0 %v566
    %2819 = vmatprep.subr.bf16.mxu0 0
    %2820 = vmatpush1.bf16.msra.mxu0 %v565
    %2821 = vmatprep.subr.bf16.mxu0 0
    %2822 = vmatpush1.bf16.msra.mxu0 %v564
    %2823 = vmatprep.subr.bf16.mxu0 0
    %2824 = vmatpush1.bf16.msra.mxu0 %v563
    %2825 = vmatprep.subr.bf16.mxu0 0
    %2826 = vmatpush1.bf16.msra.mxu0 %v562
    %2827 = vmatprep.subr.bf16.mxu0 0
    %2828 = vmatpush2.bf16.msra.mxu0 0
    %2829 = vmatprep.subr.bf16.mxu0 0
    %2830 = vmatpush2.bf16.msra.mxu0 0
    %2831 = vmatprep.subr.bf16.mxu0 0
    %2832 = vmatpush2.bf16.msra.mxu0 0
    %2833 = vmatprep.subr.bf16.mxu0 0
    %2834 = vmatpush2.bf16.msra.mxu0 0
    %2835 = vmatprep.subr.bf16.mxu0 0
    %2836 = vmatpush2.bf16.msra.mxu0 %v573
    %2837 = vmatprep.subr.bf16.mxu0 0
    %2838 = vmatpush2.bf16.msra.mxu0 %v572
    %2839 = vmatprep.subr.bf16.mxu0 0
    %2840 = vmatpush2.bf16.msra.mxu0 %v571
    %2841 = vmatprep.subr.bf16.mxu0 0
    %2842 = vmatpush2.bf16.msra.mxu0 %v570
    %2843 = vmatprep.mubr.bf16.mxu0 %v2806
    %2844 = vmatmul.mubr.bf16.gmra.mxu0 %v2799
    %v2845 = vpop.f32.mrf.mxu0
    %v2846 = vadd.f32 %v496, %v2845
    %v2847 = vpop.f32.mrf.mxu0
    %v2848 = vpop.f32.mrf.mxu0
    %v2849 = vadd.f32 %v497, %v2848
    %v2850 = vpop.f32.mrf.mxu0
    %2851 = vmatprep.mubr.bf16.mxu0 %v2809
    %2852 = vmatmul.mubr.bf16.gmra.mxu0 %v2801
    %v2853 = vpop.f32.mrf.mxu0
    %v2854 = vadd.f32 %v498, %v2853
    %v2855 = vpop.f32.mrf.mxu0
    %v2856 = vpop.f32.mrf.mxu0
    %v2857 = vpop.f32.mrf.mxu0
    %2858 = vdwg.mxu0
    %v2859 = vsel %vm586, %v2846, 0.0
    %2860 = vadd.xlane.f32.xlu0 %v2859
    %v2861 = vpop.xlane.xlu0 %2860
    %v2862 = vsel %vm586, %v2849, 0.0
    %2863 = vadd.xlane.f32.xlu0 %v2862
    %v2864 = vpop.xlane.xlu0 %2863
    %v2865 = vsel %vm649, %v2854, 0.0
    %2866 = vadd.xlane.f32.xlu0 %v2865
    %v2867 = vpop.xlane.xlu0 %2866
    %v2868 = vmul.f32 %v2861, %v653
    %v2869 = vmul.f32 %v2864, %v653
    %v2870 = vmul.f32 %v2867, %v653
    %v2871 = vsub.f32 %v2846, %v2868
    %v2872 = vsub.f32 %v2849, %v2869
    %v2873 = vsub.f32 %v2854, %v2870
    %v2874 = vmul.f32 %v2871, %v2871
    %v2875 = vmul.f32 %v2872, %v2872
    %v2876 = vmul.f32 %v2873, %v2873
    %v2877 = vsel %vm586, %v2874, 0.0
    %2878 = vadd.xlane.f32.xlu0 %v2877
    %v2879 = vpop.xlane.xlu0 %2878
    %v2880 = vsel %vm586, %v2875, 0.0
    %2881 = vadd.xlane.f32.xlu0 %v2880
    %v2882 = vpop.xlane.xlu0 %2881
    %v2883 = vsel %vm649, %v2876, 0.0
    %2884 = vadd.xlane.f32.xlu0 %v2883
    %v2885 = vpop.xlane.xlu0 %2884
    %v2886 = vmul.f32 %v2879, %v653
    %v2887 = vmul.f32 %v2882, %v653
    %v2888 = vmul.f32 %v2885, %v653
    %v2889 = vadd.f32 %v2886, 1e-05
    %v2890 = vadd.f32 %v2887, 1e-05
    %v2891 = vadd.f32 %v2888, 1e-05
    %v2892 = vrsqrt.pop %v2889
    %v2893 = vrsqrt.pop %v2890
    %v2894 = vrsqrt.pop %v2891
    %v2895 = vmul.f32 %v2871, %v2892
    %v2896 = vmul.f32 %v2872, %v2893
    %v2897 = vmul.f32 %v2873, %v2894
    %v2898 = vmul.f32 %v2895, %v688
    %v2899 = vmul.f32 %v2896, %v688
    %v2900 = vmul.f32 %v2897, %v688
    %v2901 = vadd.f32 %v2898, %v697
    %v2902 = vadd.f32 %v2899, %v697
    %v2903 = vadd.f32 %v2900, %v697
    %v2904 = vsel %vm586, %v2901, 0.0
    %2905 = vadd.xlane.f32.xlu0 %v2904
    %v2906 = vpop.xlane.xlu0 %2905
    %v2907 = vsel %vm586, %v2902, 0.0
    %2908 = vadd.xlane.f32.xlu0 %v2907
    %v2909 = vpop.xlane.xlu0 %2908
    %v2910 = vsel %vm649, %v2903, 0.0
    %2911 = vadd.xlane.f32.xlu0 %v2910
    %v2912 = vpop.xlane.xlu0 %2911
    %v2913 = vmul.f32 %v2906, %v653
    %v2914 = vmul.f32 %v2909, %v653
    %v2915 = vmul.f32 %v2912, %v653
    %v2916 = vsub.f32 %v2901, %v2913
    %v2917 = vsub.f32 %v2902, %v2914
    %v2918 = vsub.f32 %v2903, %v2915
    %v2919 = vmul.f32 %v2916, %v2916
    %v2920 = vmul.f32 %v2917, %v2917
    %v2921 = vmul.f32 %v2918, %v2918
    %v2922 = vsel %vm586, %v2919, 0.0
    %2923 = vadd.xlane.f32.xlu0 %v2922
    %v2924 = vpop.xlane.xlu0 %2923
    %v2925 = vsel %vm586, %v2920, 0.0
    %2926 = vadd.xlane.f32.xlu0 %v2925
    %v2927 = vpop.xlane.xlu0 %2926
    %v2928 = vsel %vm649, %v2921, 0.0
    %2929 = vadd.xlane.f32.xlu0 %v2928
    %v2930 = vpop.xlane.xlu0 %2929
    %v2931 = vmul.f32 %v2924, %v653
    %v2932 = vmul.f32 %v2927, %v653
    %v2933 = vmul.f32 %v2930, %v653
    %v2934 = vadd.f32 %v2931, 1e-05
    %v2935 = vadd.f32 %v2932, 1e-05
    %v2936 = vadd.f32 %v2933, 1e-05
    %v2937 = vrsqrt.pop %v2934
    %v2938 = vrsqrt.pop %v2935
    %v2939 = vrsqrt.pop %v2936
    %v2940 = vmul.f32 %v2916, %v2937
    %v2941 = vmul.f32 %v2917, %v2938
    %v2942 = vmul.f32 %v2918, %v2939
    %v2943 = vmul.f32 %v2940, %v747
    %v2944 = vmul.f32 %v2941, %v747
    %v2945 = vmul.f32 %v2942, %v747
    %v2946 = vadd.f32 %v2943, %v756
    %v2947 = vadd.f32 %v2944, %v756
    %v2948 = vadd.f32 %v2945, %v756
    %v2949 = vpack.c.bf16 %v2947, %v2946
    %v2950 = vpack.c.bf16 %v2948, %v2948
    %v2952 = vsel %vm586, %v2949, 0
    %v2955 = vsel %vm586, %v2950, 0
    %2957 = vmatprep.subr.bf16.mxu0 0
    %2958 = vmatpush1.bf16.msra.mxu0 0
    %2959 = vmatprep.subr.bf16.mxu0 0
    %2960 = vmatpush1.bf16.msra.mxu0 0
    %2961 = vmatprep.subr.bf16.mxu0 0
    %2962 = vmatpush1.bf16.msra.mxu0 0
    %2963 = vmatprep.subr.bf16.mxu0 0
    %2964 = vmatpush1.bf16.msra.mxu0 0
    %2965 = vmatprep.subr.bf16.mxu0 %v814
    %2966 = vmatpush1.bf16.msra.mxu0 %v813
    %2967 = vmatprep.subr.bf16.mxu0 %v812
    %2968 = vmatpush1.bf16.msra.mxu0 %v811
    %2969 = vmatprep.subr.bf16.mxu0 %v810
    %2970 = vmatpush1.bf16.msra.mxu0 %v809
    %2971 = vmatprep.subr.bf16.mxu0 %v808
    %2972 = vmatpush1.bf16.msra.mxu0 %v807
    %2973 = vmatprep.subr.bf16.mxu0 0
    %2974 = vmatpush2.bf16.msra.mxu0 0
    %2975 = vmatprep.subr.bf16.mxu0 0
    %2976 = vmatpush2.bf16.msra.mxu0 0
    %2977 = vmatprep.subr.bf16.mxu0 0
    %2978 = vmatpush2.bf16.msra.mxu0 0
    %2979 = vmatprep.subr.bf16.mxu0 0
    %2980 = vmatpush2.bf16.msra.mxu0 0
    %2981 = vmatprep.subr.bf16.mxu0 0
    %2982 = vmatpush2.bf16.msra.mxu0 0
    %2983 = vmatprep.subr.bf16.mxu0 0
    %2984 = vmatpush2.bf16.msra.mxu0 0
    %2985 = vmatprep.subr.bf16.mxu0 0
    %2986 = vmatpush2.bf16.msra.mxu0 0
    %2987 = vmatprep.subr.bf16.mxu0 0
    %2988 = vmatpush2.bf16.msra.mxu0 0
    %2989 = vmatprep.mubr.bf16.mxu0 0
    %2990 = vmatmul.mubr.bf16.gmra.mxu0 %v2952
    %v2991 = vpop.f32.mrf.mxu0
    %v2992 = vadd.f32 %v776, %v2991
    %v2993 = vpop.f32.mrf.mxu0
    %v2994 = vadd.f32 %v780, %v2993
    %v2995 = vpop.f32.mrf.mxu0
    %v2996 = vadd.f32 %v776, %v2995
    %v2997 = vpop.f32.mrf.mxu0
    %v2998 = vadd.f32 %v780, %v2997
    %2999 = vmatprep.mubr.bf16.mxu0 0
    %3000 = vmatmul.mubr.bf16.gmra.mxu0 %v2955
    %v3001 = vpop.f32.mrf.mxu0
    %v3002 = vadd.f32 %v776, %v3001
    %v3003 = vpop.f32.mrf.mxu0
    %v3004 = vadd.f32 %v780, %v3003
    %v3005 = vpop.f32.mrf.mxu0
    %v3006 = vpop.f32.mrf.mxu0
    %3007 = vdwg.mxu0
    %v3008 = vpack.c.bf16 %v2996, %v2992
    %v3009 = vpack.c.bf16 %v2998, %v2994
    %v3010 = vpack.c.bf16 %v3002, %v3002
    %v3011 = vpack.c.bf16 %v3004, %v3004
    %3014 = vrot.lane.b32.xlu0 %v3008, 64
    %v3015 = vpop.permute.xlu0 %3014
    %3016 = vrot.lane.b32.xlu0 %v3010, 64
    %v3017 = vpop.permute.xlu0 %3016
    %v3019 = vsel %vm890, %v3008, 0
    %v3022 = vsel %vm890, %v3010, 0
    %v3025 = vsel %vm890, %v3015, 0
    %v3028 = vsel %vm890, %v3017, 0
    %3030 = vmatprep.subr.bf16.mxu0 0
    %3031 = vmatpush1.bf16.xpose.msra.mxu0 0
    %3032 = vmatprep.subr.bf16.mxu0 0
    %3033 = vmatpush1.bf16.xpose.msra.mxu0 0
    %3034 = vmatprep.subr.bf16.mxu0 0
    %3035 = vmatpush1.bf16.xpose.msra.mxu0 0
    %3036 = vmatprep.subr.bf16.mxu0 0
    %3037 = vmatpush1.bf16.xpose.msra.mxu0 0
    %3038 = vmatprep.subr.bf16.mxu0 0
    %3039 = vmatpush1.bf16.xpose.msra.mxu0 0
    %3040 = vmatprep.subr.bf16.mxu0 0
    %3041 = vmatpush1.bf16.xpose.msra.mxu0 0
    %3042 = vmatprep.subr.bf16.mxu0 0
    %3043 = vmatpush1.bf16.xpose.msra.mxu0 %v3028
    %3044 = vmatprep.subr.bf16.mxu0 0
    %3045 = vmatpush1.bf16.xpose.msra.mxu0 %v3025
    %3046 = vmatprep.subr.bf16.mxu0 0
    %3047 = vmatpush2.bf16.xpose.msra.mxu0 0
    %3048 = vmatprep.subr.bf16.mxu0 0
    %3049 = vmatpush2.bf16.xpose.msra.mxu0 0
    %3050 = vmatprep.subr.bf16.mxu0 0
    %3051 = vmatpush2.bf16.xpose.msra.mxu0 0
    %3052 = vmatprep.subr.bf16.mxu0 0
    %3053 = vmatpush2.bf16.xpose.msra.mxu0 0
    %3054 = vmatprep.subr.bf16.mxu0 0
    %3055 = vmatpush2.bf16.xpose.msra.mxu0 0
    %3056 = vmatprep.subr.bf16.mxu0 0
    %3057 = vmatpush2.bf16.xpose.msra.mxu0 0
    %3058 = vmatprep.subr.bf16.mxu0 0
    %3059 = vmatpush2.bf16.xpose.msra.mxu0 0
    %3060 = vmatprep.subr.bf16.mxu0 0
    %3061 = vmatpush2.bf16.xpose.msra.mxu0 0
    %3062 = vmatprep.mubr.bf16.mxu0 0
    %3063 = vmatmul.mubr.bf16.gmra.mxu0 %v3019
    %v3064 = vpop.f32.mrf.mxu0
    %v3065 = vadd.f32 0.0, %v3064
    %v3066 = vpop.f32.mrf.mxu0
    %v3067 = vpop.f32.mrf.mxu0
    %v3068 = vadd.f32 0.0, %v3067
    %v3069 = vpop.f32.mrf.mxu0
    %3070 = vmatprep.mubr.bf16.mxu0 0
    %3071 = vmatmul.mubr.bf16.gmra.mxu0 %v3022
    %v3072 = vpop.f32.mrf.mxu0
    %v3073 = vadd.f32 0.0, %v3072
    %v3074 = vpop.f32.mrf.mxu0
    %v3075 = vpop.f32.mrf.mxu0
    %v3076 = vpop.f32.mrf.mxu0
    %3077 = vdwg.mxu0
    %v3078 = vmul.f32 %v3065, 0.17677669
    %v3079 = vmul.f32 %v3068, 0.17677669
    %v3080 = vmul.f32 %v3073, 0.17677669
    %v3081 = vsel %vm954, %v3078, -inf
    %3082 = vmax.xlane.f32.xlu0 %v3081
    %v3083 = vpop.xlane.xlu0 %3082
    %v3084 = vsel %vm954, %v3079, -inf
    %3085 = vmax.xlane.f32.xlu0 %v3084
    %v3086 = vpop.xlane.xlu0 %3085
    %v3087 = vsel %vm961, %v3080, -inf
    %3088 = vmax.xlane.f32.xlu0 %v3087
    %v3089 = vpop.xlane.xlu0 %3088
    %v3090 = vsub.f32 %v3078, %v3083
    %v3091 = vsub.f32 %v3079, %v3086
    %v3092 = vsub.f32 %v3080, %v3089
    %v3093 = vmul.f32 %v3090, 1.442695
    %v3094 = vpow.pop %v3093
    %v3095 = vmul.f32 %v3091, 1.442695
    %v3096 = vpow.pop %v3095
    %v3097 = vmul.f32 %v3092, 1.442695
    %v3098 = vpow.pop %v3097
    %v3099 = vsel %vm954, %v3094, 0.0
    %3100 = vadd.xlane.f32.xlu0 %v3099
    %v3101 = vpop.xlane.xlu0 %3100
    %v3102 = vsel %vm954, %v3096, 0.0
    %3103 = vadd.xlane.f32.xlu0 %v3102
    %v3104 = vpop.xlane.xlu0 %3103
    %v3105 = vsel %vm961, %v3098, 0.0
    %3106 = vadd.xlane.f32.xlu0 %v3105
    %v3107 = vpop.xlane.xlu0 %3106
    %v3108 = vrcp.pop %v3101
    %v3109 = vrcp.pop %v3104
    %v3110 = vrcp.pop %v3107
    %v3111 = vmul.f32 %v3094, %v3108
    %v3112 = vmul.f32 %v3096, %v3109
    %v3113 = vmul.f32 %v3098, %v3110
    %v3114 = vpack.c.bf16 %v3112, %v3111
    %v3115 = vpack.c.bf16 %v3113, %v3113
    %v3117 = vsel %vm954, %v3114, 0
    %v3120 = vsel %vm954, %v3115, 0
    %v3123 = vand.u32 %v3011, %v999
    %3125 = vmatprep.subr.bf16.mxu0 0
    %3126 = vmatpush1.bf16.msra.mxu0 0
    %3127 = vmatprep.subr.bf16.mxu0 0
    %3128 = vmatpush1.bf16.msra.mxu0 0
    %3129 = vmatprep.subr.bf16.mxu0 0
    %3130 = vmatpush1.bf16.msra.mxu0 0
    %3131 = vmatprep.subr.bf16.mxu0 0
    %3132 = vmatpush1.bf16.msra.mxu0 0
    %3133 = vmatprep.subr.bf16.mxu0 0
    %3134 = vmatpush1.bf16.msra.mxu0 0
    %3135 = vmatprep.subr.bf16.mxu0 0
    %3136 = vmatpush1.bf16.msra.mxu0 0
    %3137 = vmatprep.subr.bf16.mxu0 0
    %3138 = vmatpush1.bf16.msra.mxu0 %v3123
    %3139 = vmatprep.subr.bf16.mxu0 0
    %3140 = vmatpush1.bf16.msra.mxu0 %v3009
    %3141 = vmatprep.subr.bf16.mxu0 0
    %3142 = vmatpush2.bf16.msra.mxu0 0
    %3143 = vmatprep.subr.bf16.mxu0 0
    %3144 = vmatpush2.bf16.msra.mxu0 0
    %3145 = vmatprep.subr.bf16.mxu0 0
    %3146 = vmatpush2.bf16.msra.mxu0 0
    %3147 = vmatprep.subr.bf16.mxu0 0
    %3148 = vmatpush2.bf16.msra.mxu0 0
    %3149 = vmatprep.subr.bf16.mxu0 0
    %3150 = vmatpush2.bf16.msra.mxu0 0
    %3151 = vmatprep.subr.bf16.mxu0 0
    %3152 = vmatpush2.bf16.msra.mxu0 0
    %3153 = vmatprep.subr.bf16.mxu0 0
    %3154 = vmatpush2.bf16.msra.mxu0 0
    %3155 = vmatprep.subr.bf16.mxu0 0
    %3156 = vmatpush2.bf16.msra.mxu0 0
    %3157 = vmatprep.mubr.bf16.mxu0 0
    %3158 = vmatmul.mubr.bf16.gmra.mxu0 %v3117
    %v3159 = vpop.f32.mrf.mxu0
    %v3160 = vadd.f32 0.0, %v3159
    %v3161 = vpop.f32.mrf.mxu0
    %v3162 = vpop.f32.mrf.mxu0
    %v3163 = vadd.f32 0.0, %v3162
    %v3164 = vpop.f32.mrf.mxu0
    %3165 = vmatprep.mubr.bf16.mxu0 0
    %3166 = vmatmul.mubr.bf16.gmra.mxu0 %v3120
    %v3167 = vpop.f32.mrf.mxu0
    %v3168 = vadd.f32 0.0, %v3167
    %v3169 = vpop.f32.mrf.mxu0
    %v3170 = vpop.f32.mrf.mxu0
    %v3171 = vpop.f32.mrf.mxu0
    %3172 = vdwg.mxu0
    %3173 = vrot.lane.b32.xlu0 %v3008, 96
    %v3174 = vpop.permute.xlu0 %3173
    %3175 = vrot.lane.b32.xlu0 %v3010, 96
    %v3176 = vpop.permute.xlu0 %3175
    %3177 = vrot.lane.b32.xlu0 %v3008, 32
    %v3178 = vpop.permute.xlu0 %3177
    %3179 = vrot.lane.b32.xlu0 %v3010, 32
    %v3180 = vpop.permute.xlu0 %3179
    %v3182 = vsel %vm890, %v3174, 0
    %v3185 = vsel %vm890, %v3176, 0
    %v3188 = vsel %vm890, %v3178, 0
    %v3191 = vsel %vm890, %v3180, 0
    %3193 = vmatprep.subr.bf16.mxu0 0
    %3194 = vmatpush1.bf16.xpose.msra.mxu0 0
    %3195 = vmatprep.subr.bf16.mxu0 0
    %3196 = vmatpush1.bf16.xpose.msra.mxu0 0
    %3197 = vmatprep.subr.bf16.mxu0 0
    %3198 = vmatpush1.bf16.xpose.msra.mxu0 0
    %3199 = vmatprep.subr.bf16.mxu0 0
    %3200 = vmatpush1.bf16.xpose.msra.mxu0 0
    %3201 = vmatprep.subr.bf16.mxu0 0
    %3202 = vmatpush1.bf16.xpose.msra.mxu0 0
    %3203 = vmatprep.subr.bf16.mxu0 0
    %3204 = vmatpush1.bf16.xpose.msra.mxu0 0
    %3205 = vmatprep.subr.bf16.mxu0 0
    %3206 = vmatpush1.bf16.xpose.msra.mxu0 %v3191
    %3207 = vmatprep.subr.bf16.mxu0 0
    %3208 = vmatpush1.bf16.xpose.msra.mxu0 %v3188
    %3209 = vmatprep.subr.bf16.mxu0 0
    %3210 = vmatpush2.bf16.xpose.msra.mxu0 0
    %3211 = vmatprep.subr.bf16.mxu0 0
    %3212 = vmatpush2.bf16.xpose.msra.mxu0 0
    %3213 = vmatprep.subr.bf16.mxu0 0
    %3214 = vmatpush2.bf16.xpose.msra.mxu0 0
    %3215 = vmatprep.subr.bf16.mxu0 0
    %3216 = vmatpush2.bf16.xpose.msra.mxu0 0
    %3217 = vmatprep.subr.bf16.mxu0 0
    %3218 = vmatpush2.bf16.xpose.msra.mxu0 0
    %3219 = vmatprep.subr.bf16.mxu0 0
    %3220 = vmatpush2.bf16.xpose.msra.mxu0 0
    %3221 = vmatprep.subr.bf16.mxu0 0
    %3222 = vmatpush2.bf16.xpose.msra.mxu0 0
    %3223 = vmatprep.subr.bf16.mxu0 0
    %3224 = vmatpush2.bf16.xpose.msra.mxu0 0
    %3225 = vmatprep.mubr.bf16.mxu0 0
    %3226 = vmatmul.mubr.bf16.gmra.mxu0 %v3182
    %v3227 = vpop.f32.mrf.mxu0
    %v3228 = vadd.f32 0.0, %v3227
    %v3229 = vpop.f32.mrf.mxu0
    %v3230 = vpop.f32.mrf.mxu0
    %v3231 = vadd.f32 0.0, %v3230
    %v3232 = vpop.f32.mrf.mxu0
    %3233 = vmatprep.mubr.bf16.mxu0 0
    %3234 = vmatmul.mubr.bf16.gmra.mxu0 %v3185
    %v3235 = vpop.f32.mrf.mxu0
    %v3236 = vadd.f32 0.0, %v3235
    %v3237 = vpop.f32.mrf.mxu0
    %v3238 = vpop.f32.mrf.mxu0
    %v3239 = vpop.f32.mrf.mxu0
    %3240 = vdwg.mxu0
    %v3241 = vmul.f32 %v3228, 0.17677669
    %v3242 = vmul.f32 %v3231, 0.17677669
    %v3243 = vmul.f32 %v3236, 0.17677669
    %v3244 = vsel %vm954, %v3241, -inf
    %3245 = vmax.xlane.f32.xlu0 %v3244
    %v3246 = vpop.xlane.xlu0 %3245
    %v3247 = vsel %vm954, %v3242, -inf
    %3248 = vmax.xlane.f32.xlu0 %v3247
    %v3249 = vpop.xlane.xlu0 %3248
    %v3250 = vsel %vm961, %v3243, -inf
    %3251 = vmax.xlane.f32.xlu0 %v3250
    %v3252 = vpop.xlane.xlu0 %3251
    %v3253 = vsub.f32 %v3241, %v3246
    %v3254 = vsub.f32 %v3242, %v3249
    %v3255 = vsub.f32 %v3243, %v3252
    %v3256 = vmul.f32 %v3253, 1.442695
    %v3257 = vpow.pop %v3256
    %v3258 = vmul.f32 %v3254, 1.442695
    %v3259 = vpow.pop %v3258
    %v3260 = vmul.f32 %v3255, 1.442695
    %v3261 = vpow.pop %v3260
    %v3262 = vsel %vm954, %v3257, 0.0
    %3263 = vadd.xlane.f32.xlu0 %v3262
    %v3264 = vpop.xlane.xlu0 %3263
    %v3265 = vsel %vm954, %v3259, 0.0
    %3266 = vadd.xlane.f32.xlu0 %v3265
    %v3267 = vpop.xlane.xlu0 %3266
    %v3268 = vsel %vm961, %v3261, 0.0
    %3269 = vadd.xlane.f32.xlu0 %v3268
    %v3270 = vpop.xlane.xlu0 %3269
    %v3271 = vrcp.pop %v3264
    %v3272 = vrcp.pop %v3267
    %v3273 = vrcp.pop %v3270
    %v3274 = vmul.f32 %v3257, %v3271
    %v3275 = vmul.f32 %v3259, %v3272
    %v3276 = vmul.f32 %v3261, %v3273
    %v3277 = vpack.c.bf16 %v3275, %v3274
    %v3278 = vpack.c.bf16 %v3276, %v3276
    %3281 = vrot.lane.b32.xlu0 %v3009, 96
    %v3282 = vpop.permute.xlu0 %3281
    %3283 = vrot.lane.b32.xlu0 %v3011, 96
    %v3284 = vpop.permute.xlu0 %3283
    %v3287 = vsel %vm954, %v3277, 0
    %v3290 = vsel %vm954, %v3278, 0
    %v3293 = vand.u32 %v3284, %v999
    %3295 = vmatprep.subr.bf16.mxu0 0
    %3296 = vmatpush1.bf16.msra.mxu0 0
    %3297 = vmatprep.subr.bf16.mxu0 0
    %3298 = vmatpush1.bf16.msra.mxu0 0
    %3299 = vmatprep.subr.bf16.mxu0 0
    %3300 = vmatpush1.bf16.msra.mxu0 0
    %3301 = vmatprep.subr.bf16.mxu0 0
    %3302 = vmatpush1.bf16.msra.mxu0 0
    %3303 = vmatprep.subr.bf16.mxu0 0
    %3304 = vmatpush1.bf16.msra.mxu0 0
    %3305 = vmatprep.subr.bf16.mxu0 0
    %3306 = vmatpush1.bf16.msra.mxu0 0
    %3307 = vmatprep.subr.bf16.mxu0 0
    %3308 = vmatpush1.bf16.msra.mxu0 %v3293
    %3309 = vmatprep.subr.bf16.mxu0 0
    %3310 = vmatpush1.bf16.msra.mxu0 %v3282
    %3311 = vmatprep.subr.bf16.mxu0 0
    %3312 = vmatpush2.bf16.msra.mxu0 0
    %3313 = vmatprep.subr.bf16.mxu0 0
    %3314 = vmatpush2.bf16.msra.mxu0 0
    %3315 = vmatprep.subr.bf16.mxu0 0
    %3316 = vmatpush2.bf16.msra.mxu0 0
    %3317 = vmatprep.subr.bf16.mxu0 0
    %3318 = vmatpush2.bf16.msra.mxu0 0
    %3319 = vmatprep.subr.bf16.mxu0 0
    %3320 = vmatpush2.bf16.msra.mxu0 0
    %3321 = vmatprep.subr.bf16.mxu0 0
    %3322 = vmatpush2.bf16.msra.mxu0 0
    %3323 = vmatprep.subr.bf16.mxu0 0
    %3324 = vmatpush2.bf16.msra.mxu0 0
    %3325 = vmatprep.subr.bf16.mxu0 0
    %3326 = vmatpush2.bf16.msra.mxu0 0
    %3327 = vmatprep.mubr.bf16.mxu0 0
    %3328 = vmatmul.mubr.bf16.gmra.mxu0 %v3287
    %v3329 = vpop.f32.mrf.mxu0
    %v3330 = vadd.f32 0.0, %v3329
    %v3331 = vpop.f32.mrf.mxu0
    %v3332 = vpop.f32.mrf.mxu0
    %v3333 = vadd.f32 0.0, %v3332
    %v3334 = vpop.f32.mrf.mxu0
    %3335 = vmatprep.mubr.bf16.mxu0 0
    %3336 = vmatmul.mubr.bf16.gmra.mxu0 %v3290
    %v3337 = vpop.f32.mrf.mxu0
    %v3338 = vadd.f32 0.0, %v3337
    %v3339 = vpop.f32.mrf.mxu0
    %v3340 = vpop.f32.mrf.mxu0
    %v3341 = vpop.f32.mrf.mxu0
    %3342 = vdwg.mxu0
    %3346 = vrot.lane.b32.xlu0 %v3330, 32
    %v3347 = vpop.permute.xlu0 %3346
    %3348 = vrot.lane.b32.xlu0 %v3333, 32
    %v3349 = vpop.permute.xlu0 %3348
    %3350 = vrot.lane.b32.xlu0 %v3338, 32
    %v3351 = vpop.permute.xlu0 %3350
    %v3355 = vsel %vm890, %v3160, %v3347
    %v3356 = vsel %vm890, %v3163, %v3349
    %v3357 = vsel %vm890, %v3168, %v3351
    %v3358 = vpack.c.bf16 %v3356, %v3355
    %v3359 = vpack.c.bf16 %v3357, %v3357
    %v3361 = vsel %vm586, %v3358, 0
    %v3364 = vsel %vm586, %v3359, 0
    %3366 = vmatprep.subr.bf16.mxu0 0
    %3367 = vmatpush1.bf16.msra.mxu0 0
    %3368 = vmatprep.subr.bf16.mxu0 0
    %3369 = vmatpush1.bf16.msra.mxu0 0
    %3370 = vmatprep.subr.bf16.mxu0 0
    %3371 = vmatpush1.bf16.msra.mxu0 0
    %3372 = vmatprep.subr.bf16.mxu0 0
    %3373 = vmatpush1.bf16.msra.mxu0 0
    %3374 = vmatprep.subr.bf16.mxu0 0
    %3375 = vmatpush1.bf16.msra.mxu0 %v1265
    %3376 = vmatprep.subr.bf16.mxu0 0
    %3377 = vmatpush1.bf16.msra.mxu0 %v1264
    %3378 = vmatprep.subr.bf16.mxu0 0
    %3379 = vmatpush1.bf16.msra.mxu0 %v1263
    %3380 = vmatprep.subr.bf16.mxu0 0
    %3381 = vmatpush1.bf16.msra.mxu0 %v1262
    %3382 = vmatprep.subr.bf16.mxu0 0
    %3383 = vmatpush2.bf16.msra.mxu0 0
    %3384 = vmatprep.subr.bf16.mxu0 0
    %3385 = vmatpush2.bf16.msra.mxu0 0
    %3386 = vmatprep.subr.bf16.mxu0 0
    %3387 = vmatpush2.bf16.msra.mxu0 0
    %3388 = vmatprep.subr.bf16.mxu0 0
    %3389 = vmatpush2.bf16.msra.mxu0 0
    %3390 = vmatprep.subr.bf16.mxu0 0
    %3391 = vmatpush2.bf16.msra.mxu0 0
    %3392 = vmatprep.subr.bf16.mxu0 0
    %3393 = vmatpush2.bf16.msra.mxu0 0
    %3394 = vmatprep.subr.bf16.mxu0 0
    %3395 = vmatpush2.bf16.msra.mxu0 0
    %3396 = vmatprep.subr.bf16.mxu0 0
    %3397 = vmatpush2.bf16.msra.mxu0 0
    %3398 = vmatprep.mubr.bf16.mxu0 0
    %3399 = vmatmul.mubr.bf16.gmra.mxu0 %v3361
    %v3400 = vpop.f32.mrf.mxu0
    %v3401 = vadd.f32 0.0, %v3400
    %v3402 = vpop.f32.mrf.mxu0
    %v3403 = vpop.f32.mrf.mxu0
    %v3404 = vadd.f32 0.0, %v3403
    %v3405 = vpop.f32.mrf.mxu0
    %3406 = vmatprep.mubr.bf16.mxu0 0
    %3407 = vmatmul.mubr.bf16.gmra.mxu0 %v3364
    %v3408 = vpop.f32.mrf.mxu0
    %v3409 = vadd.f32 0.0, %v3408
    %v3410 = vpop.f32.mrf.mxu0
    %v3411 = vpop.f32.mrf.mxu0
    %v3412 = vpop.f32.mrf.mxu0
    %3413 = vdwg.mxu0
    %v3414 = vadd.f32 %v2901, %v3401
    %v3415 = vadd.f32 %v2902, %v3404
    %v3416 = vadd.f32 %v2903, %v3409
    %v3417 = vadd.f32 %v3414, %v1332
    %v3418 = vadd.f32 %v3415, %v1332
    %v3419 = vadd.f32 %v3416, %v1332
    %v3420 = vsel %vm586, %v3417, 0.0
    %3421 = vadd.xlane.f32.xlu0 %v3420
    %v3422 = vpop.xlane.xlu0 %3421
    %v3423 = vsel %vm586, %v3418, 0.0
    %3424 = vadd.xlane.f32.xlu0 %v3423
    %v3425 = vpop.xlane.xlu0 %3424
    %v3426 = vsel %vm649, %v3419, 0.0
    %3427 = vadd.xlane.f32.xlu0 %v3426
    %v3428 = vpop.xlane.xlu0 %3427
    %v3429 = vmul.f32 %v3422, %v653
    %v3430 = vmul.f32 %v3425, %v653
    %v3431 = vmul.f32 %v3428, %v653
    %v3432 = vsub.f32 %v3417, %v3429
    %v3433 = vsub.f32 %v3418, %v3430
    %v3434 = vsub.f32 %v3419, %v3431
    %v3435 = vmul.f32 %v3432, %v3432
    %v3436 = vmul.f32 %v3433, %v3433
    %v3437 = vmul.f32 %v3434, %v3434
    %v3438 = vsel %vm586, %v3435, 0.0
    %3439 = vadd.xlane.f32.xlu0 %v3438
    %v3440 = vpop.xlane.xlu0 %3439
    %v3441 = vsel %vm586, %v3436, 0.0
    %3442 = vadd.xlane.f32.xlu0 %v3441
    %v3443 = vpop.xlane.xlu0 %3442
    %v3444 = vsel %vm649, %v3437, 0.0
    %3445 = vadd.xlane.f32.xlu0 %v3444
    %v3446 = vpop.xlane.xlu0 %3445
    %v3447 = vmul.f32 %v3440, %v653
    %v3448 = vmul.f32 %v3443, %v653
    %v3449 = vmul.f32 %v3446, %v653
    %v3450 = vadd.f32 %v3447, 1e-05
    %v3451 = vadd.f32 %v3448, 1e-05
    %v3452 = vadd.f32 %v3449, 1e-05
    %v3453 = vrsqrt.pop %v3450
    %v3454 = vrsqrt.pop %v3451
    %v3455 = vrsqrt.pop %v3452
    %v3456 = vmul.f32 %v3432, %v3453
    %v3457 = vmul.f32 %v3433, %v3454
    %v3458 = vmul.f32 %v3434, %v3455
    %v3459 = vmul.f32 %v3456, %v1382
    %v3460 = vmul.f32 %v3457, %v1382
    %v3461 = vmul.f32 %v3458, %v1382
    %v3462 = vadd.f32 %v3459, %v1391
    %v3463 = vadd.f32 %v3460, %v1391
    %v3464 = vadd.f32 %v3461, %v1391
    %v3465 = vpack.c.bf16 %v3463, %v3462
    %v3466 = vpack.c.bf16 %v3464, %v3464
    %v3468 = vsel %vm586, %v3465, 0
    %v3471 = vsel %vm586, %v3466, 0
    %3473 = vmatprep.subr.bf16.mxu0 0
    %3474 = vmatpush1.bf16.msra.mxu0 0
    %3475 = vmatprep.subr.bf16.mxu0 0
    %3476 = vmatpush1.bf16.msra.mxu0 0
    %3477 = vmatprep.subr.bf16.mxu0 0
    %3478 = vmatpush1.bf16.msra.mxu0 0
    %3479 = vmatprep.subr.bf16.mxu0 0
    %3480 = vmatpush1.bf16.msra.mxu0 0
    %3481 = vmatprep.subr.bf16.mxu0 %v1449
    %3482 = vmatpush1.bf16.msra.mxu0 %v1448
    %3483 = vmatprep.subr.bf16.mxu0 %v1447
    %3484 = vmatpush1.bf16.msra.mxu0 %v1446
    %3485 = vmatprep.subr.bf16.mxu0 %v1445
    %3486 = vmatpush1.bf16.msra.mxu0 %v1444
    %3487 = vmatprep.subr.bf16.mxu0 %v1443
    %3488 = vmatpush1.bf16.msra.mxu0 %v1442
    %3489 = vmatprep.subr.bf16.mxu0 0
    %3490 = vmatpush2.bf16.msra.mxu0 0
    %3491 = vmatprep.subr.bf16.mxu0 0
    %3492 = vmatpush2.bf16.msra.mxu0 0
    %3493 = vmatprep.subr.bf16.mxu0 0
    %3494 = vmatpush2.bf16.msra.mxu0 0
    %3495 = vmatprep.subr.bf16.mxu0 0
    %3496 = vmatpush2.bf16.msra.mxu0 0
    %3497 = vmatprep.subr.bf16.mxu0 0
    %3498 = vmatpush2.bf16.msra.mxu0 0
    %3499 = vmatprep.subr.bf16.mxu0 0
    %3500 = vmatpush2.bf16.msra.mxu0 0
    %3501 = vmatprep.subr.bf16.mxu0 0
    %3502 = vmatpush2.bf16.msra.mxu0 0
    %3503 = vmatprep.subr.bf16.mxu0 0
    %3504 = vmatpush2.bf16.msra.mxu0 0
    %3505 = vmatprep.mubr.bf16.mxu0 0
    %3506 = vmatmul.mubr.bf16.gmra.mxu0 %v3468
    %v3507 = vpop.f32.mrf.mxu0
    %v3508 = vadd.f32 %v1411, %v3507
    %v3509 = vpop.f32.mrf.mxu0
    %v3510 = vadd.f32 %v1415, %v3509
    %v3511 = vpop.f32.mrf.mxu0
    %v3512 = vadd.f32 %v1411, %v3511
    %v3513 = vpop.f32.mrf.mxu0
    %v3514 = vadd.f32 %v1415, %v3513
    %3515 = vmatprep.mubr.bf16.mxu0 0
    %3516 = vmatmul.mubr.bf16.gmra.mxu0 %v3471
    %v3517 = vpop.f32.mrf.mxu0
    %v3518 = vadd.f32 %v1411, %v3517
    %v3519 = vpop.f32.mrf.mxu0
    %v3520 = vadd.f32 %v1415, %v3519
    %v3521 = vpop.f32.mrf.mxu0
    %v3522 = vpop.f32.mrf.mxu0
    %3523 = vdwg.mxu0
    %v3524 = vmul.f32 %v3508, -1.702
    %v3525 = vmul.f32 %v3510, -1.702
    %v3526 = vmul.f32 %v3512, -1.702
    %v3527 = vmul.f32 %v3514, -1.702
    %v3528 = vmul.f32 %v3518, -1.702
    %v3529 = vmul.f32 %v3520, -1.702
    %v3530 = vmul.f32 %v3524, 1.442695
    %v3531 = vpow.pop %v3530
    %v3532 = vmul.f32 %v3525, 1.442695
    %v3533 = vpow.pop %v3532
    %v3534 = vmul.f32 %v3526, 1.442695
    %v3535 = vpow.pop %v3534
    %v3536 = vmul.f32 %v3527, 1.442695
    %v3537 = vpow.pop %v3536
    %v3538 = vmul.f32 %v3528, 1.442695
    %v3539 = vpow.pop %v3538
    %v3540 = vmul.f32 %v3529, 1.442695
    %v3541 = vpow.pop %v3540
    %v3542 = vadd.f32 %v3531, 1.0
    %v3543 = vadd.f32 %v3533, 1.0
    %v3544 = vadd.f32 %v3535, 1.0
    %v3545 = vadd.f32 %v3537, 1.0
    %v3546 = vadd.f32 %v3539, 1.0
    %v3547 = vadd.f32 %v3541, 1.0
    %v3548 = vrcp.pop %v3542
    %v3549 = vmul.f32 1.0, %v3548
    %v3550 = vrcp.pop %v3543
    %v3551 = vmul.f32 1.0, %v3550
    %v3552 = vrcp.pop %v3544
    %v3553 = vmul.f32 1.0, %v3552
    %v3554 = vrcp.pop %v3545
    %v3555 = vmul.f32 1.0, %v3554
    %v3556 = vrcp.pop %v3546
    %v3557 = vmul.f32 1.0, %v3556
    %v3558 = vrcp.pop %v3547
    %v3559 = vmul.f32 1.0, %v3558
    %v3560 = vmul.f32 %v3508, %v3549
    %v3561 = vmul.f32 %v3510, %v3551
    %v3562 = vmul.f32 %v3512, %v3553
    %v3563 = vmul.f32 %v3514, %v3555
    %v3564 = vmul.f32 %v3518, %v3557
    %v3565 = vmul.f32 %v3520, %v3559
    %v3566 = vpack.c.bf16 %v3562, %v3560
    %v3567 = vpack.c.bf16 %v3563, %v3561
    %v3568 = vpack.c.bf16 %v3564, %v3564
    %v3569 = vpack.c.bf16 %v3565, %v3565
    %3570 = vmatprep.subr.bf16.mxu0 0
    %3571 = vmatpush1.bf16.msra.mxu0 %v1664
    %3572 = vmatprep.subr.bf16.mxu0 0
    %3573 = vmatpush1.bf16.msra.mxu0 %v1663
    %3574 = vmatprep.subr.bf16.mxu0 0
    %3575 = vmatpush1.bf16.msra.mxu0 %v1662
    %3576 = vmatprep.subr.bf16.mxu0 0
    %3577 = vmatpush1.bf16.msra.mxu0 %v1661
    %3578 = vmatprep.subr.bf16.mxu0 0
    %3579 = vmatpush1.bf16.msra.mxu0 %v1660
    %3580 = vmatprep.subr.bf16.mxu0 0
    %3581 = vmatpush1.bf16.msra.mxu0 %v1659
    %3582 = vmatprep.subr.bf16.mxu0 0
    %3583 = vmatpush1.bf16.msra.mxu0 %v1658
    %3584 = vmatprep.subr.bf16.mxu0 0
    %3585 = vmatpush1.bf16.msra.mxu0 %v1657
    %3586 = vmatprep.subr.bf16.mxu0 0
    %3587 = vmatpush2.bf16.msra.mxu0 %v1672
    %3588 = vmatprep.subr.bf16.mxu0 0
    %3589 = vmatpush2.bf16.msra.mxu0 %v1671
    %3590 = vmatprep.subr.bf16.mxu0 0
    %3591 = vmatpush2.bf16.msra.mxu0 %v1670
    %3592 = vmatprep.subr.bf16.mxu0 0
    %3593 = vmatpush2.bf16.msra.mxu0 %v1669
    %3594 = vmatprep.subr.bf16.mxu0 0
    %3595 = vmatpush2.bf16.msra.mxu0 %v1668
    %3596 = vmatprep.subr.bf16.mxu0 0
    %3597 = vmatpush2.bf16.msra.mxu0 %v1667
    %3598 = vmatprep.subr.bf16.mxu0 0
    %3599 = vmatpush2.bf16.msra.mxu0 %v1666
    %3600 = vmatprep.subr.bf16.mxu0 0
    %3601 = vmatpush2.bf16.msra.mxu0 %v1665
    %3602 = vmatprep.mubr.bf16.mxu0 %v3567
    %3603 = vmatmul.mubr.bf16.gmra.mxu0 %v3566
    %v3604 = vpop.f32.mrf.mxu0
    %v3605 = vadd.f32 0.0, %v3604
    %v3606 = vpop.f32.mrf.mxu0
    %v3607 = vpop.f32.mrf.mxu0
    %v3608 = vadd.f32 0.0, %v3607
    %v3609 = vpop.f32.mrf.mxu0
    %3610 = vmatprep.mubr.bf16.mxu0 %v3569
    %3611 = vmatmul.mubr.bf16.gmra.mxu0 %v3568
    %v3612 = vpop.f32.mrf.mxu0
    %v3613 = vadd.f32 0.0, %v3612
    %v3614 = vpop.f32.mrf.mxu0
    %v3615 = vpop.f32.mrf.mxu0
    %v3616 = vpop.f32.mrf.mxu0
    %3617 = vdwg.mxu0
    %v3618 = vadd.f32 %v3417, %v3605
    %v3619 = vadd.f32 %v3418, %v3608
    %v3620 = vadd.f32 %v3419, %v3613
    %v3621 = vadd.f32 %v3618, %v1745
    %v3622 = vadd.f32 %v3619, %v1745
    %v3623 = vadd.f32 %v3620, %v1745
    %v3624 = vsel %vm586, %v3621, 0.0
    %3625 = vadd.xlane.f32.xlu0 %v3624
    %v3626 = vpop.xlane.xlu0 %3625
    %v3627 = vsel %vm586, %v3622, 0.0
    %3628 = vadd.xlane.f32.xlu0 %v3627
    %v3629 = vpop.xlane.xlu0 %3628
    %v3630 = vsel %vm649, %v3623, 0.0
    %3631 = vadd.xlane.f32.xlu0 %v3630
    %v3632 = vpop.xlane.xlu0 %3631
    %v3633 = vmul.f32 %v3626, %v653
    %v3634 = vmul.f32 %v3629, %v653
    %v3635 = vmul.f32 %v3632, %v653
    %v3636 = vsub.f32 %v3621, %v3633
    %v3637 = vsub.f32 %v3622, %v3634
    %v3638 = vsub.f32 %v3623, %v3635
    %v3639 = vmul.f32 %v3636, %v3636
    %v3640 = vmul.f32 %v3637, %v3637
    %v3641 = vmul.f32 %v3638, %v3638
    %v3642 = vsel %vm586, %v3639, 0.0
    %3643 = vadd.xlane.f32.xlu0 %v3642
    %v3644 = vpop.xlane.xlu0 %3643
    %v3645 = vsel %vm586, %v3640, 0.0
    %3646 = vadd.xlane.f32.xlu0 %v3645
    %v3647 = vpop.xlane.xlu0 %3646
    %v3648 = vsel %vm649, %v3641, 0.0
    %3649 = vadd.xlane.f32.xlu0 %v3648
    %v3650 = vpop.xlane.xlu0 %3649
    %v3651 = vmul.f32 %v3644, %v653
    %v3652 = vmul.f32 %v3647, %v653
    %v3653 = vmul.f32 %v3650, %v653
    %v3654 = vadd.f32 %v3651, 1e-05
    %v3655 = vadd.f32 %v3652, 1e-05
    %v3656 = vadd.f32 %v3653, 1e-05
    %v3657 = vrsqrt.pop %v3654
    %v3658 = vrsqrt.pop %v3655
    %v3659 = vrsqrt.pop %v3656
    %v3660 = vmul.f32 %v3636, %v3657
    %v3661 = vmul.f32 %v3637, %v3658
    %v3662 = vmul.f32 %v3638, %v3659
    %v3663 = vmul.f32 %v3660, %v1795
    %v3664 = vmul.f32 %v3661, %v1795
    %v3665 = vmul.f32 %v3662, %v1795
    %v3666 = vadd.f32 %v3663, %v1804
    %v3667 = vadd.f32 %v3664, %v1804
    %v3668 = vadd.f32 %v3665, %v1804
    %v3669 = vpack.c.bf16 %v3667, %v3666
    %v3670 = vpack.c.bf16 %v3668, %v3668
    %v3672 = vsel %vm586, %v3669, 0
    %v3675 = vsel %vm586, %v3670, 0
    %3677 = vmatprep.subr.bf16.mxu0 0
    %3678 = vmatpush1.bf16.msra.mxu0 0
    %3679 = vmatprep.subr.bf16.mxu0 0
    %3680 = vmatpush1.bf16.msra.mxu0 0
    %3681 = vmatprep.subr.bf16.mxu0 0
    %3682 = vmatpush1.bf16.msra.mxu0 0
    %3683 = vmatprep.subr.bf16.mxu0 0
    %3684 = vmatpush1.bf16.msra.mxu0 0
    %3685 = vmatprep.subr.bf16.mxu0 %v1862
    %3686 = vmatpush1.bf16.msra.mxu0 %v1861
    %3687 = vmatprep.subr.bf16.mxu0 %v1860
    %3688 = vmatpush1.bf16.msra.mxu0 %v1859
    %3689 = vmatprep.subr.bf16.mxu0 %v1858
    %3690 = vmatpush1.bf16.msra.mxu0 %v1857
    %3691 = vmatprep.subr.bf16.mxu0 %v1856
    %3692 = vmatpush1.bf16.msra.mxu0 %v1855
    %3693 = vmatprep.subr.bf16.mxu0 0
    %3694 = vmatpush2.bf16.msra.mxu0 0
    %3695 = vmatprep.subr.bf16.mxu0 0
    %3696 = vmatpush2.bf16.msra.mxu0 0
    %3697 = vmatprep.subr.bf16.mxu0 0
    %3698 = vmatpush2.bf16.msra.mxu0 0
    %3699 = vmatprep.subr.bf16.mxu0 0
    %3700 = vmatpush2.bf16.msra.mxu0 0
    %3701 = vmatprep.subr.bf16.mxu0 0
    %3702 = vmatpush2.bf16.msra.mxu0 0
    %3703 = vmatprep.subr.bf16.mxu0 0
    %3704 = vmatpush2.bf16.msra.mxu0 0
    %3705 = vmatprep.subr.bf16.mxu0 0
    %3706 = vmatpush2.bf16.msra.mxu0 0
    %3707 = vmatprep.subr.bf16.mxu0 0
    %3708 = vmatpush2.bf16.msra.mxu0 0
    %3709 = vmatprep.mubr.bf16.mxu0 0
    %3710 = vmatmul.mubr.bf16.gmra.mxu0 %v3672
    %v3711 = vpop.f32.mrf.mxu0
    %v3712 = vadd.f32 %v1824, %v3711
    %v3713 = vpop.f32.mrf.mxu0
    %v3714 = vadd.f32 %v1828, %v3713
    %v3715 = vpop.f32.mrf.mxu0
    %v3716 = vadd.f32 %v1824, %v3715
    %v3717 = vpop.f32.mrf.mxu0
    %v3718 = vadd.f32 %v1828, %v3717
    %3719 = vmatprep.mubr.bf16.mxu0 0
    %3720 = vmatmul.mubr.bf16.gmra.mxu0 %v3675
    %v3721 = vpop.f32.mrf.mxu0
    %v3722 = vadd.f32 %v1824, %v3721
    %v3723 = vpop.f32.mrf.mxu0
    %v3724 = vadd.f32 %v1828, %v3723
    %v3725 = vpop.f32.mrf.mxu0
    %v3726 = vpop.f32.mrf.mxu0
    %3727 = vdwg.mxu0
    %v3728 = vpack.c.bf16 %v3716, %v3712
    %v3729 = vpack.c.bf16 %v3718, %v3714
    %v3730 = vpack.c.bf16 %v3722, %v3722
    %v3731 = vpack.c.bf16 %v3724, %v3724
    %3734 = vrot.lane.b32.xlu0 %v3728, 64
    %v3735 = vpop.permute.xlu0 %3734
    %3736 = vrot.lane.b32.xlu0 %v3730, 64
    %v3737 = vpop.permute.xlu0 %3736
    %v3739 = vsel %vm890, %v3728, 0
    %v3742 = vsel %vm890, %v3730, 0
    %v3745 = vsel %vm890, %v3735, 0
    %v3748 = vsel %vm890, %v3737, 0
    %3750 = vmatprep.subr.bf16.mxu0 0
    %3751 = vmatpush1.bf16.xpose.msra.mxu0 0
    %3752 = vmatprep.subr.bf16.mxu0 0
    %3753 = vmatpush1.bf16.xpose.msra.mxu0 0
    %3754 = vmatprep.subr.bf16.mxu0 0
    %3755 = vmatpush1.bf16.xpose.msra.mxu0 0
    %3756 = vmatprep.subr.bf16.mxu0 0
    %3757 = vmatpush1.bf16.xpose.msra.mxu0 0
    %3758 = vmatprep.subr.bf16.mxu0 0
    %3759 = vmatpush1.bf16.xpose.msra.mxu0 0
    %3760 = vmatprep.subr.bf16.mxu0 0
    %3761 = vmatpush1.bf16.xpose.msra.mxu0 0
    %3762 = vmatprep.subr.bf16.mxu0 0
    %3763 = vmatpush1.bf16.xpose.msra.mxu0 %v3748
    %3764 = vmatprep.subr.bf16.mxu0 0
    %3765 = vmatpush1.bf16.xpose.msra.mxu0 %v3745
    %3766 = vmatprep.subr.bf16.mxu0 0
    %3767 = vmatpush2.bf16.xpose.msra.mxu0 0
    %3768 = vmatprep.subr.bf16.mxu0 0
    %3769 = vmatpush2.bf16.xpose.msra.mxu0 0
    %3770 = vmatprep.subr.bf16.mxu0 0
    %3771 = vmatpush2.bf16.xpose.msra.mxu0 0
    %3772 = vmatprep.subr.bf16.mxu0 0
    %3773 = vmatpush2.bf16.xpose.msra.mxu0 0
    %3774 = vmatprep.subr.bf16.mxu0 0
    %3775 = vmatpush2.bf16.xpose.msra.mxu0 0
    %3776 = vmatprep.subr.bf16.mxu0 0
    %3777 = vmatpush2.bf16.xpose.msra.mxu0 0
    %3778 = vmatprep.subr.bf16.mxu0 0
    %3779 = vmatpush2.bf16.xpose.msra.mxu0 0
    %3780 = vmatprep.subr.bf16.mxu0 0
    %3781 = vmatpush2.bf16.xpose.msra.mxu0 0
    %3782 = vmatprep.mubr.bf16.mxu0 0
    %3783 = vmatmul.mubr.bf16.gmra.mxu0 %v3739
    %v3784 = vpop.f32.mrf.mxu0
    %v3785 = vadd.f32 0.0, %v3784
    %v3786 = vpop.f32.mrf.mxu0
    %v3787 = vpop.f32.mrf.mxu0
    %v3788 = vadd.f32 0.0, %v3787
    %v3789 = vpop.f32.mrf.mxu0
    %3790 = vmatprep.mubr.bf16.mxu0 0
    %3791 = vmatmul.mubr.bf16.gmra.mxu0 %v3742
    %v3792 = vpop.f32.mrf.mxu0
    %v3793 = vadd.f32 0.0, %v3792
    %v3794 = vpop.f32.mrf.mxu0
    %v3795 = vpop.f32.mrf.mxu0
    %v3796 = vpop.f32.mrf.mxu0
    %3797 = vdwg.mxu0
    %v3798 = vmul.f32 %v3785, 0.17677669
    %v3799 = vmul.f32 %v3788, 0.17677669
    %v3800 = vmul.f32 %v3793, 0.17677669
    %v3801 = vsel %vm954, %v3798, -inf
    %3802 = vmax.xlane.f32.xlu0 %v3801
    %v3803 = vpop.xlane.xlu0 %3802
    %v3804 = vsel %vm954, %v3799, -inf
    %3805 = vmax.xlane.f32.xlu0 %v3804
    %v3806 = vpop.xlane.xlu0 %3805
    %v3807 = vsel %vm961, %v3800, -inf
    %3808 = vmax.xlane.f32.xlu0 %v3807
    %v3809 = vpop.xlane.xlu0 %3808
    %v3810 = vsub.f32 %v3798, %v3803
    %v3811 = vsub.f32 %v3799, %v3806
    %v3812 = vsub.f32 %v3800, %v3809
    %v3813 = vmul.f32 %v3810, 1.442695
    %v3814 = vpow.pop %v3813
    %v3815 = vmul.f32 %v3811, 1.442695
    %v3816 = vpow.pop %v3815
    %v3817 = vmul.f32 %v3812, 1.442695
    %v3818 = vpow.pop %v3817
    %v3819 = vsel %vm954, %v3814, 0.0
    %3820 = vadd.xlane.f32.xlu0 %v3819
    %v3821 = vpop.xlane.xlu0 %3820
    %v3822 = vsel %vm954, %v3816, 0.0
    %3823 = vadd.xlane.f32.xlu0 %v3822
    %v3824 = vpop.xlane.xlu0 %3823
    %v3825 = vsel %vm961, %v3818, 0.0
    %3826 = vadd.xlane.f32.xlu0 %v3825
    %v3827 = vpop.xlane.xlu0 %3826
    %v3828 = vrcp.pop %v3821
    %v3829 = vrcp.pop %v3824
    %v3830 = vrcp.pop %v3827
    %v3831 = vmul.f32 %v3814, %v3828
    %v3832 = vmul.f32 %v3816, %v3829
    %v3833 = vmul.f32 %v3818, %v3830
    %v3834 = vpack.c.bf16 %v3832, %v3831
    %v3835 = vpack.c.bf16 %v3833, %v3833
    %v3837 = vsel %vm954, %v3834, 0
    %v3840 = vsel %vm954, %v3835, 0
    %v3843 = vand.u32 %v3731, %v999
    %3845 = vmatprep.subr.bf16.mxu0 0
    %3846 = vmatpush1.bf16.msra.mxu0 0
    %3847 = vmatprep.subr.bf16.mxu0 0
    %3848 = vmatpush1.bf16.msra.mxu0 0
    %3849 = vmatprep.subr.bf16.mxu0 0
    %3850 = vmatpush1.bf16.msra.mxu0 0
    %3851 = vmatprep.subr.bf16.mxu0 0
    %3852 = vmatpush1.bf16.msra.mxu0 0
    %3853 = vmatprep.subr.bf16.mxu0 0
    %3854 = vmatpush1.bf16.msra.mxu0 0
    %3855 = vmatprep.subr.bf16.mxu0 0
    %3856 = vmatpush1.bf16.msra.mxu0 0
    %3857 = vmatprep.subr.bf16.mxu0 0
    %3858 = vmatpush1.bf16.msra.mxu0 %v3843
    %3859 = vmatprep.subr.bf16.mxu0 0
    %3860 = vmatpush1.bf16.msra.mxu0 %v3729
    %3861 = vmatprep.subr.bf16.mxu0 0
    %3862 = vmatpush2.bf16.msra.mxu0 0
    %3863 = vmatprep.subr.bf16.mxu0 0
    %3864 = vmatpush2.bf16.msra.mxu0 0
    %3865 = vmatprep.subr.bf16.mxu0 0
    %3866 = vmatpush2.bf16.msra.mxu0 0
    %3867 = vmatprep.subr.bf16.mxu0 0
    %3868 = vmatpush2.bf16.msra.mxu0 0
    %3869 = vmatprep.subr.bf16.mxu0 0
    %3870 = vmatpush2.bf16.msra.mxu0 0
    %3871 = vmatprep.subr.bf16.mxu0 0
    %3872 = vmatpush2.bf16.msra.mxu0 0
    %3873 = vmatprep.subr.bf16.mxu0 0
    %3874 = vmatpush2.bf16.msra.mxu0 0
    %3875 = vmatprep.subr.bf16.mxu0 0
    %3876 = vmatpush2.bf16.msra.mxu0 0
    %3877 = vmatprep.mubr.bf16.mxu0 0
    %3878 = vmatmul.mubr.bf16.gmra.mxu0 %v3837
    %v3879 = vpop.f32.mrf.mxu0
    %v3880 = vadd.f32 0.0, %v3879
    %v3881 = vpop.f32.mrf.mxu0
    %v3882 = vpop.f32.mrf.mxu0
    %v3883 = vadd.f32 0.0, %v3882
    %v3884 = vpop.f32.mrf.mxu0
    %3885 = vmatprep.mubr.bf16.mxu0 0
    %3886 = vmatmul.mubr.bf16.gmra.mxu0 %v3840
    %v3887 = vpop.f32.mrf.mxu0
    %v3888 = vadd.f32 0.0, %v3887
    %v3889 = vpop.f32.mrf.mxu0
    %v3890 = vpop.f32.mrf.mxu0
    %v3891 = vpop.f32.mrf.mxu0
    %3892 = vdwg.mxu0
    %3893 = vrot.lane.b32.xlu0 %v3728, 96
    %v3894 = vpop.permute.xlu0 %3893
    %3895 = vrot.lane.b32.xlu0 %v3730, 96
    %v3896 = vpop.permute.xlu0 %3895
    %3897 = vrot.lane.b32.xlu0 %v3728, 32
    %v3898 = vpop.permute.xlu0 %3897
    %3899 = vrot.lane.b32.xlu0 %v3730, 32
    %v3900 = vpop.permute.xlu0 %3899
    %v3902 = vsel %vm890, %v3894, 0
    %v3905 = vsel %vm890, %v3896, 0
    %v3908 = vsel %vm890, %v3898, 0
    %v3911 = vsel %vm890, %v3900, 0
    %3913 = vmatprep.subr.bf16.mxu0 0
    %3914 = vmatpush1.bf16.xpose.msra.mxu0 0
    %3915 = vmatprep.subr.bf16.mxu0 0
    %3916 = vmatpush1.bf16.xpose.msra.mxu0 0
    %3917 = vmatprep.subr.bf16.mxu0 0
    %3918 = vmatpush1.bf16.xpose.msra.mxu0 0
    %3919 = vmatprep.subr.bf16.mxu0 0
    %3920 = vmatpush1.bf16.xpose.msra.mxu0 0
    %3921 = vmatprep.subr.bf16.mxu0 0
    %3922 = vmatpush1.bf16.xpose.msra.mxu0 0
    %3923 = vmatprep.subr.bf16.mxu0 0
    %3924 = vmatpush1.bf16.xpose.msra.mxu0 0
    %3925 = vmatprep.subr.bf16.mxu0 0
    %3926 = vmatpush1.bf16.xpose.msra.mxu0 %v3911
    %3927 = vmatprep.subr.bf16.mxu0 0
    %3928 = vmatpush1.bf16.xpose.msra.mxu0 %v3908
    %3929 = vmatprep.subr.bf16.mxu0 0
    %3930 = vmatpush2.bf16.xpose.msra.mxu0 0
    %3931 = vmatprep.subr.bf16.mxu0 0
    %3932 = vmatpush2.bf16.xpose.msra.mxu0 0
    %3933 = vmatprep.subr.bf16.mxu0 0
    %3934 = vmatpush2.bf16.xpose.msra.mxu0 0
    %3935 = vmatprep.subr.bf16.mxu0 0
    %3936 = vmatpush2.bf16.xpose.msra.mxu0 0
    %3937 = vmatprep.subr.bf16.mxu0 0
    %3938 = vmatpush2.bf16.xpose.msra.mxu0 0
    %3939 = vmatprep.subr.bf16.mxu0 0
    %3940 = vmatpush2.bf16.xpose.msra.mxu0 0
    %3941 = vmatprep.subr.bf16.mxu0 0
    %3942 = vmatpush2.bf16.xpose.msra.mxu0 0
    %3943 = vmatprep.subr.bf16.mxu0 0
    %3944 = vmatpush2.bf16.xpose.msra.mxu0 0
    %3945 = vmatprep.mubr.bf16.mxu0 0
    %3946 = vmatmul.mubr.bf16.gmra.mxu0 %v3902
    %v3947 = vpop.f32.mrf.mxu0
    %v3948 = vadd.f32 0.0, %v3947
    %v3949 = vpop.f32.mrf.mxu0
    %v3950 = vpop.f32.mrf.mxu0
    %v3951 = vadd.f32 0.0, %v3950
    %v3952 = vpop.f32.mrf.mxu0
    %3953 = vmatprep.mubr.bf16.mxu0 0
    %3954 = vmatmul.mubr.bf16.gmra.mxu0 %v3905
    %v3955 = vpop.f32.mrf.mxu0
    %v3956 = vadd.f32 0.0, %v3955
    %v3957 = vpop.f32.mrf.mxu0
    %v3958 = vpop.f32.mrf.mxu0
    %v3959 = vpop.f32.mrf.mxu0
    %3960 = vdwg.mxu0
    %v3961 = vmul.f32 %v3948, 0.17677669
    %v3962 = vmul.f32 %v3951, 0.17677669
    %v3963 = vmul.f32 %v3956, 0.17677669
    %v3964 = vsel %vm954, %v3961, -inf
    %3965 = vmax.xlane.f32.xlu0 %v3964
    %v3966 = vpop.xlane.xlu0 %3965
    %v3967 = vsel %vm954, %v3962, -inf
    %3968 = vmax.xlane.f32.xlu0 %v3967
    %v3969 = vpop.xlane.xlu0 %3968
    %v3970 = vsel %vm961, %v3963, -inf
    %3971 = vmax.xlane.f32.xlu0 %v3970
    %v3972 = vpop.xlane.xlu0 %3971
    %v3973 = vsub.f32 %v3961, %v3966
    %v3974 = vsub.f32 %v3962, %v3969
    %v3975 = vsub.f32 %v3963, %v3972
    %v3976 = vmul.f32 %v3973, 1.442695
    %v3977 = vpow.pop %v3976
    %v3978 = vmul.f32 %v3974, 1.442695
    %v3979 = vpow.pop %v3978
    %v3980 = vmul.f32 %v3975, 1.442695
    %v3981 = vpow.pop %v3980
    %v3982 = vsel %vm954, %v3977, 0.0
    %3983 = vadd.xlane.f32.xlu0 %v3982
    %v3984 = vpop.xlane.xlu0 %3983
    %v3985 = vsel %vm954, %v3979, 0.0
    %3986 = vadd.xlane.f32.xlu0 %v3985
    %v3987 = vpop.xlane.xlu0 %3986
    %v3988 = vsel %vm961, %v3981, 0.0
    %3989 = vadd.xlane.f32.xlu0 %v3988
    %v3990 = vpop.xlane.xlu0 %3989
    %v3991 = vrcp.pop %v3984
    %v3992 = vrcp.pop %v3987
    %v3993 = vrcp.pop %v3990
    %v3994 = vmul.f32 %v3977, %v3991
    %v3995 = vmul.f32 %v3979, %v3992
    %v3996 = vmul.f32 %v3981, %v3993
    %v3997 = vpack.c.bf16 %v3995, %v3994
    %v3998 = vpack.c.bf16 %v3996, %v3996
    %4001 = vrot.lane.b32.xlu0 %v3729, 96
    %v4002 = vpop.permute.xlu0 %4001
    %4003 = vrot.lane.b32.xlu0 %v3731, 96
    %v4004 = vpop.permute.xlu0 %4003
    %v4007 = vsel %vm954, %v3997, 0
    %v4010 = vsel %vm954, %v3998, 0
    %v4013 = vand.u32 %v4004, %v999
    %4015 = vmatprep.subr.bf16.mxu0 0
    %4016 = vmatpush1.bf16.msra.mxu0 0
    %4017 = vmatprep.subr.bf16.mxu0 0
    %4018 = vmatpush1.bf16.msra.mxu0 0
    %4019 = vmatprep.subr.bf16.mxu0 0
    %4020 = vmatpush1.bf16.msra.mxu0 0
    %4021 = vmatprep.subr.bf16.mxu0 0
    %4022 = vmatpush1.bf16.msra.mxu0 0
    %4023 = vmatprep.subr.bf16.mxu0 0
    %4024 = vmatpush1.bf16.msra.mxu0 0
    %4025 = vmatprep.subr.bf16.mxu0 0
    %4026 = vmatpush1.bf16.msra.mxu0 0
    %4027 = vmatprep.subr.bf16.mxu0 0
    %4028 = vmatpush1.bf16.msra.mxu0 %v4013
    %4029 = vmatprep.subr.bf16.mxu0 0
    %4030 = vmatpush1.bf16.msra.mxu0 %v4002
    %4031 = vmatprep.subr.bf16.mxu0 0
    %4032 = vmatpush2.bf16.msra.mxu0 0
    %4033 = vmatprep.subr.bf16.mxu0 0
    %4034 = vmatpush2.bf16.msra.mxu0 0
    %4035 = vmatprep.subr.bf16.mxu0 0
    %4036 = vmatpush2.bf16.msra.mxu0 0
    %4037 = vmatprep.subr.bf16.mxu0 0
    %4038 = vmatpush2.bf16.msra.mxu0 0
    %4039 = vmatprep.subr.bf16.mxu0 0
    %4040 = vmatpush2.bf16.msra.mxu0 0
    %4041 = vmatprep.subr.bf16.mxu0 0
    %4042 = vmatpush2.bf16.msra.mxu0 0
    %4043 = vmatprep.subr.bf16.mxu0 0
    %4044 = vmatpush2.bf16.msra.mxu0 0
    %4045 = vmatprep.subr.bf16.mxu0 0
    %4046 = vmatpush2.bf16.msra.mxu0 0
    %4047 = vmatprep.mubr.bf16.mxu0 0
    %4048 = vmatmul.mubr.bf16.gmra.mxu0 %v4007
    %v4049 = vpop.f32.mrf.mxu0
    %v4050 = vadd.f32 0.0, %v4049
    %v4051 = vpop.f32.mrf.mxu0
    %v4052 = vpop.f32.mrf.mxu0
    %v4053 = vadd.f32 0.0, %v4052
    %v4054 = vpop.f32.mrf.mxu0
    %4055 = vmatprep.mubr.bf16.mxu0 0
    %4056 = vmatmul.mubr.bf16.gmra.mxu0 %v4010
    %v4057 = vpop.f32.mrf.mxu0
    %v4058 = vadd.f32 0.0, %v4057
    %v4059 = vpop.f32.mrf.mxu0
    %v4060 = vpop.f32.mrf.mxu0
    %v4061 = vpop.f32.mrf.mxu0
    %4062 = vdwg.mxu0
    %4066 = vrot.lane.b32.xlu0 %v4050, 32
    %v4067 = vpop.permute.xlu0 %4066
    %4068 = vrot.lane.b32.xlu0 %v4053, 32
    %v4069 = vpop.permute.xlu0 %4068
    %4070 = vrot.lane.b32.xlu0 %v4058, 32
    %v4071 = vpop.permute.xlu0 %4070
    %v4075 = vsel %vm890, %v3880, %v4067
    %v4076 = vsel %vm890, %v3883, %v4069
    %v4077 = vsel %vm890, %v3888, %v4071
    %v4078 = vpack.c.bf16 %v4076, %v4075
    %v4079 = vpack.c.bf16 %v4077, %v4077
    %v4081 = vsel %vm586, %v4078, 0
    %v4084 = vsel %vm586, %v4079, 0
    %4086 = vmatprep.subr.bf16.mxu0 0
    %4087 = vmatpush1.bf16.msra.mxu0 0
    %4088 = vmatprep.subr.bf16.mxu0 0
    %4089 = vmatpush1.bf16.msra.mxu0 0
    %4090 = vmatprep.subr.bf16.mxu0 0
    %4091 = vmatpush1.bf16.msra.mxu0 0
    %4092 = vmatprep.subr.bf16.mxu0 0
    %4093 = vmatpush1.bf16.msra.mxu0 0
    %4094 = vmatprep.subr.bf16.mxu0 0
    %4095 = vmatpush1.bf16.msra.mxu0 %v2307
    %4096 = vmatprep.subr.bf16.mxu0 0
    %4097 = vmatpush1.bf16.msra.mxu0 %v2306
    %4098 = vmatprep.subr.bf16.mxu0 0
    %4099 = vmatpush1.bf16.msra.mxu0 %v2305
    %4100 = vmatprep.subr.bf16.mxu0 0
    %4101 = vmatpush1.bf16.msra.mxu0 %v2304
    %4102 = vmatprep.subr.bf16.mxu0 0
    %4103 = vmatpush2.bf16.msra.mxu0 0
    %4104 = vmatprep.subr.bf16.mxu0 0
    %4105 = vmatpush2.bf16.msra.mxu0 0
    %4106 = vmatprep.subr.bf16.mxu0 0
    %4107 = vmatpush2.bf16.msra.mxu0 0
    %4108 = vmatprep.subr.bf16.mxu0 0
    %4109 = vmatpush2.bf16.msra.mxu0 0
    %4110 = vmatprep.subr.bf16.mxu0 0
    %4111 = vmatpush2.bf16.msra.mxu0 0
    %4112 = vmatprep.subr.bf16.mxu0 0
    %4113 = vmatpush2.bf16.msra.mxu0 0
    %4114 = vmatprep.subr.bf16.mxu0 0
    %4115 = vmatpush2.bf16.msra.mxu0 0
    %4116 = vmatprep.subr.bf16.mxu0 0
    %4117 = vmatpush2.bf16.msra.mxu0 0
    %4118 = vmatprep.mubr.bf16.mxu0 0
    %4119 = vmatmul.mubr.bf16.gmra.mxu0 %v4081
    %v4120 = vpop.f32.mrf.mxu0
    %v4121 = vadd.f32 0.0, %v4120
    %v4122 = vpop.f32.mrf.mxu0
    %v4123 = vpop.f32.mrf.mxu0
    %v4124 = vadd.f32 0.0, %v4123
    %v4125 = vpop.f32.mrf.mxu0
    %4126 = vmatprep.mubr.bf16.mxu0 0
    %4127 = vmatmul.mubr.bf16.gmra.mxu0 %v4084
    %v4128 = vpop.f32.mrf.mxu0
    %v4129 = vadd.f32 0.0, %v4128
    %v4130 = vpop.f32.mrf.mxu0
    %v4131 = vpop.f32.mrf.mxu0
    %v4132 = vpop.f32.mrf.mxu0
    %4133 = vdwg.mxu0
    %v4134 = vadd.f32 %v3621, %v4121
    %v4135 = vadd.f32 %v3622, %v4124
    %v4136 = vadd.f32 %v3623, %v4129
    %v4137 = vadd.f32 %v4134, %v2374
    %v4138 = vadd.f32 %v4135, %v2374
    %v4139 = vadd.f32 %v4136, %v2374
    %v4140 = vsel %vm586, %v4137, 0.0
    %4141 = vadd.xlane.f32.xlu0 %v4140
    %v4142 = vpop.xlane.xlu0 %4141
    %v4143 = vsel %vm586, %v4138, 0.0
    %4144 = vadd.xlane.f32.xlu0 %v4143
    %v4145 = vpop.xlane.xlu0 %4144
    %v4146 = vsel %vm649, %v4139, 0.0
    %4147 = vadd.xlane.f32.xlu0 %v4146
    %v4148 = vpop.xlane.xlu0 %4147
    %v4149 = vmul.f32 %v4142, %v653
    %v4150 = vmul.f32 %v4145, %v653
    %v4151 = vmul.f32 %v4148, %v653
    %v4152 = vsub.f32 %v4137, %v4149
    %v4153 = vsub.f32 %v4138, %v4150
    %v4154 = vsub.f32 %v4139, %v4151
    %v4155 = vmul.f32 %v4152, %v4152
    %v4156 = vmul.f32 %v4153, %v4153
    %v4157 = vmul.f32 %v4154, %v4154
    %v4158 = vsel %vm586, %v4155, 0.0
    %4159 = vadd.xlane.f32.xlu0 %v4158
    %v4160 = vpop.xlane.xlu0 %4159
    %v4161 = vsel %vm586, %v4156, 0.0
    %4162 = vadd.xlane.f32.xlu0 %v4161
    %v4163 = vpop.xlane.xlu0 %4162
    %v4164 = vsel %vm649, %v4157, 0.0
    %4165 = vadd.xlane.f32.xlu0 %v4164
    %v4166 = vpop.xlane.xlu0 %4165
    %v4167 = vmul.f32 %v4160, %v653
    %v4168 = vmul.f32 %v4163, %v653
    %v4169 = vmul.f32 %v4166, %v653
    %v4170 = vadd.f32 %v4167, 1e-05
    %v4171 = vadd.f32 %v4168, 1e-05
    %v4172 = vadd.f32 %v4169, 1e-05
    %v4173 = vrsqrt.pop %v4170
    %v4174 = vrsqrt.pop %v4171
    %v4175 = vrsqrt.pop %v4172
    %v4176 = vmul.f32 %v4152, %v4173
    %v4177 = vmul.f32 %v4153, %v4174
    %v4178 = vmul.f32 %v4154, %v4175
    %v4179 = vmul.f32 %v4176, %v2424
    %v4180 = vmul.f32 %v4177, %v2424
    %v4181 = vmul.f32 %v4178, %v2424
    %v4182 = vadd.f32 %v4179, %v2433
    %v4183 = vadd.f32 %v4180, %v2433
    %v4184 = vadd.f32 %v4181, %v2433
    %v4185 = vpack.c.bf16 %v4183, %v4182
    %v4186 = vpack.c.bf16 %v4184, %v4184
    %v4188 = vsel %vm586, %v4185, 0
    %v4191 = vsel %vm586, %v4186, 0
    %4193 = vmatprep.subr.bf16.mxu0 0
    %4194 = vmatpush1.bf16.msra.mxu0 0
    %4195 = vmatprep.subr.bf16.mxu0 0
    %4196 = vmatpush1.bf16.msra.mxu0 0
    %4197 = vmatprep.subr.bf16.mxu0 0
    %4198 = vmatpush1.bf16.msra.mxu0 0
    %4199 = vmatprep.subr.bf16.mxu0 0
    %4200 = vmatpush1.bf16.msra.mxu0 0
    %4201 = vmatprep.subr.bf16.mxu0 %v2491
    %4202 = vmatpush1.bf16.msra.mxu0 %v2490
    %4203 = vmatprep.subr.bf16.mxu0 %v2489
    %4204 = vmatpush1.bf16.msra.mxu0 %v2488
    %4205 = vmatprep.subr.bf16.mxu0 %v2487
    %4206 = vmatpush1.bf16.msra.mxu0 %v2486
    %4207 = vmatprep.subr.bf16.mxu0 %v2485
    %4208 = vmatpush1.bf16.msra.mxu0 %v2484
    %4209 = vmatprep.subr.bf16.mxu0 0
    %4210 = vmatpush2.bf16.msra.mxu0 0
    %4211 = vmatprep.subr.bf16.mxu0 0
    %4212 = vmatpush2.bf16.msra.mxu0 0
    %4213 = vmatprep.subr.bf16.mxu0 0
    %4214 = vmatpush2.bf16.msra.mxu0 0
    %4215 = vmatprep.subr.bf16.mxu0 0
    %4216 = vmatpush2.bf16.msra.mxu0 0
    %4217 = vmatprep.subr.bf16.mxu0 0
    %4218 = vmatpush2.bf16.msra.mxu0 0
    %4219 = vmatprep.subr.bf16.mxu0 0
    %4220 = vmatpush2.bf16.msra.mxu0 0
    %4221 = vmatprep.subr.bf16.mxu0 0
    %4222 = vmatpush2.bf16.msra.mxu0 0
    %4223 = vmatprep.subr.bf16.mxu0 0
    %4224 = vmatpush2.bf16.msra.mxu0 0
    %4225 = vmatprep.mubr.bf16.mxu0 0
    %4226 = vmatmul.mubr.bf16.gmra.mxu0 %v4188
    %v4227 = vpop.f32.mrf.mxu0
    %v4228 = vadd.f32 %v2453, %v4227
    %v4229 = vpop.f32.mrf.mxu0
    %v4230 = vadd.f32 %v2457, %v4229
    %v4231 = vpop.f32.mrf.mxu0
    %v4232 = vadd.f32 %v2453, %v4231
    %v4233 = vpop.f32.mrf.mxu0
    %v4234 = vadd.f32 %v2457, %v4233
    %4235 = vmatprep.mubr.bf16.mxu0 0
    %4236 = vmatmul.mubr.bf16.gmra.mxu0 %v4191
    %v4237 = vpop.f32.mrf.mxu0
    %v4238 = vadd.f32 %v2453, %v4237
    %v4239 = vpop.f32.mrf.mxu0
    %v4240 = vadd.f32 %v2457, %v4239
    %v4241 = vpop.f32.mrf.mxu0
    %v4242 = vpop.f32.mrf.mxu0
    %4243 = vdwg.mxu0
    %v4244 = vmul.f32 %v4228, -1.702
    %v4245 = vmul.f32 %v4230, -1.702
    %v4246 = vmul.f32 %v4232, -1.702
    %v4247 = vmul.f32 %v4234, -1.702
    %v4248 = vmul.f32 %v4238, -1.702
    %v4249 = vmul.f32 %v4240, -1.702
    %v4250 = vmul.f32 %v4244, 1.442695
    %v4251 = vpow.pop %v4250
    %v4252 = vmul.f32 %v4245, 1.442695
    %v4253 = vpow.pop %v4252
    %v4254 = vmul.f32 %v4246, 1.442695
    %v4255 = vpow.pop %v4254
    %v4256 = vmul.f32 %v4247, 1.442695
    %v4257 = vpow.pop %v4256
    %v4258 = vmul.f32 %v4248, 1.442695
    %v4259 = vpow.pop %v4258
    %v4260 = vmul.f32 %v4249, 1.442695
    %v4261 = vpow.pop %v4260
    %v4262 = vadd.f32 %v4251, 1.0
    %v4263 = vadd.f32 %v4253, 1.0
    %v4264 = vadd.f32 %v4255, 1.0
    %v4265 = vadd.f32 %v4257, 1.0
    %v4266 = vadd.f32 %v4259, 1.0
    %v4267 = vadd.f32 %v4261, 1.0
    %v4268 = vrcp.pop %v4262
    %v4269 = vmul.f32 1.0, %v4268
    %v4270 = vrcp.pop %v4263
    %v4271 = vmul.f32 1.0, %v4270
    %v4272 = vrcp.pop %v4264
    %v4273 = vmul.f32 1.0, %v4272
    %v4274 = vrcp.pop %v4265
    %v4275 = vmul.f32 1.0, %v4274
    %v4276 = vrcp.pop %v4266
    %v4277 = vmul.f32 1.0, %v4276
    %v4278 = vrcp.pop %v4267
    %v4279 = vmul.f32 1.0, %v4278
    %v4280 = vmul.f32 %v4228, %v4269
    %v4281 = vmul.f32 %v4230, %v4271
    %v4282 = vmul.f32 %v4232, %v4273
    %v4283 = vmul.f32 %v4234, %v4275
    %v4284 = vmul.f32 %v4238, %v4277
    %v4285 = vmul.f32 %v4240, %v4279
    %v4286 = vpack.c.bf16 %v4282, %v4280
    %v4287 = vpack.c.bf16 %v4283, %v4281
    %v4288 = vpack.c.bf16 %v4284, %v4284
    %v4289 = vpack.c.bf16 %v4285, %v4285
    %4290 = vmatprep.subr.bf16.mxu0 0
    %4291 = vmatpush1.bf16.msra.mxu0 %v2706
    %4292 = vmatprep.subr.bf16.mxu0 0
    %4293 = vmatpush1.bf16.msra.mxu0 %v2705
    %4294 = vmatprep.subr.bf16.mxu0 0
    %4295 = vmatpush1.bf16.msra.mxu0 %v2704
    %4296 = vmatprep.subr.bf16.mxu0 0
    %4297 = vmatpush1.bf16.msra.mxu0 %v2703
    %4298 = vmatprep.subr.bf16.mxu0 0
    %4299 = vmatpush1.bf16.msra.mxu0 %v2702
    %4300 = vmatprep.subr.bf16.mxu0 0
    %4301 = vmatpush1.bf16.msra.mxu0 %v2701
    %4302 = vmatprep.subr.bf16.mxu0 0
    %4303 = vmatpush1.bf16.msra.mxu0 %v2700
    %4304 = vmatprep.subr.bf16.mxu0 0
    %4305 = vmatpush1.bf16.msra.mxu0 %v2699
    %4306 = vmatprep.subr.bf16.mxu0 0
    %4307 = vmatpush2.bf16.msra.mxu0 %v2714
    %4308 = vmatprep.subr.bf16.mxu0 0
    %4309 = vmatpush2.bf16.msra.mxu0 %v2713
    %4310 = vmatprep.subr.bf16.mxu0 0
    %4311 = vmatpush2.bf16.msra.mxu0 %v2712
    %4312 = vmatprep.subr.bf16.mxu0 0
    %4313 = vmatpush2.bf16.msra.mxu0 %v2711
    %4314 = vmatprep.subr.bf16.mxu0 0
    %4315 = vmatpush2.bf16.msra.mxu0 %v2710
    %4316 = vmatprep.subr.bf16.mxu0 0
    %4317 = vmatpush2.bf16.msra.mxu0 %v2709
    %4318 = vmatprep.subr.bf16.mxu0 0
    %4319 = vmatpush2.bf16.msra.mxu0 %v2708
    %4320 = vmatprep.subr.bf16.mxu0 0
    %4321 = vmatpush2.bf16.msra.mxu0 %v2707
    %4322 = vmatprep.mubr.bf16.mxu0 %v4287
    %4323 = vmatmul.mubr.bf16.gmra.mxu0 %v4286
    %v4324 = vpop.f32.mrf.mxu0
    %v4325 = vadd.f32 0.0, %v4324
    %v4326 = vpop.f32.mrf.mxu0
    %v4327 = vpop.f32.mrf.mxu0
    %v4328 = vpop.f32.mrf.mxu0
    %4329 = vmatprep.mubr.bf16.mxu0 %v4289
    %4330 = vmatmul.mubr.bf16.gmra.mxu0 %v4288
    %v4331 = vpop.f32.mrf.mxu0
    %v4332 = vpop.f32.mrf.mxu0
    %v4333 = vpop.f32.mrf.mxu0
    %v4334 = vpop.f32.mrf.mxu0
    %4335 = vdwg.mxu0
    %v4336 = vadd.f32 %v4137, %v4325
    %v4337 = vadd.f32 %v4336, %v2783
    %v4339 = vrot.slane %v4337, 7
    %v4341 = vsel %vm997, %v2785, %v4339
    %v4342 = vld [vmem:[#allocation37] sm:$0x1]
    %v4343 = vld [vmem:[#allocation38] sm:$0x1]
    %vm4344 = vcmask 517120
    %v4345 = vsel %vm4344, %v4341, 0.0
    %4346 = vadd.xlane.f32.xlu0 %v4345
    %v4347 = vpop.xlane.xlu0 %4346
    %v4348 = vmul.f32 %v4347, %v653
    %v4349 = vsub.f32 %v4341, %v4348
    %v4350 = vmul.f32 %v4349, %v4349
    %v4351 = vsel %vm4344, %v4350, 0.0
    %4352 = vadd.xlane.f32.xlu0 %v4351
    %v4353 = vpop.xlane.xlu0 %4352
    %v4354 = vmul.f32 %v4353, %v653
    %v4355 = vadd.f32 %v4354, 1e-05
    %v4356 = vrsqrt.pop %v4355
    %v4357 = vmul.f32 %v4349, %v4356
    %v4359 = vlaneseq
    %v4360 = vshrl.u32 %v4359, 7
    %v4361 = vsub.s32 0, %v4360
    %v4362 = vrot.slane %v4342, %v4361
    %v4364 = vmul.f32 %v4357, %v4362
    %v4366 = vlaneseq
    %v4367 = vshrl.u32 %v4366, 7
    %v4368 = vsub.s32 0, %v4367
    %v4369 = vrot.slane %v4343, %v4368
    %v4371 = vadd.f32 %v4364, %v4369
    %v4372 = vpack.c.bf16 %v4371, %v4371
    %v4373 = vld [vmem:[%s63] sm:$0xff]
    %v4374 = vld [vmem:[%s63 + $0x8] sm:$0xff]
    %v4375 = vld [vmem:[%s63 + $0x10] sm:$0xff]
    %v4376 = vld [vmem:[%s63 + $0x18] sm:$0xff]
    %v4377 = vld [vmem:[%s63 + $0x20] sm:$0xff]
    %v4378 = vld [vmem:[%s63 + $0x28] sm:$0xff]
    %v4379 = vld [vmem:[%s63 + $0x30] sm:$0xff]
    %v4380 = vld [vmem:[%s63 + $0x38] sm:$0xff]
    %v4381 = vld [vmem:[%s63 + $0x40] sm:$0xff]
    %v4382 = vld [vmem:[%s63 + $0x48] sm:$0xff]
    %v4383 = vld [vmem:[%s63 + $0x50] sm:$0xff]
    %v4384 = vld [vmem:[%s63 + $0x58] sm:$0xff]
    %v4385 = vld [vmem:[%s63 + $0x60] sm:$0xff]
    %v4386 = vld [vmem:[%s63 + $0x68] sm:$0xff]
    %v4387 = vld [vmem:[%s63 + $0x70] sm:$0xff]
    %v4388 = vld [vmem:[%s63 + $0x78] sm:$0xff]
    %v4405 = vunpack.c.l.b16 %v4373
    %v4406 = vunpack.c.h.b16 %v4373
    %v4407 = vunpack.c.l.b16 %v4374
    %v4408 = vunpack.c.h.b16 %v4374
    %v4409 = vunpack.c.l.b16 %v4375
    %v4410 = vunpack.c.h.b16 %v4375
    %v4411 = vunpack.c.l.b16 %v4376
    %v4412 = vunpack.c.h.b16 %v4376
    %v4413 = vunpack.c.l.b16 %v4377
    %v4414 = vunpack.c.h.b16 %v4377
    %v4415 = vunpack.c.l.b16 %v4378
    %v4416 = vunpack.c.h.b16 %v4378
    %v4417 = vunpack.c.l.b16 %v4379
    %v4418 = vunpack.c.h.b16 %v4379
    %v4419 = vunpack.c.l.b16 %v4380
    %v4420 = vunpack.c.h.b16 %v4380
    %v4421 = vunpack.c.l.b16 %v4381
    %v4422 = vunpack.c.h.b16 %v4381
    %v4423 = vunpack.c.l.b16 %v4382
    %v4424 = vunpack.c.h.b16 %v4382
    %v4425 = vunpack.c.l.b16 %v4383
    %v4426 = vunpack.c.h.b16 %v4383
    %v4427 = vunpack.c.l.b16 %v4384
    %v4428 = vunpack.c.h.b16 %v4384
    %v4429 = vunpack.c.l.b16 %v4385
    %v4430 = vunpack.c.h.b16 %v4385
    %v4431 = vunpack.c.l.b16 %v4386
    %v4432 = vunpack.c.h.b16 %v4386
    %v4433 = vunpack.c.l.b16 %v4387
    %v4434 = vunpack.c.h.b16 %v4387
    %v4435 = vunpack.c.l.b16 %v4388
    %v4436 = vunpack.c.h.b16 %v4388
    %v4437 = vpack.c.b16 %v4409, %v4405
    %v4438 = vpack.c.b16 %v4410, %v4406
    %v4439 = vpack.c.b16 %v4411, %v4407
    %v4440 = vpack.c.b16 %v4412, %v4408
    %v4441 = vpack.c.b16 %v4417, %v4413
    %v4442 = vpack.c.b16 %v4418, %v4414
    %v4443 = vpack.c.b16 %v4419, %v4415
    %v4444 = vpack.c.b16 %v4420, %v4416
    %v4445 = vpack.c.b16 %v4425, %v4421
    %v4446 = vpack.c.b16 %v4426, %v4422
    %v4447 = vpack.c.b16 %v4427, %v4423
    %v4448 = vpack.c.b16 %v4428, %v4424
    %v4449 = vpack.c.b16 %v4433, %v4429
    %v4450 = vpack.c.b16 %v4434, %v4430
    %v4451 = vpack.c.b16 %v4435, %v4431
    %v4452 = vpack.c.b16 %v4436, %v4432
    %v4470 = vsel %vm586, %v4372, 0
    %4472 = vmatprep.subr.bf16.mxu0 0
    %4473 = vmatpush1.bf16.msra.mxu0 0
    %4474 = vmatprep.subr.bf16.mxu0 0
    %4475 = vmatpush1.bf16.msra.mxu0 0
    %4476 = vmatprep.subr.bf16.mxu0 0
    %4477 = vmatpush1.bf16.msra.mxu0 0
    %4478 = vmatprep.subr.bf16.mxu0 0
    %4479 = vmatpush1.bf16.msra.mxu0 0
    %4480 = vmatprep.subr.bf16.mxu0 %v4450
    %4481 = vmatpush1.bf16.msra.mxu0 %v4449
    %4482 = vmatprep.subr.bf16.mxu0 %v4446
    %4483 = vmatpush1.bf16.msra.mxu0 %v4445
    %4484 = vmatprep.subr.bf16.mxu0 %v4442
    %4485 = vmatpush1.bf16.msra.mxu0 %v4441
    %4486 = vmatprep.subr.bf16.mxu0 %v4438
    %4487 = vmatpush1.bf16.msra.mxu0 %v4437
    %4488 = vmatprep.subr.bf16.mxu0 0
    %4489 = vmatpush2.bf16.msra.mxu0 0
    %4490 = vmatprep.subr.bf16.mxu0 0
    %4491 = vmatpush2.bf16.msra.mxu0 0
    %4492 = vmatprep.subr.bf16.mxu0 0
    %4493 = vmatpush2.bf16.msra.mxu0 0
    %4494 = vmatprep.subr.bf16.mxu0 0
    %4495 = vmatpush2.bf16.msra.mxu0 0
    %4496 = vmatprep.subr.bf16.mxu0 0
    %4497 = vmatpush2.bf16.msra.mxu0 0
    %4498 = vmatprep.subr.bf16.mxu0 0
    %4499 = vmatpush2.bf16.msra.mxu0 0
    %4500 = vmatprep.subr.bf16.mxu0 0
    %4501 = vmatpush2.bf16.msra.mxu0 0
    %4502 = vmatprep.subr.bf16.mxu0 0
    %4503 = vmatpush2.bf16.msra.mxu0 0
    %4504 = vmatprep.mubr.bf16.mxu0 0
    %4505 = vmatmul.mubr.bf16.gmra.mxu0 %v4470
    %v4506 = vpop.f32.mrf.mxu0
    %v4507 = vadd.f32 0.0, %v4506
    %v4508 = vpop.f32.mrf.mxu0
    %v4509 = vadd.f32 0.0, %v4508
    %v4510 = vpop.f32.mrf.mxu0
    %v4511 = vpop.f32.mrf.mxu0
    %4512 = vdwg.mxu0
    %4513 = vmatprep.subr.bf16.mxu0 0
    %4514 = vmatpush1.bf16.msra.mxu0 0
    %4515 = vmatprep.subr.bf16.mxu0 0
    %4516 = vmatpush1.bf16.msra.mxu0 0
    %4517 = vmatprep.subr.bf16.mxu0 0
    %4518 = vmatpush1.bf16.msra.mxu0 0
    %4519 = vmatprep.subr.bf16.mxu0 0
    %4520 = vmatpush1.bf16.msra.mxu0 0
    %4521 = vmatprep.subr.bf16.mxu0 %v4452
    %4522 = vmatpush1.bf16.msra.mxu0 %v4451
    %4523 = vmatprep.subr.bf16.mxu0 %v4448
    %4524 = vmatpush1.bf16.msra.mxu0 %v4447
    %4525 = vmatprep.subr.bf16.mxu0 %v4444
    %4526 = vmatpush1.bf16.msra.mxu0 %v4443
    %4527 = vmatprep.subr.bf16.mxu0 %v4440
    %4528 = vmatpush1.bf16.msra.mxu0 %v4439
    %4529 = vmatprep.subr.bf16.mxu0 0
    %4530 = vmatpush2.bf16.msra.mxu0 0
    %4531 = vmatprep.subr.bf16.mxu0 0
    %4532 = vmatpush2.bf16.msra.mxu0 0
    %4533 = vmatprep.subr.bf16.mxu0 0
    %4534 = vmatpush2.bf16.msra.mxu0 0
    %4535 = vmatprep.subr.bf16.mxu0 0
    %4536 = vmatpush2.bf16.msra.mxu0 0
    %4537 = vmatprep.subr.bf16.mxu0 0
    %4538 = vmatpush2.bf16.msra.mxu0 0
    %4539 = vmatprep.subr.bf16.mxu0 0
    %4540 = vmatpush2.bf16.msra.mxu0 0
    %4541 = vmatprep.subr.bf16.mxu0 0
    %4542 = vmatpush2.bf16.msra.mxu0 0
    %4543 = vmatprep.subr.bf16.mxu0 0
    %4544 = vmatpush2.bf16.msra.mxu0 0
    %4545 = vmatprep.mubr.bf16.mxu0 0
    %4546 = vmatmul.mubr.bf16.gmra.mxu0 %v4470
    %v4547 = vpop.f32.mrf.mxu0
    %v4548 = vadd.f32 0.0, %v4547
    %v4549 = vpop.f32.mrf.mxu0
    %v4550 = vadd.f32 0.0, %v4549
    %v4551 = vpop.f32.mrf.mxu0
    %v4552 = vpop.f32.mrf.mxu0
    %4553 = vdwg.mxu0
    %v4554 = vpack.c.bf16 %v4507, %v4507
    %v4555 = vpack.c.bf16 %v4509, %v4509
    %v4556 = vpack.c.bf16 %v4548, %v4548
    %v4557 = vpack.c.bf16 %v4550, %v4550
    %v4558 = vld [vmem:[%s65] sm:$0xff]
    %v4559 = vld [vmem:[%s65 + $0x8] sm:$0xff]
    %v4560 = vld [vmem:[%s65 + $0x10] sm:$0xff]
    %v4561 = vld [vmem:[%s65 + $0x18] sm:$0xff]
    %v4562 = vld [vmem:[%s65 + $0x20] sm:$0xff]
    %v4563 = vld [vmem:[%s65 + $0x28] sm:$0xff]
    %v4564 = vld [vmem:[%s65 + $0x30] sm:$0xff]
    %v4565 = vld [vmem:[%s65 + $0x38] sm:$0xff]
    %v4566 = vld [vmem:[%s65 + $0x40] sm:$0xff]
    %v4567 = vld [vmem:[%s65 + $0x48] sm:$0xff]
    %v4568 = vld [vmem:[%s65 + $0x50] sm:$0xff]
    %v4569 = vld [vmem:[%s65 + $0x58] sm:$0xff]
    %v4570 = vld [vmem:[%s65 + $0x60] sm:$0xff]
    %v4571 = vld [vmem:[%s65 + $0x68] sm:$0xff]
    %v4572 = vld [vmem:[%s65 + $0x70] sm:$0xff]
    %v4573 = vld [vmem:[%s65 + $0x78] sm:$0xff]
    %v4574 = vld [vmem:[%s65 + $0x80] sm:$0xff]
    %v4575 = vld [vmem:[%s65 + $0x88] sm:$0xff]
    %v4576 = vld [vmem:[%s65 + $0x90] sm:$0xff]
    %v4577 = vld [vmem:[%s65 + $0x98] sm:$0xff]
    %v4578 = vld [vmem:[%s65 + $0xa0] sm:$0xff]
    %v4579 = vld [vmem:[%s65 + $0xa8] sm:$0xff]
    %v4580 = vld [vmem:[%s65 + $0xb0] sm:$0xff]
    %v4581 = vld [vmem:[%s65 + $0xb8] sm:$0xff]
    %v4582 = vld [vmem:[%s65 + $0xc0] sm:$0xff]
    %v4583 = vld [vmem:[%s65 + $0xc8] sm:$0xff]
    %v4584 = vld [vmem:[%s65 + $0xd0] sm:$0xff]
    %v4585 = vld [vmem:[%s65 + $0xd8] sm:$0xff]
    %v4586 = vld [vmem:[%s65 + $0xe0] sm:$0xff]
    %v4587 = vld [vmem:[%s65 + $0xe8] sm:$0xff]
    %v4588 = vld [vmem:[%s65 + $0xf0] sm:$0xff]
    %v4589 = vld [vmem:[%s65 + $0xf8] sm:$0xff]
    %v4590 = vld [vmem:[%s65 + $0x100] sm:$0xff]
    %v4591 = vld [vmem:[%s65 + $0x108] sm:$0xff]
    %v4592 = vld [vmem:[%s65 + $0x110] sm:$0xff]
    %v4593 = vld [vmem:[%s65 + $0x118] sm:$0xff]
    %v4594 = vld [vmem:[%s65 + $0x120] sm:$0xff]
    %v4595 = vld [vmem:[%s65 + $0x128] sm:$0xff]
    %v4596 = vld [vmem:[%s65 + $0x130] sm:$0xff]
    %v4597 = vld [vmem:[%s65 + $0x138] sm:$0xff]
    %v4598 = vld [vmem:[%s65 + $0x140] sm:$0xff]
    %v4599 = vld [vmem:[%s65 + $0x148] sm:$0xff]
    %v4600 = vld [vmem:[%s65 + $0x150] sm:$0xff]
    %v4601 = vld [vmem:[%s65 + $0x158] sm:$0xff]
    %v4602 = vld [vmem:[%s65 + $0x160] sm:$0xff]
    %v4603 = vld [vmem:[%s65 + $0x168] sm:$0xff]
    %v4604 = vld [vmem:[%s65 + $0x170] sm:$0xff]
    %v4605 = vld [vmem:[%s65 + $0x178] sm:$0xff]
    %v4606 = vld [vmem:[%s65 + $0x180] sm:$0xff]
    %v4607 = vld [vmem:[%s65 + $0x188] sm:$0xff]
    %v4608 = vld [vmem:[%s65 + $0x190] sm:$0xff]
    %v4609 = vld [vmem:[%s65 + $0x198] sm:$0xff]
    %v4610 = vld [vmem:[%s65 + $0x1a0] sm:$0xff]
    %v4611 = vld [vmem:[%s65 + $0x1a8] sm:$0xff]
    %v4612 = vld [vmem:[%s65 + $0x1b0] sm:$0xff]
    %v4613 = vld [vmem:[%s65 + $0x1b8] sm:$0xff]
    %v4614 = vld [vmem:[%s65 + $0x1c0] sm:$0xff]
    %v4615 = vld [vmem:[%s65 + $0x1c8] sm:$0xff]
    %v4616 = vld [vmem:[%s65 + $0x1d0] sm:$0xff]
    %v4617 = vld [vmem:[%s65 + $0x1d8] sm:$0xff]
    %v4618 = vld [vmem:[%s65 + $0x1e0] sm:$0xff]
    %v4619 = vld [vmem:[%s65 + $0x1e8] sm:$0xff]
    %v4620 = vld [vmem:[%s65 + $0x1f0] sm:$0xff]
    %v4621 = vld [vmem:[%s65 + $0x1f8] sm:$0xff]
    %v4686 = vunpack.c.l.b16 %v4558
    %v4687 = vunpack.c.h.b16 %v4558
    %v4688 = vunpack.c.l.b16 %v4559
    %v4689 = vunpack.c.h.b16 %v4559
    %v4690 = vunpack.c.l.b16 %v4560
    %v4691 = vunpack.c.h.b16 %v4560
    %v4692 = vunpack.c.l.b16 %v4561
    %v4693 = vunpack.c.h.b16 %v4561
    %v4694 = vunpack.c.l.b16 %v4562
    %v4695 = vunpack.c.h.b16 %v4562
    %v4696 = vunpack.c.l.b16 %v4563
    %v4697 = vunpack.c.h.b16 %v4563
    %v4698 = vunpack.c.l.b16 %v4564
    %v4699 = vunpack.c.h.b16 %v4564
    %v4700 = vunpack.c.l.b16 %v4565
    %v4701 = vunpack.c.h.b16 %v4565
    %v4702 = vunpack.c.l.b16 %v4566
    %v4703 = vunpack.c.h.b16 %v4566
    %v4704 = vunpack.c.l.b16 %v4567
    %v4705 = vunpack.c.h.b16 %v4567
    %v4706 = vunpack.c.l.b16 %v4568
    %v4707 = vunpack.c.h.b16 %v4568
    %v4708 = vunpack.c.l.b16 %v4569
    %v4709 = vunpack.c.h.b16 %v4569
    %v4710 = vunpack.c.l.b16 %v4570
    %v4711 = vunpack.c.h.b16 %v4570
    %v4712 = vunpack.c.l.b16 %v4571
    %v4713 = vunpack.c.h.b16 %v4571
    %v4714 = vunpack.c.l.b16 %v4572
    %v4715 = vunpack.c.h.b16 %v4572
    %v4716 = vunpack.c.l.b16 %v4573
    %v4717 = vunpack.c.h.b16 %v4573
    %v4718 = vunpack.c.l.b16 %v4574
    %v4719 = vunpack.c.h.b16 %v4574
    %v4720 = vunpack.c.l.b16 %v4575
    %v4721 = vunpack.c.h.b16 %v4575
    %v4722 = vunpack.c.l.b16 %v4576
    %v4723 = vunpack.c.h.b16 %v4576
    %v4724 = vunpack.c.l.b16 %v4577
    %v4725 = vunpack.c.h.b16 %v4577
    %v4726 = vunpack.c.l.b16 %v4578
    %v4727 = vunpack.c.h.b16 %v4578
    %v4728 = vunpack.c.l.b16 %v4579
    %v4729 = vunpack.c.h.b16 %v4579
    %v4730 = vunpack.c.l.b16 %v4580
    %v4731 = vunpack.c.h.b16 %v4580
    %v4732 = vunpack.c.l.b16 %v4581
    %v4733 = vunpack.c.h.b16 %v4581
    %v4734 = vunpack.c.l.b16 %v4582
    %v4735 = vunpack.c.h.b16 %v4582
    %v4736 = vunpack.c.l.b16 %v4583
    %v4737 = vunpack.c.h.b16 %v4583
    %v4738 = vunpack.c.l.b16 %v4584
    %v4739 = vunpack.c.h.b16 %v4584
    %v4740 = vunpack.c.l.b16 %v4585
    %v4741 = vunpack.c.h.b16 %v4585
    %v4742 = vunpack.c.l.b16 %v4586
    %v4743 = vunpack.c.h.b16 %v4586
    %v4744 = vunpack.c.l.b16 %v4587
    %v4745 = vunpack.c.h.b16 %v4587
    %v4746 = vunpack.c.l.b16 %v4588
    %v4747 = vunpack.c.h.b16 %v4588
    %v4748 = vunpack.c.l.b16 %v4589
    %v4749 = vunpack.c.h.b16 %v4589
    %v4750 = vunpack.c.l.b16 %v4590
    %v4751 = vunpack.c.h.b16 %v4590
    %v4752 = vunpack.c.l.b16 %v4591
    %v4753 = vunpack.c.h.b16 %v4591
    %v4754 = vunpack.c.l.b16 %v4592
    %v4755 = vunpack.c.h.b16 %v4592
    %v4756 = vunpack.c.l.b16 %v4593
    %v4757 = vunpack.c.h.b16 %v4593
    %v4758 = vunpack.c.l.b16 %v4594
    %v4759 = vunpack.c.h.b16 %v4594
    %v4760 = vunpack.c.l.b16 %v4595
    %v4761 = vunpack.c.h.b16 %v4595
    %v4762 = vunpack.c.l.b16 %v4596
    %v4763 = vunpack.c.h.b16 %v4596
    %v4764 = vunpack.c.l.b16 %v4597
    %v4765 = vunpack.c.h.b16 %v4597
    %v4766 = vunpack.c.l.b16 %v4598
    %v4767 = vunpack.c.h.b16 %v4598
    %v4768 = vunpack.c.l.b16 %v4599
    %v4769 = vunpack.c.h.b16 %v4599
    %v4770 = vunpack.c.l.b16 %v4600
    %v4771 = vunpack.c.h.b16 %v4600
    %v4772 = vunpack.c.l.b16 %v4601
    %v4773 = vunpack.c.h.b16 %v4601
    %v4774 = vunpack.c.l.b16 %v4602
    %v4775 = vunpack.c.h.b16 %v4602
    %v4776 = vunpack.c.l.b16 %v4603
    %v4777 = vunpack.c.h.b16 %v4603
    %v4778 = vunpack.c.l.b16 %v4604
    %v4779 = vunpack.c.h.b16 %v4604
    %v4780 = vunpack.c.l.b16 %v4605
    %v4781 = vunpack.c.h.b16 %v4605
    %v4782 = vunpack.c.l.b16 %v4606
    %v4783 = vunpack.c.h.b16 %v4606
    %v4784 = vunpack.c.l.b16 %v4607
    %v4785 = vunpack.c.h.b16 %v4607
    %v4786 = vunpack.c.l.b16 %v4608
    %v4787 = vunpack.c.h.b16 %v4608
    %v4788 = vunpack.c.l.b16 %v4609
    %v4789 = vunpack.c.h.b16 %v4609
    %v4790 = vunpack.c.l.b16 %v4610
    %v4791 = vunpack.c.h.b16 %v4610
    %v4792 = vunpack.c.l.b16 %v4611
    %v4793 = vunpack.c.h.b16 %v4611
    %v4794 = vunpack.c.l.b16 %v4612
    %v4795 = vunpack.c.h.b16 %v4612
    %v4796 = vunpack.c.l.b16 %v4613
    %v4797 = vunpack.c.h.b16 %v4613
    %v4798 = vunpack.c.l.b16 %v4614
    %v4799 = vunpack.c.h.b16 %v4614
    %v4800 = vunpack.c.l.b16 %v4615
    %v4801 = vunpack.c.h.b16 %v4615
    %v4802 = vunpack.c.l.b16 %v4616
    %v4803 = vunpack.c.h.b16 %v4616
    %v4804 = vunpack.c.l.b16 %v4617
    %v4805 = vunpack.c.h.b16 %v4617
    %v4806 = vunpack.c.l.b16 %v4618
    %v4807 = vunpack.c.h.b16 %v4618
    %v4808 = vunpack.c.l.b16 %v4619
    %v4809 = vunpack.c.h.b16 %v4619
    %v4810 = vunpack.c.l.b16 %v4620
    %v4811 = vunpack.c.h.b16 %v4620
    %v4812 = vunpack.c.l.b16 %v4621
    %v4813 = vunpack.c.h.b16 %v4621
    %v4814 = vpack.c.b16 %v4688, %v4686
    %v4815 = vpack.c.b16 %v4689, %v4687
    %v4816 = vpack.c.b16 %v4692, %v4690
    %v4817 = vpack.c.b16 %v4693, %v4691
    %v4818 = vpack.c.b16 %v4696, %v4694
    %v4819 = vpack.c.b16 %v4697, %v4695
    %v4820 = vpack.c.b16 %v4700, %v4698
    %v4821 = vpack.c.b16 %v4701, %v4699
    %v4822 = vpack.c.b16 %v4704, %v4702
    %v4823 = vpack.c.b16 %v4705, %v4703
    %v4824 = vpack.c.b16 %v4708, %v4706
    %v4825 = vpack.c.b16 %v4709, %v4707
    %v4826 = vpack.c.b16 %v4712, %v4710
    %v4827 = vpack.c.b16 %v4713, %v4711
    %v4828 = vpack.c.b16 %v4716, %v4714
    %v4829 = vpack.c.b16 %v4717, %v4715
    %v4830 = vpack.c.b16 %v4720, %v4718
    %v4831 = vpack.c.b16 %v4721, %v4719
    %v4832 = vpack.c.b16 %v4724, %v4722
    %v4833 = vpack.c.b16 %v4725, %v4723
    %v4834 = vpack.c.b16 %v4728, %v4726
    %v4835 = vpack.c.b16 %v4729, %v4727
    %v4836 = vpack.c.b16 %v4732, %v4730
    %v4837 = vpack.c.b16 %v4733, %v4731
    %v4838 = vpack.c.b16 %v4736, %v4734
    %v4839 = vpack.c.b16 %v4737, %v4735
    %v4840 = vpack.c.b16 %v4740, %v4738
    %v4841 = vpack.c.b16 %v4741, %v4739
    %v4842 = vpack.c.b16 %v4744, %v4742
    %v4843 = vpack.c.b16 %v4745, %v4743
    %v4844 = vpack.c.b16 %v4748, %v4746
    %v4845 = vpack.c.b16 %v4749, %v4747
    %v4846 = vpack.c.b16 %v4752, %v4750
    %v4847 = vpack.c.b16 %v4753, %v4751
    %v4848 = vpack.c.b16 %v4756, %v4754
    %v4849 = vpack.c.b16 %v4757, %v4755
    %v4850 = vpack.c.b16 %v4760, %v4758
    %v4851 = vpack.c.b16 %v4761, %v4759
    %v4852 = vpack.c.b16 %v4764, %v4762
    %v4853 = vpack.c.b16 %v4765, %v4763
    %v4854 = vpack.c.b16 %v4768, %v4766
    %v4855 = vpack.c.b16 %v4769, %v4767
    %v4856 = vpack.c.b16 %v4772, %v4770
    %v4857 = vpack.c.b16 %v4773, %v4771
    %v4858 = vpack.c.b16 %v4776, %v4774
    %v4859 = vpack.c.b16 %v4777, %v4775
    %v4860 = vpack.c.b16 %v4780, %v4778
    %v4861 = vpack.c.b16 %v4781, %v4779
    %v4862 = vpack.c.b16 %v4784, %v4782
    %v4863 = vpack.c.b16 %v4785, %v4783
    %v4864 = vpack.c.b16 %v4788, %v4786
    %v4865 = vpack.c.b16 %v4789, %v4787
    %v4866 = vpack.c.b16 %v4792, %v4790
    %v4867 = vpack.c.b16 %v4793, %v4791
    %v4868 = vpack.c.b16 %v4796, %v4794
    %v4869 = vpack.c.b16 %v4797, %v4795
    %v4870 = vpack.c.b16 %v4800, %v4798
    %v4871 = vpack.c.b16 %v4801, %v4799
    %v4872 = vpack.c.b16 %v4804, %v4802
    %v4873 = vpack.c.b16 %v4805, %v4803
    %v4874 = vpack.c.b16 %v4808, %v4806
    %v4875 = vpack.c.b16 %v4809, %v4807
    %v4876 = vpack.c.b16 %v4812, %v4810
    %v4877 = vpack.c.b16 %v4813, %v4811
    %4942 = vmatprep.subr.bf16.mxu0 %v4829
    %4943 = vmatpush1.bf16.msra.mxu0 %v4828
    %4944 = vmatprep.subr.bf16.mxu0 %v4827
    %4945 = vmatpush1.bf16.msra.mxu0 %v4826
    %4946 = vmatprep.subr.bf16.mxu0 %v4825
    %4947 = vmatpush1.bf16.msra.mxu0 %v4824
    %4948 = vmatprep.subr.bf16.mxu0 %v4823
    %4949 = vmatpush1.bf16.msra.mxu0 %v4822
    %4950 = vmatprep.subr.bf16.mxu0 %v4821
    %4951 = vmatpush1.bf16.msra.mxu0 %v4820
    %4952 = vmatprep.subr.bf16.mxu0 %v4819
    %4953 = vmatpush1.bf16.msra.mxu0 %v4818
    %4954 = vmatprep.subr.bf16.mxu0 %v4817
    %4955 = vmatpush1.bf16.msra.mxu0 %v4816
    %4956 = vmatprep.subr.bf16.mxu0 %v4815
    %4957 = vmatpush1.bf16.msra.mxu0 %v4814
    %4958 = vmatprep.subr.bf16.mxu0 %v4845
    %4959 = vmatpush2.bf16.msra.mxu0 %v4844
    %4960 = vmatprep.subr.bf16.mxu0 %v4843
    %4961 = vmatpush2.bf16.msra.mxu0 %v4842
    %4962 = vmatprep.subr.bf16.mxu0 %v4841
    %4963 = vmatpush2.bf16.msra.mxu0 %v4840
    %4964 = vmatprep.subr.bf16.mxu0 %v4839
    %4965 = vmatpush2.bf16.msra.mxu0 %v4838
    %4966 = vmatprep.subr.bf16.mxu0 %v4837
    %4967 = vmatpush2.bf16.msra.mxu0 %v4836
    %4968 = vmatprep.subr.bf16.mxu0 %v4835
    %4969 = vmatpush2.bf16.msra.mxu0 %v4834
    %4970 = vmatprep.subr.bf16.mxu0 %v4833
    %4971 = vmatpush2.bf16.msra.mxu0 %v4832
    %4972 = vmatprep.subr.bf16.mxu0 %v4831
    %4973 = vmatpush2.bf16.msra.mxu0 %v4830
    %4974 = vmatprep.mubr.bf16.mxu0 %v4555
    %4975 = vmatmul.mubr.bf16.gmra.mxu0 %v4554
    %v4976 = vpop.f32.mrf.mxu0
    %v4977 = vadd.f32 0.0, %v4976
    %v4978 = vpop.f32.mrf.mxu0
    %v4979 = vadd.f32 0.0, %v4978
    %v4980 = vpop.f32.mrf.mxu0
    %v4981 = vpop.f32.mrf.mxu0
    %4982 = vdwg.mxu0
    %4983 = vmatprep.subr.bf16.mxu0 %v4861
    %4984 = vmatpush1.bf16.msra.mxu0 %v4860
    %4985 = vmatprep.subr.bf16.mxu0 %v4859
    %4986 = vmatpush1.bf16.msra.mxu0 %v4858
    %4987 = vmatprep.subr.bf16.mxu0 %v4857
    %4988 = vmatpush1.bf16.msra.mxu0 %v4856
    %4989 = vmatprep.subr.bf16.mxu0 %v4855
    %4990 = vmatpush1.bf16.msra.mxu0 %v4854
    %4991 = vmatprep.subr.bf16.mxu0 %v4853
    %4992 = vmatpush1.bf16.msra.mxu0 %v4852
    %4993 = vmatprep.subr.bf16.mxu0 %v4851
    %4994 = vmatpush1.bf16.msra.mxu0 %v4850
    %4995 = vmatprep.subr.bf16.mxu0 %v4849
    %4996 = vmatpush1.bf16.msra.mxu0 %v4848
    %4997 = vmatprep.subr.bf16.mxu0 %v4847
    %4998 = vmatpush1.bf16.msra.mxu0 %v4846
    %4999 = vmatprep.subr.bf16.mxu0 %v4877
    %5000 = vmatpush2.bf16.msra.mxu0 %v4876
    %5001 = vmatprep.subr.bf16.mxu0 %v4875
    %5002 = vmatpush2.bf16.msra.mxu0 %v4874
    %5003 = vmatprep.subr.bf16.mxu0 %v4873
    %5004 = vmatpush2.bf16.msra.mxu0 %v4872
    %5005 = vmatprep.subr.bf16.mxu0 %v4871
    %5006 = vmatpush2.bf16.msra.mxu0 %v4870
    %5007 = vmatprep.subr.bf16.mxu0 %v4869
    %5008 = vmatpush2.bf16.msra.mxu0 %v4868
    %5009 = vmatprep.subr.bf16.mxu0 %v4867
    %5010 = vmatpush2.bf16.msra.mxu0 %v4866
    %5011 = vmatprep.subr.bf16.mxu0 %v4865
    %5012 = vmatpush2.bf16.msra.mxu0 %v4864
    %5013 = vmatprep.subr.bf16.mxu0 %v4863
    %5014 = vmatpush2.bf16.msra.mxu0 %v4862
    %5015 = vmatprep.mubr.bf16.mxu0 %v4557
    %5016 = vmatmul.mubr.bf16.gmra.mxu0 %v4556
    %v5017 = vpop.f32.mrf.mxu0
    %v5018 = vadd.f32 %v4977, %v5017
    %v5019 = vpop.f32.mrf.mxu0
    %v5020 = vadd.f32 %v4979, %v5019
    %v5021 = vpop.f32.mrf.mxu0
    %v5022 = vpop.f32.mrf.mxu0
    %5023 = vdwg.mxu0
    %v5024 = vld [vmem:[%s67] sm:$0x3]
    %v5026 = vlaneseq
    %v5027 = vshrl.u32 %v5026, 7
    %v5028 = vsub.s32 0, %v5027
    %v5029 = vrot.slane %v5024, %v5028
    %v5030 = vlaneseq
    %v5031 = vshrl.u32 %v5030, 7
    %v5032 = vsub.s32 1, %v5031
    %v5033 = vrot.slane %v5024, %v5032
    %v5036 = vmul.f32 %v5018, %v5029
    %v5037 = vmul.f32 %v5020, %v5033
    %v5038 = vld [vmem:[%s69] sm:$0x3]
    %v5040 = vlaneseq
    %v5041 = vshrl.u32 %v5040, 7
    %v5042 = vsub.s32 0, %v5041
    %v5043 = vrot.slane %v5038, %v5042
    %v5044 = vlaneseq
    %v5045 = vshrl.u32 %v5044, 7
    %v5046 = vsub.s32 1, %v5045
    %v5047 = vrot.slane %v5038, %v5046
    %v5050 = vadd.f32 %v5036, %v5043
    %v5051 = vadd.f32 %v5037, %v5047
    %v5052 = vmax.f32 %v5050, 0.0
    %v5053 = vmax.f32 %v5051, 0.0
    %v5054 = vpack.c.bf16 %v5052, %v5052
    %v5055 = vpack.c.bf16 %v5053, %v5053
    %v5056 = vld [vmem:[%s71] sm:$0xff]
    %v5057 = vld [vmem:[%s71 + $0x8] sm:$0xff]
    %v5058 = vld [vmem:[%s71 + $0x10] sm:$0xff]
    %v5059 = vld [vmem:[%s71 + $0x18] sm:$0xff]
    %v5060 = vld [vmem:[%s71 + $0x20] sm:$0xff]
    %v5061 = vld [vmem:[%s71 + $0x28] sm:$0xff]
    %v5062 = vld [vmem:[%s71 + $0x30] sm:$0xff]
    %v5063 = vld [vmem:[%s71 + $0x38] sm:$0xff]
    %v5064 = vld [vmem:[%s71 + $0x40] sm:$0xff]
    %v5065 = vld [vmem:[%s71 + $0x48] sm:$0xff]
    %v5066 = vld [vmem:[%s71 + $0x50] sm:$0xff]
    %v5067 = vld [vmem:[%s71 + $0x58] sm:$0xff]
    %v5068 = vld [vmem:[%s71 + $0x60] sm:$0xff]
    %v5069 = vld [vmem:[%s71 + $0x68] sm:$0xff]
    %v5070 = vld [vmem:[%s71 + $0x70] sm:$0xff]
    %v5071 = vld [vmem:[%s71 + $0x78] sm:$0xff]
    %v5072 = vld [vmem:[%s71 + $0x80] sm:$0xff]
    %v5073 = vld [vmem:[%s71 + $0x88] sm:$0xff]
    %v5074 = vld [vmem:[%s71 + $0x90] sm:$0xff]
    %v5075 = vld [vmem:[%s71 + $0x98] sm:$0xff]
    %v5076 = vld [vmem:[%s71 + $0xa0] sm:$0xff]
    %v5077 = vld [vmem:[%s71 + $0xa8] sm:$0xff]
    %v5078 = vld [vmem:[%s71 + $0xb0] sm:$0xff]
    %v5079 = vld [vmem:[%s71 + $0xb8] sm:$0xff]
    %v5080 = vld [vmem:[%s71 + $0xc0] sm:$0xff]
    %v5081 = vld [vmem:[%s71 + $0xc8] sm:$0xff]
    %v5082 = vld [vmem:[%s71 + $0xd0] sm:$0xff]
    %v5083 = vld [vmem:[%s71 + $0xd8] sm:$0xff]
    %v5084 = vld [vmem:[%s71 + $0xe0] sm:$0xff]
    %v5085 = vld [vmem:[%s71 + $0xe8] sm:$0xff]
    %v5086 = vld [vmem:[%s71 + $0xf0] sm:$0xff]
    %v5087 = vld [vmem:[%s71 + $0xf8] sm:$0xff]
    %v5120 = vunpack.c.l.b16 %v5056
    %v5121 = vunpack.c.h.b16 %v5056
    %v5122 = vunpack.c.l.b16 %v5057
    %v5123 = vunpack.c.h.b16 %v5057
    %v5124 = vunpack.c.l.b16 %v5058
    %v5125 = vunpack.c.h.b16 %v5058
    %v5126 = vunpack.c.l.b16 %v5059
    %v5127 = vunpack.c.h.b16 %v5059
    %v5128 = vunpack.c.l.b16 %v5060
    %v5129 = vunpack.c.h.b16 %v5060
    %v5130 = vunpack.c.l.b16 %v5061
    %v5131 = vunpack.c.h.b16 %v5061
    %v5132 = vunpack.c.l.b16 %v5062
    %v5133 = vunpack.c.h.b16 %v5062
    %v5134 = vunpack.c.l.b16 %v5063
    %v5135 = vunpack.c.h.b16 %v5063
    %v5136 = vunpack.c.l.b16 %v5064
    %v5137 = vunpack.c.h.b16 %v5064
    %v5138 = vunpack.c.l.b16 %v5065
    %v5139 = vunpack.c.h.b16 %v5065
    %v5140 = vunpack.c.l.b16 %v5066
    %v5141 = vunpack.c.h.b16 %v5066
    %v5142 = vunpack.c.l.b16 %v5067
    %v5143 = vunpack.c.h.b16 %v5067
    %v5144 = vunpack.c.l.b16 %v5068
    %v5145 = vunpack.c.h.b16 %v5068
    %v5146 = vunpack.c.l.b16 %v5069
    %v5147 = vunpack.c.h.b16 %v5069
    %v5148 = vunpack.c.l.b16 %v5070
    %v5149 = vunpack.c.h.b16 %v5070
    %v5150 = vunpack.c.l.b16 %v5071
    %v5151 = vunpack.c.h.b16 %v5071
    %v5152 = vunpack.c.l.b16 %v5072
    %v5153 = vunpack.c.h.b16 %v5072
    %v5154 = vunpack.c.l.b16 %v5073
    %v5155 = vunpack.c.h.b16 %v5073
    %v5156 = vunpack.c.l.b16 %v5074
    %v5157 = vunpack.c.h.b16 %v5074
    %v5158 = vunpack.c.l.b16 %v5075
    %v5159 = vunpack.c.h.b16 %v5075
    %v5160 = vunpack.c.l.b16 %v5076
    %v5161 = vunpack.c.h.b16 %v5076
    %v5162 = vunpack.c.l.b16 %v5077
    %v5163 = vunpack.c.h.b16 %v5077
    %v5164 = vunpack.c.l.b16 %v5078
    %v5165 = vunpack.c.h.b16 %v5078
    %v5166 = vunpack.c.l.b16 %v5079
    %v5167 = vunpack.c.h.b16 %v5079
    %v5168 = vunpack.c.l.b16 %v5080
    %v5169 = vunpack.c.h.b16 %v5080
    %v5170 = vunpack.c.l.b16 %v5081
    %v5171 = vunpack.c.h.b16 %v5081
    %v5172 = vunpack.c.l.b16 %v5082
    %v5173 = vunpack.c.h.b16 %v5082
    %v5174 = vunpack.c.l.b16 %v5083
    %v5175 = vunpack.c.h.b16 %v5083
    %v5176 = vunpack.c.l.b16 %v5084
    %v5177 = vunpack.c.h.b16 %v5084
    %v5178 = vunpack.c.l.b16 %v5085
    %v5179 = vunpack.c.h.b16 %v5085
    %v5180 = vunpack.c.l.b16 %v5086
    %v5181 = vunpack.c.h.b16 %v5086
    %v5182 = vunpack.c.l.b16 %v5087
    %v5183 = vunpack.c.h.b16 %v5087
    %v5184 = vpack.c.b16 %v5122, %v5120
    %v5185 = vpack.c.b16 %v5123, %v5121
    %v5186 = vpack.c.b16 %v5126, %v5124
    %v5187 = vpack.c.b16 %v5127, %v5125
    %v5188 = vpack.c.b16 %v5130, %v5128
    %v5189 = vpack.c.b16 %v5131, %v5129
    %v5190 = vpack.c.b16 %v5134, %v5132
    %v5191 = vpack.c.b16 %v5135, %v5133
    %v5192 = vpack.c.b16 %v5138, %v5136
    %v5193 = vpack.c.b16 %v5139, %v5137
    %v5194 = vpack.c.b16 %v5142, %v5140
    %v5195 = vpack.c.b16 %v5143, %v5141
    %v5196 = vpack.c.b16 %v5146, %v5144
    %v5197 = vpack.c.b16 %v5147, %v5145
    %v5198 = vpack.c.b16 %v5150, %v5148
    %v5199 = vpack.c.b16 %v5151, %v5149
    %v5200 = vpack.c.b16 %v5154, %v5152
    %v5201 = vpack.c.b16 %v5155, %v5153
    %v5202 = vpack.c.b16 %v5158, %v5156
    %v5203 = vpack.c.b16 %v5159, %v5157
    %v5204 = vpack.c.b16 %v5162, %v5160
    %v5205 = vpack.c.b16 %v5163, %v5161
    %v5206 = vpack.c.b16 %v5166, %v5164
    %v5207 = vpack.c.b16 %v5167, %v5165
    %v5208 = vpack.c.b16 %v5170, %v5168
    %v5209 = vpack.c.b16 %v5171, %v5169
    %v5210 = vpack.c.b16 %v5174, %v5172
    %v5211 = vpack.c.b16 %v5175, %v5173
    %v5212 = vpack.c.b16 %v5178, %v5176
    %v5213 = vpack.c.b16 %v5179, %v5177
    %v5214 = vpack.c.b16 %v5182, %v5180
    %v5215 = vpack.c.b16 %v5183, %v5181
    %5248 = vmatprep.subr.bf16.mxu0 %v5199
    %5249 = vmatpush1.bf16.msra.mxu0 %v5198
    %5250 = vmatprep.subr.bf16.mxu0 %v5197
    %5251 = vmatpush1.bf16.msra.mxu0 %v5196
    %5252 = vmatprep.subr.bf16.mxu0 %v5195
    %5253 = vmatpush1.bf16.msra.mxu0 %v5194
    %5254 = vmatprep.subr.bf16.mxu0 %v5193
    %5255 = vmatpush1.bf16.msra.mxu0 %v5192
    %5256 = vmatprep.subr.bf16.mxu0 %v5191
    %5257 = vmatpush1.bf16.msra.mxu0 %v5190
    %5258 = vmatprep.subr.bf16.mxu0 %v5189
    %5259 = vmatpush1.bf16.msra.mxu0 %v5188
    %5260 = vmatprep.subr.bf16.mxu0 %v5187
    %5261 = vmatpush1.bf16.msra.mxu0 %v5186
    %5262 = vmatprep.subr.bf16.mxu0 %v5185
    %5263 = vmatpush1.bf16.msra.mxu0 %v5184
    %5264 = vmatprep.subr.bf16.mxu0 %v5215
    %5265 = vmatpush2.bf16.msra.mxu0 %v5214
    %5266 = vmatprep.subr.bf16.mxu0 %v5213
    %5267 = vmatpush2.bf16.msra.mxu0 %v5212
    %5268 = vmatprep.subr.bf16.mxu0 %v5211
    %5269 = vmatpush2.bf16.msra.mxu0 %v5210
    %5270 = vmatprep.subr.bf16.mxu0 %v5209
    %5271 = vmatpush2.bf16.msra.mxu0 %v5208
    %5272 = vmatprep.subr.bf16.mxu0 %v5207
    %5273 = vmatpush2.bf16.msra.mxu0 %v5206
    %5274 = vmatprep.subr.bf16.mxu0 %v5205
    %5275 = vmatpush2.bf16.msra.mxu0 %v5204
    %5276 = vmatprep.subr.bf16.mxu0 %v5203
    %5277 = vmatpush2.bf16.msra.mxu0 %v5202
    %5278 = vmatprep.subr.bf16.mxu0 %v5201
    %5279 = vmatpush2.bf16.msra.mxu0 %v5200
    %5280 = vmatprep.mubr.bf16.mxu0 %v5055
    %5281 = vmatmul.mubr.bf16.gmra.mxu0 %v5054
    %v5282 = vpop.f32.mrf.mxu0
    %v5283 = vadd.f32 0.0, %v5282
    %v5284 = vpop.f32.mrf.mxu0
    %v5285 = vadd.f32 0.0, %v5284
    %v5286 = vpop.f32.mrf.mxu0
    %v5287 = vpop.f32.mrf.mxu0
    %5288 = vdwg.mxu0
    %v5289 = vld [vmem:[%s73] sm:$0x3]
    %v5291 = vlaneseq
    %v5292 = vshrl.u32 %v5291, 7
    %v5293 = vsub.s32 0, %v5292
    %v5294 = vrot.slane %v5289, %v5293
    %v5295 = vlaneseq
    %v5296 = vshrl.u32 %v5295, 7
    %v5297 = vsub.s32 1, %v5296
    %v5298 = vrot.slane %v5289, %v5297
    %v5301 = vmul.f32 %v5283, %v5294
    %v5302 = vmul.f32 %v5285, %v5298
    %v5303 = vld [vmem:[%s75] sm:$0x3]
    %v5305 = vlaneseq
    %v5306 = vshrl.u32 %v5305, 7
    %v5307 = vsub.s32 0, %v5306
    %v5308 = vrot.slane %v5303, %v5307
    %v5309 = vlaneseq
    %v5310 = vshrl.u32 %v5309, 7
    %v5311 = vsub.s32 1, %v5310
    %v5312 = vrot.slane %v5303, %v5311
    %v5315 = vadd.f32 %v5301, %v5308
    %v5316 = vadd.f32 %v5302, %v5312
    %v5317 = vmax.f32 %v5315, 0.0
    %v5318 = vmax.f32 %v5316, 0.0
    %v5319 = vpack.c.bf16 %v5317, %v5317
    %v5320 = vpack.c.bf16 %v5318, %v5318
    %v5321 = vld [vmem:[%s77] sm:$0xff]
    %v5322 = vld [vmem:[%s77 + $0x8] sm:$0xff]
    %v5323 = vld [vmem:[%s77 + $0x10] sm:$0xff]
    %v5324 = vld [vmem:[%s77 + $0x18] sm:$0xff]
    %v5325 = vld [vmem:[%s77 + $0x20] sm:$0xff]
    %v5326 = vld [vmem:[%s77 + $0x28] sm:$0xff]
    %v5327 = vld [vmem:[%s77 + $0x30] sm:$0xff]
    %v5328 = vld [vmem:[%s77 + $0x38] sm:$0xff]
    %v5329 = vld [vmem:[%s77 + $0x40] sm:$0xff]
    %v5330 = vld [vmem:[%s77 + $0x48] sm:$0xff]
    %v5331 = vld [vmem:[%s77 + $0x50] sm:$0xff]
    %v5332 = vld [vmem:[%s77 + $0x58] sm:$0xff]
    %v5333 = vld [vmem:[%s77 + $0x60] sm:$0xff]
    %v5334 = vld [vmem:[%s77 + $0x68] sm:$0xff]
    %v5335 = vld [vmem:[%s77 + $0x70] sm:$0xff]
    %v5336 = vld [vmem:[%s77 + $0x78] sm:$0xff]
    %v5337 = vld [vmem:[%s77 + $0x80] sm:$0xff]
    %v5338 = vld [vmem:[%s77 + $0x88] sm:$0xff]
    %v5339 = vld [vmem:[%s77 + $0x90] sm:$0xff]
    %v5340 = vld [vmem:[%s77 + $0x98] sm:$0xff]
    %v5341 = vld [vmem:[%s77 + $0xa0] sm:$0xff]
    %v5342 = vld [vmem:[%s77 + $0xa8] sm:$0xff]
    %v5343 = vld [vmem:[%s77 + $0xb0] sm:$0xff]
    %v5344 = vld [vmem:[%s77 + $0xb8] sm:$0xff]
    %v5345 = vld [vmem:[%s77 + $0xc0] sm:$0xff]
    %v5346 = vld [vmem:[%s77 + $0xc8] sm:$0xff]
    %v5347 = vld [vmem:[%s77 + $0xd0] sm:$0xff]
    %v5348 = vld [vmem:[%s77 + $0xd8] sm:$0xff]
    %v5349 = vld [vmem:[%s77 + $0xe0] sm:$0xff]
    %v5350 = vld [vmem:[%s77 + $0xe8] sm:$0xff]
    %v5351 = vld [vmem:[%s77 + $0xf0] sm:$0xff]
    %v5352 = vld [vmem:[%s77 + $0xf8] sm:$0xff]
    %v5353 = vld [vmem:[%s77 + $0x100] sm:$0xff]
    %v5354 = vld [vmem:[%s77 + $0x108] sm:$0xff]
    %v5355 = vld [vmem:[%s77 + $0x110] sm:$0xff]
    %v5356 = vld [vmem:[%s77 + $0x118] sm:$0xff]
    %v5357 = vld [vmem:[%s77 + $0x120] sm:$0xff]
    %v5358 = vld [vmem:[%s77 + $0x128] sm:$0xff]
    %v5359 = vld [vmem:[%s77 + $0x130] sm:$0xff]
    %v5360 = vld [vmem:[%s77 + $0x138] sm:$0xff]
    %v5361 = vld [vmem:[%s77 + $0x140] sm:$0xff]
    %v5362 = vld [vmem:[%s77 + $0x148] sm:$0xff]
    %v5363 = vld [vmem:[%s77 + $0x150] sm:$0xff]
    %v5364 = vld [vmem:[%s77 + $0x158] sm:$0xff]
    %v5365 = vld [vmem:[%s77 + $0x160] sm:$0xff]
    %v5366 = vld [vmem:[%s77 + $0x168] sm:$0xff]
    %v5367 = vld [vmem:[%s77 + $0x170] sm:$0xff]
    %v5368 = vld [vmem:[%s77 + $0x178] sm:$0xff]
    %v5369 = vld [vmem:[%s77 + $0x180] sm:$0xff]
    %v5370 = vld [vmem:[%s77 + $0x188] sm:$0xff]
    %v5371 = vld [vmem:[%s77 + $0x190] sm:$0xff]
    %v5372 = vld [vmem:[%s77 + $0x198] sm:$0xff]
    %v5373 = vld [vmem:[%s77 + $0x1a0] sm:$0xff]
    %v5374 = vld [vmem:[%s77 + $0x1a8] sm:$0xff]
    %v5375 = vld [vmem:[%s77 + $0x1b0] sm:$0xff]
    %v5376 = vld [vmem:[%s77 + $0x1b8] sm:$0xff]
    %v5377 = vld [vmem:[%s77 + $0x1c0] sm:$0xff]
    %v5378 = vld [vmem:[%s77 + $0x1c8] sm:$0xff]
    %v5379 = vld [vmem:[%s77 + $0x1d0] sm:$0xff]
    %v5380 = vld [vmem:[%s77 + $0x1d8] sm:$0xff]
    %v5381 = vld [vmem:[%s77 + $0x1e0] sm:$0xff]
    %v5382 = vld [vmem:[%s77 + $0x1e8] sm:$0xff]
    %v5383 = vld [vmem:[%s77 + $0x1f0] sm:$0xff]
    %v5384 = vld [vmem:[%s77 + $0x1f8] sm:$0xff]
    %v5385 = vld [vmem:[%s77 + $0x200] sm:$0xff]
    %v5386 = vld [vmem:[%s77 + $0x208] sm:$0xff]
    %v5387 = vld [vmem:[%s77 + $0x210] sm:$0xff]
    %v5388 = vld [vmem:[%s77 + $0x218] sm:$0xff]
    %v5389 = vld [vmem:[%s77 + $0x220] sm:$0xff]
    %v5390 = vld [vmem:[%s77 + $0x228] sm:$0xff]
    %v5391 = vld [vmem:[%s77 + $0x230] sm:$0xff]
    %v5392 = vld [vmem:[%s77 + $0x238] sm:$0xff]
    %v5393 = vld [vmem:[%s77 + $0x240] sm:$0xff]
    %v5394 = vld [vmem:[%s77 + $0x248] sm:$0xff]
    %v5395 = vld [vmem:[%s77 + $0x250] sm:$0xff]
    %v5396 = vld [vmem:[%s77 + $0x258] sm:$0xff]
    %v5397 = vld [vmem:[%s77 + $0x260] sm:$0xff]
    %v5398 = vld [vmem:[%s77 + $0x268] sm:$0xff]
    %v5399 = vld [vmem:[%s77 + $0x270] sm:$0xff]
    %v5400 = vld [vmem:[%s77 + $0x278] sm:$0xff]
    %v5401 = vld [vmem:[%s77 + $0x280] sm:$0xff]
    %v5402 = vld [vmem:[%s77 + $0x288] sm:$0xff]
    %v5403 = vld [vmem:[%s77 + $0x290] sm:$0xff]
    %v5404 = vld [vmem:[%s77 + $0x298] sm:$0xff]
    %v5405 = vld [vmem:[%s77 + $0x2a0] sm:$0xff]
    %v5406 = vld [vmem:[%s77 + $0x2a8] sm:$0xff]
    %v5407 = vld [vmem:[%s77 + $0x2b0] sm:$0xff]
    %v5408 = vld [vmem:[%s77 + $0x2b8] sm:$0xff]
    %v5409 = vld [vmem:[%s77 + $0x2c0] sm:$0xff]
    %v5410 = vld [vmem:[%s77 + $0x2c8] sm:$0xff]
    %v5411 = vld [vmem:[%s77 + $0x2d0] sm:$0xff]
    %v5412 = vld [vmem:[%s77 + $0x2d8] sm:$0xff]
    %v5413 = vld [vmem:[%s77 + $0x2e0] sm:$0xff]
    %v5414 = vld [vmem:[%s77 + $0x2e8] sm:$0xff]
    %v5415 = vld [vmem:[%s77 + $0x2f0] sm:$0xff]
    %v5416 = vld [vmem:[%s77 + $0x2f8] sm:$0xff]
    %v5417 = vld [vmem:[%s77 + $0x300] sm:$0xff]
    %v5418 = vld [vmem:[%s77 + $0x308] sm:$0xff]
    %v5419 = vld [vmem:[%s77 + $0x310] sm:$0xff]
    %v5420 = vld [vmem:[%s77 + $0x318] sm:$0xff]
    %v5421 = vld [vmem:[%s77 + $0x320] sm:$0xff]
    %v5422 = vld [vmem:[%s77 + $0x328] sm:$0xff]
    %v5423 = vld [vmem:[%s77 + $0x330] sm:$0xff]
    %v5424 = vld [vmem:[%s77 + $0x338] sm:$0xff]
    %v5425 = vld [vmem:[%s77 + $0x340] sm:$0xff]
    %v5426 = vld [vmem:[%s77 + $0x348] sm:$0xff]
    %v5427 = vld [vmem:[%s77 + $0x350] sm:$0xff]
    %v5428 = vld [vmem:[%s77 + $0x358] sm:$0xff]
    %v5429 = vld [vmem:[%s77 + $0x360] sm:$0xff]
    %v5430 = vld [vmem:[%s77 + $0x368] sm:$0xff]
    %v5431 = vld [vmem:[%s77 + $0x370] sm:$0xff]
    %v5432 = vld [vmem:[%s77 + $0x378] sm:$0xff]
    %v5433 = vld [vmem:[%s77 + $0x380] sm:$0xff]
    %v5434 = vld [vmem:[%s77 + $0x388] sm:$0xff]
    %v5435 = vld [vmem:[%s77 + $0x390] sm:$0xff]
    %v5436 = vld [vmem:[%s77 + $0x398] sm:$0xff]
    %v5437 = vld [vmem:[%s77 + $0x3a0] sm:$0xff]
    %v5438 = vld [vmem:[%s77 + $0x3a8] sm:$0xff]
    %v5439 = vld [vmem:[%s77 + $0x3b0] sm:$0xff]
    %v5440 = vld [vmem:[%s77 + $0x3b8] sm:$0xff]
    %v5441 = vld [vmem:[%s77 + $0x3c0] sm:$0xff]
    %v5442 = vld [vmem:[%s77 + $0x3c8] sm:$0xff]
    %v5443 = vld [vmem:[%s77 + $0x3d0] sm:$0xff]
    %v5444 = vld [vmem:[%s77 + $0x3d8] sm:$0xff]
    %v5445 = vld [vmem:[%s77 + $0x3e0] sm:$0xff]
    %v5446 = vld [vmem:[%s77 + $0x3e8] sm:$0xff]
    %v5447 = vld [vmem:[%s77 + $0x3f0] sm:$0xff]
    %v5448 = vld [vmem:[%s77 + $0x3f8] sm:$0xff]
    %v5577 = vunpack.c.l.b16 %v5321
    %v5578 = vunpack.c.h.b16 %v5321
    %v5579 = vunpack.c.l.b16 %v5322
    %v5580 = vunpack.c.h.b16 %v5322
    %v5581 = vunpack.c.l.b16 %v5323
    %v5582 = vunpack.c.h.b16 %v5323
    %v5583 = vunpack.c.l.b16 %v5324
    %v5584 = vunpack.c.h.b16 %v5324
    %v5585 = vunpack.c.l.b16 %v5325
    %v5586 = vunpack.c.h.b16 %v5325
    %v5587 = vunpack.c.l.b16 %v5326
    %v5588 = vunpack.c.h.b16 %v5326
    %v5589 = vunpack.c.l.b16 %v5327
    %v5590 = vunpack.c.h.b16 %v5327
    %v5591 = vunpack.c.l.b16 %v5328
    %v5592 = vunpack.c.h.b16 %v5328
    %v5593 = vunpack.c.l.b16 %v5329
    %v5594 = vunpack.c.h.b16 %v5329
    %v5595 = vunpack.c.l.b16 %v5330
    %v5596 = vunpack.c.h.b16 %v5330
    %v5597 = vunpack.c.l.b16 %v5331
    %v5598 = vunpack.c.h.b16 %v5331
    %v5599 = vunpack.c.l.b16 %v5332
    %v5600 = vunpack.c.h.b16 %v5332
    %v5601 = vunpack.c.l.b16 %v5333
    %v5602 = vunpack.c.h.b16 %v5333
    %v5603 = vunpack.c.l.b16 %v5334
    %v5604 = vunpack.c.h.b16 %v5334
    %v5605 = vunpack.c.l.b16 %v5335
    %v5606 = vunpack.c.h.b16 %v5335
    %v5607 = vunpack.c.l.b16 %v5336
    %v5608 = vunpack.c.h.b16 %v5336
    %v5609 = vunpack.c.l.b16 %v5337
    %v5610 = vunpack.c.h.b16 %v5337
    %v5611 = vunpack.c.l.b16 %v5338
    %v5612 = vunpack.c.h.b16 %v5338
    %v5613 = vunpack.c.l.b16 %v5339
    %v5614 = vunpack.c.h.b16 %v5339
    %v5615 = vunpack.c.l.b16 %v5340
    %v5616 = vunpack.c.h.b16 %v5340
    %v5617 = vunpack.c.l.b16 %v5341
    %v5618 = vunpack.c.h.b16 %v5341
    %v5619 = vunpack.c.l.b16 %v5342
    %v5620 = vunpack.c.h.b16 %v5342
    %v5621 = vunpack.c.l.b16 %v5343
    %v5622 = vunpack.c.h.b16 %v5343
    %v5623 = vunpack.c.l.b16 %v5344
    %v5624 = vunpack.c.h.b16 %v5344
    %v5625 = vunpack.c.l.b16 %v5345
    %v5626 = vunpack.c.h.b16 %v5345
    %v5627 = vunpack.c.l.b16 %v5346
    %v5628 = vunpack.c.h.b16 %v5346
    %v5629 = vunpack.c.l.b16 %v5347
    %v5630 = vunpack.c.h.b16 %v5347
    %v5631 = vunpack.c.l.b16 %v5348
    %v5632 = vunpack.c.h.b16 %v5348
    %v5633 = vunpack.c.l.b16 %v5349
    %v5634 = vunpack.c.h.b16 %v5349
    %v5635 = vunpack.c.l.b16 %v5350
    %v5636 = vunpack.c.h.b16 %v5350
    %v5637 = vunpack.c.l.b16 %v5351
    %v5638 = vunpack.c.h.b16 %v5351
    %v5639 = vunpack.c.l.b16 %v5352
    %v5640 = vunpack.c.h.b16 %v5352
    %v5641 = vunpack.c.l.b16 %v5353
    %v5642 = vunpack.c.h.b16 %v5353
    %v5643 = vunpack.c.l.b16 %v5354
    %v5644 = vunpack.c.h.b16 %v5354
    %v5645 = vunpack.c.l.b16 %v5355
    %v5646 = vunpack.c.h.b16 %v5355
    %v5647 = vunpack.c.l.b16 %v5356
    %v5648 = vunpack.c.h.b16 %v5356
    %v5649 = vunpack.c.l.b16 %v5357
    %v5650 = vunpack.c.h.b16 %v5357
    %v5651 = vunpack.c.l.b16 %v5358
    %v5652 = vunpack.c.h.b16 %v5358
    %v5653 = vunpack.c.l.b16 %v5359
    %v5654 = vunpack.c.h.b16 %v5359
    %v5655 = vunpack.c.l.b16 %v5360
    %v5656 = vunpack.c.h.b16 %v5360
    %v5657 = vunpack.c.l.b16 %v5361
    %v5658 = vunpack.c.h.b16 %v5361
    %v5659 = vunpack.c.l.b16 %v5362
    %v5660 = vunpack.c.h.b16 %v5362
    %v5661 = vunpack.c.l.b16 %v5363
    %v5662 = vunpack.c.h.b16 %v5363
    %v5663 = vunpack.c.l.b16 %v5364
    %v5664 = vunpack.c.h.b16 %v5364
    %v5665 = vunpack.c.l.b16 %v5365
    %v5666 = vunpack.c.h.b16 %v5365
    %v5667 = vunpack.c.l.b16 %v5366
    %v5668 = vunpack.c.h.b16 %v5366
    %v5669 = vunpack.c.l.b16 %v5367
    %v5670 = vunpack.c.h.b16 %v5367
    %v5671 = vunpack.c.l.b16 %v5368
    %v5672 = vunpack.c.h.b16 %v5368
    %v5673 = vunpack.c.l.b16 %v5369
    %v5674 = vunpack.c.h.b16 %v5369
    %v5675 = vunpack.c.l.b16 %v5370
    %v5676 = vunpack.c.h.b16 %v5370
    %v5677 = vunpack.c.l.b16 %v5371
    %v5678 = vunpack.c.h.b16 %v5371
    %v5679 = vunpack.c.l.b16 %v5372
    %v5680 = vunpack.c.h.b16 %v5372
    %v5681 = vunpack.c.l.b16 %v5373
    %v5682 = vunpack.c.h.b16 %v5373
    %v5683 = vunpack.c.l.b16 %v5374
    %v5684 = vunpack.c.h.b16 %v5374
    %v5685 = vunpack.c.l.b16 %v5375
    %v5686 = vunpack.c.h.b16 %v5375
    %v5687 = vunpack.c.l.b16 %v5376
    %v5688 = vunpack.c.h.b16 %v5376
    %v5689 = vunpack.c.l.b16 %v5377
    %v5690 = vunpack.c.h.b16 %v5377
    %v5691 = vunpack.c.l.b16 %v5378
    %v5692 = vunpack.c.h.b16 %v5378
    %v5693 = vunpack.c.l.b16 %v5379
    %v5694 = vunpack.c.h.b16 %v5379
    %v5695 = vunpack.c.l.b16 %v5380
    %v5696 = vunpack.c.h.b16 %v5380
    %v5697 = vunpack.c.l.b16 %v5381
    %v5698 = vunpack.c.h.b16 %v5381
    %v5699 = vunpack.c.l.b16 %v5382
    %v5700 = vunpack.c.h.b16 %v5382
    %v5701 = vunpack.c.l.b16 %v5383
    %v5702 = vunpack.c.h.b16 %v5383
    %v5703 = vunpack.c.l.b16 %v5384
    %v5704 = vunpack.c.h.b16 %v5384
    %v5705 = vunpack.c.l.b16 %v5385
    %v5706 = vunpack.c.h.b16 %v5385
    %v5707 = vunpack.c.l.b16 %v5386
    %v5708 = vunpack.c.h.b16 %v5386
    %v5709 = vunpack.c.l.b16 %v5387
    %v5710 = vunpack.c.h.b16 %v5387
    %v5711 = vunpack.c.l.b16 %v5388
    %v5712 = vunpack.c.h.b16 %v5388
    %v5713 = vunpack.c.l.b16 %v5389
    %v5714 = vunpack.c.h.b16 %v5389
    %v5715 = vunpack.c.l.b16 %v5390
    %v5716 = vunpack.c.h.b16 %v5390
    %v5717 = vunpack.c.l.b16 %v5391
    %v5718 = vunpack.c.h.b16 %v5391
    %v5719 = vunpack.c.l.b16 %v5392
    %v5720 = vunpack.c.h.b16 %v5392
    %v5721 = vunpack.c.l.b16 %v5393
    %v5722 = vunpack.c.h.b16 %v5393
    %v5723 = vunpack.c.l.b16 %v5394
    %v5724 = vunpack.c.h.b16 %v5394
    %v5725 = vunpack.c.l.b16 %v5395
    %v5726 = vunpack.c.h.b16 %v5395
    %v5727 = vunpack.c.l.b16 %v5396
    %v5728 = vunpack.c.h.b16 %v5396
    %v5729 = vunpack.c.l.b16 %v5397
    %v5730 = vunpack.c.h.b16 %v5397
    %v5731 = vunpack.c.l.b16 %v5398
    %v5732 = vunpack.c.h.b16 %v5398
    %v5733 = vunpack.c.l.b16 %v5399
    %v5734 = vunpack.c.h.b16 %v5399
    %v5735 = vunpack.c.l.b16 %v5400
    %v5736 = vunpack.c.h.b16 %v5400
    %v5737 = vunpack.c.l.b16 %v5401
    %v5738 = vunpack.c.h.b16 %v5401
    %v5739 = vunpack.c.l.b16 %v5402
    %v5740 = vunpack.c.h.b16 %v5402
    %v5741 = vunpack.c.l.b16 %v5403
    %v5742 = vunpack.c.h.b16 %v5403
    %v5743 = vunpack.c.l.b16 %v5404
    %v5744 = vunpack.c.h.b16 %v5404
    %v5745 = vunpack.c.l.b16 %v5405
    %v5746 = vunpack.c.h.b16 %v5405
    %v5747 = vunpack.c.l.b16 %v5406
    %v5748 = vunpack.c.h.b16 %v5406
    %v5749 = vunpack.c.l.b16 %v5407
    %v5750 = vunpack.c.h.b16 %v5407
    %v5751 = vunpack.c.l.b16 %v5408
    %v5752 = vunpack.c.h.b16 %v5408
    %v5753 = vunpack.c.l.b16 %v5409
    %v5754 = vunpack.c.h.b16 %v5409
    %v5755 = vunpack.c.l.b16 %v5410
    %v5756 = vunpack.c.h.b16 %v5410
    %v5757 = vunpack.c.l.b16 %v5411
    %v5758 = vunpack.c.h.b16 %v5411
    %v5759 = vunpack.c.l.b16 %v5412
    %v5760 = vunpack.c.h.b16 %v5412
    %v5761 = vunpack.c.l.b16 %v5413
    %v5762 = vunpack.c.h.b16 %v5413
    %v5763 = vunpack.c.l.b16 %v5414
    %v5764 = vunpack.c.h.b16 %v5414
    %v5765 = vunpack.c.l.b16 %v5415
    %v5766 = vunpack.c.h.b16 %v5415
    %v5767 = vunpack.c.l.b16 %v5416
    %v5768 = vunpack.c.h.b16 %v5416
    %v5769 = vunpack.c.l.b16 %v5417
    %v5770 = vunpack.c.h.b16 %v5417
    %v5771 = vunpack.c.l.b16 %v5418
    %v5772 = vunpack.c.h.b16 %v5418
    %v5773 = vunpack.c.l.b16 %v5419
    %v5774 = vunpack.c.h.b16 %v5419
    %v5775 = vunpack.c.l.b16 %v5420
    %v5776 = vunpack.c.h.b16 %v5420
    %v5777 = vunpack.c.l.b16 %v5421
    %v5778 = vunpack.c.h.b16 %v5421
    %v5779 = vunpack.c.l.b16 %v5422
    %v5780 = vunpack.c.h.b16 %v5422
    %v5781 = vunpack.c.l.b16 %v5423
    %v5782 = vunpack.c.h.b16 %v5423
    %v5783 = vunpack.c.l.b16 %v5424
    %v5784 = vunpack.c.h.b16 %v5424
    %v5785 = vunpack.c.l.b16 %v5425
    %v5786 = vunpack.c.h.b16 %v5425
    %v5787 = vunpack.c.l.b16 %v5426
    %v5788 = vunpack.c.h.b16 %v5426
    %v5789 = vunpack.c.l.b16 %v5427
    %v5790 = vunpack.c.h.b16 %v5427
    %v5791 = vunpack.c.l.b16 %v5428
    %v5792 = vunpack.c.h.b16 %v5428
    %v5793 = vunpack.c.l.b16 %v5429
    %v5794 = vunpack.c.h.b16 %v5429
    %v5795 = vunpack.c.l.b16 %v5430
    %v5796 = vunpack.c.h.b16 %v5430
    %v5797 = vunpack.c.l.b16 %v5431
    %v5798 = vunpack.c.h.b16 %v5431
    %v5799 = vunpack.c.l.b16 %v5432
    %v5800 = vunpack.c.h.b16 %v5432
    %v5801 = vunpack.c.l.b16 %v5433
    %v5802 = vunpack.c.h.b16 %v5433
    %v5803 = vunpack.c.l.b16 %v5434
    %v5804 = vunpack.c.h.b16 %v5434
    %v5805 = vunpack.c.l.b16 %v5435
    %v5806 = vunpack.c.h.b16 %v5435
    %v5807 = vunpack.c.l.b16 %v5436
    %v5808 = vunpack.c.h.b16 %v5436
    %v5809 = vunpack.c.l.b16 %v5437
    %v5810 = vunpack.c.h.b16 %v5437
    %v5811 = vunpack.c.l.b16 %v5438
    %v5812 = vunpack.c.h.b16 %v5438
    %v5813 = vunpack.c.l.b16 %v5439
    %v5814 = vunpack.c.h.b16 %v5439
    %v5815 = vunpack.c.l.b16 %v5440
    %v5816 = vunpack.c.h.b16 %v5440
    %v5817 = vunpack.c.l.b16 %v5441
    %v5818 = vunpack.c.h.b16 %v5441
    %v5819 = vunpack.c.l.b16 %v5442
    %v5820 = vunpack.c.h.b16 %v5442
    %v5821 = vunpack.c.l.b16 %v5443
    %v5822 = vunpack.c.h.b16 %v5443
    %v5823 = vunpack.c.l.b16 %v5444
    %v5824 = vunpack.c.h.b16 %v5444
    %v5825 = vunpack.c.l.b16 %v5445
    %v5826 = vunpack.c.h.b16 %v5445
    %v5827 = vunpack.c.l.b16 %v5446
    %v5828 = vunpack.c.h.b16 %v5446
    %v5829 = vunpack.c.l.b16 %v5447
    %v5830 = vunpack.c.h.b16 %v5447
    %v5831 = vunpack.c.l.b16 %v5448
    %v5832 = vunpack.c.h.b16 %v5448
    %v5833 = vpack.c.b16 %v5585, %v5577
    %v5834 = vpack.c.b16 %v5586, %v5578
    %v5835 = vpack.c.b16 %v5587, %v5579
    %v5836 = vpack.c.b16 %v5588, %v5580
    %v5837 = vpack.c.b16 %v5589, %v5581
    %v5838 = vpack.c.b16 %v5590, %v5582
    %v5839 = vpack.c.b16 %v5591, %v5583
    %v5840 = vpack.c.b16 %v5592, %v5584
    %v5841 = vpack.c.b16 %v5601, %v5593
    %v5842 = vpack.c.b16 %v5602, %v5594
    %v5843 = vpack.c.b16 %v5603, %v5595
    %v5844 = vpack.c.b16 %v5604, %v5596
    %v5845 = vpack.c.b16 %v5605, %v5597
    %v5846 = vpack.c.b16 %v5606, %v5598
    %v5847 = vpack.c.b16 %v5607, %v5599
    %v5848 = vpack.c.b16 %v5608, %v5600
    %v5849 = vpack.c.b16 %v5617, %v5609
    %v5850 = vpack.c.b16 %v5618, %v5610
    %v5851 = vpack.c.b16 %v5619, %v5611
    %v5852 = vpack.c.b16 %v5620, %v5612
    %v5853 = vpack.c.b16 %v5621, %v5613
    %v5854 = vpack.c.b16 %v5622, %v5614
    %v5855 = vpack.c.b16 %v5623, %v5615
    %v5856 = vpack.c.b16 %v5624, %v5616
    %v5857 = vpack.c.b16 %v5633, %v5625
    %v5858 = vpack.c.b16 %v5634, %v5626
    %v5859 = vpack.c.b16 %v5635, %v5627
    %v5860 = vpack.c.b16 %v5636, %v5628
    %v5861 = vpack.c.b16 %v5637, %v5629
    %v5862 = vpack.c.b16 %v5638, %v5630
    %v5863 = vpack.c.b16 %v5639, %v5631
    %v5864 = vpack.c.b16 %v5640, %v5632
    %v5865 = vpack.c.b16 %v5649, %v5641
    %v5866 = vpack.c.b16 %v5650, %v5642
    %v5867 = vpack.c.b16 %v5651, %v5643
    %v5868 = vpack.c.b16 %v5652, %v5644
    %v5869 = vpack.c.b16 %v5653, %v5645
    %v5870 = vpack.c.b16 %v5654, %v5646
    %v5871 = vpack.c.b16 %v5655, %v5647
    %v5872 = vpack.c.b16 %v5656, %v5648
    %v5873 = vpack.c.b16 %v5665, %v5657
    %v5874 = vpack.c.b16 %v5666, %v5658
    %v5875 = vpack.c.b16 %v5667, %v5659
    %v5876 = vpack.c.b16 %v5668, %v5660
    %v5877 = vpack.c.b16 %v5669, %v5661
    %v5878 = vpack.c.b16 %v5670, %v5662
    %v5879 = vpack.c.b16 %v5671, %v5663
    %v5880 = vpack.c.b16 %v5672, %v5664
    %v5881 = vpack.c.b16 %v5681, %v5673
    %v5882 = vpack.c.b16 %v5682, %v5674
    %v5883 = vpack.c.b16 %v5683, %v5675
    %v5884 = vpack.c.b16 %v5684, %v5676
    %v5885 = vpack.c.b16 %v5685, %v5677
    %v5886 = vpack.c.b16 %v5686, %v5678
    %v5887 = vpack.c.b16 %v5687, %v5679
    %v5888 = vpack.c.b16 %v5688, %v5680
    %v5889 = vpack.c.b16 %v5697, %v5689
    %v5890 = vpack.c.b16 %v5698, %v5690
    %v5891 = vpack.c.b16 %v5699, %v5691
    %v5892 = vpack.c.b16 %v5700, %v5692
    %v5893 = vpack.c.b16 %v5701, %v5693
    %v5894 = vpack.c.b16 %v5702, %v5694
    %v5895 = vpack.c.b16 %v5703, %v5695
    %v5896 = vpack.c.b16 %v5704, %v5696
    %v5897 = vpack.c.b16 %v5713, %v5705
    %v5898 = vpack.c.b16 %v5714, %v5706
    %v5899 = vpack.c.b16 %v5715, %v5707
    %v5900 = vpack.c.b16 %v5716, %v5708
    %v5901 = vpack.c.b16 %v5717, %v5709
    %v5902 = vpack.c.b16 %v5718, %v5710
    %v5903 = vpack.c.b16 %v5719, %v5711
    %v5904 = vpack.c.b16 %v5720, %v5712
    %v5905 = vpack.c.b16 %v5729, %v5721
    %v5906 = vpack.c.b16 %v5730, %v5722
    %v5907 = vpack.c.b16 %v5731, %v5723
    %v5908 = vpack.c.b16 %v5732, %v5724
    %v5909 = vpack.c.b16 %v5733, %v5725
    %v5910 = vpack.c.b16 %v5734, %v5726
    %v5911 = vpack.c.b16 %v5735, %v5727
    %v5912 = vpack.c.b16 %v5736, %v5728
    %v5913 = vpack.c.b16 %v5745, %v5737
    %v5914 = vpack.c.b16 %v5746, %v5738
    %v5915 = vpack.c.b16 %v5747, %v5739
    %v5916 = vpack.c.b16 %v5748, %v5740
    %v5917 = vpack.c.b16 %v5749, %v5741
    %v5918 = vpack.c.b16 %v5750, %v5742
    %v5919 = vpack.c.b16 %v5751, %v5743
    %v5920 = vpack.c.b16 %v5752, %v5744
    %v5921 = vpack.c.b16 %v5761, %v5753
    %v5922 = vpack.c.b16 %v5762, %v5754
    %v5923 = vpack.c.b16 %v5763, %v5755
    %v5924 = vpack.c.b16 %v5764, %v5756
    %v5925 = vpack.c.b16 %v5765, %v5757
    %v5926 = vpack.c.b16 %v5766, %v5758
    %v5927 = vpack.c.b16 %v5767, %v5759
    %v5928 = vpack.c.b16 %v5768, %v5760
    %v5929 = vpack.c.b16 %v5777, %v5769
    %v5930 = vpack.c.b16 %v5778, %v5770
    %v5931 = vpack.c.b16 %v5779, %v5771
    %v5932 = vpack.c.b16 %v5780, %v5772
    %v5933 = vpack.c.b16 %v5781, %v5773
    %v5934 = vpack.c.b16 %v5782, %v5774
    %v5935 = vpack.c.b16 %v5783, %v5775
    %v5936 = vpack.c.b16 %v5784, %v5776
    %v5937 = vpack.c.b16 %v5793, %v5785
    %v5938 = vpack.c.b16 %v5794, %v5786
    %v5939 = vpack.c.b16 %v5795, %v5787
    %v5940 = vpack.c.b16 %v5796, %v5788
    %v5941 = vpack.c.b16 %v5797, %v5789
    %v5942 = vpack.c.b16 %v5798, %v5790
    %v5943 = vpack.c.b16 %v5799, %v5791
    %v5944 = vpack.c.b16 %v5800, %v5792
    %v5945 = vpack.c.b16 %v5809, %v5801
    %v5946 = vpack.c.b16 %v5810, %v5802
    %v5947 = vpack.c.b16 %v5811, %v5803
    %v5948 = vpack.c.b16 %v5812, %v5804
    %v5949 = vpack.c.b16 %v5813, %v5805
    %v5950 = vpack.c.b16 %v5814, %v5806
    %v5951 = vpack.c.b16 %v5815, %v5807
    %v5952 = vpack.c.b16 %v5816, %v5808
    %v5953 = vpack.c.b16 %v5825, %v5817
    %v5954 = vpack.c.b16 %v5826, %v5818
    %v5955 = vpack.c.b16 %v5827, %v5819
    %v5956 = vpack.c.b16 %v5828, %v5820
    %v5957 = vpack.c.b16 %v5829, %v5821
    %v5958 = vpack.c.b16 %v5830, %v5822
    %v5959 = vpack.c.b16 %v5831, %v5823
    %v5960 = vpack.c.b16 %v5832, %v5824
    %6089 = vmatprep.subr.bf16.mxu0 %v5890
    %6090 = vmatpush1.bf16.msra.mxu0 %v5889
    %6091 = vmatprep.subr.bf16.mxu0 %v5882
    %6092 = vmatpush1.bf16.msra.mxu0 %v5881
    %6093 = vmatprep.subr.bf16.mxu0 %v5874
    %6094 = vmatpush1.bf16.msra.mxu0 %v5873
    %6095 = vmatprep.subr.bf16.mxu0 %v5866
    %6096 = vmatpush1.bf16.msra.mxu0 %v5865
    %6097 = vmatprep.subr.bf16.mxu0 %v5858
    %6098 = vmatpush1.bf16.msra.mxu0 %v5857
    %6099 = vmatprep.subr.bf16.mxu0 %v5850
    %6100 = vmatpush1.bf16.msra.mxu0 %v5849
    %6101 = vmatprep.subr.bf16.mxu0 %v5842
    %6102 = vmatpush1.bf16.msra.mxu0 %v5841
    %6103 = vmatprep.subr.bf16.mxu0 %v5834
    %6104 = vmatpush1.bf16.msra.mxu0 %v5833
    %6105 = vmatprep.subr.bf16.mxu0 %v5954
    %6106 = vmatpush2.bf16.msra.mxu0 %v5953
    %6107 = vmatprep.subr.bf16.mxu0 %v5946
    %6108 = vmatpush2.bf16.msra.mxu0 %v5945
    %6109 = vmatprep.subr.bf16.mxu0 %v5938
    %6110 = vmatpush2.bf16.msra.mxu0 %v5937
    %6111 = vmatprep.subr.bf16.mxu0 %v5930
    %6112 = vmatpush2.bf16.msra.mxu0 %v5929
    %6113 = vmatprep.subr.bf16.mxu0 %v5922
    %6114 = vmatpush2.bf16.msra.mxu0 %v5921
    %6115 = vmatprep.subr.bf16.mxu0 %v5914
    %6116 = vmatpush2.bf16.msra.mxu0 %v5913
    %6117 = vmatprep.subr.bf16.mxu0 %v5906
    %6118 = vmatpush2.bf16.msra.mxu0 %v5905
    %6119 = vmatprep.subr.bf16.mxu0 %v5898
    %6120 = vmatpush2.bf16.msra.mxu0 %v5897
    %6121 = vmatprep.mubr.bf16.mxu0 %v5320
    %6122 = vmatmul.mubr.bf16.gmra.mxu0 %v5319
    %v6123 = vpop.f32.mrf.mxu0
    %v6124 = vadd.f32 0.0, %v6123
    %v6125 = vpop.f32.mrf.mxu0
    %v6126 = vadd.f32 0.0, %v6125
    %v6127 = vpop.f32.mrf.mxu0
    %v6128 = vpop.f32.mrf.mxu0
    %6129 = vdwg.mxu0
    %6130 = vmatprep.subr.bf16.mxu0 %v5892
    %6131 = vmatpush1.bf16.msra.mxu0 %v5891
    %6132 = vmatprep.subr.bf16.mxu0 %v5884
    %6133 = vmatpush1.bf16.msra.mxu0 %v5883
    %6134 = vmatprep.subr.bf16.mxu0 %v5876
    %6135 = vmatpush1.bf16.msra.mxu0 %v5875
    %6136 = vmatprep.subr.bf16.mxu0 %v5868
    %6137 = vmatpush1.bf16.msra.mxu0 %v5867
    %6138 = vmatprep.subr.bf16.mxu0 %v5860
    %6139 = vmatpush1.bf16.msra.mxu0 %v5859
    %6140 = vmatprep.subr.bf16.mxu0 %v5852
    %6141 = vmatpush1.bf16.msra.mxu0 %v5851
    %6142 = vmatprep.subr.bf16.mxu0 %v5844
    %6143 = vmatpush1.bf16.msra.mxu0 %v5843
    %6144 = vmatprep.subr.bf16.mxu0 %v5836
    %6145 = vmatpush1.bf16.msra.mxu0 %v5835
    %6146 = vmatprep.subr.bf16.mxu0 %v5956
    %6147 = vmatpush2.bf16.msra.mxu0 %v5955
    %6148 = vmatprep.subr.bf16.mxu0 %v5948
    %6149 = vmatpush2.bf16.msra.mxu0 %v5947
    %6150 = vmatprep.subr.bf16.mxu0 %v5940
    %6151 = vmatpush2.bf16.msra.mxu0 %v5939
    %6152 = vmatprep.subr.bf16.mxu0 %v5932
    %6153 = vmatpush2.bf16.msra.mxu0 %v5931
    %6154 = vmatprep.subr.bf16.mxu0 %v5924
    %6155 = vmatpush2.bf16.msra.mxu0 %v5923
    %6156 = vmatprep.subr.bf16.mxu0 %v5916
    %6157 = vmatpush2.bf16.msra.mxu0 %v5915
    %6158 = vmatprep.subr.bf16.mxu0 %v5908
    %6159 = vmatpush2.bf16.msra.mxu0 %v5907
    %6160 = vmatprep.subr.bf16.mxu0 %v5900
    %6161 = vmatpush2.bf16.msra.mxu0 %v5899
    %6162 = vmatprep.mubr.bf16.mxu0 %v5320
    %6163 = vmatmul.mubr.bf16.gmra.mxu0 %v5319
    %v6164 = vpop.f32.mrf.mxu0
    %v6165 = vadd.f32 0.0, %v6164
    %v6166 = vpop.f32.mrf.mxu0
    %v6167 = vadd.f32 0.0, %v6166
    %v6168 = vpop.f32.mrf.mxu0
    %v6169 = vpop.f32.mrf.mxu0
    %6170 = vdwg.mxu0
    %6171 = vmatprep.subr.bf16.mxu0 %v5894
    %6172 = vmatpush1.bf16.msra.mxu0 %v5893
    %6173 = vmatprep.subr.bf16.mxu0 %v5886
    %6174 = vmatpush1.bf16.msra.mxu0 %v5885
    %6175 = vmatprep.subr.bf16.mxu0 %v5878
    %6176 = vmatpush1.bf16.msra.mxu0 %v5877
    %6177 = vmatprep.subr.bf16.mxu0 %v5870
    %6178 = vmatpush1.bf16.msra.mxu0 %v5869
    %6179 = vmatprep.subr.bf16.mxu0 %v5862
    %6180 = vmatpush1.bf16.msra.mxu0 %v5861
    %6181 = vmatprep.subr.bf16.mxu0 %v5854
    %6182 = vmatpush1.bf16.msra.mxu0 %v5853
    %6183 = vmatprep.subr.bf16.mxu0 %v5846
    %6184 = vmatpush1.bf16.msra.mxu0 %v5845
    %6185 = vmatprep.subr.bf16.mxu0 %v5838
    %6186 = vmatpush1.bf16.msra.mxu0 %v5837
    %6187 = vmatprep.subr.bf16.mxu0 %v5958
    %6188 = vmatpush2.bf16.msra.mxu0 %v5957
    %6189 = vmatprep.subr.bf16.mxu0 %v5950
    %6190 = vmatpush2.bf16.msra.mxu0 %v5949
    %6191 = vmatprep.subr.bf16.mxu0 %v5942
    %6192 = vmatpush2.bf16.msra.mxu0 %v5941
    %6193 = vmatprep.subr.bf16.mxu0 %v5934
    %6194 = vmatpush2.bf16.msra.mxu0 %v5933
    %6195 = vmatprep.subr.bf16.mxu0 %v5926
    %6196 = vmatpush2.bf16.msra.mxu0 %v5925
    %6197 = vmatprep.subr.bf16.mxu0 %v5918
    %6198 = vmatpush2.bf16.msra.mxu0 %v5917
    %6199 = vmatprep.subr.bf16.mxu0 %v5910
    %6200 = vmatpush2.bf16.msra.mxu0 %v5909
    %6201 = vmatprep.subr.bf16.mxu0 %v5902
    %6202 = vmatpush2.bf16.msra.mxu0 %v5901
    %6203 = vmatprep.mubr.bf16.mxu0 %v5320
    %6204 = vmatmul.mubr.bf16.gmra.mxu0 %v5319
    %v6205 = vpop.f32.mrf.mxu0
    %v6206 = vadd.f32 0.0, %v6205
    %v6207 = vpop.f32.mrf.mxu0
    %v6208 = vadd.f32 0.0, %v6207
    %v6209 = vpop.f32.mrf.mxu0
    %v6210 = vpop.f32.mrf.mxu0
    %6211 = vdwg.mxu0
    %6212 = vmatprep.subr.bf16.mxu0 %v5896
    %6213 = vmatpush1.bf16.msra.mxu0 %v5895
    %6214 = vmatprep.subr.bf16.mxu0 %v5888
    %6215 = vmatpush1.bf16.msra.mxu0 %v5887
    %6216 = vmatprep.subr.bf16.mxu0 %v5880
    %6217 = vmatpush1.bf16.msra.mxu0 %v5879
    %6218 = vmatprep.subr.bf16.mxu0 %v5872
    %6219 = vmatpush1.bf16.msra.mxu0 %v5871
    %6220 = vmatprep.subr.bf16.mxu0 %v5864
    %6221 = vmatpush1.bf16.msra.mxu0 %v5863
    %6222 = vmatprep.subr.bf16.mxu0 %v5856
    %6223 = vmatpush1.bf16.msra.mxu0 %v5855
    %6224 = vmatprep.subr.bf16.mxu0 %v5848
    %6225 = vmatpush1.bf16.msra.mxu0 %v5847
    %6226 = vmatprep.subr.bf16.mxu0 %v5840
    %6227 = vmatpush1.bf16.msra.mxu0 %v5839
    %6228 = vmatprep.subr.bf16.mxu0 %v5960
    %6229 = vmatpush2.bf16.msra.mxu0 %v5959
    %6230 = vmatprep.subr.bf16.mxu0 %v5952
    %6231 = vmatpush2.bf16.msra.mxu0 %v5951
    %6232 = vmatprep.subr.bf16.mxu0 %v5944
    %6233 = vmatpush2.bf16.msra.mxu0 %v5943
    %6234 = vmatprep.subr.bf16.mxu0 %v5936
    %6235 = vmatpush2.bf16.msra.mxu0 %v5935
    %6236 = vmatprep.subr.bf16.mxu0 %v5928
    %6237 = vmatpush2.bf16.msra.mxu0 %v5927
    %6238 = vmatprep.subr.bf16.mxu0 %v5920
    %6239 = vmatpush2.bf16.msra.mxu0 %v5919
    %6240 = vmatprep.subr.bf16.mxu0 %v5912
    %6241 = vmatpush2.bf16.msra.mxu0 %v5911
    %6242 = vmatprep.subr.bf16.mxu0 %v5904
    %6243 = vmatpush2.bf16.msra.mxu0 %v5903
    %6244 = vmatprep.mubr.bf16.mxu0 %v5320
    %6245 = vmatmul.mubr.bf16.gmra.mxu0 %v5319
    %v6246 = vpop.f32.mrf.mxu0
    %v6247 = vadd.f32 0.0, %v6246
    %v6248 = vpop.f32.mrf.mxu0
    %v6249 = vadd.f32 0.0, %v6248
    %v6250 = vpop.f32.mrf.mxu0
    %v6251 = vpop.f32.mrf.mxu0
    %6252 = vdwg.mxu0
    %v6253 = vld [vmem:[%s79] sm:$0xff]
    %v6255 = vlaneseq
    %v6256 = vshrl.u32 %v6255, 7
    %v6257 = vsub.s32 0, %v6256
    %v6258 = vrot.slane %v6253, %v6257
    %v6259 = vlaneseq
    %v6260 = vshrl.u32 %v6259, 7
    %v6261 = vsub.s32 1, %v6260
    %v6262 = vrot.slane %v6253, %v6261
    %v6263 = vlaneseq
    %v6264 = vshrl.u32 %v6263, 7
    %v6265 = vsub.s32 2, %v6264
    %v6266 = vrot.slane %v6253, %v6265
    %v6267 = vlaneseq
    %v6268 = vshrl.u32 %v6267, 7
    %v6269 = vsub.s32 3, %v6268
    %v6270 = vrot.slane %v6253, %v6269
    %v6271 = vlaneseq
    %v6272 = vshrl.u32 %v6271, 7
    %v6273 = vsub.s32 4, %v6272
    %v6274 = vrot.slane %v6253, %v6273
    %v6275 = vlaneseq
    %v6276 = vshrl.u32 %v6275, 7
    %v6277 = vsub.s32 5, %v6276
    %v6278 = vrot.slane %v6253, %v6277
    %v6279 = vlaneseq
    %v6280 = vshrl.u32 %v6279, 7
    %v6281 = vsub.s32 6, %v6280
    %v6282 = vrot.slane %v6253, %v6281
    %v6283 = vlaneseq
    %v6284 = vshrl.u32 %v6283, 7
    %v6285 = vsub.s32 7, %v6284
    %v6286 = vrot.slane %v6253, %v6285
    %v6295 = vmul.f32 %v6124, %v6258
    %v6296 = vmul.f32 %v6126, %v6262
    %v6297 = vmul.f32 %v6165, %v6266
    %v6298 = vmul.f32 %v6167, %v6270
    %v6299 = vmul.f32 %v6206, %v6274
    %v6300 = vmul.f32 %v6208, %v6278
    %v6301 = vmul.f32 %v6247, %v6282
    %v6302 = vmul.f32 %v6249, %v6286
    %v6303 = vld [vmem:[%s81] sm:$0xff]
    %v6305 = vlaneseq
    %v6306 = vshrl.u32 %v6305, 7
    %v6307 = vsub.s32 0, %v6306
    %v6308 = vrot.slane %v6303, %v6307
    %v6309 = vlaneseq
    %v6310 = vshrl.u32 %v6309, 7
    %v6311 = vsub.s32 1, %v6310
    %v6312 = vrot.slane %v6303, %v6311
    %v6313 = vlaneseq
    %v6314 = vshrl.u32 %v6313, 7
    %v6315 = vsub.s32 2, %v6314
    %v6316 = vrot.slane %v6303, %v6315
    %v6317 = vlaneseq
    %v6318 = vshrl.u32 %v6317, 7
    %v6319 = vsub.s32 3, %v6318
    %v6320 = vrot.slane %v6303, %v6319
    %v6321 = vlaneseq
    %v6322 = vshrl.u32 %v6321, 7
    %v6323 = vsub.s32 4, %v6322
    %v6324 = vrot.slane %v6303, %v6323
    %v6325 = vlaneseq
    %v6326 = vshrl.u32 %v6325, 7
    %v6327 = vsub.s32 5, %v6326
    %v6328 = vrot.slane %v6303, %v6327
    %v6329 = vlaneseq
    %v6330 = vshrl.u32 %v6329, 7
    %v6331 = vsub.s32 6, %v6330
    %v6332 = vrot.slane %v6303, %v6331
    %v6333 = vlaneseq
    %v6334 = vshrl.u32 %v6333, 7
    %v6335 = vsub.s32 7, %v6334
    %v6336 = vrot.slane %v6303, %v6335
    %v6345 = vadd.f32 %v6295, %v6308
    %v6346 = vadd.f32 %v6296, %v6312
    %v6347 = vadd.f32 %v6297, %v6316
    %v6348 = vadd.f32 %v6298, %v6320
    %v6349 = vadd.f32 %v6299, %v6324
    %v6350 = vadd.f32 %v6300, %v6328
    %v6351 = vadd.f32 %v6301, %v6332
    %v6352 = vadd.f32 %v6302, %v6336
    %v6353 = vmax.f32 %v6345, 0.0
    %v6354 = vmax.f32 %v6346, 0.0
    %v6355 = vmax.f32 %v6347, 0.0
    %v6356 = vmax.f32 %v6348, 0.0
    %v6357 = vmax.f32 %v6349, 0.0
    %v6358 = vmax.f32 %v6350, 0.0
    %v6359 = vmax.f32 %v6351, 0.0
    %v6360 = vmax.f32 %v6352, 0.0
    %v6361 = vpack.c.bf16 %v6353, %v6353
    %v6362 = vpack.c.bf16 %v6354, %v6354
    %v6363 = vpack.c.bf16 %v6355, %v6355
    %v6364 = vpack.c.bf16 %v6356, %v6356
    %v6365 = vpack.c.bf16 %v6357, %v6357
    %v6366 = vpack.c.bf16 %v6358, %v6358
    %v6367 = vpack.c.bf16 %v6359, %v6359
    %v6368 = vpack.c.bf16 %v6360, %v6360
    %v6369 = vld [vmem:[%s83] sm:$0xf]
    %v6370 = vld [vmem:[%s83 + $0x4] sm:$0xf]
    %v6371 = vld [vmem:[%s83 + $0x8] sm:$0xf]
    %v6372 = vld [vmem:[%s83 + $0xc] sm:$0xf]
    %v6373 = vld [vmem:[%s83 + $0x10] sm:$0xf]
    %v6374 = vld [vmem:[%s83 + $0x14] sm:$0xf]
    %v6375 = vld [vmem:[%s83 + $0x18] sm:$0xf]
    %v6376 = vld [vmem:[%s83 + $0x1c] sm:$0xf]
    %v6377 = vld [vmem:[%s83 + $0x20] sm:$0xf]
    %v6378 = vld [vmem:[%s83 + $0x24] sm:$0xf]
    %v6379 = vld [vmem:[%s83 + $0x28] sm:$0xf]
    %v6380 = vld [vmem:[%s83 + $0x2c] sm:$0xf]
    %v6381 = vld [vmem:[%s83 + $0x30] sm:$0xf]
    %v6382 = vld [vmem:[%s83 + $0x34] sm:$0xf]
    %v6383 = vld [vmem:[%s83 + $0x38] sm:$0xf]
    %v6384 = vld [vmem:[%s83 + $0x3c] sm:$0xf]
    %v6385 = vld [vmem:[%s83 + $0x40] sm:$0xf]
    %v6386 = vld [vmem:[%s83 + $0x44] sm:$0xf]
    %v6387 = vld [vmem:[%s83 + $0x48] sm:$0xf]
    %v6388 = vld [vmem:[%s83 + $0x4c] sm:$0xf]
    %v6389 = vld [vmem:[%s83 + $0x50] sm:$0xf]
    %v6390 = vld [vmem:[%s83 + $0x54] sm:$0xf]
    %v6391 = vld [vmem:[%s83 + $0x58] sm:$0xf]
    %v6392 = vld [vmem:[%s83 + $0x5c] sm:$0xf]
    %v6393 = vld [vmem:[%s83 + $0x60] sm:$0xf]
    %v6394 = vld [vmem:[%s83 + $0x64] sm:$0xf]
    %v6395 = vld [vmem:[%s83 + $0x68] sm:$0xf]
    %v6396 = vld [vmem:[%s83 + $0x6c] sm:$0xf]
    %v6397 = vld [vmem:[%s83 + $0x70] sm:$0xf]
    %v6398 = vld [vmem:[%s83 + $0x74] sm:$0xf]
    %v6399 = vld [vmem:[%s83 + $0x78] sm:$0xf]
    %v6400 = vld [vmem:[%s83 + $0x7c] sm:$0xf]
    %v6401 = vld [vmem:[%s83 + $0x80] sm:$0xf]
    %v6402 = vld [vmem:[%s83 + $0x84] sm:$0xf]
    %v6403 = vld [vmem:[%s83 + $0x88] sm:$0xf]
    %v6404 = vld [vmem:[%s83 + $0x8c] sm:$0xf]
    %v6405 = vld [vmem:[%s83 + $0x90] sm:$0xf]
    %v6406 = vld [vmem:[%s83 + $0x94] sm:$0xf]
    %v6407 = vld [vmem:[%s83 + $0x98] sm:$0xf]
    %v6408 = vld [vmem:[%s83 + $0x9c] sm:$0xf]
    %v6409 = vld [vmem:[%s83 + $0xa0] sm:$0xf]
    %v6410 = vld [vmem:[%s83 + $0xa4] sm:$0xf]
    %v6411 = vld [vmem:[%s83 + $0xa8] sm:$0xf]
    %v6412 = vld [vmem:[%s83 + $0xac] sm:$0xf]
    %v6413 = vld [vmem:[%s83 + $0xb0] sm:$0xf]
    %v6414 = vld [vmem:[%s83 + $0xb4] sm:$0xf]
    %v6415 = vld [vmem:[%s83 + $0xb8] sm:$0xf]
    %v6416 = vld [vmem:[%s83 + $0xbc] sm:$0xf]
    %v6417 = vld [vmem:[%s83 + $0xc0] sm:$0xf]
    %v6418 = vld [vmem:[%s83 + $0xc4] sm:$0xf]
    %v6419 = vld [vmem:[%s83 + $0xc8] sm:$0xf]
    %v6420 = vld [vmem:[%s83 + $0xcc] sm:$0xf]
    %v6421 = vld [vmem:[%s83 + $0xd0] sm:$0xf]
    %v6422 = vld [vmem:[%s83 + $0xd4] sm:$0xf]
    %v6423 = vld [vmem:[%s83 + $0xd8] sm:$0xf]
    %v6424 = vld [vmem:[%s83 + $0xdc] sm:$0xf]
    %v6425 = vld [vmem:[%s83 + $0xe0] sm:$0xf]
    %v6426 = vld [vmem:[%s83 + $0xe4] sm:$0xf]
    %v6427 = vld [vmem:[%s83 + $0xe8] sm:$0xf]
    %v6428 = vld [vmem:[%s83 + $0xec] sm:$0xf]
    %v6429 = vld [vmem:[%s83 + $0xf0] sm:$0xf]
    %v6430 = vld [vmem:[%s83 + $0xf4] sm:$0xf]
    %v6431 = vld [vmem:[%s83 + $0xf8] sm:$0xf]
    %v6432 = vld [vmem:[%s83 + $0xfc] sm:$0xf]
    %v6433 = vld [vmem:[%s83 + $0x100] sm:$0xf]
    %v6434 = vld [vmem:[%s83 + $0x104] sm:$0xf]
    %v6435 = vld [vmem:[%s83 + $0x108] sm:$0xf]
    %v6436 = vld [vmem:[%s83 + $0x10c] sm:$0xf]
    %v6437 = vld [vmem:[%s83 + $0x110] sm:$0xf]
    %v6438 = vld [vmem:[%s83 + $0x114] sm:$0xf]
    %v6439 = vld [vmem:[%s83 + $0x118] sm:$0xf]
    %v6440 = vld [vmem:[%s83 + $0x11c] sm:$0xf]
    %v6441 = vld [vmem:[%s83 + $0x120] sm:$0xf]
    %v6442 = vld [vmem:[%s83 + $0x124] sm:$0xf]
    %v6443 = vld [vmem:[%s83 + $0x128] sm:$0xf]
    %v6444 = vld [vmem:[%s83 + $0x12c] sm:$0xf]
    %v6445 = vld [vmem:[%s83 + $0x130] sm:$0xf]
    %v6446 = vld [vmem:[%s83 + $0x134] sm:$0xf]
    %v6447 = vld [vmem:[%s83 + $0x138] sm:$0xf]
    %v6448 = vld [vmem:[%s83 + $0x13c] sm:$0xf]
    %v6449 = vld [vmem:[%s83 + $0x140] sm:$0xf]
    %v6450 = vld [vmem:[%s83 + $0x144] sm:$0xf]
    %v6451 = vld [vmem:[%s83 + $0x148] sm:$0xf]
    %v6452 = vld [vmem:[%s83 + $0x14c] sm:$0xf]
    %v6453 = vld [vmem:[%s83 + $0x150] sm:$0xf]
    %v6454 = vld [vmem:[%s83 + $0x154] sm:$0xf]
    %v6455 = vld [vmem:[%s83 + $0x158] sm:$0xf]
    %v6456 = vld [vmem:[%s83 + $0x15c] sm:$0xf]
    %v6457 = vld [vmem:[%s83 + $0x160] sm:$0xf]
    %v6458 = vld [vmem:[%s83 + $0x164] sm:$0xf]
    %v6459 = vld [vmem:[%s83 + $0x168] sm:$0xf]
    %v6460 = vld [vmem:[%s83 + $0x16c] sm:$0xf]
    %v6461 = vld [vmem:[%s83 + $0x170] sm:$0xf]
    %v6462 = vld [vmem:[%s83 + $0x174] sm:$0xf]
    %v6463 = vld [vmem:[%s83 + $0x178] sm:$0xf]
    %v6464 = vld [vmem:[%s83 + $0x17c] sm:$0xf]
    %v6465 = vld [vmem:[%s83 + $0x180] sm:$0xf]
    %v6466 = vld [vmem:[%s83 + $0x184] sm:$0xf]
    %v6467 = vld [vmem:[%s83 + $0x188] sm:$0xf]
    %v6468 = vld [vmem:[%s83 + $0x18c] sm:$0xf]
    %v6469 = vld [vmem:[%s83 + $0x190] sm:$0xf]
    %v6470 = vld [vmem:[%s83 + $0x194] sm:$0xf]
    %v6471 = vld [vmem:[%s83 + $0x198] sm:$0xf]
    %v6472 = vld [vmem:[%s83 + $0x19c] sm:$0xf]
    %v6473 = vld [vmem:[%s83 + $0x1a0] sm:$0xf]
    %v6474 = vld [vmem:[%s83 + $0x1a4] sm:$0xf]
    %v6475 = vld [vmem:[%s83 + $0x1a8] sm:$0xf]
    %v6476 = vld [vmem:[%s83 + $0x1ac] sm:$0xf]
    %v6477 = vld [vmem:[%s83 + $0x1b0] sm:$0xf]
    %v6478 = vld [vmem:[%s83 + $0x1b4] sm:$0xf]
    %v6479 = vld [vmem:[%s83 + $0x1b8] sm:$0xf]
    %v6480 = vld [vmem:[%s83 + $0x1bc] sm:$0xf]
    %v6481 = vld [vmem:[%s83 + $0x1c0] sm:$0xf]
    %v6482 = vld [vmem:[%s83 + $0x1c4] sm:$0xf]
    %v6483 = vld [vmem:[%s83 + $0x1c8] sm:$0xf]
    %v6484 = vld [vmem:[%s83 + $0x1cc] sm:$0xf]
    %v6485 = vld [vmem:[%s83 + $0x1d0] sm:$0xf]
    %v6486 = vld [vmem:[%s83 + $0x1d4] sm:$0xf]
    %v6487 = vld [vmem:[%s83 + $0x1d8] sm:$0xf]
    %v6488 = vld [vmem:[%s83 + $0x1dc] sm:$0xf]
    %v6489 = vld [vmem:[%s83 + $0x1e0] sm:$0xf]
    %v6490 = vld [vmem:[%s83 + $0x1e4] sm:$0xf]
    %v6491 = vld [vmem:[%s83 + $0x1e8] sm:$0xf]
    %v6492 = vld [vmem:[%s83 + $0x1ec] sm:$0xf]
    %v6493 = vld [vmem:[%s83 + $0x1f0] sm:$0xf]
    %v6494 = vld [vmem:[%s83 + $0x1f4] sm:$0xf]
    %v6495 = vld [vmem:[%s83 + $0x1f8] sm:$0xf]
    %v6496 = vld [vmem:[%s83 + $0x1fc] sm:$0xf]
    %v6497 = vld [vmem:[%s85] sm:$0x1]
    %v6499 = vlaneseq
    %v6500 = vshrl.u32 %v6499, 7
    %v6501 = vsub.s32 0, %v6500
    %v6502 = vrot.slane %v6497, %v6501
    %v6632 = vunpack.c.l.b16 %v6369
    %v6633 = vunpack.c.l.b16 %v6370
    %v6634 = vunpack.c.l.b16 %v6371
    %v6635 = vunpack.c.l.b16 %v6372
    %v6636 = vunpack.c.l.b16 %v6373
    %v6637 = vunpack.c.l.b16 %v6374
    %v6638 = vunpack.c.l.b16 %v6375
    %v6639 = vunpack.c.l.b16 %v6376
    %v6640 = vunpack.c.l.b16 %v6377
    %v6641 = vunpack.c.l.b16 %v6378
    %v6642 = vunpack.c.l.b16 %v6379
    %v6643 = vunpack.c.l.b16 %v6380
    %v6644 = vunpack.c.l.b16 %v6381
    %v6645 = vunpack.c.l.b16 %v6382
    %v6646 = vunpack.c.l.b16 %v6383
    %v6647 = vunpack.c.l.b16 %v6384
    %v6648 = vunpack.c.l.b16 %v6385
    %v6649 = vunpack.c.l.b16 %v6386
    %v6650 = vunpack.c.l.b16 %v6387
    %v6651 = vunpack.c.l.b16 %v6388
    %v6652 = vunpack.c.l.b16 %v6389
    %v6653 = vunpack.c.l.b16 %v6390
    %v6654 = vunpack.c.l.b16 %v6391
    %v6655 = vunpack.c.l.b16 %v6392
    %v6656 = vunpack.c.l.b16 %v6393
    %v6657 = vunpack.c.l.b16 %v6394
    %v6658 = vunpack.c.l.b16 %v6395
    %v6659 = vunpack.c.l.b16 %v6396
    %v6660 = vunpack.c.l.b16 %v6397
    %v6661 = vunpack.c.l.b16 %v6398
    %v6662 = vunpack.c.l.b16 %v6399
    %v6663 = vunpack.c.l.b16 %v6400
    %v6664 = vunpack.c.l.b16 %v6401
    %v6665 = vunpack.c.l.b16 %v6402
    %v6666 = vunpack.c.l.b16 %v6403
    %v6667 = vunpack.c.l.b16 %v6404
    %v6668 = vunpack.c.l.b16 %v6405
    %v6669 = vunpack.c.l.b16 %v6406
    %v6670 = vunpack.c.l.b16 %v6407
    %v6671 = vunpack.c.l.b16 %v6408
    %v6672 = vunpack.c.l.b16 %v6409
    %v6673 = vunpack.c.l.b16 %v6410
    %v6674 = vunpack.c.l.b16 %v6411
    %v6675 = vunpack.c.l.b16 %v6412
    %v6676 = vunpack.c.l.b16 %v6413
    %v6677 = vunpack.c.l.b16 %v6414
    %v6678 = vunpack.c.l.b16 %v6415
    %v6679 = vunpack.c.l.b16 %v6416
    %v6680 = vunpack.c.l.b16 %v6417
    %v6681 = vunpack.c.l.b16 %v6418
    %v6682 = vunpack.c.l.b16 %v6419
    %v6683 = vunpack.c.l.b16 %v6420
    %v6684 = vunpack.c.l.b16 %v6421
    %v6685 = vunpack.c.l.b16 %v6422
    %v6686 = vunpack.c.l.b16 %v6423
    %v6687 = vunpack.c.l.b16 %v6424
    %v6688 = vunpack.c.l.b16 %v6425
    %v6689 = vunpack.c.l.b16 %v6426
    %v6690 = vunpack.c.l.b16 %v6427
    %v6691 = vunpack.c.l.b16 %v6428
    %v6692 = vunpack.c.l.b16 %v6429
    %v6693 = vunpack.c.l.b16 %v6430
    %v6694 = vunpack.c.l.b16 %v6431
    %v6695 = vunpack.c.l.b16 %v6432
    %v6696 = vunpack.c.l.b16 %v6433
    %v6697 = vunpack.c.l.b16 %v6434
    %v6698 = vunpack.c.l.b16 %v6435
    %v6699 = vunpack.c.l.b16 %v6436
    %v6700 = vunpack.c.l.b16 %v6437
    %v6701 = vunpack.c.l.b16 %v6438
    %v6702 = vunpack.c.l.b16 %v6439
    %v6703 = vunpack.c.l.b16 %v6440
    %v6704 = vunpack.c.l.b16 %v6441
    %v6705 = vunpack.c.l.b16 %v6442
    %v6706 = vunpack.c.l.b16 %v6443
    %v6707 = vunpack.c.l.b16 %v6444
    %v6708 = vunpack.c.l.b16 %v6445
    %v6709 = vunpack.c.l.b16 %v6446
    %v6710 = vunpack.c.l.b16 %v6447
    %v6711 = vunpack.c.l.b16 %v6448
    %v6712 = vunpack.c.l.b16 %v6449
    %v6713 = vunpack.c.l.b16 %v6450
    %v6714 = vunpack.c.l.b16 %v6451
    %v6715 = vunpack.c.l.b16 %v6452
    %v6716 = vunpack.c.l.b16 %v6453
    %v6717 = vunpack.c.l.b16 %v6454
    %v6718 = vunpack.c.l.b16 %v6455
    %v6719 = vunpack.c.l.b16 %v6456
    %v6720 = vunpack.c.l.b16 %v6457
    %v6721 = vunpack.c.l.b16 %v6458
    %v6722 = vunpack.c.l.b16 %v6459
    %v6723 = vunpack.c.l.b16 %v6460
    %v6724 = vunpack.c.l.b16 %v6461
    %v6725 = vunpack.c.l.b16 %v6462
    %v6726 = vunpack.c.l.b16 %v6463
    %v6727 = vunpack.c.l.b16 %v6464
    %v6728 = vunpack.c.l.b16 %v6465
    %v6729 = vunpack.c.l.b16 %v6466
    %v6730 = vunpack.c.l.b16 %v6467
    %v6731 = vunpack.c.l.b16 %v6468
    %v6732 = vunpack.c.l.b16 %v6469
    %v6733 = vunpack.c.l.b16 %v6470
    %v6734 = vunpack.c.l.b16 %v6471
    %v6735 = vunpack.c.l.b16 %v6472
    %v6736 = vunpack.c.l.b16 %v6473
    %v6737 = vunpack.c.l.b16 %v6474
    %v6738 = vunpack.c.l.b16 %v6475
    %v6739 = vunpack.c.l.b16 %v6476
    %v6740 = vunpack.c.l.b16 %v6477
    %v6741 = vunpack.c.l.b16 %v6478
    %v6742 = vunpack.c.l.b16 %v6479
    %v6743 = vunpack.c.l.b16 %v6480
    %v6744 = vunpack.c.l.b16 %v6481
    %v6745 = vunpack.c.l.b16 %v6482
    %v6746 = vunpack.c.l.b16 %v6483
    %v6747 = vunpack.c.l.b16 %v6484
    %v6748 = vunpack.c.l.b16 %v6485
    %v6749 = vunpack.c.l.b16 %v6486
    %v6750 = vunpack.c.l.b16 %v6487
    %v6751 = vunpack.c.l.b16 %v6488
    %v6752 = vunpack.c.l.b16 %v6489
    %v6753 = vunpack.c.l.b16 %v6490
    %v6754 = vunpack.c.l.b16 %v6491
    %v6755 = vunpack.c.l.b16 %v6492
    %v6756 = vunpack.c.l.b16 %v6493
    %v6757 = vunpack.c.l.b16 %v6494
    %v6758 = vunpack.c.l.b16 %v6495
    %v6759 = vunpack.c.l.b16 %v6496
    %v6760 = vpack.c.b16 %v6633, %v6632
    %v6761 = vpack.c.b16 %v6635, %v6634
    %v6762 = vpack.c.b16 %v6637, %v6636
    %v6763 = vpack.c.b16 %v6639, %v6638
    %v6764 = vpack.c.b16 %v6641, %v6640
    %v6765 = vpack.c.b16 %v6643, %v6642
    %v6766 = vpack.c.b16 %v6645, %v6644
    %v6767 = vpack.c.b16 %v6647, %v6646
    %v6768 = vpack.c.b16 %v6649, %v6648
    %v6769 = vpack.c.b16 %v6651, %v6650
    %v6770 = vpack.c.b16 %v6653, %v6652
    %v6771 = vpack.c.b16 %v6655, %v6654
    %v6772 = vpack.c.b16 %v6657, %v6656
    %v6773 = vpack.c.b16 %v6659, %v6658
    %v6774 = vpack.c.b16 %v6661, %v6660
    %v6775 = vpack.c.b16 %v6663, %v6662
    %v6776 = vpack.c.b16 %v6665, %v6664
    %v6777 = vpack.c.b16 %v6667, %v6666
    %v6778 = vpack.c.b16 %v6669, %v6668
    %v6779 = vpack.c.b16 %v6671, %v6670
    %v6780 = vpack.c.b16 %v6673, %v6672
    %v6781 = vpack.c.b16 %v6675, %v6674
    %v6782 = vpack.c.b16 %v6677, %v6676
    %v6783 = vpack.c.b16 %v6679, %v6678
    %v6784 = vpack.c.b16 %v6681, %v6680
    %v6785 = vpack.c.b16 %v6683, %v6682
    %v6786 = vpack.c.b16 %v6685, %v6684
    %v6787 = vpack.c.b16 %v6687, %v6686
    %v6788 = vpack.c.b16 %v6689, %v6688
    %v6789 = vpack.c.b16 %v6691, %v6690
    %v6790 = vpack.c.b16 %v6693, %v6692
    %v6791 = vpack.c.b16 %v6695, %v6694
    %v6792 = vpack.c.b16 %v6697, %v6696
    %v6793 = vpack.c.b16 %v6699, %v6698
    %v6794 = vpack.c.b16 %v6701, %v6700
    %v6795 = vpack.c.b16 %v6703, %v6702
    %v6796 = vpack.c.b16 %v6705, %v6704
    %v6797 = vpack.c.b16 %v6707, %v6706
    %v6798 = vpack.c.b16 %v6709, %v6708
    %v6799 = vpack.c.b16 %v6711, %v6710
    %v6800 = vpack.c.b16 %v6713, %v6712
    %v6801 = vpack.c.b16 %v6715, %v6714
    %v6802 = vpack.c.b16 %v6717, %v6716
    %v6803 = vpack.c.b16 %v6719, %v6718
    %v6804 = vpack.c.b16 %v6721, %v6720
    %v6805 = vpack.c.b16 %v6723, %v6722
    %v6806 = vpack.c.b16 %v6725, %v6724
    %v6807 = vpack.c.b16 %v6727, %v6726
    %v6808 = vpack.c.b16 %v6729, %v6728
    %v6809 = vpack.c.b16 %v6731, %v6730
    %v6810 = vpack.c.b16 %v6733, %v6732
    %v6811 = vpack.c.b16 %v6735, %v6734
    %v6812 = vpack.c.b16 %v6737, %v6736
    %v6813 = vpack.c.b16 %v6739, %v6738
    %v6814 = vpack.c.b16 %v6741, %v6740
    %v6815 = vpack.c.b16 %v6743, %v6742
    %v6816 = vpack.c.b16 %v6745, %v6744
    %v6817 = vpack.c.b16 %v6747, %v6746
    %v6818 = vpack.c.b16 %v6749, %v6748
    %v6819 = vpack.c.b16 %v6751, %v6750
    %v6820 = vpack.c.b16 %v6753, %v6752
    %v6821 = vpack.c.b16 %v6755, %v6754
    %v6822 = vpack.c.b16 %v6757, %v6756
    %v6823 = vpack.c.b16 %v6759, %v6758
    %6888 = vmatprep.subr.bf16.mxu0 0
    %6889 = vmatpush1.bf16.msra.mxu0 %v6767
    %6890 = vmatprep.subr.bf16.mxu0 0
    %6891 = vmatpush1.bf16.msra.mxu0 %v6766
    %6892 = vmatprep.subr.bf16.mxu0 0
    %6893 = vmatpush1.bf16.msra.mxu0 %v6765
    %6894 = vmatprep.subr.bf16.mxu0 0
    %6895 = vmatpush1.bf16.msra.mxu0 %v6764
    %6896 = vmatprep.subr.bf16.mxu0 0
    %6897 = vmatpush1.bf16.msra.mxu0 %v6763
    %6898 = vmatprep.subr.bf16.mxu0 0
    %6899 = vmatpush1.bf16.msra.mxu0 %v6762
    %6900 = vmatprep.subr.bf16.mxu0 0
    %6901 = vmatpush1.bf16.msra.mxu0 %v6761
    %6902 = vmatprep.subr.bf16.mxu0 0
    %6903 = vmatpush1.bf16.msra.mxu0 %v6760
    %6904 = vmatprep.subr.bf16.mxu0 0
    %6905 = vmatpush2.bf16.msra.mxu0 %v6775
    %6906 = vmatprep.subr.bf16.mxu0 0
    %6907 = vmatpush2.bf16.msra.mxu0 %v6774
    %6908 = vmatprep.subr.bf16.mxu0 0
    %6909 = vmatpush2.bf16.msra.mxu0 %v6773
    %6910 = vmatprep.subr.bf16.mxu0 0
    %6911 = vmatpush2.bf16.msra.mxu0 %v6772
    %6912 = vmatprep.subr.bf16.mxu0 0
    %6913 = vmatpush2.bf16.msra.mxu0 %v6771
    %6914 = vmatprep.subr.bf16.mxu0 0
    %6915 = vmatpush2.bf16.msra.mxu0 %v6770
    %6916 = vmatprep.subr.bf16.mxu0 0
    %6917 = vmatpush2.bf16.msra.mxu0 %v6769
    %6918 = vmatprep.subr.bf16.mxu0 0
    %6919 = vmatpush2.bf16.msra.mxu0 %v6768
    %6920 = vmatprep.mubr.bf16.mxu0 %v6362
    %6921 = vmatmul.mubr.bf16.gmra.mxu0 %v6361
    %v6922 = vpop.f32.mrf.mxu0
    %v6923 = vadd.f32 %v6502, %v6922
    %v6924 = vpop.f32.mrf.mxu0
    %v6925 = vpop.f32.mrf.mxu0
    %v6926 = vpop.f32.mrf.mxu0
    %6927 = vdwg.mxu0
    %6928 = vmatprep.subr.bf16.mxu0 0
    %6929 = vmatpush1.bf16.msra.mxu0 %v6783
    %6930 = vmatprep.subr.bf16.mxu0 0
    %6931 = vmatpush1.bf16.msra.mxu0 %v6782
    %6932 = vmatprep.subr.bf16.mxu0 0
    %6933 = vmatpush1.bf16.msra.mxu0 %v6781
    %6934 = vmatprep.subr.bf16.mxu0 0
    %6935 = vmatpush1.bf16.msra.mxu0 %v6780
    %6936 = vmatprep.subr.bf16.mxu0 0
    %6937 = vmatpush1.bf16.msra.mxu0 %v6779
    %6938 = vmatprep.subr.bf16.mxu0 0
    %6939 = vmatpush1.bf16.msra.mxu0 %v6778
    %6940 = vmatprep.subr.bf16.mxu0 0
    %6941 = vmatpush1.bf16.msra.mxu0 %v6777
    %6942 = vmatprep.subr.bf16.mxu0 0
    %6943 = vmatpush1.bf16.msra.mxu0 %v6776
    %6944 = vmatprep.subr.bf16.mxu0 0
    %6945 = vmatpush2.bf16.msra.mxu0 %v6791
    %6946 = vmatprep.subr.bf16.mxu0 0
    %6947 = vmatpush2.bf16.msra.mxu0 %v6790
    %6948 = vmatprep.subr.bf16.mxu0 0
    %6949 = vmatpush2.bf16.msra.mxu0 %v6789
    %6950 = vmatprep.subr.bf16.mxu0 0
    %6951 = vmatpush2.bf16.msra.mxu0 %v6788
    %6952 = vmatprep.subr.bf16.mxu0 0
    %6953 = vmatpush2.bf16.msra.mxu0 %v6787
    %6954 = vmatprep.subr.bf16.mxu0 0
    %6955 = vmatpush2.bf16.msra.mxu0 %v6786
    %6956 = vmatprep.subr.bf16.mxu0 0
    %6957 = vmatpush2.bf16.msra.mxu0 %v6785
    %6958 = vmatprep.subr.bf16.mxu0 0
    %6959 = vmatpush2.bf16.msra.mxu0 %v6784
    %6960 = vmatprep.mubr.bf16.mxu0 %v6364
    %6961 = vmatmul.mubr.bf16.gmra.mxu0 %v6363
    %v6962 = vpop.f32.mrf.mxu0
    %v6963 = vadd.f32 %v6923, %v6962
    %v6964 = vpop.f32.mrf.mxu0
    %v6965 = vpop.f32.mrf.mxu0
    %v6966 = vpop.f32.mrf.mxu0
    %6967 = vdwg.mxu0
    %6968 = vmatprep.subr.bf16.mxu0 0
    %6969 = vmatpush1.bf16.msra.mxu0 %v6799
    %6970 = vmatprep.subr.bf16.mxu0 0
    %6971 = vmatpush1.bf16.msra.mxu0 %v6798
    %6972 = vmatprep.subr.bf16.mxu0 0
    %6973 = vmatpush1.bf16.msra.mxu0 %v6797
    %6974 = vmatprep.subr.bf16.mxu0 0
    %6975 = vmatpush1.bf16.msra.mxu0 %v6796
    %6976 = vmatprep.subr.bf16.mxu0 0
    %6977 = vmatpush1.bf16.msra.mxu0 %v6795
    %6978 = vmatprep.subr.bf16.mxu0 0
    %6979 = vmatpush1.bf16.msra.mxu0 %v6794
    %6980 = vmatprep.subr.bf16.mxu0 0
    %6981 = vmatpush1.bf16.msra.mxu0 %v6793
    %6982 = vmatprep.subr.bf16.mxu0 0
    %6983 = vmatpush1.bf16.msra.mxu0 %v6792
    %6984 = vmatprep.subr.bf16.mxu0 0
    %6985 = vmatpush2.bf16.msra.mxu0 %v6807
    %6986 = vmatprep.subr.bf16.mxu0 0
    %6987 = vmatpush2.bf16.msra.mxu0 %v6806
    %6988 = vmatprep.subr.bf16.mxu0 0
    %6989 = vmatpush2.bf16.msra.mxu0 %v6805
    %6990 = vmatprep.subr.bf16.mxu0 0
    %6991 = vmatpush2.bf16.msra.mxu0 %v6804
    %6992 = vmatprep.subr.bf16.mxu0 0
    %6993 = vmatpush2.bf16.msra.mxu0 %v6803
    %6994 = vmatprep.subr.bf16.mxu0 0
    %6995 = vmatpush2.bf16.msra.mxu0 %v6802
    %6996 = vmatprep.subr.bf16.mxu0 0
    %6997 = vmatpush2.bf16.msra.mxu0 %v6801
    %6998 = vmatprep.subr.bf16.mxu0 0
    %6999 = vmatpush2.bf16.msra.mxu0 %v6800
    %7000 = vmatprep.mubr.bf16.mxu0 %v6366
    %7001 = vmatmul.mubr.bf16.gmra.mxu0 %v6365
    %v7002 = vpop.f32.mrf.mxu0
    %v7003 = vadd.f32 %v6963, %v7002
    %v7004 = vpop.f32.mrf.mxu0
    %v7005 = vpop.f32.mrf.mxu0
    %v7006 = vpop.f32.mrf.mxu0
    %7007 = vdwg.mxu0
    %7008 = vmatprep.subr.bf16.mxu0 0
    %7009 = vmatpush1.bf16.msra.mxu0 %v6815
    %7010 = vmatprep.subr.bf16.mxu0 0
    %7011 = vmatpush1.bf16.msra.mxu0 %v6814
    %7012 = vmatprep.subr.bf16.mxu0 0
    %7013 = vmatpush1.bf16.msra.mxu0 %v6813
    %7014 = vmatprep.subr.bf16.mxu0 0
    %7015 = vmatpush1.bf16.msra.mxu0 %v6812
    %7016 = vmatprep.subr.bf16.mxu0 0
    %7017 = vmatpush1.bf16.msra.mxu0 %v6811
    %7018 = vmatprep.subr.bf16.mxu0 0
    %7019 = vmatpush1.bf16.msra.mxu0 %v6810
    %7020 = vmatprep.subr.bf16.mxu0 0
    %7021 = vmatpush1.bf16.msra.mxu0 %v6809
    %7022 = vmatprep.subr.bf16.mxu0 0
    %7023 = vmatpush1.bf16.msra.mxu0 %v6808
    %7024 = vmatprep.subr.bf16.mxu0 0
    %7025 = vmatpush2.bf16.msra.mxu0 %v6823
    %7026 = vmatprep.subr.bf16.mxu0 0
    %7027 = vmatpush2.bf16.msra.mxu0 %v6822
    %7028 = vmatprep.subr.bf16.mxu0 0
    %7029 = vmatpush2.bf16.msra.mxu0 %v6821
    %7030 = vmatprep.subr.bf16.mxu0 0
    %7031 = vmatpush2.bf16.msra.mxu0 %v6820
    %7032 = vmatprep.subr.bf16.mxu0 0
    %7033 = vmatpush2.bf16.msra.mxu0 %v6819
    %7034 = vmatprep.subr.bf16.mxu0 0
    %7035 = vmatpush2.bf16.msra.mxu0 %v6818
    %7036 = vmatprep.subr.bf16.mxu0 0
    %7037 = vmatpush2.bf16.msra.mxu0 %v6817
    %7038 = vmatprep.subr.bf16.mxu0 0
    %7039 = vmatpush2.bf16.msra.mxu0 %v6816
    %7040 = vmatprep.mubr.bf16.mxu0 %v6368
    %7041 = vmatmul.mubr.bf16.gmra.mxu0 %v6367
    %v7042 = vpop.f32.mrf.mxu0
    %v7043 = vadd.f32 %v7003, %v7042
    %v7044 = vpop.f32.mrf.mxu0
    %v7045 = vpop.f32.mrf.mxu0
    %v7046 = vpop.f32.mrf.mxu0
    %7047 = vdwg.mxu0
    %7048 = vst [vmem:[#allocation40] sm:$0x3] %v7043
    // Predicated region
    $region270: #{forward.1} parent=1 // pred_check
      _
    $region271: #{forward.1} parent=1 // pred_check_branch
      %7050 = sbr.rel (0) target = $region273
    $region272: #{forward.1} parent=1 // pred_region
      %s7052 = ssub.s32 32, 32
      %7053 = vsyncadd [#allocation4], %s7052
      %s7055 = sshll.u32 [#allocation40], 4
      %s7056 = int_to_ptr.vmem [resolvable:$true] %s7055
      %7058 = dma.vmem_to_hbm [thread:$0]  %s7056, 32, %s87, [#allocation4]
    $region273: #{forward.1} parent=1 // pred_fallthru
      _
    // Predicated region
    $region274: #{forward.1} parent=1 // pred_check
      _
    $region275: #{forward.1} parent=1 // pred_check_branch
      %7060 = sbr.rel (0) target = $region277
    $region276: #{forward.1} parent=1 // pred_region
      %7061 = dma.done [#allocation4], 32
    $region277: #{forward.1} parent=1 // pred_fallthru
      _
    %7062 = vsyncpa [#allocation3], 1
    %7063 = vsyncpa [#allocation6], 1
    %7064 = vsyncpa [#allocation9], 1
    %7065 = vsyncpa [#allocation12], 1
    %7066 = vsyncpa [#allocation15], 1
    %7067 = vsyncpa [#allocation18], 1
    %7068 = vsyncpa [#allocation21], 1
    %7069 = vsyncpa [#allocation24], 1
    %7070 = vsyncpa [#allocation27], 1
    %7071 = vsyncpa [#allocation30], 1
    %7072 = vsyncpa [#allocation33], 1
    %7073 = vsyncpa [#allocation36], 1
    %7074 = vsyncpa [#allocation39], 1
    %7075 = vsyncpa [#allocation4], 1

</llo_original>
